<compile_context>
chip_gen: v7x
topology: tpu7x:2x2x1
jax: 0.10.0
libtpu: 0.0.40
codegen_flags: <defaults>
</compile_context>

<pallas_src>
import functools
import math

import jax
import jax.numpy as jnp
from jax.experimental import pallas as pl
from jax.experimental.pallas import tpu as pltpu

# bf16 MXU inputs (f32 accumulation).  Set to jnp.float32 for bit-exact f32.
MXU_DTYPE = jnp.bfloat16


def _pick_tile(n, cap):
    """Largest tile t <= cap with n % t == 0 (multiple of 8 when tiling)."""
    if n <= cap:
        return n
    t = cap - (cap % 8)
    while t >= 8:
        if n % t == 0:
            return t
        t -= 8
    return n


# ------------------------------ Pallas kernels ------------------------------

def _matmul_bias_act_kernel(a_ref, w_ref, b_ref, y_ref, *, act):
    y = jnp.dot(a_ref[...], w_ref[...],
                preferred_element_type=jnp.float32) + b_ref[...]
    if act == "relu":
        y = jnp.maximum(y, 0.0)
    elif act == "tanh":
        y = jnp.tanh(y)
    y_ref[...] = y


def _matmul_bias_stats_kernel(a_ref, w_ref, b_ref, y_ref, s_ref, q_ref, *,
                              tile_m, m_valid):
    # matmul + bias, plus per-tile channel sum / sum-of-squares for BatchNorm.
    y = jnp.dot(a_ref[...], w_ref[...],
                preferred_element_type=jnp.float32) + b_ref[...]
    y_ref[...] = y
    if m_valid is not None:      # ragged tail: keep padded rows out of stats
        row = (pl.program_id(0) * tile_m
               + jax.lax.broadcasted_iota(jnp.int32, y.shape, 0))
        y = jnp.where(row < m_valid, y, 0.0)
    s_ref[...] = jnp.sum(y, axis=0, keepdims=True)[None]       # (1, 1, N)
    q_ref[...] = jnp.sum(y * y, axis=0, keepdims=True)[None]   # (1, 1, N)


def pallas_matmul(cols, wmat, bias, *, act=None, with_stats=False):
    """(M,K) @ (K,N) + bias on the MXU, with optional activation epilogue or
    fused per-tile BatchNorm partial statistics."""
    M, K = cols.shape
    N = wmat.shape[1]
    Mp = ((M + 7) // 8) * 8
    a = cols if Mp == M else jnp.pad(cols, ((0, Mp - M), (0, 0)))
    a = a.astype(MXU_DTYPE)
    w = wmat.astype(MXU_DTYPE)
    b2 = bias.reshape(1, N).astype(jnp.float32)
    TM = _pick_tile(Mp, 1024)
    G = Mp // TM
    cparams = pltpu.CompilerParams(dimension_semantics=("parallel",))

    if not with_stats:
        y = pl.pallas_call(
            functools.partial(_matmul_bias_act_kernel, act=act),
            out_shape=jax.ShapeDtypeStruct((Mp, N), jnp.float32),
            grid=(G,),
            in_specs=[pl.BlockSpec((TM, K), lambda i: (i, 0)),
                      pl.BlockSpec((K, N), lambda i: (0, 0)),
                      pl.BlockSpec((1, N), lambda i: (0, 0))],
            out_specs=pl.BlockSpec((TM, N), lambda i: (i, 0)),
            compiler_params=cparams,
        )(a, w, b2)
        return y if Mp == M else y[:M]

    kern = functools.partial(_matmul_bias_stats_kernel, tile_m=TM,
                             m_valid=None if Mp == M else M)
    y, psum, psq = pl.pallas_call(
        kern,
        out_shape=(jax.ShapeDtypeStruct((Mp, N), jnp.float32),
                   jax.ShapeDtypeStruct((G, 1, N), jnp.float32),
                   jax.ShapeDtypeStruct((G, 1, N), jnp.float32)),
        grid=(G,),
        in_specs=[pl.BlockSpec((TM, K), lambda i: (i, 0)),
                  pl.BlockSpec((K, N), lambda i: (0, 0)),
                  pl.BlockSpec((1, N), lambda i: (0, 0))],
        out_specs=(pl.BlockSpec((TM, N), lambda i: (i, 0)),
                   pl.BlockSpec((1, 1, N), lambda i: (i, 0, 0)),
                   pl.BlockSpec((1, 1, N), lambda i: (i, 0, 0))),
        compiler_params=cparams,
    )(a, w, b2)
    y = y if Mp == M else y[:M]
    s = jnp.sum(psum[:, 0, :], axis=0)
    q = jnp.sum(psq[:, 0, :], axis=0)
    mean = s / M
    var = jnp.maximum(q / M - mean * mean, 0.0)   # biased (training-mode) var
    return y, mean, var


def _affine_act_kernel(*refs, act, has_res):
    if has_res:
        x_ref, s_ref, t_ref, r_ref, o_ref = refs
    else:
        x_ref, s_ref, t_ref, o_ref = refs
    y = x_ref[...] * s_ref[...] + t_ref[...]
    if act == "relu":
        y = jnp.maximum(y, 0.0)
    elif act == "tanh":
        y = jnp.tanh(y)
    if has_res:
        y = y + r_ref[...]
    o_ref[...] = y


def pallas_affine_act(x2, scale, shift, act, residual=None):
    R, L = x2.shape
    TR = _pick_tile(R, 2048)
    G = R // TR
    has_res = residual is not None
    in_specs = [pl.BlockSpec((TR, L), lambda i: (i, 0)),
                pl.BlockSpec((1, L), lambda i: (0, 0)),
                pl.BlockSpec((1, L), lambda i: (0, 0))]
    args = [x2, scale.reshape(1, L).astype(jnp.float32),
            shift.reshape(1, L).astype(jnp.float32)]
    if has_res:
        in_specs.append(pl.BlockSpec((TR, L), lambda i: (i, 0)))
        args.append(residual)
    return pl.pallas_call(
        functools.partial(_affine_act_kernel, act=act, has_res=has_res),
        out_shape=jax.ShapeDtypeStruct((R, L), jnp.float32),
        grid=(G,),
        in_specs=in_specs,
        out_specs=pl.BlockSpec((TR, L), lambda i: (i, 0)),
        compiler_params=pltpu.CompilerParams(
            dimension_semantics=("parallel",)),
    )(*args)


def affine_act_nhwc(x, scale, shift, act, residual=None):
    """y = act(x*scale + shift) [+ residual], channels-last; repacked to a
    lane-dense (M*C/128, 128) layout when C divides 128 (pure reshapes)."""
    N, H, W, C = x.shape
    M = N * H * W
    if C < 128 and 128 % C == 0 and (M * C) % 128 == 0:
        reps = 128 // C
        R, L = (M * C) // 128, 128
        x2 = x.reshape(R, L)
        s2, t2 = jnp.tile(scale, reps), jnp.tile(shift, reps)
        r2 = residual.reshape(R, L) if residual is not None else None
    else:
        R, L = M, C
        x2 = x.reshape(R, L)
        s2, t2 = scale, shift
        r2 = residual.reshape(R, L) if residual is not None else None
    y2 = pallas_affine_act(x2, s2, t2, act, r2)
    return y2.reshape(N, H, W, C)


def batchnorm_affine(y, mean, var, gamma, beta, act=None, residual=None,
                     eps=1e-5):
    # training-mode BatchNorm2d affine (batch statistics, biased variance)
    scale = gamma * jax.lax.rsqrt(var + eps)
    shift = beta - mean * scale
    return affine_act_nhwc(y, scale, shift, act, residual)


def _vq_kernel(z_ref, cb_ref, csqr_ref, idx_ref, codes_ref):
    # Matches VectorQuantization.forward (f32 distance math):
    #   dist = ||c||^2 + ||z||^2 - 2 z . c ; indices = first argmin over K
    z = z_ref[...]                       # (M, D)
    cb = cb_ref[...]                     # (K, D)
    M, D = z.shape
    K = cb.shape[0]
    z_sqr = jnp.sum(z * z, axis=1, keepdims=True)                     # (M,1)
    zc = jax.lax.dot_general(z, cb, (((1,), (1,)), ((), ())),
                             preferred_element_type=jnp.float32)      # (M,K)
    dist = z_sqr + csqr_ref[...] - 2.0 * zc
    dmin = jnp.min(dist, axis=1, keepdims=True)
    lane = jax.lax.broadcasted_iota(jnp.int32, (M, K), 1)
    idx = jnp.min(jnp.where(dist == dmin, lane, K), axis=1, keepdims=True)
    idx_ref[...] = idx
    onehot = (lane == idx).astype(jnp.float32)
    codes_ref[...] = jnp.dot(onehot, cb, preferred_element_type=jnp.float32)


def pallas_vq(z_flat, codebook):
    M, D = z_flat.shape
    K = codebook.shape[0]
    Mp = max(8, ((M + 7) // 8) * 8)
    z_p = z_flat if Mp == M else jnp.pad(z_flat, ((0, Mp - M), (0, 0)))
    c_sqr = jnp.sum(codebook * codebook, axis=1).reshape(1, K)  # const per fwd
    idx, codes = pl.pallas_call(
        _vq_kernel,
        out_shape=(jax.ShapeDtypeStruct((Mp, 1), jnp.int32),
                   jax.ShapeDtypeStruct((Mp, D), jnp.float32)),
        grid=(1,),
        in_specs=[pl.BlockSpec((Mp, D), lambda i: (0, 0)),
                  pl.BlockSpec((K, D), lambda i: (0, 0)),
                  pl.BlockSpec((1, K), lambda i: (0, 0))],
        out_specs=(pl.BlockSpec((Mp, 1), lambda i: (0, 0)),
                   pl.BlockSpec((Mp, D), lambda i: (0, 0))),
    )(z_p, codebook, c_sqr)
    return codes[:M], idx[:M, 0]


# -------------------------------- JAX glue -----------------------------------

def im2col(x, kh, kw, stride, pad):
    """x: (N,H,W,C) -> cols (N*Ho*Wo, kh*kw*C); column order (ki, kj, c)."""
    # TODO(synk): im2col patch gather kept as XLA glue; in-kernel gather via a
    # kernel-position grid axis is not implemented.
    if pad > 0:
        x = jnp.pad(x, ((0, 0), (pad, pad), (pad, pad), (0, 0)))
    N, Hp, Wp, C = x.shape
    Ho = (Hp - kh) // stride + 1
    Wo = (Wp - kw) // stride + 1
    patches = []
    for i in range(kh):
        for j in range(kw):
            patches.append(x[:, i:i + stride * (Ho - 1) + 1:stride,
                             j:j + stride * (Wo - 1) + 1:stride, :])
    cols = jnp.concatenate(patches, axis=-1)
    return cols.reshape(N * Ho * Wo, kh * kw * C), (N, Ho, Wo)


def conv2d(x, w, b, stride, pad, *, pre_relu=False, act=None, with_stats=False):
    # w: (Cout, Cin, kh, kw)   (PyTorch Conv2d layout)
    cout, cin, kh, kw = w.shape
    if pre_relu:                 # nn.ReLU preceding the conv (res blocks)
        x = jnp.maximum(x, 0.0)
    x = x.astype(MXU_DTYPE)
    cols, (N, Ho, Wo) = im2col(x, kh, kw, stride, pad)
    wmat = jnp.transpose(w, (2, 3, 1, 0)).reshape(kh * kw * cin, cout)
    out = pallas_matmul(cols, wmat, b, act=act, with_stats=with_stats)
    if with_stats:
        y, mean, var = out
        return y.reshape(N, Ho, Wo, cout), mean, var
    return out.reshape(N, Ho, Wo, cout)


def conv_transpose2d(x, w, b, stride, pad, *, pre_relu=False, act=None,
                     with_stats=False):
    # w: (Cin, Cout, kh, kw)   (PyTorch ConvTranspose2d layout)
    cin, cout, kh, kw = w.shape
    assert kh == kw, "square kernels only"
    if pre_relu:
        x = jnp.maximum(x, 0.0)
    x = x.astype(MXU_DTYPE)
    N, H, W, C = x.shape
    if stride > 1:
        xd = jnp.zeros((N, (H - 1) * stride + 1, (W - 1) * stride + 1, C),
                       x.dtype)
        xd = xd.at[:, ::stride, ::stride, :].set(x)
    else:
        xd = x
    eff_pad = kh - 1 - pad
    wmat = jnp.flip(w, (2, 3)).transpose(2, 3, 0, 1).reshape(kh * kw * cin,
                                                             cout)
    cols, (N2, Ho, Wo) = im2col(xd, kh, kw, 1, eff_pad)
    out = pallas_matmul(cols, wmat, b, act=act, with_stats=with_stats)
    if with_stats:
        y, mean, var = out
        return y.reshape(N2, Ho, Wo, cout), mean, var
    return out.reshape(N2, Ho, Wo, cout)


def avg_pool_4_2_1(x):
    # nn.AvgPool2d(4, 2, 1), count_include_pad=True.  Pure strided-slice sums
    # (fused by XLA); result feeds the fused affine kernel as the residual.
    x = x.astype(jnp.float32)
    xp = jnp.pad(x, ((0, 0), (1, 1), (1, 1), (0, 0)))
    N, Hp, Wp, C = xp.shape
    Ho = (Hp - 4) // 2 + 1
    Wo = (Wp - 4) // 2 + 1
    acc = jnp.zeros((N, Ho, Wo, C), jnp.float32)
    for i in range(4):
        for j in range(4):
            acc = acc + xp[:, i:i + 2 * (Ho - 1) + 1:2,
                           j:j + 2 * (Wo - 1) + 1:2, :]
    return acc / 16.0


def bilinear_up2(x):
    # TODO(synk): nn.Upsample(bilinear, x2) kept as jax.image.resize glue; no
    # dedicated Pallas kernel for the 2x bilinear interpolation.
    N, H, W, C = x.shape
    return jax.image.resize(x, (N, 2 * H, 2 * W, C), method="bilinear")


# ------------------------------ network blocks -------------------------------

def basic_enc_block(x, p):
    # out = [ReLU∘]BN(conv(x)); out += avgpool(x) if downsample
    y, mean, var = conv2d(x, p["w"], p["b"], 2, 1, with_stats=True)
    residual = avg_pool_4_2_1(x) if p["down"] else None
    act = None if p["is_last"] else "relu"
    return batchnorm_affine(y, mean, var, p["g"], p["be"], act, residual)


def res_block(x, p):
    # x + BN2(conv2(ReLU(BN1(conv1(ReLU(x))))))
    h, m1, v1 = conv2d(x, p["w1"], p["b1"], 1, 1, pre_relu=True,
                       with_stats=True)
    h = batchnorm_affine(h, m1, v1, p["g1"], p["be1"], "relu")
    h, m2, v2 = conv2d(h, p["w2"], p["b2"], 1, 0, with_stats=True)
    return batchnorm_affine(h, m2, v2, p["g2"], p["be2"], None, residual=x)


def basic_dec_block(x, p):
    if p["is_last"]:
        # last block is ConvTranspose only; decoder's trailing nn.Tanh() is
        # fused into the matmul epilogue.
        return conv_transpose2d(x, p["w"], p["b"], 2, 1, act="tanh")
    y, mean, var = conv_transpose2d(x, p["w"], p["b"], 2, 1, pre_relu=True,
                                    with_stats=True)
    residual = bilinear_up2(x) if p["up"] else None
    return batchnorm_affine(y, mean, var, p["g"], p["be"], None, residual)


def vqvae_forward(params, x_nchw):
    x = jnp.transpose(x_nchw, (0, 2, 3, 1)).astype(jnp.float32)  # NCHW -> NHWC
    h = x
    for p in params["enc_blocks"]:
        h = basic_enc_block(h, p)
    for p in params["enc_res"]:
        h = res_block(h, p)
    z_e_x = h                                                    # (N,Hl,Wl,D)
    N, Hl, Wl, D = z_e_x.shape
    codes, _indices = pallas_vq(z_e_x.reshape(-1, D), params["codebook"])
    z_q_x_st = codes.reshape(N, Hl, Wl, D)
    z_q_x = z_q_x_st  # straight-through and "bar" path share forward values
    h = z_q_x_st
    for p in params["dec_res"]:
        h = res_block(h, p)
    for p in params["dec_blocks"]:
        h = basic_dec_block(h, p)
    x_tilde = h                       # tanh already fused into the last block
    to_nchw = lambda t: jnp.transpose(t, (0, 3, 1, 2))
    return to_nchw(x_tilde), to_nchw(z_e_x), to_nchw(z_q_x)


# ------------------------------ parameter init -------------------------------

def init_params(key, input_dim, dim, K, num_cnn_blocks, num_res_blocks, ksize):
    keys = iter(jax.random.split(key, 8 * (num_cnn_blocks + num_res_blocks) + 8))

    def xavier(shape, fan_in, fan_out):
        bound = math.sqrt(6.0 / (fan_in + fan_out))
        return jax.random.uniform(next(keys), shape, jnp.float32, -bound, bound)

    def enc_block(cin, cout, down, is_last):
        return {"w": xavier((cout, cin, ksize, ksize),
                            cin * ksize * ksize, cout * ksize * ksize),
                "b": jnp.zeros((cout,), jnp.float32),
                "g": jnp.ones((cout,), jnp.float32),
                "be": jnp.zeros((cout,), jnp.float32),
                "down": down, "is_last": is_last}

    def dec_block(cin, cout, up, is_last):
        return {"w": xavier((cin, cout, ksize, ksize),
                            cout * ksize * ksize, cin * ksize * ksize),
                "b": jnp.zeros((cout,), jnp.float32),
                "g": jnp.ones((cout,), jnp.float32),
                "be": jnp.zeros((cout,), jnp.float32),
                "up": up, "is_last": is_last}

    def resb(d):
        return {"w1": xavier((d, d, 3, 3), d * 9, d * 9),
                "b1": jnp.zeros((d,), jnp.float32),
                "g1": jnp.ones((d,), jnp.float32),
                "be1": jnp.zeros((d,), jnp.float32),
                "w2": xavier((d, d, 1, 1), d, d),
                "b2": jnp.zeros((d,), jnp.float32),
                "g2": jnp.ones((d,), jnp.float32),
                "be2": jnp.zeros((d,), jnp.float32)}

    enc_blocks = [enc_block(input_dim, dim, False, False),
                  enc_block(dim, dim, False, False)]
    for _ in range(num_cnn_blocks - 3):
        enc_blocks.append(enc_block(dim, dim, True, False))
    enc_blocks.append(enc_block(dim, dim, True, True))
    enc_res = [resb(dim) for _ in range(num_res_blocks)]

    dec_res = [resb(dim) for _ in range(num_res_blocks)]
    dec_blocks = [dec_block(dim, dim, True, False)
                  for _ in range(num_cnn_blocks - 2)]
    dec_blocks.append(dec_block(dim, dim, False, False))
    dec_blocks.append(dec_block(dim, input_dim, False, True))

    codebook = jax.random.uniform(next(keys), (K, dim), jnp.float32,
                                  -1.0 / K, 1.0 / K)

    return {"enc_blocks": enc_blocks, "enc_res": enc_res,
            "dec_res": dec_res, "dec_blocks": dec_blocks, "codebook": codebook}


# ----------------------------------- main -------------------------------------

if __name__ == "__main__":
    # Small VectorQuantizedVAE(input_dim=3, dim=32, K=64, num_cnn_blocks=4,
    # num_res_blocks=1, kernel_size=4, arch='res')
    INPUT_DIM, DIM, K = 3, 32, 64
    NUM_CNN_BLOCKS, NUM_RES_BLOCKS, KSIZE = 4, 1, 4

    key = jax.random.PRNGKey(0)
    pkey, xkey = jax.random.split(key)
    params = init_params(pkey, INPUT_DIM, DIM, K,
                         NUM_CNN_BLOCKS, NUM_RES_BLOCKS, KSIZE)
    x = jax.random.normal(xkey, (2, INPUT_DIM, 32, 32), jnp.float32)  # NCHW

    fwd = jax.jit(lambda inp: vqvae_forward(params, inp))
    x_tilde, z_e_x, z_q_x = fwd(x)
    jax.block_until_ready((x_tilde, z_e_x, z_q_x))

    assert x_tilde.shape == x.shape                  # (2, 3, 32, 32)
    assert z_e_x.shape == (2, DIM, 2, 2)
    assert z_q_x.shape == (2, DIM, 2, 2)
    assert bool(jnp.all(jnp.isfinite(x_tilde)))
    assert bool(jnp.all(jnp.isfinite(z_e_x)))
    print("KERNEL_OK")
</pallas_src>

<mosaic_0001>
module attributes {stable_mosaic.version = 11 : i64} {
  func.func @_affine_act_kernel(%arg0: i32, %arg1: memref<128x128xf32, #tpu.memory_space<vmem>>, %arg2: memref<1x128xf32, #tpu.memory_space<vmem>>, %arg3: memref<1x128xf32, #tpu.memory_space<vmem>>, %arg4: memref<128x128xf32, #tpu.memory_space<vmem>>) attributes {dimension_semantics = [#tpu.dimension_semantics<parallel>], iteration_bounds = array<i64: 1>, scalar_prefetch = 0 : i64, scratch_operands = 0 : i64, tpu.core_type = #tpu.core_type<tc>, window_params = [{transform_indices = @transform_0, window_bounds = array<i64: 128, 128>}, {pipeline_mode = #tpu.pipeline_mode<synchronous>, transform_indices = @transform_1, window_bounds = array<i64: 1, 128>}, {pipeline_mode = #tpu.pipeline_mode<synchronous>, transform_indices = @transform_2, window_bounds = array<i64: 1, 128>}, {transform_indices = @transform_3, window_bounds = array<i64: 128, 128>}]} {
    %c0 = arith.constant 0 : index
    %c0_0 = arith.constant 0 : index
    %0 = vector.load %arg1[%c0, %c0_0] : memref<128x128xf32, #tpu.memory_space<vmem>>, vector<128x128xf32>
    %c0_1 = arith.constant 0 : index
    %c0_2 = arith.constant 0 : index
    %1 = vector.load %arg2[%c0_1, %c0_2] : memref<1x128xf32, #tpu.memory_space<vmem>>, vector<1x128xf32>
    %2 = vector.broadcast %1 : vector<1x128xf32> to vector<128x128xf32>
    %3 = arith.mulf %0, %2 : vector<128x128xf32>
    %c0_3 = arith.constant 0 : index
    %c0_4 = arith.constant 0 : index
    %4 = vector.load %arg3[%c0_3, %c0_4] : memref<1x128xf32, #tpu.memory_space<vmem>>, vector<1x128xf32>
    %5 = vector.broadcast %4 : vector<1x128xf32> to vector<128x128xf32>
    %6 = arith.addf %3, %5 : vector<128x128xf32>
    %cst = arith.constant 0.000000e+00 : f32
    %7 = vector.broadcast %cst : f32 to vector<128x128xf32>
    %8 = arith.maximumf %6, %7 : vector<128x128xf32>
    %c0_5 = arith.constant 0 : index
    %c0_6 = arith.constant 0 : index
    %9 = vector.load %arg4[%c0_5, %c0_6] : memref<128x128xf32, #tpu.memory_space<vmem>>, vector<128x128xf32>
    tpu.vector_store %arg4[%c0_5, %c0_6], %8 {strides = array<i32>} : memref<128x128xf32, #tpu.memory_space<vmem>>, vector<128x128xf32>,
    return
  }
  func.func @transform_0(%arg0: i32) -> (i32, i32) {
    %c0_i32 = arith.constant 0 : i32
    %c0_i32_0 = arith.constant 0 : i32
    return %arg0, %c0_i32 : i32, i32
  }
  func.func @transform_1(%arg0: i32) -> (i32, i32) {
    %c0_i32 = arith.constant 0 : i32
    %c0_i32_0 = arith.constant 0 : i32
    %c0_i32_1 = arith.constant 0 : i32
    return %c0_i32, %c0_i32_0 : i32, i32
  }
  func.func @transform_2(%arg0: i32) -> (i32, i32) {
    %c0_i32 = arith.constant 0 : i32
    %c0_i32_0 = arith.constant 0 : i32
    %c0_i32_1 = arith.constant 0 : i32
    return %c0_i32, %c0_i32_0 : i32, i32
  }
  func.func @transform_3(%arg0: i32) -> (i32, i32) {
    %c0_i32 = arith.constant 0 : i32
    %c0_i32_0 = arith.constant 0 : i32
    return %arg0, %c0_i32 : i32, i32
  }
}

module attributes {stable_mosaic.version = 11 : i64} {
  func.func @_matmul_bias_stats_kernel(%arg0: i32, %arg1: memref<512x48xbf16, #tpu.memory_space<vmem>>, %arg2: memref<48x32xbf16, #tpu.memory_space<vmem>>, %arg3: memref<1x32xf32, #tpu.memory_space<vmem>>, %arg4: memref<512x32xf32, #tpu.memory_space<vmem>>, %arg5: memref<1x1x32xf32, #tpu.memory_space<vmem>>, %arg6: memref<1x1x32xf32, #tpu.memory_space<vmem>>) attributes {dimension_semantics = [#tpu.dimension_semantics<parallel>], iteration_bounds = array<i64: 1>, scalar_prefetch = 0 : i64, scratch_operands = 0 : i64, tpu.core_type = #tpu.core_type<tc>, window_params = [{transform_indices = @transform_0, window_bounds = array<i64: 512, 48>}, {pipeline_mode = #tpu.pipeline_mode<synchronous>, transform_indices = @transform_1, window_bounds = array<i64: 48, 32>}, {pipeline_mode = #tpu.pipeline_mode<synchronous>, transform_indices = @transform_2, window_bounds = array<i64: 1, 32>}, {transform_indices = @transform_3, window_bounds = array<i64: 512, 32>}, {transform_indices = @transform_4, window_bounds = array<i64: 1, 1, 32>}, {transform_indices = @transform_5, window_bounds = array<i64: 1, 1, 32>}]} {
    %c0 = arith.constant 0 : index
    %c0_0 = arith.constant 0 : index
    %0 = vector.load %arg1[%c0, %c0_0] : memref<512x48xbf16, #tpu.memory_space<vmem>>, vector<512x48xbf16>
    %c0_1 = arith.constant 0 : index
    %c0_2 = arith.constant 0 : index
    %1 = vector.load %arg2[%c0_1, %c0_2] : memref<48x32xbf16, #tpu.memory_space<vmem>>, vector<48x32xbf16>
    %cst = arith.constant dense<0.000000e+00> : vector<512x32xf32>
    %2 = tpu.matmul %0, %1, %cst {dimension_numbers = #tpu.dot_dimension_numbers<[1], [0], [0], [1], [0, 0, 1, 1], [], []>} : vector<512x48xbf16>, vector<48x32xbf16>, vector<512x32xf32> -> vector<512x32xf32>
    %c0_3 = arith.constant 0 : index
    %c0_4 = arith.constant 0 : index
    %3 = vector.load %arg3[%c0_3, %c0_4] : memref<1x32xf32, #tpu.memory_space<vmem>>, vector<1x32xf32>
    %4 = vector.broadcast %3 : vector<1x32xf32> to vector<512x32xf32>
    %5 = arith.addf %2, %4 : vector<512x32xf32>
    %c0_5 = arith.constant 0 : index
    %c0_6 = arith.constant 0 : index
    %6 = vector.load %arg4[%c0_5, %c0_6] : memref<512x32xf32, #tpu.memory_space<vmem>>, vector<512x32xf32>
    tpu.vector_store %arg4[%c0_5, %c0_6], %5 {strides = array<i32>} : memref<512x32xf32, #tpu.memory_space<vmem>>, vector<512x32xf32>,
    %cst_7 = arith.constant dense<0.000000e+00> : vector<32xf32>
    %7 = vector.multi_reduction <add>, %5, %cst_7 [0] : vector<512x32xf32> to vector<32xf32>
    %8 = vector.shape_cast %7 : vector<32xf32> to vector<1x32xf32>
    %9 = vector.shape_cast %8 : vector<1x32xf32> to vector<1x1x32xf32>
    %c0_8 = arith.constant 0 : index
    %c0_9 = arith.constant 0 : index
    %c0_10 = arith.constant 0 : index
    %10 = vector.load %arg5[%c0_8, %c0_9, %c0_10] : memref<1x1x32xf32, #tpu.memory_space<vmem>>, vector<1x1x32xf32>
    tpu.vector_store %arg5[%c0_8, %c0_9, %c0_10], %9 {strides = array<i32>} : memref<1x1x32xf32, #tpu.memory_space<vmem>>, vector<1x1x32xf32>,
    %11 = arith.mulf %5, %5 : vector<512x32xf32>
    %cst_11 = arith.constant dense<0.000000e+00> : vector<32xf32>
    %12 = vector.multi_reduction <add>, %11, %cst_11 [0] : vector<512x32xf32> to vector<32xf32>
    %13 = vector.shape_cast %12 : vector<32xf32> to vector<1x32xf32>
    %14 = vector.shape_cast %13 : vector<1x32xf32> to vector<1x1x32xf32>
    %c0_12 = arith.constant 0 : index
    %c0_13 = arith.constant 0 : index
    %c0_14 = arith.constant 0 : index
    %15 = vector.load %arg6[%c0_12, %c0_13, %c0_14] : memref<1x1x32xf32, #tpu.memory_space<vmem>>, vector<1x1x32xf32>
    tpu.vector_store %arg6[%c0_12, %c0_13, %c0_14], %14 {strides = array<i32>} : memref<1x1x32xf32, #tpu.memory_space<vmem>>, vector<1x1x32xf32>,
    return
  }
  func.func @transform_0(%arg0: i32) -> (i32, i32) {
    %c0_i32 = arith.constant 0 : i32
    %c0_i32_0 = arith.constant 0 : i32
    return %arg0, %c0_i32 : i32, i32
  }
  func.func @transform_1(%arg0: i32) -> (i32, i32) {
    %c0_i32 = arith.constant 0 : i32
    %c0_i32_0 = arith.constant 0 : i32
    %c0_i32_1 = arith.constant 0 : i32
    return %c0_i32, %c0_i32_0 : i32, i32
  }
  func.func @transform_2(%arg0: i32) -> (i32, i32) {
    %c0_i32 = arith.constant 0 : i32
    %c0_i32_0 = arith.constant 0 : i32
    %c0_i32_1 = arith.constant 0 : i32
    return %c0_i32, %c0_i32_0 : i32, i32
  }
  func.func @transform_3(%arg0: i32) -> (i32, i32) {
    %c0_i32 = arith.constant 0 : i32
    %c0_i32_0 = arith.constant 0 : i32
    return %arg0, %c0_i32 : i32, i32
  }
  func.func @transform_4(%arg0: i32) -> (i32, i32, i32) {
    %c0_i32 = arith.constant 0 : i32
    %c0_i32_0 = arith.constant 0 : i32
    %c0_i32_1 = arith.constant 0 : i32
    return %arg0, %c0_i32, %c0_i32_0 : i32, i32, i32
  }
  func.func @transform_5(%arg0: i32) -> (i32, i32, i32) {
    %c0_i32 = arith.constant 0 : i32
    %c0_i32_0 = arith.constant 0 : i32
    %c0_i32_1 = arith.constant 0 : i32
    return %arg0, %c0_i32, %c0_i32_0 : i32, i32, i32
  }
}

module attributes {stable_mosaic.version = 11 : i64} {
  func.func @_matmul_bias_stats_kernel(%arg0: i32, %arg1: memref<128x512xbf16, #tpu.memory_space<vmem>>, %arg2: memref<512x32xbf16, #tpu.memory_space<vmem>>, %arg3: memref<1x32xf32, #tpu.memory_space<vmem>>, %arg4: memref<128x32xf32, #tpu.memory_space<vmem>>, %arg5: memref<1x1x32xf32, #tpu.memory_space<vmem>>, %arg6: memref<1x1x32xf32, #tpu.memory_space<vmem>>) attributes {dimension_semantics = [#tpu.dimension_semantics<parallel>], iteration_bounds = array<i64: 1>, scalar_prefetch = 0 : i64, scratch_operands = 0 : i64, tpu.core_type = #tpu.core_type<tc>, window_params = [{transform_indices = @transform_0, window_bounds = array<i64: 128, 512>}, {pipeline_mode = #tpu.pipeline_mode<synchronous>, transform_indices = @transform_1, window_bounds = array<i64: 512, 32>}, {pipeline_mode = #tpu.pipeline_mode<synchronous>, transform_indices = @transform_2, window_bounds = array<i64: 1, 32>}, {transform_indices = @transform_3, window_bounds = array<i64: 128, 32>}, {transform_indices = @transform_4, window_bounds = array<i64: 1, 1, 32>}, {transform_indices = @transform_5, window_bounds = array<i64: 1, 1, 32>}]} {
    %c0 = arith.constant 0 : index
    %c0_0 = arith.constant 0 : index
    %0 = vector.load %arg1[%c0, %c0_0] : memref<128x512xbf16, #tpu.memory_space<vmem>>, vector<128x512xbf16>
    %c0_1 = arith.constant 0 : index
    %c0_2 = arith.constant 0 : index
    %1 = vector.load %arg2[%c0_1, %c0_2] : memref<512x32xbf16, #tpu.memory_space<vmem>>, vector<512x32xbf16>
    %cst = arith.constant dense<0.000000e+00> : vector<128x32xf32>
    %2 = tpu.matmul %0, %1, %cst {dimension_numbers = #tpu.dot_dimension_numbers<[1], [0], [0], [1], [0, 0, 1, 1], [], []>} : vector<128x512xbf16>, vector<512x32xbf16>, vector<128x32xf32> -> vector<128x32xf32>
    %c0_3 = arith.constant 0 : index
    %c0_4 = arith.constant 0 : index
    %3 = vector.load %arg3[%c0_3, %c0_4] : memref<1x32xf32, #tpu.memory_space<vmem>>, vector<1x32xf32>
    %4 = vector.broadcast %3 : vector<1x32xf32> to vector<128x32xf32>
    %5 = arith.addf %2, %4 : vector<128x32xf32>
    %c0_5 = arith.constant 0 : index
    %c0_6 = arith.constant 0 : index
    %6 = vector.load %arg4[%c0_5, %c0_6] : memref<128x32xf32, #tpu.memory_space<vmem>>, vector<128x32xf32>
    tpu.vector_store %arg4[%c0_5, %c0_6], %5 {strides = array<i32>} : memref<128x32xf32, #tpu.memory_space<vmem>>, vector<128x32xf32>,
    %cst_7 = arith.constant dense<0.000000e+00> : vector<32xf32>
    %7 = vector.multi_reduction <add>, %5, %cst_7 [0] : vector<128x32xf32> to vector<32xf32>
    %8 = vector.shape_cast %7 : vector<32xf32> to vector<1x32xf32>
    %9 = vector.shape_cast %8 : vector<1x32xf32> to vector<1x1x32xf32>
    %c0_8 = arith.constant 0 : index
    %c0_9 = arith.constant 0 : index
    %c0_10 = arith.constant 0 : index
    %10 = vector.load %arg5[%c0_8, %c0_9, %c0_10] : memref<1x1x32xf32, #tpu.memory_space<vmem>>, vector<1x1x32xf32>
    tpu.vector_store %arg5[%c0_8, %c0_9, %c0_10], %9 {strides = array<i32>} : memref<1x1x32xf32, #tpu.memory_space<vmem>>, vector<1x1x32xf32>,
    %11 = arith.mulf %5, %5 : vector<128x32xf32>
    %cst_11 = arith.constant dense<0.000000e+00> : vector<32xf32>
    %12 = vector.multi_reduction <add>, %11, %cst_11 [0] : vector<128x32xf32> to vector<32xf32>
    %13 = vector.shape_cast %12 : vector<32xf32> to vector<1x32xf32>
    %14 = vector.shape_cast %13 : vector<1x32xf32> to vector<1x1x32xf32>
    %c0_12 = arith.constant 0 : index
    %c0_13 = arith.constant 0 : index
    %c0_14 = arith.constant 0 : index
    %15 = vector.load %arg6[%c0_12, %c0_13, %c0_14] : memref<1x1x32xf32, #tpu.memory_space<vmem>>, vector<1x1x32xf32>
    tpu.vector_store %arg6[%c0_12, %c0_13, %c0_14], %14 {strides = array<i32>} : memref<1x1x32xf32, #tpu.memory_space<vmem>>, vector<1x1x32xf32>,
    return
  }
  func.func @transform_0(%arg0: i32) -> (i32, i32) {
    %c0_i32 = arith.constant 0 : i32
    %c0_i32_0 = arith.constant 0 : i32
    return %arg0, %c0_i32 : i32, i32
  }
  func.func @transform_1(%arg0: i32) -> (i32, i32) {
    %c0_i32 = arith.constant 0 : i32
    %c0_i32_0 = arith.constant 0 : i32
    %c0_i32_1 = arith.constant 0 : i32
    return %c0_i32, %c0_i32_0 : i32, i32
  }
  func.func @transform_2(%arg0: i32) -> (i32, i32) {
    %c0_i32 = arith.constant 0 : i32
    %c0_i32_0 = arith.constant 0 : i32
    %c0_i32_1 = arith.constant 0 : i32
    return %c0_i32, %c0_i32_0 : i32, i32
  }
  func.func @transform_3(%arg0: i32) -> (i32, i32) {
    %c0_i32 = arith.constant 0 : i32
    %c0_i32_0 = arith.constant 0 : i32
    return %arg0, %c0_i32 : i32, i32
  }
  func.func @transform_4(%arg0: i32) -> (i32, i32, i32) {
    %c0_i32 = arith.constant 0 : i32
    %c0_i32_0 = arith.constant 0 : i32
    %c0_i32_1 = arith.constant 0 : i32
    return %arg0, %c0_i32, %c0_i32_0 : i32, i32, i32
  }
  func.func @transform_5(%arg0: i32) -> (i32, i32, i32) {
    %c0_i32 = arith.constant 0 : i32
    %c0_i32_0 = arith.constant 0 : i32
    %c0_i32_1 = arith.constant 0 : i32
    return %arg0, %c0_i32, %c0_i32_0 : i32, i32, i32
  }
}

module attributes {stable_mosaic.version = 11 : i64} {
  func.func @_affine_act_kernel(%arg0: i32, %arg1: memref<32x128xf32, #tpu.memory_space<vmem>>, %arg2: memref<1x128xf32, #tpu.memory_space<vmem>>, %arg3: memref<1x128xf32, #tpu.memory_space<vmem>>, %arg4: memref<32x128xf32, #tpu.memory_space<vmem>>) attributes {dimension_semantics = [#tpu.dimension_semantics<parallel>], iteration_bounds = array<i64: 1>, scalar_prefetch = 0 : i64, scratch_operands = 0 : i64, tpu.core_type = #tpu.core_type<tc>, window_params = [{transform_indices = @transform_0, window_bounds = array<i64: 32, 128>}, {pipeline_mode = #tpu.pipeline_mode<synchronous>, transform_indices = @transform_1, window_bounds = array<i64: 1, 128>}, {pipeline_mode = #tpu.pipeline_mode<synchronous>, transform_indices = @transform_2, window_bounds = array<i64: 1, 128>}, {transform_indices = @transform_3, window_bounds = array<i64: 32, 128>}]} {
    %c0 = arith.constant 0 : index
    %c0_0 = arith.constant 0 : index
    %0 = vector.load %arg1[%c0, %c0_0] : memref<32x128xf32, #tpu.memory_space<vmem>>, vector<32x128xf32>
    %c0_1 = arith.constant 0 : index
    %c0_2 = arith.constant 0 : index
    %1 = vector.load %arg2[%c0_1, %c0_2] : memref<1x128xf32, #tpu.memory_space<vmem>>, vector<1x128xf32>
    %2 = vector.broadcast %1 : vector<1x128xf32> to vector<32x128xf32>
    %3 = arith.mulf %0, %2 : vector<32x128xf32>
    %c0_3 = arith.constant 0 : index
    %c0_4 = arith.constant 0 : index
    %4 = vector.load %arg3[%c0_3, %c0_4] : memref<1x128xf32, #tpu.memory_space<vmem>>, vector<1x128xf32>
    %5 = vector.broadcast %4 : vector<1x128xf32> to vector<32x128xf32>
    %6 = arith.addf %3, %5 : vector<32x128xf32>
    %cst = arith.constant 0.000000e+00 : f32
    %7 = vector.broadcast %cst : f32 to vector<32x128xf32>
    %8 = arith.maximumf %6, %7 : vector<32x128xf32>
    %c0_5 = arith.constant 0 : index
    %c0_6 = arith.constant 0 : index
    %9 = vector.load %arg4[%c0_5, %c0_6] : memref<32x128xf32, #tpu.memory_space<vmem>>, vector<32x128xf32>
    tpu.vector_store %arg4[%c0_5, %c0_6], %8 {strides = array<i32>} : memref<32x128xf32, #tpu.memory_space<vmem>>, vector<32x128xf32>,
    return
  }
  func.func @transform_0(%arg0: i32) -> (i32, i32) {
    %c0_i32 = arith.constant 0 : i32
    %c0_i32_0 = arith.constant 0 : i32
    return %arg0, %c0_i32 : i32, i32
  }
  func.func @transform_1(%arg0: i32) -> (i32, i32) {
    %c0_i32 = arith.constant 0 : i32
    %c0_i32_0 = arith.constant 0 : i32
    %c0_i32_1 = arith.constant 0 : i32
    return %c0_i32, %c0_i32_0 : i32, i32
  }
  func.func @transform_2(%arg0: i32) -> (i32, i32) {
    %c0_i32 = arith.constant 0 : i32
    %c0_i32_0 = arith.constant 0 : i32
    %c0_i32_1 = arith.constant 0 : i32
    return %c0_i32, %c0_i32_0 : i32, i32
  }
  func.func @transform_3(%arg0: i32) -> (i32, i32) {
    %c0_i32 = arith.constant 0 : i32
    %c0_i32_0 = arith.constant 0 : i32
    return %arg0, %c0_i32 : i32, i32
  }
}

module attributes {stable_mosaic.version = 11 : i64} {
  func.func @_affine_act_kernel(%arg0: i32, %arg1: memref<8x128xf32, #tpu.memory_space<vmem>>, %arg2: memref<1x128xf32, #tpu.memory_space<vmem>>, %arg3: memref<1x128xf32, #tpu.memory_space<vmem>>, %arg4: memref<8x128xf32, #tpu.memory_space<vmem>>, %arg5: memref<8x128xf32, #tpu.memory_space<vmem>>) attributes {dimension_semantics = [#tpu.dimension_semantics<parallel>], iteration_bounds = array<i64: 1>, scalar_prefetch = 0 : i64, scratch_operands = 0 : i64, tpu.core_type = #tpu.core_type<tc>, window_params = [{transform_indices = @transform_0, window_bounds = array<i64: 8, 128>}, {pipeline_mode = #tpu.pipeline_mode<synchronous>, transform_indices = @transform_1, window_bounds = array<i64: 1, 128>}, {pipeline_mode = #tpu.pipeline_mode<synchronous>, transform_indices = @transform_2, window_bounds = array<i64: 1, 128>}, {transform_indices = @transform_3, window_bounds = array<i64: 8, 128>}, {transform_indices = @transform_4, window_bounds = array<i64: 8, 128>}]} {
    %c0 = arith.constant 0 : index
    %c0_0 = arith.constant 0 : index
    %0 = vector.load %arg1[%c0, %c0_0] : memref<8x128xf32, #tpu.memory_space<vmem>>, vector<8x128xf32>
    %c0_1 = arith.constant 0 : index
    %c0_2 = arith.constant 0 : index
    %1 = vector.load %arg2[%c0_1, %c0_2] : memref<1x128xf32, #tpu.memory_space<vmem>>, vector<1x128xf32>
    %2 = vector.broadcast %1 : vector<1x128xf32> to vector<8x128xf32>
    %3 = arith.mulf %0, %2 : vector<8x128xf32>
    %c0_3 = arith.constant 0 : index
    %c0_4 = arith.constant 0 : index
    %4 = vector.load %arg3[%c0_3, %c0_4] : memref<1x128xf32, #tpu.memory_space<vmem>>, vector<1x128xf32>
    %5 = vector.broadcast %4 : vector<1x128xf32> to vector<8x128xf32>
    %6 = arith.addf %3, %5 : vector<8x128xf32>
    %cst = arith.constant 0.000000e+00 : f32
    %7 = vector.broadcast %cst : f32 to vector<8x128xf32>
    %8 = arith.maximumf %6, %7 : vector<8x128xf32>
    %c0_5 = arith.constant 0 : index
    %c0_6 = arith.constant 0 : index
    %9 = vector.load %arg4[%c0_5, %c0_6] : memref<8x128xf32, #tpu.memory_space<vmem>>, vector<8x128xf32>
    %10 = arith.addf %8, %9 : vector<8x128xf32>
    %c0_7 = arith.constant 0 : index
    %c0_8 = arith.constant 0 : index
    %11 = vector.load %arg5[%c0_7, %c0_8] : memref<8x128xf32, #tpu.memory_space<vmem>>, vector<8x128xf32>
    tpu.vector_store %arg5[%c0_7, %c0_8], %10 {strides = array<i32>} : memref<8x128xf32, #tpu.memory_space<vmem>>, vector<8x128xf32>,
    return
  }
  func.func @transform_0(%arg0: i32) -> (i32, i32) {
    %c0_i32 = arith.constant 0 : i32
    %c0_i32_0 = arith.constant 0 : i32
    return %arg0, %c0_i32 : i32, i32
  }
  func.func @transform_1(%arg0: i32) -> (i32, i32) {
    %c0_i32 = arith.constant 0 : i32
    %c0_i32_0 = arith.constant 0 : i32
    %c0_i32_1 = arith.constant 0 : i32
    return %c0_i32, %c0_i32_0 : i32, i32
  }
  func.func @transform_2(%arg0: i32) -> (i32, i32) {
    %c0_i32 = arith.constant 0 : i32
    %c0_i32_0 = arith.constant 0 : i32
    %c0_i32_1 = arith.constant 0 : i32
    return %c0_i32, %c0_i32_0 : i32, i32
  }
  func.func @transform_3(%arg0: i32) -> (i32, i32) {
    %c0_i32 = arith.constant 0 : i32
    %c0_i32_0 = arith.constant 0 : i32
    return %arg0, %c0_i32 : i32, i32
  }
  func.func @transform_4(%arg0: i32) -> (i32, i32) {
    %c0_i32 = arith.constant 0 : i32
    %c0_i32_0 = arith.constant 0 : i32
    return %arg0, %c0_i32 : i32, i32
  }
}

module attributes {stable_mosaic.version = 11 : i64} {
  func.func @_matmul_bias_stats_kernel(%arg0: i32, %arg1: memref<32x512xbf16, #tpu.memory_space<vmem>>, %arg2: memref<512x32xbf16, #tpu.memory_space<vmem>>, %arg3: memref<1x32xf32, #tpu.memory_space<vmem>>, %arg4: memref<32x32xf32, #tpu.memory_space<vmem>>, %arg5: memref<1x1x32xf32, #tpu.memory_space<vmem>>, %arg6: memref<1x1x32xf32, #tpu.memory_space<vmem>>) attributes {dimension_semantics = [#tpu.dimension_semantics<parallel>], iteration_bounds = array<i64: 1>, scalar_prefetch = 0 : i64, scratch_operands = 0 : i64, tpu.core_type = #tpu.core_type<tc>, window_params = [{transform_indices = @transform_0, window_bounds = array<i64: 32, 512>}, {pipeline_mode = #tpu.pipeline_mode<synchronous>, transform_indices = @transform_1, window_bounds = array<i64: 512, 32>}, {pipeline_mode = #tpu.pipeline_mode<synchronous>, transform_indices = @transform_2, window_bounds = array<i64: 1, 32>}, {transform_indices = @transform_3, window_bounds = array<i64: 32, 32>}, {transform_indices = @transform_4, window_bounds = array<i64: 1, 1, 32>}, {transform_indices = @transform_5, window_bounds = array<i64: 1, 1, 32>}]} {
    %c0 = arith.constant 0 : index
    %c0_0 = arith.constant 0 : index
    %0 = vector.load %arg1[%c0, %c0_0] : memref<32x512xbf16, #tpu.memory_space<vmem>>, vector<32x512xbf16>
    %c0_1 = arith.constant 0 : index
    %c0_2 = arith.constant 0 : index
    %1 = vector.load %arg2[%c0_1, %c0_2] : memref<512x32xbf16, #tpu.memory_space<vmem>>, vector<512x32xbf16>
    %cst = arith.constant dense<0.000000e+00> : vector<32x32xf32>
    %2 = tpu.matmul %0, %1, %cst {dimension_numbers = #tpu.dot_dimension_numbers<[1], [0], [0], [1], [0, 0, 1, 1], [], []>} : vector<32x512xbf16>, vector<512x32xbf16>, vector<32x32xf32> -> vector<32x32xf32>
    %c0_3 = arith.constant 0 : index
    %c0_4 = arith.constant 0 : index
    %3 = vector.load %arg3[%c0_3, %c0_4] : memref<1x32xf32, #tpu.memory_space<vmem>>, vector<1x32xf32>
    %4 = vector.broadcast %3 : vector<1x32xf32> to vector<32x32xf32>
    %5 = arith.addf %2, %4 : vector<32x32xf32>
    %c0_5 = arith.constant 0 : index
    %c0_6 = arith.constant 0 : index
    %6 = vector.load %arg4[%c0_5, %c0_6] : memref<32x32xf32, #tpu.memory_space<vmem>>, vector<32x32xf32>
    tpu.vector_store %arg4[%c0_5, %c0_6], %5 {strides = array<i32>} : memref<32x32xf32, #tpu.memory_space<vmem>>, vector<32x32xf32>,
    %cst_7 = arith.constant dense<0.000000e+00> : vector<32xf32>
    %7 = vector.multi_reduction <add>, %5, %cst_7 [0] : vector<32x32xf32> to vector<32xf32>
    %8 = vector.shape_cast %7 : vector<32xf32> to vector<1x32xf32>
    %9 = vector.shape_cast %8 : vector<1x32xf32> to vector<1x1x32xf32>
    %c0_8 = arith.constant 0 : index
    %c0_9 = arith.constant 0 : index
    %c0_10 = arith.constant 0 : index
    %10 = vector.load %arg5[%c0_8, %c0_9, %c0_10] : memref<1x1x32xf32, #tpu.memory_space<vmem>>, vector<1x1x32xf32>
    tpu.vector_store %arg5[%c0_8, %c0_9, %c0_10], %9 {strides = array<i32>} : memref<1x1x32xf32, #tpu.memory_space<vmem>>, vector<1x1x32xf32>,
    %11 = arith.mulf %5, %5 : vector<32x32xf32>
    %cst_11 = arith.constant dense<0.000000e+00> : vector<32xf32>
    %12 = vector.multi_reduction <add>, %11, %cst_11 [0] : vector<32x32xf32> to vector<32xf32>
    %13 = vector.shape_cast %12 : vector<32xf32> to vector<1x32xf32>
    %14 = vector.shape_cast %13 : vector<1x32xf32> to vector<1x1x32xf32>
    %c0_12 = arith.constant 0 : index
    %c0_13 = arith.constant 0 : index
    %c0_14 = arith.constant 0 : index
    %15 = vector.load %arg6[%c0_12, %c0_13, %c0_14] : memref<1x1x32xf32, #tpu.memory_space<vmem>>, vector<1x1x32xf32>
    tpu.vector_store %arg6[%c0_12, %c0_13, %c0_14], %14 {strides = array<i32>} : memref<1x1x32xf32, #tpu.memory_space<vmem>>, vector<1x1x32xf32>,
    return
  }
  func.func @transform_0(%arg0: i32) -> (i32, i32) {
    %c0_i32 = arith.constant 0 : i32
    %c0_i32_0 = arith.constant 0 : i32
    return %arg0, %c0_i32 : i32, i32
  }
  func.func @transform_1(%arg0: i32) -> (i32, i32) {
    %c0_i32 = arith.constant 0 : i32
    %c0_i32_0 = arith.constant 0 : i32
    %c0_i32_1 = arith.constant 0 : i32
    return %c0_i32, %c0_i32_0 : i32, i32
  }
  func.func @transform_2(%arg0: i32) -> (i32, i32) {
    %c0_i32 = arith.constant 0 : i32
    %c0_i32_0 = arith.constant 0 : i32
    %c0_i32_1 = arith.constant 0 : i32
    return %c0_i32, %c0_i32_0 : i32, i32
  }
  func.func @transform_3(%arg0: i32) -> (i32, i32) {
    %c0_i32 = arith.constant 0 : i32
    %c0_i32_0 = arith.constant 0 : i32
    return %arg0, %c0_i32 : i32, i32
  }
  func.func @transform_4(%arg0: i32) -> (i32, i32, i32) {
    %c0_i32 = arith.constant 0 : i32
    %c0_i32_0 = arith.constant 0 : i32
    %c0_i32_1 = arith.constant 0 : i32
    return %arg0, %c0_i32, %c0_i32_0 : i32, i32, i32
  }
  func.func @transform_5(%arg0: i32) -> (i32, i32, i32) {
    %c0_i32 = arith.constant 0 : i32
    %c0_i32_0 = arith.constant 0 : i32
    %c0_i32_1 = arith.constant 0 : i32
    return %arg0, %c0_i32, %c0_i32_0 : i32, i32, i32
  }
}

module attributes {stable_mosaic.version = 11 : i64} {
  func.func @_matmul_bias_stats_kernel(%arg0: i32, %arg1: memref<8x512xbf16, #tpu.memory_space<vmem>>, %arg2: memref<512x32xbf16, #tpu.memory_space<vmem>>, %arg3: memref<1x32xf32, #tpu.memory_space<vmem>>, %arg4: memref<8x32xf32, #tpu.memory_space<vmem>>, %arg5: memref<1x1x32xf32, #tpu.memory_space<vmem>>, %arg6: memref<1x1x32xf32, #tpu.memory_space<vmem>>) attributes {dimension_semantics = [#tpu.dimension_semantics<parallel>], iteration_bounds = array<i64: 1>, scalar_prefetch = 0 : i64, scratch_operands = 0 : i64, tpu.core_type = #tpu.core_type<tc>, window_params = [{transform_indices = @transform_0, window_bounds = array<i64: 8, 512>}, {pipeline_mode = #tpu.pipeline_mode<synchronous>, transform_indices = @transform_1, window_bounds = array<i64: 512, 32>}, {pipeline_mode = #tpu.pipeline_mode<synchronous>, transform_indices = @transform_2, window_bounds = array<i64: 1, 32>}, {transform_indices = @transform_3, window_bounds = array<i64: 8, 32>}, {transform_indices = @transform_4, window_bounds = array<i64: 1, 1, 32>}, {transform_indices = @transform_5, window_bounds = array<i64: 1, 1, 32>}]} {
    %c0 = arith.constant 0 : index
    %c0_0 = arith.constant 0 : index
    %0 = vector.load %arg1[%c0, %c0_0] : memref<8x512xbf16, #tpu.memory_space<vmem>>, vector<8x512xbf16>
    %c0_1 = arith.constant 0 : index
    %c0_2 = arith.constant 0 : index
    %1 = vector.load %arg2[%c0_1, %c0_2] : memref<512x32xbf16, #tpu.memory_space<vmem>>, vector<512x32xbf16>
    %cst = arith.constant dense<0.000000e+00> : vector<8x32xf32>
    %2 = tpu.matmul %0, %1, %cst {dimension_numbers = #tpu.dot_dimension_numbers<[1], [0], [0], [1], [0, 0, 1, 1], [], []>} : vector<8x512xbf16>, vector<512x32xbf16>, vector<8x32xf32> -> vector<8x32xf32>
    %c0_3 = arith.constant 0 : index
    %c0_4 = arith.constant 0 : index
    %3 = vector.load %arg3[%c0_3, %c0_4] : memref<1x32xf32, #tpu.memory_space<vmem>>, vector<1x32xf32>
    %4 = vector.broadcast %3 : vector<1x32xf32> to vector<8x32xf32>
    %5 = arith.addf %2, %4 : vector<8x32xf32>
    %c0_5 = arith.constant 0 : index
    %c0_6 = arith.constant 0 : index
    %6 = vector.load %arg4[%c0_5, %c0_6] : memref<8x32xf32, #tpu.memory_space<vmem>>, vector<8x32xf32>
    tpu.vector_store %arg4[%c0_5, %c0_6], %5 {strides = array<i32>} : memref<8x32xf32, #tpu.memory_space<vmem>>, vector<8x32xf32>,
    %cst_7 = arith.constant dense<0.000000e+00> : vector<32xf32>
    %7 = vector.multi_reduction <add>, %5, %cst_7 [0] : vector<8x32xf32> to vector<32xf32>
    %8 = vector.shape_cast %7 : vector<32xf32> to vector<1x32xf32>
    %9 = vector.shape_cast %8 : vector<1x32xf32> to vector<1x1x32xf32>
    %c0_8 = arith.constant 0 : index
    %c0_9 = arith.constant 0 : index
    %c0_10 = arith.constant 0 : index
    %10 = vector.load %arg5[%c0_8, %c0_9, %c0_10] : memref<1x1x32xf32, #tpu.memory_space<vmem>>, vector<1x1x32xf32>
    tpu.vector_store %arg5[%c0_8, %c0_9, %c0_10], %9 {strides = array<i32>} : memref<1x1x32xf32, #tpu.memory_space<vmem>>, vector<1x1x32xf32>,
    %11 = arith.mulf %5, %5 : vector<8x32xf32>
    %cst_11 = arith.constant dense<0.000000e+00> : vector<32xf32>
    %12 = vector.multi_reduction <add>, %11, %cst_11 [0] : vector<8x32xf32> to vector<32xf32>
    %13 = vector.shape_cast %12 : vector<32xf32> to vector<1x32xf32>
    %14 = vector.shape_cast %13 : vector<1x32xf32> to vector<1x1x32xf32>
    %c0_12 = arith.constant 0 : index
    %c0_13 = arith.constant 0 : index
    %c0_14 = arith.constant 0 : index
    %15 = vector.load %arg6[%c0_12, %c0_13, %c0_14] : memref<1x1x32xf32, #tpu.memory_space<vmem>>, vector<1x1x32xf32>
    tpu.vector_store %arg6[%c0_12, %c0_13, %c0_14], %14 {strides = array<i32>} : memref<1x1x32xf32, #tpu.memory_space<vmem>>, vector<1x1x32xf32>,
    return
  }
  func.func @transform_0(%arg0: i32) -> (i32, i32) {
    %c0_i32 = arith.constant 0 : i32
    %c0_i32_0 = arith.constant 0 : i32
    return %arg0, %c0_i32 : i32, i32
  }
  func.func @transform_1(%arg0: i32) -> (i32, i32) {
    %c0_i32 = arith.constant 0 : i32
    %c0_i32_0 = arith.constant 0 : i32
    %c0_i32_1 = arith.constant 0 : i32
    return %c0_i32, %c0_i32_0 : i32, i32
  }
  func.func @transform_2(%arg0: i32) -> (i32, i32) {
    %c0_i32 = arith.constant 0 : i32
    %c0_i32_0 = arith.constant 0 : i32
    %c0_i32_1 = arith.constant 0 : i32
    return %c0_i32, %c0_i32_0 : i32, i32
  }
  func.func @transform_3(%arg0: i32) -> (i32, i32) {
    %c0_i32 = arith.constant 0 : i32
    %c0_i32_0 = arith.constant 0 : i32
    return %arg0, %c0_i32 : i32, i32
  }
  func.func @transform_4(%arg0: i32) -> (i32, i32, i32) {
    %c0_i32 = arith.constant 0 : i32
    %c0_i32_0 = arith.constant 0 : i32
    %c0_i32_1 = arith.constant 0 : i32
    return %arg0, %c0_i32, %c0_i32_0 : i32, i32, i32
  }
  func.func @transform_5(%arg0: i32) -> (i32, i32, i32) {
    %c0_i32 = arith.constant 0 : i32
    %c0_i32_0 = arith.constant 0 : i32
    %c0_i32_1 = arith.constant 0 : i32
    return %arg0, %c0_i32, %c0_i32_0 : i32, i32, i32
  }
}

module attributes {stable_mosaic.version = 11 : i64} {
  func.func @_affine_act_kernel(%arg0: i32, %arg1: memref<2x128xf32, #tpu.memory_space<vmem>>, %arg2: memref<1x128xf32, #tpu.memory_space<vmem>>, %arg3: memref<1x128xf32, #tpu.memory_space<vmem>>, %arg4: memref<2x128xf32, #tpu.memory_space<vmem>>, %arg5: memref<2x128xf32, #tpu.memory_space<vmem>>) attributes {dimension_semantics = [#tpu.dimension_semantics<parallel>], iteration_bounds = array<i64: 1>, scalar_prefetch = 0 : i64, scratch_operands = 0 : i64, tpu.core_type = #tpu.core_type<tc>, window_params = [{transform_indices = @transform_0, window_bounds = array<i64: 2, 128>}, {pipeline_mode = #tpu.pipeline_mode<synchronous>, transform_indices = @transform_1, window_bounds = array<i64: 1, 128>}, {pipeline_mode = #tpu.pipeline_mode<synchronous>, transform_indices = @transform_2, window_bounds = array<i64: 1, 128>}, {transform_indices = @transform_3, window_bounds = array<i64: 2, 128>}, {transform_indices = @transform_4, window_bounds = array<i64: 2, 128>}]} {
    %c0 = arith.constant 0 : index
    %c0_0 = arith.constant 0 : index
    %0 = vector.load %arg1[%c0, %c0_0] : memref<2x128xf32, #tpu.memory_space<vmem>>, vector<2x128xf32>
    %c0_1 = arith.constant 0 : index
    %c0_2 = arith.constant 0 : index
    %1 = vector.load %arg2[%c0_1, %c0_2] : memref<1x128xf32, #tpu.memory_space<vmem>>, vector<1x128xf32>
    %2 = vector.broadcast %1 : vector<1x128xf32> to vector<2x128xf32>
    %3 = arith.mulf %0, %2 : vector<2x128xf32>
    %c0_3 = arith.constant 0 : index
    %c0_4 = arith.constant 0 : index
    %4 = vector.load %arg3[%c0_3, %c0_4] : memref<1x128xf32, #tpu.memory_space<vmem>>, vector<1x128xf32>
    %5 = vector.broadcast %4 : vector<1x128xf32> to vector<2x128xf32>
    %6 = arith.addf %3, %5 : vector<2x128xf32>
    %c0_5 = arith.constant 0 : index
    %c0_6 = arith.constant 0 : index
    %7 = vector.load %arg4[%c0_5, %c0_6] : memref<2x128xf32, #tpu.memory_space<vmem>>, vector<2x128xf32>
    %8 = arith.addf %6, %7 : vector<2x128xf32>
    %c0_7 = arith.constant 0 : index
    %c0_8 = arith.constant 0 : index
    %9 = vector.load %arg5[%c0_7, %c0_8] : memref<2x128xf32, #tpu.memory_space<vmem>>, vector<2x128xf32>
    tpu.vector_store %arg5[%c0_7, %c0_8], %8 {strides = array<i32>} : memref<2x128xf32, #tpu.memory_space<vmem>>, vector<2x128xf32>,
    return
  }
  func.func @transform_0(%arg0: i32) -> (i32, i32) {
    %c0_i32 = arith.constant 0 : i32
    %c0_i32_0 = arith.constant 0 : i32
    return %arg0, %c0_i32 : i32, i32
  }
  func.func @transform_1(%arg0: i32) -> (i32, i32) {
    %c0_i32 = arith.constant 0 : i32
    %c0_i32_0 = arith.constant 0 : i32
    %c0_i32_1 = arith.constant 0 : i32
    return %c0_i32, %c0_i32_0 : i32, i32
  }
  func.func @transform_2(%arg0: i32) -> (i32, i32) {
    %c0_i32 = arith.constant 0 : i32
    %c0_i32_0 = arith.constant 0 : i32
    %c0_i32_1 = arith.constant 0 : i32
    return %c0_i32, %c0_i32_0 : i32, i32
  }
  func.func @transform_3(%arg0: i32) -> (i32, i32) {
    %c0_i32 = arith.constant 0 : i32
    %c0_i32_0 = arith.constant 0 : i32
    return %arg0, %c0_i32 : i32, i32
  }
  func.func @transform_4(%arg0: i32) -> (i32, i32) {
    %c0_i32 = arith.constant 0 : i32
    %c0_i32_0 = arith.constant 0 : i32
    return %arg0, %c0_i32 : i32, i32
  }
}

module attributes {stable_mosaic.version = 11 : i64} {
  func.func @_matmul_bias_stats_kernel(%arg0: i32, %arg1: memref<8x32xbf16, #tpu.memory_space<vmem>>, %arg2: memref<32x32xbf16, #tpu.memory_space<vmem>>, %arg3: memref<1x32xf32, #tpu.memory_space<vmem>>, %arg4: memref<8x32xf32, #tpu.memory_space<vmem>>, %arg5: memref<1x1x32xf32, #tpu.memory_space<vmem>>, %arg6: memref<1x1x32xf32, #tpu.memory_space<vmem>>) attributes {dimension_semantics = [#tpu.dimension_semantics<parallel>], iteration_bounds = array<i64: 1>, scalar_prefetch = 0 : i64, scratch_operands = 0 : i64, tpu.core_type = #tpu.core_type<tc>, window_params = [{transform_indices = @transform_0, window_bounds = array<i64: 8, 32>}, {pipeline_mode = #tpu.pipeline_mode<synchronous>, transform_indices = @transform_1, window_bounds = array<i64: 32, 32>}, {pipeline_mode = #tpu.pipeline_mode<synchronous>, transform_indices = @transform_2, window_bounds = array<i64: 1, 32>}, {transform_indices = @transform_3, window_bounds = array<i64: 8, 32>}, {transform_indices = @transform_4, window_bounds = array<i64: 1, 1, 32>}, {transform_indices = @transform_5, window_bounds = array<i64: 1, 1, 32>}]} {
    %c0 = arith.constant 0 : index
    %c0_0 = arith.constant 0 : index
    %0 = vector.load %arg1[%c0, %c0_0] : memref<8x32xbf16, #tpu.memory_space<vmem>>, vector<8x32xbf16>
    %c0_1 = arith.constant 0 : index
    %c0_2 = arith.constant 0 : index
    %1 = vector.load %arg2[%c0_1, %c0_2] : memref<32x32xbf16, #tpu.memory_space<vmem>>, vector<32x32xbf16>
    %cst = arith.constant dense<0.000000e+00> : vector<8x32xf32>
    %2 = tpu.matmul %0, %1, %cst {dimension_numbers = #tpu.dot_dimension_numbers<[1], [0], [0], [1], [0, 0, 1, 1], [], []>} : vector<8x32xbf16>, vector<32x32xbf16>, vector<8x32xf32> -> vector<8x32xf32>
    %c0_3 = arith.constant 0 : index
    %c0_4 = arith.constant 0 : index
    %3 = vector.load %arg3[%c0_3, %c0_4] : memref<1x32xf32, #tpu.memory_space<vmem>>, vector<1x32xf32>
    %4 = vector.broadcast %3 : vector<1x32xf32> to vector<8x32xf32>
    %5 = arith.addf %2, %4 : vector<8x32xf32>
    %c0_5 = arith.constant 0 : index
    %c0_6 = arith.constant 0 : index
    %6 = vector.load %arg4[%c0_5, %c0_6] : memref<8x32xf32, #tpu.memory_space<vmem>>, vector<8x32xf32>
    tpu.vector_store %arg4[%c0_5, %c0_6], %5 {strides = array<i32>} : memref<8x32xf32, #tpu.memory_space<vmem>>, vector<8x32xf32>,
    %cst_7 = arith.constant dense<0.000000e+00> : vector<32xf32>
    %7 = vector.multi_reduction <add>, %5, %cst_7 [0] : vector<8x32xf32> to vector<32xf32>
    %8 = vector.shape_cast %7 : vector<32xf32> to vector<1x32xf32>
    %9 = vector.shape_cast %8 : vector<1x32xf32> to vector<1x1x32xf32>
    %c0_8 = arith.constant 0 : index
    %c0_9 = arith.constant 0 : index
    %c0_10 = arith.constant 0 : index
    %10 = vector.load %arg5[%c0_8, %c0_9, %c0_10] : memref<1x1x32xf32, #tpu.memory_space<vmem>>, vector<1x1x32xf32>
    tpu.vector_store %arg5[%c0_8, %c0_9, %c0_10], %9 {strides = array<i32>} : memref<1x1x32xf32, #tpu.memory_space<vmem>>, vector<1x1x32xf32>,
    %11 = arith.mulf %5, %5 : vector<8x32xf32>
    %cst_11 = arith.constant dense<0.000000e+00> : vector<32xf32>
    %12 = vector.multi_reduction <add>, %11, %cst_11 [0] : vector<8x32xf32> to vector<32xf32>
    %13 = vector.shape_cast %12 : vector<32xf32> to vector<1x32xf32>
    %14 = vector.shape_cast %13 : vector<1x32xf32> to vector<1x1x32xf32>
    %c0_12 = arith.constant 0 : index
    %c0_13 = arith.constant 0 : index
    %c0_14 = arith.constant 0 : index
    %15 = vector.load %arg6[%c0_12, %c0_13, %c0_14] : memref<1x1x32xf32, #tpu.memory_space<vmem>>, vector<1x1x32xf32>
    tpu.vector_store %arg6[%c0_12, %c0_13, %c0_14], %14 {strides = array<i32>} : memref<1x1x32xf32, #tpu.memory_space<vmem>>, vector<1x1x32xf32>,
    return
  }
  func.func @transform_0(%arg0: i32) -> (i32, i32) {
    %c0_i32 = arith.constant 0 : i32
    %c0_i32_0 = arith.constant 0 : i32
    return %arg0, %c0_i32 : i32, i32
  }
  func.func @transform_1(%arg0: i32) -> (i32, i32) {
    %c0_i32 = arith.constant 0 : i32
    %c0_i32_0 = arith.constant 0 : i32
    %c0_i32_1 = arith.constant 0 : i32
    return %c0_i32, %c0_i32_0 : i32, i32
  }
  func.func @transform_2(%arg0: i32) -> (i32, i32) {
    %c0_i32 = arith.constant 0 : i32
    %c0_i32_0 = arith.constant 0 : i32
    %c0_i32_1 = arith.constant 0 : i32
    return %c0_i32, %c0_i32_0 : i32, i32
  }
  func.func @transform_3(%arg0: i32) -> (i32, i32) {
    %c0_i32 = arith.constant 0 : i32
    %c0_i32_0 = arith.constant 0 : i32
    return %arg0, %c0_i32 : i32, i32
  }
  func.func @transform_4(%arg0: i32) -> (i32, i32, i32) {
    %c0_i32 = arith.constant 0 : i32
    %c0_i32_0 = arith.constant 0 : i32
    %c0_i32_1 = arith.constant 0 : i32
    return %arg0, %c0_i32, %c0_i32_0 : i32, i32, i32
  }
  func.func @transform_5(%arg0: i32) -> (i32, i32, i32) {
    %c0_i32 = arith.constant 0 : i32
    %c0_i32_0 = arith.constant 0 : i32
    %c0_i32_1 = arith.constant 0 : i32
    return %arg0, %c0_i32, %c0_i32_0 : i32, i32, i32
  }
}

module attributes {stable_mosaic.version = 11 : i64} {
  func.func @_matmul_bias_stats_kernel(%arg0: i32, %arg1: memref<8x288xbf16, #tpu.memory_space<vmem>>, %arg2: memref<288x32xbf16, #tpu.memory_space<vmem>>, %arg3: memref<1x32xf32, #tpu.memory_space<vmem>>, %arg4: memref<8x32xf32, #tpu.memory_space<vmem>>, %arg5: memref<1x1x32xf32, #tpu.memory_space<vmem>>, %arg6: memref<1x1x32xf32, #tpu.memory_space<vmem>>) attributes {dimension_semantics = [#tpu.dimension_semantics<parallel>], iteration_bounds = array<i64: 1>, scalar_prefetch = 0 : i64, scratch_operands = 0 : i64, tpu.core_type = #tpu.core_type<tc>, window_params = [{transform_indices = @transform_0, window_bounds = array<i64: 8, 288>}, {pipeline_mode = #tpu.pipeline_mode<synchronous>, transform_indices = @transform_1, window_bounds = array<i64: 288, 32>}, {pipeline_mode = #tpu.pipeline_mode<synchronous>, transform_indices = @transform_2, window_bounds = array<i64: 1, 32>}, {transform_indices = @transform_3, window_bounds = array<i64: 8, 32>}, {transform_indices = @transform_4, window_bounds = array<i64: 1, 1, 32>}, {transform_indices = @transform_5, window_bounds = array<i64: 1, 1, 32>}]} {
    %c0 = arith.constant 0 : index
    %c0_0 = arith.constant 0 : index
    %0 = vector.load %arg1[%c0, %c0_0] : memref<8x288xbf16, #tpu.memory_space<vmem>>, vector<8x288xbf16>
    %c0_1 = arith.constant 0 : index
    %c0_2 = arith.constant 0 : index
    %1 = vector.load %arg2[%c0_1, %c0_2] : memref<288x32xbf16, #tpu.memory_space<vmem>>, vector<288x32xbf16>
    %cst = arith.constant dense<0.000000e+00> : vector<8x32xf32>
    %2 = tpu.matmul %0, %1, %cst {dimension_numbers = #tpu.dot_dimension_numbers<[1], [0], [0], [1], [0, 0, 1, 1], [], []>} : vector<8x288xbf16>, vector<288x32xbf16>, vector<8x32xf32> -> vector<8x32xf32>
    %c0_3 = arith.constant 0 : index
    %c0_4 = arith.constant 0 : index
    %3 = vector.load %arg3[%c0_3, %c0_4] : memref<1x32xf32, #tpu.memory_space<vmem>>, vector<1x32xf32>
    %4 = vector.broadcast %3 : vector<1x32xf32> to vector<8x32xf32>
    %5 = arith.addf %2, %4 : vector<8x32xf32>
    %c0_5 = arith.constant 0 : index
    %c0_6 = arith.constant 0 : index
    %6 = vector.load %arg4[%c0_5, %c0_6] : memref<8x32xf32, #tpu.memory_space<vmem>>, vector<8x32xf32>
    tpu.vector_store %arg4[%c0_5, %c0_6], %5 {strides = array<i32>} : memref<8x32xf32, #tpu.memory_space<vmem>>, vector<8x32xf32>,
    %cst_7 = arith.constant dense<0.000000e+00> : vector<32xf32>
    %7 = vector.multi_reduction <add>, %5, %cst_7 [0] : vector<8x32xf32> to vector<32xf32>
    %8 = vector.shape_cast %7 : vector<32xf32> to vector<1x32xf32>
    %9 = vector.shape_cast %8 : vector<1x32xf32> to vector<1x1x32xf32>
    %c0_8 = arith.constant 0 : index
    %c0_9 = arith.constant 0 : index
    %c0_10 = arith.constant 0 : index
    %10 = vector.load %arg5[%c0_8, %c0_9, %c0_10] : memref<1x1x32xf32, #tpu.memory_space<vmem>>, vector<1x1x32xf32>
    tpu.vector_store %arg5[%c0_8, %c0_9, %c0_10], %9 {strides = array<i32>} : memref<1x1x32xf32, #tpu.memory_space<vmem>>, vector<1x1x32xf32>,
    %11 = arith.mulf %5, %5 : vector<8x32xf32>
    %cst_11 = arith.constant dense<0.000000e+00> : vector<32xf32>
    %12 = vector.multi_reduction <add>, %11, %cst_11 [0] : vector<8x32xf32> to vector<32xf32>
    %13 = vector.shape_cast %12 : vector<32xf32> to vector<1x32xf32>
    %14 = vector.shape_cast %13 : vector<1x32xf32> to vector<1x1x32xf32>
    %c0_12 = arith.constant 0 : index
    %c0_13 = arith.constant 0 : index
    %c0_14 = arith.constant 0 : index
    %15 = vector.load %arg6[%c0_12, %c0_13, %c0_14] : memref<1x1x32xf32, #tpu.memory_space<vmem>>, vector<1x1x32xf32>
    tpu.vector_store %arg6[%c0_12, %c0_13, %c0_14], %14 {strides = array<i32>} : memref<1x1x32xf32, #tpu.memory_space<vmem>>, vector<1x1x32xf32>,
    return
  }
  func.func @transform_0(%arg0: i32) -> (i32, i32) {
    %c0_i32 = arith.constant 0 : i32
    %c0_i32_0 = arith.constant 0 : i32
    return %arg0, %c0_i32 : i32, i32
  }
  func.func @transform_1(%arg0: i32) -> (i32, i32) {
    %c0_i32 = arith.constant 0 : i32
    %c0_i32_0 = arith.constant 0 : i32
    %c0_i32_1 = arith.constant 0 : i32
    return %c0_i32, %c0_i32_0 : i32, i32
  }
  func.func @transform_2(%arg0: i32) -> (i32, i32) {
    %c0_i32 = arith.constant 0 : i32
    %c0_i32_0 = arith.constant 0 : i32
    %c0_i32_1 = arith.constant 0 : i32
    return %c0_i32, %c0_i32_0 : i32, i32
  }
  func.func @transform_3(%arg0: i32) -> (i32, i32) {
    %c0_i32 = arith.constant 0 : i32
    %c0_i32_0 = arith.constant 0 : i32
    return %arg0, %c0_i32 : i32, i32
  }
  func.func @transform_4(%arg0: i32) -> (i32, i32, i32) {
    %c0_i32 = arith.constant 0 : i32
    %c0_i32_0 = arith.constant 0 : i32
    %c0_i32_1 = arith.constant 0 : i32
    return %arg0, %c0_i32, %c0_i32_0 : i32, i32, i32
  }
  func.func @transform_5(%arg0: i32) -> (i32, i32, i32) {
    %c0_i32 = arith.constant 0 : i32
    %c0_i32_0 = arith.constant 0 : i32
    %c0_i32_1 = arith.constant 0 : i32
    return %arg0, %c0_i32, %c0_i32_0 : i32, i32, i32
  }
}

module attributes {stable_mosaic.version = 11 : i64} {
  func.func @_affine_act_kernel(%arg0: i32, %arg1: memref<2x128xf32, #tpu.memory_space<vmem>>, %arg2: memref<1x128xf32, #tpu.memory_space<vmem>>, %arg3: memref<1x128xf32, #tpu.memory_space<vmem>>, %arg4: memref<2x128xf32, #tpu.memory_space<vmem>>) attributes {dimension_semantics = [#tpu.dimension_semantics<parallel>], iteration_bounds = array<i64: 1>, scalar_prefetch = 0 : i64, scratch_operands = 0 : i64, tpu.core_type = #tpu.core_type<tc>, window_params = [{transform_indices = @transform_0, window_bounds = array<i64: 2, 128>}, {pipeline_mode = #tpu.pipeline_mode<synchronous>, transform_indices = @transform_1, window_bounds = array<i64: 1, 128>}, {pipeline_mode = #tpu.pipeline_mode<synchronous>, transform_indices = @transform_2, window_bounds = array<i64: 1, 128>}, {transform_indices = @transform_3, window_bounds = array<i64: 2, 128>}]} {
    %c0 = arith.constant 0 : index
    %c0_0 = arith.constant 0 : index
    %0 = vector.load %arg1[%c0, %c0_0] : memref<2x128xf32, #tpu.memory_space<vmem>>, vector<2x128xf32>
    %c0_1 = arith.constant 0 : index
    %c0_2 = arith.constant 0 : index
    %1 = vector.load %arg2[%c0_1, %c0_2] : memref<1x128xf32, #tpu.memory_space<vmem>>, vector<1x128xf32>
    %2 = vector.broadcast %1 : vector<1x128xf32> to vector<2x128xf32>
    %3 = arith.mulf %0, %2 : vector<2x128xf32>
    %c0_3 = arith.constant 0 : index
    %c0_4 = arith.constant 0 : index
    %4 = vector.load %arg3[%c0_3, %c0_4] : memref<1x128xf32, #tpu.memory_space<vmem>>, vector<1x128xf32>
    %5 = vector.broadcast %4 : vector<1x128xf32> to vector<2x128xf32>
    %6 = arith.addf %3, %5 : vector<2x128xf32>
    %cst = arith.constant 0.000000e+00 : f32
    %7 = vector.broadcast %cst : f32 to vector<2x128xf32>
    %8 = arith.maximumf %6, %7 : vector<2x128xf32>
    %c0_5 = arith.constant 0 : index
    %c0_6 = arith.constant 0 : index
    %9 = vector.load %arg4[%c0_5, %c0_6] : memref<2x128xf32, #tpu.memory_space<vmem>>, vector<2x128xf32>
    tpu.vector_store %arg4[%c0_5, %c0_6], %8 {strides = array<i32>} : memref<2x128xf32, #tpu.memory_space<vmem>>, vector<2x128xf32>,
    return
  }
  func.func @transform_0(%arg0: i32) -> (i32, i32) {
    %c0_i32 = arith.constant 0 : i32
    %c0_i32_0 = arith.constant 0 : i32
    return %arg0, %c0_i32 : i32, i32
  }
  func.func @transform_1(%arg0: i32) -> (i32, i32) {
    %c0_i32 = arith.constant 0 : i32
    %c0_i32_0 = arith.constant 0 : i32
    %c0_i32_1 = arith.constant 0 : i32
    return %c0_i32, %c0_i32_0 : i32, i32
  }
  func.func @transform_2(%arg0: i32) -> (i32, i32) {
    %c0_i32 = arith.constant 0 : i32
    %c0_i32_0 = arith.constant 0 : i32
    %c0_i32_1 = arith.constant 0 : i32
    return %c0_i32, %c0_i32_0 : i32, i32
  }
  func.func @transform_3(%arg0: i32) -> (i32, i32) {
    %c0_i32 = arith.constant 0 : i32
    %c0_i32_0 = arith.constant 0 : i32
    return %arg0, %c0_i32 : i32, i32
  }
}

module attributes {stable_mosaic.version = 11 : i64} {
  func.func @_vq_kernel(%arg0: i32, %arg1: memref<8x32xf32, #tpu.memory_space<vmem>>, %arg2: memref<64x32xf32, #tpu.memory_space<vmem>>, %arg3: memref<1x64xf32, #tpu.memory_space<vmem>>, %arg4: memref<8x1xi32, #tpu.memory_space<vmem>>, %arg5: memref<8x32xf32, #tpu.memory_space<vmem>>) attributes {dimension_semantics = [#tpu.dimension_semantics<arbitrary>], iteration_bounds = array<i64: 1>, scalar_prefetch = 0 : i64, scratch_operands = 0 : i64, tpu.core_type = #tpu.core_type<tc>, window_params = [{pipeline_mode = #tpu.pipeline_mode<synchronous>, transform_indices = @transform_0, window_bounds = array<i64: 8, 32>}, {pipeline_mode = #tpu.pipeline_mode<synchronous>, transform_indices = @transform_1, window_bounds = array<i64: 64, 32>}, {pipeline_mode = #tpu.pipeline_mode<synchronous>, transform_indices = @transform_2, window_bounds = array<i64: 1, 64>}, {pipeline_mode = #tpu.pipeline_mode<synchronous>, transform_indices = @transform_3, window_bounds = array<i64: 8, 1>}, {pipeline_mode = #tpu.pipeline_mode<synchronous>, transform_indices = @transform_4, window_bounds = array<i64: 8, 32>}]} {
    %c0 = arith.constant 0 : index
    %c0_0 = arith.constant 0 : index
    %0 = vector.load %arg1[%c0, %c0_0] : memref<8x32xf32, #tpu.memory_space<vmem>>, vector<8x32xf32>
    %c0_1 = arith.constant 0 : index
    %c0_2 = arith.constant 0 : index
    %1 = vector.load %arg2[%c0_1, %c0_2] : memref<64x32xf32, #tpu.memory_space<vmem>>, vector<64x32xf32>
    %2 = arith.mulf %0, %0 : vector<8x32xf32>
    %cst = arith.constant dense<0.000000e+00> : vector<8xf32>
    %3 = vector.multi_reduction <add>, %2, %cst [1] : vector<8x32xf32> to vector<8xf32>
    %4 = vector.shape_cast %3 : vector<8xf32> to vector<8x1xf32>
    %cst_3 = arith.constant dense<0.000000e+00> : vector<8x64xf32>
    %5 = tpu.matmul %0, %1, %cst_3 {dimension_numbers = #tpu.dot_dimension_numbers<[1], [1], [0], [0], [0, 0, 1, 0], [], []>} : vector<8x32xf32>, vector<64x32xf32>, vector<8x64xf32> -> vector<8x64xf32>
    %c0_4 = arith.constant 0 : index
    %c0_5 = arith.constant 0 : index
    %6 = vector.load %arg3[%c0_4, %c0_5] : memref<1x64xf32, #tpu.memory_space<vmem>>, vector<1x64xf32>
    %7 = vector.broadcast %4 : vector<8x1xf32> to vector<8x64xf32>
    %8 = vector.broadcast %6 : vector<1x64xf32> to vector<8x64xf32>
    %9 = arith.addf %7, %8 : vector<8x64xf32>
    %cst_6 = arith.constant 2.000000e+00 : f32
    %10 = vector.broadcast %cst_6 : f32 to vector<8x64xf32>
    %11 = arith.mulf %10, %5 : vector<8x64xf32>
    %12 = arith.subf %9, %11 : vector<8x64xf32>
    %cst_7 = arith.constant dense<0x7F800000> : vector<8xf32>
    %13 = vector.multi_reduction <minimumf>, %12, %cst_7 [1] : vector<8x64xf32> to vector<8xf32>
    %14 = vector.shape_cast %13 : vector<8xf32> to vector<8x1xf32>
    %15 = tpu.iota {dimensions = array<i32: 1>} : vector<8x64xi32>
    %16 = vector.broadcast %14 : vector<8x1xf32> to vector<8x64xf32>
    %17 = arith.cmpf oeq, %12, %16 : vector<8x64xf32>
    %c64_i32 = arith.constant 64 : i32
    %18 = vector.broadcast %c64_i32 : i32 to vector<8x64xi32>
    %19 = arith.select %17, %15, %18 : vector<8x64xi1>, vector<8x64xi32>
    %cst_8 = arith.constant dense<2147483647> : vector<8xi32>
    %20 = vector.multi_reduction <minsi>, %19, %cst_8 [1] : vector<8x64xi32> to vector<8xi32>
    %21 = vector.shape_cast %20 : vector<8xi32> to vector<8x1xi32>
    %c0_9 = arith.constant 0 : index
    %c0_10 = arith.constant 0 : index
    %22 = vector.load %arg4[%c0_9, %c0_10] : memref<8x1xi32, #tpu.memory_space<vmem>>, vector<8x1xi32>
    tpu.vector_store %arg4[%c0_9, %c0_10], %21 {strides = array<i32>} : memref<8x1xi32, #tpu.memory_space<vmem>>, vector<8x1xi32>,
    %23 = vector.broadcast %21 : vector<8x1xi32> to vector<8x64xi32>
    %24 = arith.cmpi eq, %15, %23 : vector<8x64xi32>
    %25 = arith.extui %24 : vector<8x64xi1> to vector<8x64xi32>
    %26 = arith.sitofp %25 : vector<8x64xi32> to vector<8x64xf32>
    %cst_11 = arith.constant dense<0.000000e+00> : vector<8x32xf32>
    %27 = tpu.matmul %26, %1, %cst_11 {dimension_numbers = #tpu.dot_dimension_numbers<[1], [0], [0], [1], [0, 0, 1, 1], [], []>} : vector<8x64xf32>, vector<64x32xf32>, vector<8x32xf32> -> vector<8x32xf32>
    %c0_12 = arith.constant 0 : index
    %c0_13 = arith.constant 0 : index
    %28 = vector.load %arg5[%c0_12, %c0_13] : memref<8x32xf32, #tpu.memory_space<vmem>>, vector<8x32xf32>
    tpu.vector_store %arg5[%c0_12, %c0_13], %27 {strides = array<i32>} : memref<8x32xf32, #tpu.memory_space<vmem>>, vector<8x32xf32>,
    return
  }
  func.func @transform_0(%arg0: i32) -> (i32, i32) {
    %c0_i32 = arith.constant 0 : i32
    %c0_i32_0 = arith.constant 0 : i32
    %c0_i32_1 = arith.constant 0 : i32
    return %c0_i32, %c0_i32_0 : i32, i32
  }
  func.func @transform_1(%arg0: i32) -> (i32, i32) {
    %c0_i32 = arith.constant 0 : i32
    %c0_i32_0 = arith.constant 0 : i32
    %c0_i32_1 = arith.constant 0 : i32
    return %c0_i32, %c0_i32_0 : i32, i32
  }
  func.func @transform_2(%arg0: i32) -> (i32, i32) {
    %c0_i32 = arith.constant 0 : i32
    %c0_i32_0 = arith.constant 0 : i32
    %c0_i32_1 = arith.constant 0 : i32
    return %c0_i32, %c0_i32_0 : i32, i32
  }
  func.func @transform_3(%arg0: i32) -> (i32, i32) {
    %c0_i32 = arith.constant 0 : i32
    %c0_i32_0 = arith.constant 0 : i32
    %c0_i32_1 = arith.constant 0 : i32
    return %c0_i32, %c0_i32_0 : i32, i32
  }
  func.func @transform_4(%arg0: i32) -> (i32, i32) {
    %c0_i32 = arith.constant 0 : i32
    %c0_i32_0 = arith.constant 0 : i32
    %c0_i32_1 = arith.constant 0 : i32
    return %c0_i32, %c0_i32_0 : i32, i32
  }
}

module attributes {stable_mosaic.version = 11 : i64} {
  func.func @_affine_act_kernel(%arg0: i32, %arg1: memref<8x128xf32, #tpu.memory_space<vmem>>, %arg2: memref<1x128xf32, #tpu.memory_space<vmem>>, %arg3: memref<1x128xf32, #tpu.memory_space<vmem>>, %arg4: memref<8x128xf32, #tpu.memory_space<vmem>>, %arg5: memref<8x128xf32, #tpu.memory_space<vmem>>) attributes {dimension_semantics = [#tpu.dimension_semantics<parallel>], iteration_bounds = array<i64: 1>, scalar_prefetch = 0 : i64, scratch_operands = 0 : i64, tpu.core_type = #tpu.core_type<tc>, window_params = [{transform_indices = @transform_0, window_bounds = array<i64: 8, 128>}, {pipeline_mode = #tpu.pipeline_mode<synchronous>, transform_indices = @transform_1, window_bounds = array<i64: 1, 128>}, {pipeline_mode = #tpu.pipeline_mode<synchronous>, transform_indices = @transform_2, window_bounds = array<i64: 1, 128>}, {transform_indices = @transform_3, window_bounds = array<i64: 8, 128>}, {transform_indices = @transform_4, window_bounds = array<i64: 8, 128>}]} {
    %c0 = arith.constant 0 : index
    %c0_0 = arith.constant 0 : index
    %0 = vector.load %arg1[%c0, %c0_0] : memref<8x128xf32, #tpu.memory_space<vmem>>, vector<8x128xf32>
    %c0_1 = arith.constant 0 : index
    %c0_2 = arith.constant 0 : index
    %1 = vector.load %arg2[%c0_1, %c0_2] : memref<1x128xf32, #tpu.memory_space<vmem>>, vector<1x128xf32>
    %2 = vector.broadcast %1 : vector<1x128xf32> to vector<8x128xf32>
    %3 = arith.mulf %0, %2 : vector<8x128xf32>
    %c0_3 = arith.constant 0 : index
    %c0_4 = arith.constant 0 : index
    %4 = vector.load %arg3[%c0_3, %c0_4] : memref<1x128xf32, #tpu.memory_space<vmem>>, vector<1x128xf32>
    %5 = vector.broadcast %4 : vector<1x128xf32> to vector<8x128xf32>
    %6 = arith.addf %3, %5 : vector<8x128xf32>
    %c0_5 = arith.constant 0 : index
    %c0_6 = arith.constant 0 : index
    %7 = vector.load %arg4[%c0_5, %c0_6] : memref<8x128xf32, #tpu.memory_space<vmem>>, vector<8x128xf32>
    %8 = arith.addf %6, %7 : vector<8x128xf32>
    %c0_7 = arith.constant 0 : index
    %c0_8 = arith.constant 0 : index
    %9 = vector.load %arg5[%c0_7, %c0_8] : memref<8x128xf32, #tpu.memory_space<vmem>>, vector<8x128xf32>
    tpu.vector_store %arg5[%c0_7, %c0_8], %8 {strides = array<i32>} : memref<8x128xf32, #tpu.memory_space<vmem>>, vector<8x128xf32>,
    return
  }
  func.func @transform_0(%arg0: i32) -> (i32, i32) {
    %c0_i32 = arith.constant 0 : i32
    %c0_i32_0 = arith.constant 0 : i32
    return %arg0, %c0_i32 : i32, i32
  }
  func.func @transform_1(%arg0: i32) -> (i32, i32) {
    %c0_i32 = arith.constant 0 : i32
    %c0_i32_0 = arith.constant 0 : i32
    %c0_i32_1 = arith.constant 0 : i32
    return %c0_i32, %c0_i32_0 : i32, i32
  }
  func.func @transform_2(%arg0: i32) -> (i32, i32) {
    %c0_i32 = arith.constant 0 : i32
    %c0_i32_0 = arith.constant 0 : i32
    %c0_i32_1 = arith.constant 0 : i32
    return %c0_i32, %c0_i32_0 : i32, i32
  }
  func.func @transform_3(%arg0: i32) -> (i32, i32) {
    %c0_i32 = arith.constant 0 : i32
    %c0_i32_0 = arith.constant 0 : i32
    return %arg0, %c0_i32 : i32, i32
  }
  func.func @transform_4(%arg0: i32) -> (i32, i32) {
    %c0_i32 = arith.constant 0 : i32
    %c0_i32_0 = arith.constant 0 : i32
    return %arg0, %c0_i32 : i32, i32
  }
}

module attributes {stable_mosaic.version = 11 : i64} {
  func.func @_affine_act_kernel(%arg0: i32, %arg1: memref<32x128xf32, #tpu.memory_space<vmem>>, %arg2: memref<1x128xf32, #tpu.memory_space<vmem>>, %arg3: memref<1x128xf32, #tpu.memory_space<vmem>>, %arg4: memref<32x128xf32, #tpu.memory_space<vmem>>, %arg5: memref<32x128xf32, #tpu.memory_space<vmem>>) attributes {dimension_semantics = [#tpu.dimension_semantics<parallel>], iteration_bounds = array<i64: 1>, scalar_prefetch = 0 : i64, scratch_operands = 0 : i64, tpu.core_type = #tpu.core_type<tc>, window_params = [{transform_indices = @transform_0, window_bounds = array<i64: 32, 128>}, {pipeline_mode = #tpu.pipeline_mode<synchronous>, transform_indices = @transform_1, window_bounds = array<i64: 1, 128>}, {pipeline_mode = #tpu.pipeline_mode<synchronous>, transform_indices = @transform_2, window_bounds = array<i64: 1, 128>}, {transform_indices = @transform_3, window_bounds = array<i64: 32, 128>}, {transform_indices = @transform_4, window_bounds = array<i64: 32, 128>}]} {
    %c0 = arith.constant 0 : index
    %c0_0 = arith.constant 0 : index
    %0 = vector.load %arg1[%c0, %c0_0] : memref<32x128xf32, #tpu.memory_space<vmem>>, vector<32x128xf32>
    %c0_1 = arith.constant 0 : index
    %c0_2 = arith.constant 0 : index
    %1 = vector.load %arg2[%c0_1, %c0_2] : memref<1x128xf32, #tpu.memory_space<vmem>>, vector<1x128xf32>
    %2 = vector.broadcast %1 : vector<1x128xf32> to vector<32x128xf32>
    %3 = arith.mulf %0, %2 : vector<32x128xf32>
    %c0_3 = arith.constant 0 : index
    %c0_4 = arith.constant 0 : index
    %4 = vector.load %arg3[%c0_3, %c0_4] : memref<1x128xf32, #tpu.memory_space<vmem>>, vector<1x128xf32>
    %5 = vector.broadcast %4 : vector<1x128xf32> to vector<32x128xf32>
    %6 = arith.addf %3, %5 : vector<32x128xf32>
    %c0_5 = arith.constant 0 : index
    %c0_6 = arith.constant 0 : index
    %7 = vector.load %arg4[%c0_5, %c0_6] : memref<32x128xf32, #tpu.memory_space<vmem>>, vector<32x128xf32>
    %8 = arith.addf %6, %7 : vector<32x128xf32>
    %c0_7 = arith.constant 0 : index
    %c0_8 = arith.constant 0 : index
    %9 = vector.load %arg5[%c0_7, %c0_8] : memref<32x128xf32, #tpu.memory_space<vmem>>, vector<32x128xf32>
    tpu.vector_store %arg5[%c0_7, %c0_8], %8 {strides = array<i32>} : memref<32x128xf32, #tpu.memory_space<vmem>>, vector<32x128xf32>,
    return
  }
  func.func @transform_0(%arg0: i32) -> (i32, i32) {
    %c0_i32 = arith.constant 0 : i32
    %c0_i32_0 = arith.constant 0 : i32
    return %arg0, %c0_i32 : i32, i32
  }
  func.func @transform_1(%arg0: i32) -> (i32, i32) {
    %c0_i32 = arith.constant 0 : i32
    %c0_i32_0 = arith.constant 0 : i32
    %c0_i32_1 = arith.constant 0 : i32
    return %c0_i32, %c0_i32_0 : i32, i32
  }
  func.func @transform_2(%arg0: i32) -> (i32, i32) {
    %c0_i32 = arith.constant 0 : i32
    %c0_i32_0 = arith.constant 0 : i32
    %c0_i32_1 = arith.constant 0 : i32
    return %c0_i32, %c0_i32_0 : i32, i32
  }
  func.func @transform_3(%arg0: i32) -> (i32, i32) {
    %c0_i32 = arith.constant 0 : i32
    %c0_i32_0 = arith.constant 0 : i32
    return %arg0, %c0_i32 : i32, i32
  }
  func.func @transform_4(%arg0: i32) -> (i32, i32) {
    %c0_i32 = arith.constant 0 : i32
    %c0_i32_0 = arith.constant 0 : i32
    return %arg0, %c0_i32 : i32, i32
  }
}

module attributes {stable_mosaic.version = 11 : i64} {
  func.func @_matmul_bias_stats_kernel(%arg0: i32, %arg1: memref<512x512xbf16, #tpu.memory_space<vmem>>, %arg2: memref<512x32xbf16, #tpu.memory_space<vmem>>, %arg3: memref<1x32xf32, #tpu.memory_space<vmem>>, %arg4: memref<512x32xf32, #tpu.memory_space<vmem>>, %arg5: memref<1x1x32xf32, #tpu.memory_space<vmem>>, %arg6: memref<1x1x32xf32, #tpu.memory_space<vmem>>) attributes {dimension_semantics = [#tpu.dimension_semantics<parallel>], iteration_bounds = array<i64: 1>, scalar_prefetch = 0 : i64, scratch_operands = 0 : i64, tpu.core_type = #tpu.core_type<tc>, window_params = [{transform_indices = @transform_0, window_bounds = array<i64: 512, 512>}, {pipeline_mode = #tpu.pipeline_mode<synchronous>, transform_indices = @transform_1, window_bounds = array<i64: 512, 32>}, {pipeline_mode = #tpu.pipeline_mode<synchronous>, transform_indices = @transform_2, window_bounds = array<i64: 1, 32>}, {transform_indices = @transform_3, window_bounds = array<i64: 512, 32>}, {transform_indices = @transform_4, window_bounds = array<i64: 1, 1, 32>}, {transform_indices = @transform_5, window_bounds = array<i64: 1, 1, 32>}]} {
    %c0 = arith.constant 0 : index
    %c0_0 = arith.constant 0 : index
    %0 = vector.load %arg1[%c0, %c0_0] : memref<512x512xbf16, #tpu.memory_space<vmem>>, vector<512x512xbf16>
    %c0_1 = arith.constant 0 : index
    %c0_2 = arith.constant 0 : index
    %1 = vector.load %arg2[%c0_1, %c0_2] : memref<512x32xbf16, #tpu.memory_space<vmem>>, vector<512x32xbf16>
    %cst = arith.constant dense<0.000000e+00> : vector<512x32xf32>
    %2 = tpu.matmul %0, %1, %cst {dimension_numbers = #tpu.dot_dimension_numbers<[1], [0], [0], [1], [0, 0, 1, 1], [], []>} : vector<512x512xbf16>, vector<512x32xbf16>, vector<512x32xf32> -> vector<512x32xf32>
    %c0_3 = arith.constant 0 : index
    %c0_4 = arith.constant 0 : index
    %3 = vector.load %arg3[%c0_3, %c0_4] : memref<1x32xf32, #tpu.memory_space<vmem>>, vector<1x32xf32>
    %4 = vector.broadcast %3 : vector<1x32xf32> to vector<512x32xf32>
    %5 = arith.addf %2, %4 : vector<512x32xf32>
    %c0_5 = arith.constant 0 : index
    %c0_6 = arith.constant 0 : index
    %6 = vector.load %arg4[%c0_5, %c0_6] : memref<512x32xf32, #tpu.memory_space<vmem>>, vector<512x32xf32>
    tpu.vector_store %arg4[%c0_5, %c0_6], %5 {strides = array<i32>} : memref<512x32xf32, #tpu.memory_space<vmem>>, vector<512x32xf32>,
    %cst_7 = arith.constant dense<0.000000e+00> : vector<32xf32>
    %7 = vector.multi_reduction <add>, %5, %cst_7 [0] : vector<512x32xf32> to vector<32xf32>
    %8 = vector.shape_cast %7 : vector<32xf32> to vector<1x32xf32>
    %9 = vector.shape_cast %8 : vector<1x32xf32> to vector<1x1x32xf32>
    %c0_8 = arith.constant 0 : index
    %c0_9 = arith.constant 0 : index
    %c0_10 = arith.constant 0 : index
    %10 = vector.load %arg5[%c0_8, %c0_9, %c0_10] : memref<1x1x32xf32, #tpu.memory_space<vmem>>, vector<1x1x32xf32>
    tpu.vector_store %arg5[%c0_8, %c0_9, %c0_10], %9 {strides = array<i32>} : memref<1x1x32xf32, #tpu.memory_space<vmem>>, vector<1x1x32xf32>,
    %11 = arith.mulf %5, %5 : vector<512x32xf32>
    %cst_11 = arith.constant dense<0.000000e+00> : vector<32xf32>
    %12 = vector.multi_reduction <add>, %11, %cst_11 [0] : vector<512x32xf32> to vector<32xf32>
    %13 = vector.shape_cast %12 : vector<32xf32> to vector<1x32xf32>
    %14 = vector.shape_cast %13 : vector<1x32xf32> to vector<1x1x32xf32>
    %c0_12 = arith.constant 0 : index
    %c0_13 = arith.constant 0 : index
    %c0_14 = arith.constant 0 : index
    %15 = vector.load %arg6[%c0_12, %c0_13, %c0_14] : memref<1x1x32xf32, #tpu.memory_space<vmem>>, vector<1x1x32xf32>
    tpu.vector_store %arg6[%c0_12, %c0_13, %c0_14], %14 {strides = array<i32>} : memref<1x1x32xf32, #tpu.memory_space<vmem>>, vector<1x1x32xf32>,
    return
  }
  func.func @transform_0(%arg0: i32) -> (i32, i32) {
    %c0_i32 = arith.constant 0 : i32
    %c0_i32_0 = arith.constant 0 : i32
    return %arg0, %c0_i32 : i32, i32
  }
  func.func @transform_1(%arg0: i32) -> (i32, i32) {
    %c0_i32 = arith.constant 0 : i32
    %c0_i32_0 = arith.constant 0 : i32
    %c0_i32_1 = arith.constant 0 : i32
    return %c0_i32, %c0_i32_0 : i32, i32
  }
  func.func @transform_2(%arg0: i32) -> (i32, i32) {
    %c0_i32 = arith.constant 0 : i32
    %c0_i32_0 = arith.constant 0 : i32
    %c0_i32_1 = arith.constant 0 : i32
    return %c0_i32, %c0_i32_0 : i32, i32
  }
  func.func @transform_3(%arg0: i32) -> (i32, i32) {
    %c0_i32 = arith.constant 0 : i32
    %c0_i32_0 = arith.constant 0 : i32
    return %arg0, %c0_i32 : i32, i32
  }
  func.func @transform_4(%arg0: i32) -> (i32, i32, i32) {
    %c0_i32 = arith.constant 0 : i32
    %c0_i32_0 = arith.constant 0 : i32
    %c0_i32_1 = arith.constant 0 : i32
    return %arg0, %c0_i32, %c0_i32_0 : i32, i32, i32
  }
  func.func @transform_5(%arg0: i32) -> (i32, i32, i32) {
    %c0_i32 = arith.constant 0 : i32
    %c0_i32_0 = arith.constant 0 : i32
    %c0_i32_1 = arith.constant 0 : i32
    return %arg0, %c0_i32, %c0_i32_0 : i32, i32, i32
  }
}

module attributes {stable_mosaic.version = 11 : i64} {
  func.func @_affine_act_kernel(%arg0: i32, %arg1: memref<128x128xf32, #tpu.memory_space<vmem>>, %arg2: memref<1x128xf32, #tpu.memory_space<vmem>>, %arg3: memref<1x128xf32, #tpu.memory_space<vmem>>, %arg4: memref<128x128xf32, #tpu.memory_space<vmem>>) attributes {dimension_semantics = [#tpu.dimension_semantics<parallel>], iteration_bounds = array<i64: 1>, scalar_prefetch = 0 : i64, scratch_operands = 0 : i64, tpu.core_type = #tpu.core_type<tc>, window_params = [{transform_indices = @transform_0, window_bounds = array<i64: 128, 128>}, {pipeline_mode = #tpu.pipeline_mode<synchronous>, transform_indices = @transform_1, window_bounds = array<i64: 1, 128>}, {pipeline_mode = #tpu.pipeline_mode<synchronous>, transform_indices = @transform_2, window_bounds = array<i64: 1, 128>}, {transform_indices = @transform_3, window_bounds = array<i64: 128, 128>}]} {
    %c0 = arith.constant 0 : index
    %c0_0 = arith.constant 0 : index
    %0 = vector.load %arg1[%c0, %c0_0] : memref<128x128xf32, #tpu.memory_space<vmem>>, vector<128x128xf32>
    %c0_1 = arith.constant 0 : index
    %c0_2 = arith.constant 0 : index
    %1 = vector.load %arg2[%c0_1, %c0_2] : memref<1x128xf32, #tpu.memory_space<vmem>>, vector<1x128xf32>
    %2 = vector.broadcast %1 : vector<1x128xf32> to vector<128x128xf32>
    %3 = arith.mulf %0, %2 : vector<128x128xf32>
    %c0_3 = arith.constant 0 : index
    %c0_4 = arith.constant 0 : index
    %4 = vector.load %arg3[%c0_3, %c0_4] : memref<1x128xf32, #tpu.memory_space<vmem>>, vector<1x128xf32>
    %5 = vector.broadcast %4 : vector<1x128xf32> to vector<128x128xf32>
    %6 = arith.addf %3, %5 : vector<128x128xf32>
    %c0_5 = arith.constant 0 : index
    %c0_6 = arith.constant 0 : index
    %7 = vector.load %arg4[%c0_5, %c0_6] : memref<128x128xf32, #tpu.memory_space<vmem>>, vector<128x128xf32>
    tpu.vector_store %arg4[%c0_5, %c0_6], %6 {strides = array<i32>} : memref<128x128xf32, #tpu.memory_space<vmem>>, vector<128x128xf32>,
    return
  }
  func.func @transform_0(%arg0: i32) -> (i32, i32) {
    %c0_i32 = arith.constant 0 : i32
    %c0_i32_0 = arith.constant 0 : i32
    return %arg0, %c0_i32 : i32, i32
  }
  func.func @transform_1(%arg0: i32) -> (i32, i32) {
    %c0_i32 = arith.constant 0 : i32
    %c0_i32_0 = arith.constant 0 : i32
    %c0_i32_1 = arith.constant 0 : i32
    return %c0_i32, %c0_i32_0 : i32, i32
  }
  func.func @transform_2(%arg0: i32) -> (i32, i32) {
    %c0_i32 = arith.constant 0 : i32
    %c0_i32_0 = arith.constant 0 : i32
    %c0_i32_1 = arith.constant 0 : i32
    return %c0_i32, %c0_i32_0 : i32, i32
  }
  func.func @transform_3(%arg0: i32) -> (i32, i32) {
    %c0_i32 = arith.constant 0 : i32
    %c0_i32_0 = arith.constant 0 : i32
    return %arg0, %c0_i32 : i32, i32
  }
}

module attributes {stable_mosaic.version = 11 : i64} {
  func.func @_matmul_bias_act_kernel(%arg0: i32, %arg1: memref<1024x512xbf16, #tpu.memory_space<vmem>>, %arg2: memref<512x3xbf16, #tpu.memory_space<vmem>>, %arg3: memref<1x3xf32, #tpu.memory_space<vmem>>, %arg4: memref<1024x3xf32, #tpu.memory_space<vmem>>) attributes {dimension_semantics = [#tpu.dimension_semantics<parallel>], iteration_bounds = array<i64: 2>, scalar_prefetch = 0 : i64, scratch_operands = 0 : i64, tpu.core_type = #tpu.core_type<tc>, window_params = [{transform_indices = @transform_0, window_bounds = array<i64: 1024, 512>}, {pipeline_mode = #tpu.pipeline_mode<synchronous>, transform_indices = @transform_1, window_bounds = array<i64: 512, 3>}, {pipeline_mode = #tpu.pipeline_mode<synchronous>, transform_indices = @transform_2, window_bounds = array<i64: 1, 3>}, {transform_indices = @transform_3, window_bounds = array<i64: 1024, 3>}]} {
    %c0 = arith.constant 0 : index
    %c0_0 = arith.constant 0 : index
    %0 = vector.load %arg1[%c0, %c0_0] : memref<1024x512xbf16, #tpu.memory_space<vmem>>, vector<1024x512xbf16>
    %c0_1 = arith.constant 0 : index
    %c0_2 = arith.constant 0 : index
    %1 = vector.load %arg2[%c0_1, %c0_2] : memref<512x3xbf16, #tpu.memory_space<vmem>>, vector<512x3xbf16>
    %cst = arith.constant dense<0.000000e+00> : vector<1024x3xf32>
    %2 = tpu.matmul %0, %1, %cst {dimension_numbers = #tpu.dot_dimension_numbers<[1], [0], [0], [1], [0, 0, 1, 1], [], []>} : vector<1024x512xbf16>, vector<512x3xbf16>, vector<1024x3xf32> -> vector<1024x3xf32>
    %c0_3 = arith.constant 0 : index
    %c0_4 = arith.constant 0 : index
    %3 = vector.load %arg3[%c0_3, %c0_4] : memref<1x3xf32, #tpu.memory_space<vmem>>, vector<1x3xf32>
    %4 = vector.broadcast %3 : vector<1x3xf32> to vector<1024x3xf32>
    %5 = arith.addf %2, %4 : vector<1024x3xf32>
    %6 = math.tanh %5 : vector<1024x3xf32>
    %c0_5 = arith.constant 0 : index
    %c0_6 = arith.constant 0 : index
    %7 = vector.load %arg4[%c0_5, %c0_6] : memref<1024x3xf32, #tpu.memory_space<vmem>>, vector<1024x3xf32>
    tpu.vector_store %arg4[%c0_5, %c0_6], %6 {strides = array<i32>} : memref<1024x3xf32, #tpu.memory_space<vmem>>, vector<1024x3xf32>,
    return
  }
  func.func @transform_0(%arg0: i32) -> (i32, i32) {
    %c0_i32 = arith.constant 0 : i32
    %c0_i32_0 = arith.constant 0 : i32
    return %arg0, %c0_i32 : i32, i32
  }
  func.func @transform_1(%arg0: i32) -> (i32, i32) {
    %c0_i32 = arith.constant 0 : i32
    %c0_i32_0 = arith.constant 0 : i32
    %c0_i32_1 = arith.constant 0 : i32
    return %c0_i32, %c0_i32_0 : i32, i32
  }
  func.func @transform_2(%arg0: i32) -> (i32, i32) {
    %c0_i32 = arith.constant 0 : i32
    %c0_i32_0 = arith.constant 0 : i32
    %c0_i32_1 = arith.constant 0 : i32
    return %c0_i32, %c0_i32_0 : i32, i32
  }
  func.func @transform_3(%arg0: i32) -> (i32, i32) {
    %c0_i32 = arith.constant 0 : i32
    %c0_i32_0 = arith.constant 0 : i32
    return %arg0, %c0_i32 : i32, i32
  }
}

</mosaic_0001>

<llo_original>
// kernel: tile.113
$region0: #{tile.113}
  #allocation0 [shape = 's32[1]{0}', space=sflag, size = 0x4, scoped, tag = 'scoped memory for tile.113']
  %s0 = inlined_call_operand.vmem [shape: f32[32], index: 0, kind: input, shape index: {}]
  %s1 = inlined_call_operand.vmem [shape: f32[4,32], index: 1, kind: output, shape index: {}]
  // Predicated region
  $region2: #{tile.113} parent=0 // pred_check
    _
  $region3: #{tile.113} parent=0 // pred_check_branch
    %3 = sbr.rel (0) target = $region5
  $region4: #{tile.113} parent=0 // pred_region
    _
  $region5: #{tile.113} parent=0 // pred_fallthru
    _
  %v4 = vld [vmem:[%s0] ss:$0 sm:$0xff]
  %5 = vst [vmem:[%s1] sm:$0xf] %v4

// kernel: tile.118
$region0: #{tile.118}
  %s0 = inlined_call_operand.vmem [shape: f32[4,32], index: 0, kind: input, shape index: {}]
  %s1 = inlined_call_operand.vmem [shape: f32[1,128], index: 1, kind: output, shape index: {}]
  $region1: #{tile.118} parent=0
    #allocation0 [shape = 'u8[4096]{0}', space=vmem, size = 0x1000, scoped, tag = 'scoped mem for output reshape']
    #allocation1 [shape = 'u8[4096]{0}', space=vmem, size = 0x1000, scoped, tag = 'scoped mem for input reshape']
    %s3 = sshllo.u32 0, 4
    %v4 = vld [vmem:[%s0] sm:%s3]
    %5 = vst [vmem:[#allocation1] sm:%s3] %v4
    %v6 = vld [vmem:[#allocation1] sm:$0x1]
    %vm7 = vcmask 261120
    %8 = vst.msk [vmem:[#allocation0] sm:$0x1] %vm7, %v6
    %s9 = scalar_lea.vmem [#allocation1], 3
    %v10 = vld [vmem:[%s9] sm:$0x1]
    %11 = vrot.lane.b32.xlu0 %v10, 96
    %v12 = vpop.permute.xlu0 %11
    %vm13 = vcmask 1048320
    %14 = vst.msk [vmem:[#allocation0] sm:$0x1] %vm13, %v12
    %s15 = scalar_lea.vmem [#allocation1], 2
    %v16 = vld [vmem:[%s15] sm:$0x1]
    %17 = vrot.lane.b32.xlu0 %v16, 64
    %v18 = vpop.permute.xlu0 %17
    %vm19 = vcmask 785920
    %20 = vst.msk [vmem:[#allocation0] sm:$0x1] %vm19, %v18
    %s21 = scalar_lea.vmem [#allocation1], 1
    %v22 = vld [vmem:[%s21] sm:$0x1]
    %23 = vrot.lane.b32.xlu0 %v22, 32
    %v24 = vpop.permute.xlu0 %23
    %vm25 = vcmask 523520
    %26 = vst.msk [vmem:[#allocation0] sm:$0x1] %vm25, %v24
    %s28 = sshllo.u32 0, 1
    %v30 = vld [vmem:[#allocation0] sm:%s28]
    %s31 = sshllo.u32 0, 1
    %32 = vst [vmem:[%s1] sm:%s31] %v30

// kernel: _lambda_.25
$region0: #{_lambda_.25}
  #allocation0 [shape = 'u32[]', space=smem, size = 0x4, offset = 0x4, fixed_abs, tag = 'smem constant byte address 0x4 - core index']
  #allocation1 [shape = 'u32[144,128]{1,0:T(1,128)}', space=vmem, size = 0x12000, scoped, tag = 'internal scratch']
  %s0 = inlined_call_operand.vmem [shape: f32[128,128], index: 0, kind: input, shape index: {}]
  %s1 = inlined_call_operand.vmem [shape: f32[1,128], index: 1, kind: input, shape index: {}]
  %s2 = inlined_call_operand.vmem [shape: f32[1,128], index: 2, kind: input, shape index: {}]
  %s3 = inlined_call_operand.vmem [shape: f32[128,128], index: 3, kind: output, shape index: {}]
  %s4 = sld [smem:[#allocation0]]
  $region22: #{_lambda_.25} parent=0
    _
  %s6 = ssub.s32 1, %s4
  %s7 = scalar_select 0, %s6, %s4
  // Predicated region
  $region2: #{_lambda_.25} parent=0 // pred_check
    _
  $region3: #{_lambda_.25} parent=0 // pred_check_branch
    %9 = sbr.rel (0) target = $region5
  $region4: #{_lambda_.25} parent=0 // pred_region
    _
  $region5: #{_lambda_.25} parent=0 // pred_fallthru
    _
  // Predicated region
  $region6: #{_lambda_.25} parent=0 // pred_check
    _
  $region7: #{_lambda_.25} parent=0 // pred_check_branch
    %11 = sbr.rel (0) target = $region9
  $region8: #{_lambda_.25} parent=0 // pred_region
    _
  $region9: #{_lambda_.25} parent=0 // pred_fallthru
    _
  // Predicated region
  $region10: #{_lambda_.25} parent=0 // pred_check
    _
  $region11: #{_lambda_.25} parent=0 // pred_check_branch
    %13 = sbr.rel (0) target = $region13
  $region12: #{_lambda_.25} parent=0 // pred_region
    _
  $region13: #{_lambda_.25} parent=0 // pred_fallthru
    _
  %v14 = vld [vmem:[%s0] sm:$0xff]
  %v15 = vld [vmem:[%s0 + $0x8] sm:$0xff]
  %v16 = vld [vmem:[%s0 + $0x10] sm:$0xff]
  %v17 = vld [vmem:[%s0 + $0x18] sm:$0xff]
  %v18 = vld [vmem:[%s0 + $0x20] sm:$0xff]
  %v19 = vld [vmem:[%s0 + $0x28] sm:$0xff]
  %v20 = vld [vmem:[%s0 + $0x30] sm:$0xff]
  %v21 = vld [vmem:[%s0 + $0x38] sm:$0xff]
  %v22 = vld [vmem:[%s0 + $0x40] sm:$0xff]
  %v23 = vld [vmem:[%s0 + $0x48] sm:$0xff]
  %v24 = vld [vmem:[%s0 + $0x50] sm:$0xff]
  %v25 = vld [vmem:[%s0 + $0x58] sm:$0xff]
  %v26 = vld [vmem:[%s0 + $0x60] sm:$0xff]
  %v27 = vld [vmem:[%s0 + $0x68] sm:$0xff]
  %v28 = vld [vmem:[%s0 + $0x70] sm:$0xff]
  %v29 = vld [vmem:[%s0 + $0x78] sm:$0xff]
  %v30 = vld [vmem:[%s1] sm:$0x1]
  %v32 = vlaneseq
  %v33 = vshrl.u32 %v32, 7
  %v34 = vsub.s32 0, %v33
  %v35 = vrot.slane %v30, %v34
  %v37 = vmul.f32 %v14, %v35
  %v38 = vmul.f32 %v15, %v35
  %v39 = vmul.f32 %v16, %v35
  %v40 = vmul.f32 %v17, %v35
  %v41 = vmul.f32 %v18, %v35
  %v42 = vmul.f32 %v19, %v35
  %v43 = vmul.f32 %v20, %v35
  %v44 = vmul.f32 %v21, %v35
  %v45 = vmul.f32 %v22, %v35
  %v46 = vmul.f32 %v23, %v35
  %v47 = vmul.f32 %v24, %v35
  %v48 = vmul.f32 %v25, %v35
  %v49 = vmul.f32 %v26, %v35
  %v50 = vmul.f32 %v27, %v35
  %v51 = vmul.f32 %v28, %v35
  %v52 = vmul.f32 %v29, %v35
  %v53 = vld [vmem:[%s2] sm:$0x1]
  %v55 = vlaneseq
  %v56 = vshrl.u32 %v55, 7
  %v57 = vsub.s32 0, %v56
  %v58 = vrot.slane %v53, %v57
  %v60 = vadd.f32 %v37, %v58
  %v61 = vadd.f32 %v38, %v58
  %v62 = vadd.f32 %v39, %v58
  %v63 = vadd.f32 %v40, %v58
  %v64 = vadd.f32 %v41, %v58
  %v65 = vadd.f32 %v42, %v58
  %v66 = vadd.f32 %v43, %v58
  %v67 = vadd.f32 %v44, %v58
  %v68 = vadd.f32 %v45, %v58
  %v69 = vadd.f32 %v46, %v58
  %v70 = vadd.f32 %v47, %v58
  %v71 = vadd.f32 %v48, %v58
  %v72 = vadd.f32 %v49, %v58
  %v73 = vadd.f32 %v50, %v58
  %v74 = vadd.f32 %v51, %v58
  %v75 = vadd.f32 %v52, %v58
  %v76 = vmax.f32 %v60, 0.0
  %v77 = vmax.f32 %v61, 0.0
  %v78 = vmax.f32 %v62, 0.0
  %v79 = vmax.f32 %v63, 0.0
  %v80 = vmax.f32 %v64, 0.0
  %v81 = vmax.f32 %v65, 0.0
  %v82 = vmax.f32 %v66, 0.0
  %v83 = vmax.f32 %v67, 0.0
  %v84 = vmax.f32 %v68, 0.0
  %v85 = vmax.f32 %v69, 0.0
  %v86 = vmax.f32 %v70, 0.0
  %v87 = vmax.f32 %v71, 0.0
  %v88 = vmax.f32 %v72, 0.0
  %v89 = vmax.f32 %v73, 0.0
  %v90 = vmax.f32 %v74, 0.0
  %v91 = vmax.f32 %v75, 0.0
  %92 = vst [vmem:[%s3] sm:$0xff] %v76
  %93 = vst [vmem:[%s3 + $0x8] sm:$0xff] %v77
  %94 = vst [vmem:[%s3 + $0x10] sm:$0xff] %v78
  %95 = vst [vmem:[%s3 + $0x18] sm:$0xff] %v79
  %96 = vst [vmem:[%s3 + $0x20] sm:$0xff] %v80
  %97 = vst [vmem:[%s3 + $0x28] sm:$0xff] %v81
  %98 = vst [vmem:[%s3 + $0x30] sm:$0xff] %v82
  %99 = vst [vmem:[%s3 + $0x38] sm:$0xff] %v83
  %100 = vst [vmem:[%s3 + $0x40] sm:$0xff] %v84
  %101 = vst [vmem:[%s3 + $0x48] sm:$0xff] %v85
  %102 = vst [vmem:[%s3 + $0x50] sm:$0xff] %v86
  %103 = vst [vmem:[%s3 + $0x58] sm:$0xff] %v87
  %104 = vst [vmem:[%s3 + $0x60] sm:$0xff] %v88
  %105 = vst [vmem:[%s3 + $0x68] sm:$0xff] %v89
  %106 = vst [vmem:[%s3 + $0x70] sm:$0xff] %v90
  %107 = vst [vmem:[%s3 + $0x78] sm:$0xff] %v91
  // Predicated region
  $region14: #{_lambda_.25} parent=0 // pred_check
    _
  $region15: #{_lambda_.25} parent=0 // pred_check_branch
    %109 = sbr.rel (0) target = $region17
  $region16: #{_lambda_.25} parent=0 // pred_region
    _
  $region17: #{_lambda_.25} parent=0 // pred_fallthru
    _
  // Predicated region
  $region18: #{_lambda_.25} parent=0 // pred_check
    _
  $region19: #{_lambda_.25} parent=0 // pred_check_branch
    %111 = sbr.rel (0) target = $region21
  $region20: #{_lambda_.25} parent=0 // pred_region
    _
  $region21: #{_lambda_.25} parent=0 // pred_fallthru
    _

// kernel: _lambda_.24
$region0: #{_lambda_.24}
  #allocation0 [shape = 'u32[]', space=smem, size = 0x4, offset = 0x4, fixed_abs, tag = 'smem constant byte address 0x4 - core index']
  #allocation1 [shape = 'u32[144,128]{1,0:T(1,128)}', space=vmem, size = 0x12000, scoped, tag = 'internal scratch']
  %s0 = inlined_call_operand.vmem [shape: bf16[512,48], index: 0, kind: input, shape index: {}]
  %s1 = inlined_call_operand.vmem [shape: bf16[48,32], index: 1, kind: input, shape index: {}]
  %s2 = inlined_call_operand.vmem [shape: f32[1,32], index: 2, kind: input, shape index: {}]
  %s3 = inlined_call_operand.vmem [shape: f32[512,32], index: 3, kind: output, shape index: {0}]
  %s4 = inlined_call_operand.vmem [shape: f32[1,1,32], index: 4, kind: output, shape index: {1}]
  %s5 = inlined_call_operand.vmem [shape: f32[1,1,32], index: 5, kind: output, shape index: {2}]
  %6 = xla_tuple %s3, %s4, %s5
  %s7 = sld [smem:[#allocation0]]
  $region38: #{_lambda_.24} parent=0
    _
  %s9 = ssub.s32 1, %s7
  %s10 = scalar_select 0, %s9, %s7
  // Predicated region
  $region2: #{_lambda_.24} parent=0 // pred_check
    _
  $region3: #{_lambda_.24} parent=0 // pred_check_branch
    %12 = sbr.rel (0) target = $region5
  $region4: #{_lambda_.24} parent=0 // pred_region
    _
  $region5: #{_lambda_.24} parent=0 // pred_fallthru
    _
  // Predicated region
  $region6: #{_lambda_.24} parent=0 // pred_check
    _
  $region7: #{_lambda_.24} parent=0 // pred_check_branch
    %14 = sbr.rel (0) target = $region9
  $region8: #{_lambda_.24} parent=0 // pred_region
    _
  $region9: #{_lambda_.24} parent=0 // pred_fallthru
    _
  // Predicated region
  $region10: #{_lambda_.24} parent=0 // pred_check
    _
  $region11: #{_lambda_.24} parent=0 // pred_check_branch
    %16 = sbr.rel (0) target = $region13
  $region12: #{_lambda_.24} parent=0 // pred_region
    _
  $region13: #{_lambda_.24} parent=0 // pred_fallthru
    _
  %v18 = vld [vmem:[%s0] sm:$0xf]
  %v19 = vld [vmem:[%s0 + $0x4] sm:$0xf]
  %v20 = vld [vmem:[%s0 + $0x8] sm:$0xf]
  %v21 = vld [vmem:[%s0 + $0xc] sm:$0xf]
  %v22 = vld [vmem:[%s0 + $0x10] sm:$0xf]
  %v23 = vld [vmem:[%s0 + $0x14] sm:$0xf]
  %v24 = vld [vmem:[%s0 + $0x18] sm:$0xf]
  %v25 = vld [vmem:[%s0 + $0x1c] sm:$0xf]
  %v26 = vld [vmem:[%s0 + $0x20] sm:$0xf]
  %v27 = vld [vmem:[%s0 + $0x24] sm:$0xf]
  %v28 = vld [vmem:[%s0 + $0x28] sm:$0xf]
  %v29 = vld [vmem:[%s0 + $0x2c] sm:$0xf]
  %v30 = vld [vmem:[%s0 + $0x30] sm:$0xf]
  %v31 = vld [vmem:[%s0 + $0x34] sm:$0xf]
  %v32 = vld [vmem:[%s0 + $0x38] sm:$0xf]
  %v33 = vld [vmem:[%s0 + $0x3c] sm:$0xf]
  %v34 = vld [vmem:[%s0 + $0x40] sm:$0xf]
  %v35 = vld [vmem:[%s0 + $0x44] sm:$0xf]
  %v36 = vld [vmem:[%s0 + $0x48] sm:$0xf]
  %v37 = vld [vmem:[%s0 + $0x4c] sm:$0xf]
  %v38 = vld [vmem:[%s0 + $0x50] sm:$0xf]
  %v39 = vld [vmem:[%s0 + $0x54] sm:$0xf]
  %v40 = vld [vmem:[%s0 + $0x58] sm:$0xf]
  %v41 = vld [vmem:[%s0 + $0x5c] sm:$0xf]
  %v42 = vld [vmem:[%s0 + $0x60] sm:$0xf]
  %v43 = vld [vmem:[%s0 + $0x64] sm:$0xf]
  %v44 = vld [vmem:[%s0 + $0x68] sm:$0xf]
  %v45 = vld [vmem:[%s0 + $0x6c] sm:$0xf]
  %v46 = vld [vmem:[%s0 + $0x70] sm:$0xf]
  %v47 = vld [vmem:[%s0 + $0x74] sm:$0xf]
  %v48 = vld [vmem:[%s0 + $0x78] sm:$0xf]
  %v49 = vld [vmem:[%s0 + $0x7c] sm:$0xf]
  %v50 = vld [vmem:[%s0 + $0x80] sm:$0xf]
  %v51 = vld [vmem:[%s0 + $0x84] sm:$0xf]
  %v52 = vld [vmem:[%s0 + $0x88] sm:$0xf]
  %v53 = vld [vmem:[%s0 + $0x8c] sm:$0xf]
  %v54 = vld [vmem:[%s0 + $0x90] sm:$0xf]
  %v55 = vld [vmem:[%s0 + $0x94] sm:$0xf]
  %v56 = vld [vmem:[%s0 + $0x98] sm:$0xf]
  %v57 = vld [vmem:[%s0 + $0x9c] sm:$0xf]
  %v58 = vld [vmem:[%s0 + $0xa0] sm:$0xf]
  %v59 = vld [vmem:[%s0 + $0xa4] sm:$0xf]
  %v60 = vld [vmem:[%s0 + $0xa8] sm:$0xf]
  %v61 = vld [vmem:[%s0 + $0xac] sm:$0xf]
  %v62 = vld [vmem:[%s0 + $0xb0] sm:$0xf]
  %v63 = vld [vmem:[%s0 + $0xb4] sm:$0xf]
  %v64 = vld [vmem:[%s0 + $0xb8] sm:$0xf]
  %v65 = vld [vmem:[%s0 + $0xbc] sm:$0xf]
  %v66 = vld [vmem:[%s0 + $0xc0] sm:$0xf]
  %v67 = vld [vmem:[%s0 + $0xc4] sm:$0xf]
  %v68 = vld [vmem:[%s0 + $0xc8] sm:$0xf]
  %v69 = vld [vmem:[%s0 + $0xcc] sm:$0xf]
  %v70 = vld [vmem:[%s0 + $0xd0] sm:$0xf]
  %v71 = vld [vmem:[%s0 + $0xd4] sm:$0xf]
  %v72 = vld [vmem:[%s0 + $0xd8] sm:$0xf]
  %v73 = vld [vmem:[%s0 + $0xdc] sm:$0xf]
  %v74 = vld [vmem:[%s0 + $0xe0] sm:$0xf]
  %v75 = vld [vmem:[%s0 + $0xe4] sm:$0xf]
  %v76 = vld [vmem:[%s0 + $0xe8] sm:$0xf]
  %v77 = vld [vmem:[%s0 + $0xec] sm:$0xf]
  %v78 = vld [vmem:[%s0 + $0xf0] sm:$0xf]
  %v79 = vld [vmem:[%s0 + $0xf4] sm:$0xf]
  %v80 = vld [vmem:[%s0 + $0xf8] sm:$0xf]
  %v81 = vld [vmem:[%s0 + $0xfc] sm:$0xf]
  %v82 = vld [vmem:[%s1] sm:$0xf]
  %v83 = vld [vmem:[%s1 + $0x4] sm:$0xf]
  %v84 = vld [vmem:[%s1 + $0x8] sm:$0xf]
  %v85 = vld [vmem:[%s1 + $0xc] sm:$0xf]
  %v86 = vld [vmem:[%s1 + $0x10] sm:$0xf]
  %v87 = vld [vmem:[%s1 + $0x14] sm:$0xf]
  %v88 = vld [vmem:[%s2] sm:$0x1]
  %v90 = vlaneseq
  %v91 = vshrl.u32 %v90, 7
  %v92 = vsub.s32 0, %v91
  %v93 = vrot.slane %v88, %v92
  %v159 = vunpack.c.l.b16 %v18
  %v160 = vunpack.c.l.b16 %v19
  %v161 = vunpack.c.l.b16 %v20
  %v162 = vunpack.c.l.b16 %v21
  %v163 = vunpack.c.l.b16 %v22
  %v164 = vunpack.c.l.b16 %v23
  %v165 = vunpack.c.l.b16 %v24
  %v166 = vunpack.c.l.b16 %v25
  %v167 = vunpack.c.l.b16 %v26
  %v168 = vunpack.c.l.b16 %v27
  %v169 = vunpack.c.l.b16 %v28
  %v170 = vunpack.c.l.b16 %v29
  %v171 = vunpack.c.l.b16 %v30
  %v172 = vunpack.c.l.b16 %v31
  %v173 = vunpack.c.l.b16 %v32
  %v174 = vunpack.c.l.b16 %v33
  %v175 = vunpack.c.l.b16 %v34
  %v176 = vunpack.c.l.b16 %v35
  %v177 = vunpack.c.l.b16 %v36
  %v178 = vunpack.c.l.b16 %v37
  %v179 = vunpack.c.l.b16 %v38
  %v180 = vunpack.c.l.b16 %v39
  %v181 = vunpack.c.l.b16 %v40
  %v182 = vunpack.c.l.b16 %v41
  %v183 = vunpack.c.l.b16 %v42
  %v184 = vunpack.c.l.b16 %v43
  %v185 = vunpack.c.l.b16 %v44
  %v186 = vunpack.c.l.b16 %v45
  %v187 = vunpack.c.l.b16 %v46
  %v188 = vunpack.c.l.b16 %v47
  %v189 = vunpack.c.l.b16 %v48
  %v190 = vunpack.c.l.b16 %v49
  %v191 = vunpack.c.l.b16 %v50
  %v192 = vunpack.c.l.b16 %v51
  %v193 = vunpack.c.l.b16 %v52
  %v194 = vunpack.c.l.b16 %v53
  %v195 = vunpack.c.l.b16 %v54
  %v196 = vunpack.c.l.b16 %v55
  %v197 = vunpack.c.l.b16 %v56
  %v198 = vunpack.c.l.b16 %v57
  %v199 = vunpack.c.l.b16 %v58
  %v200 = vunpack.c.l.b16 %v59
  %v201 = vunpack.c.l.b16 %v60
  %v202 = vunpack.c.l.b16 %v61
  %v203 = vunpack.c.l.b16 %v62
  %v204 = vunpack.c.l.b16 %v63
  %v205 = vunpack.c.l.b16 %v64
  %v206 = vunpack.c.l.b16 %v65
  %v207 = vunpack.c.l.b16 %v66
  %v208 = vunpack.c.l.b16 %v67
  %v209 = vunpack.c.l.b16 %v68
  %v210 = vunpack.c.l.b16 %v69
  %v211 = vunpack.c.l.b16 %v70
  %v212 = vunpack.c.l.b16 %v71
  %v213 = vunpack.c.l.b16 %v72
  %v214 = vunpack.c.l.b16 %v73
  %v215 = vunpack.c.l.b16 %v74
  %v216 = vunpack.c.l.b16 %v75
  %v217 = vunpack.c.l.b16 %v76
  %v218 = vunpack.c.l.b16 %v77
  %v219 = vunpack.c.l.b16 %v78
  %v220 = vunpack.c.l.b16 %v79
  %v221 = vunpack.c.l.b16 %v80
  %v222 = vunpack.c.l.b16 %v81
  %v223 = vpack.c.b16 %v160, %v159
  %v224 = vpack.c.b16 %v162, %v161
  %v225 = vpack.c.b16 %v164, %v163
  %v226 = vpack.c.b16 %v166, %v165
  %v227 = vpack.c.b16 %v168, %v167
  %v228 = vpack.c.b16 %v170, %v169
  %v229 = vpack.c.b16 %v172, %v171
  %v230 = vpack.c.b16 %v174, %v173
  %v231 = vpack.c.b16 %v176, %v175
  %v232 = vpack.c.b16 %v178, %v177
  %v233 = vpack.c.b16 %v180, %v179
  %v234 = vpack.c.b16 %v182, %v181
  %v235 = vpack.c.b16 %v184, %v183
  %v236 = vpack.c.b16 %v186, %v185
  %v237 = vpack.c.b16 %v188, %v187
  %v238 = vpack.c.b16 %v190, %v189
  %v239 = vpack.c.b16 %v192, %v191
  %v240 = vpack.c.b16 %v194, %v193
  %v241 = vpack.c.b16 %v196, %v195
  %v242 = vpack.c.b16 %v198, %v197
  %v243 = vpack.c.b16 %v200, %v199
  %v244 = vpack.c.b16 %v202, %v201
  %v245 = vpack.c.b16 %v204, %v203
  %v246 = vpack.c.b16 %v206, %v205
  %v247 = vpack.c.b16 %v208, %v207
  %v248 = vpack.c.b16 %v210, %v209
  %v249 = vpack.c.b16 %v212, %v211
  %v250 = vpack.c.b16 %v214, %v213
  %v251 = vpack.c.b16 %v216, %v215
  %v252 = vpack.c.b16 %v218, %v217
  %v253 = vpack.c.b16 %v220, %v219
  %v254 = vpack.c.b16 %v222, %v221
  %v261 = vunpack.c.l.b16 %v82
  %v262 = vunpack.c.l.b16 %v83
  %v263 = vunpack.c.l.b16 %v84
  %v264 = vunpack.c.l.b16 %v85
  %v265 = vunpack.c.l.b16 %v86
  %v266 = vunpack.c.l.b16 %v87
  %v267 = vpack.c.b16 %v262, %v261
  %v268 = vpack.c.b16 %v264, %v263
  %v269 = vpack.c.b16 %v266, %v265
  %vm273 = vcmask 392192
  %v275 = vsel %vm273, %v223, 0
  %v278 = vsel %vm273, %v224, 0
  %v281 = vsel %vm273, %v225, 0
  %v284 = vsel %vm273, %v226, 0
  %v287 = vsel %vm273, %v227, 0
  %v290 = vsel %vm273, %v228, 0
  %v293 = vsel %vm273, %v229, 0
  %v296 = vsel %vm273, %v230, 0
  %v299 = vsel %vm273, %v231, 0
  %v302 = vsel %vm273, %v232, 0
  %v305 = vsel %vm273, %v233, 0
  %v308 = vsel %vm273, %v234, 0
  %v311 = vsel %vm273, %v235, 0
  %v314 = vsel %vm273, %v236, 0
  %v317 = vsel %vm273, %v237, 0
  %v320 = vsel %vm273, %v238, 0
  %v323 = vsel %vm273, %v239, 0
  %v326 = vsel %vm273, %v240, 0
  %v329 = vsel %vm273, %v241, 0
  %v332 = vsel %vm273, %v242, 0
  %v335 = vsel %vm273, %v243, 0
  %v338 = vsel %vm273, %v244, 0
  %v341 = vsel %vm273, %v245, 0
  %v344 = vsel %vm273, %v246, 0
  %v347 = vsel %vm273, %v247, 0
  %v350 = vsel %vm273, %v248, 0
  %v353 = vsel %vm273, %v249, 0
  %v356 = vsel %vm273, %v250, 0
  %v359 = vsel %vm273, %v251, 0
  %v362 = vsel %vm273, %v252, 0
  %v365 = vsel %vm273, %v253, 0
  %v368 = vsel %vm273, %v254, 0
  %370 = vmatprep.subr.bf16.mxu0 0
  %371 = vmatpush1.bf16.msra.mxu0 %v267
  %372 = vmatprep.subr.bf16.mxu0 0
  %373 = vmatpush1.bf16.msra.mxu0 %v268
  %374 = vmatprep.subr.bf16.mxu0 0
  %375 = vmatpush1.bf16.msra.mxu0 %v269
  %376 = vmatprep.subr.bf16.mxu0 0
  %377 = vmatpush1.bf16.msra.mxu0 0
  %378 = vmatprep.subr.bf16.mxu0 0
  %379 = vmatpush1.bf16.msra.mxu0 0
  %380 = vmatprep.subr.bf16.mxu0 0
  %381 = vmatpush1.bf16.msra.mxu0 0
  %382 = vmatprep.subr.bf16.mxu0 0
  %383 = vmatpush1.bf16.msra.mxu0 0
  %384 = vmatprep.subr.bf16.mxu0 0
  %385 = vmatpush1.bf16.msra.mxu0 0
  %386 = vmatprep.subr.bf16.mxu0 0
  %387 = vmatpush1.bf16.msra.mxu0 0
  %388 = vmatprep.subr.bf16.mxu0 0
  %389 = vmatpush1.bf16.msra.mxu0 0
  %390 = vmatprep.subr.bf16.mxu0 0
  %391 = vmatpush1.bf16.msra.mxu0 0
  %392 = vmatprep.subr.bf16.mxu0 0
  %393 = vmatpush1.bf16.msra.mxu0 0
  %394 = vmatprep.subr.bf16.mxu0 0
  %395 = vmatpush1.bf16.msra.mxu0 0
  %396 = vmatprep.subr.bf16.mxu0 0
  %397 = vmatpush1.bf16.msra.mxu0 0
  %398 = vmatprep.subr.bf16.mxu0 0
  %399 = vmatpush1.bf16.msra.mxu0 0
  %400 = vmatprep.subr.bf16.mxu0 0
  %401 = vmatpush1.bf16.msra.mxu0 0
  %402 = vmatprep.mubr.bf16.mxu0 0
  %403 = vmatmul.mubr.bf16.gmra.mrb[0].mxu0 %v275
  %v404 = vpop.f32.mrb[0].mxu0
  %v405 = vadd.f32 %v93, %v404
  %v406 = vpop.f32.mrb[0].mxu0
  %v407 = vpop.f32.mrb[0].mxu0
  %v408 = vadd.f32 %v93, %v407
  %v409 = vpop.f32.mrb[0].mxu0
  %410 = vmatprep.mubr.bf16.mxu0 0
  %411 = vmatmul.mubr.bf16.gmra.mrb[0].mxu0 %v278
  %v412 = vpop.f32.mrb[0].mxu0
  %v413 = vadd.f32 %v93, %v412
  %v414 = vpop.f32.mrb[0].mxu0
  %v415 = vpop.f32.mrb[0].mxu0
  %v416 = vadd.f32 %v93, %v415
  %v417 = vpop.f32.mrb[0].mxu0
  %418 = vmatprep.mubr.bf16.mxu0 0
  %419 = vmatmul.mubr.bf16.gmra.mrb[0].mxu0 %v281
  %v420 = vpop.f32.mrb[0].mxu0
  %v421 = vadd.f32 %v93, %v420
  %v422 = vpop.f32.mrb[0].mxu0
  %v423 = vpop.f32.mrb[0].mxu0
  %v424 = vadd.f32 %v93, %v423
  %v425 = vpop.f32.mrb[0].mxu0
  %426 = vmatprep.mubr.bf16.mxu0 0
  %427 = vmatmul.mubr.bf16.gmra.mrb[0].mxu0 %v284
  %v428 = vpop.f32.mrb[0].mxu0
  %v429 = vadd.f32 %v93, %v428
  %v430 = vpop.f32.mrb[0].mxu0
  %v431 = vpop.f32.mrb[0].mxu0
  %v432 = vadd.f32 %v93, %v431
  %v433 = vpop.f32.mrb[0].mxu0
  %434 = vmatprep.mubr.bf16.mxu0 0
  %435 = vmatmul.mubr.bf16.gmra.mrb[0].mxu0 %v287
  %v436 = vpop.f32.mrb[0].mxu0
  %v437 = vadd.f32 %v93, %v436
  %v438 = vpop.f32.mrb[0].mxu0
  %v439 = vpop.f32.mrb[0].mxu0
  %v440 = vadd.f32 %v93, %v439
  %v441 = vpop.f32.mrb[0].mxu0
  %442 = vmatprep.mubr.bf16.mxu0 0
  %443 = vmatmul.mubr.bf16.gmra.mrb[0].mxu0 %v290
  %v444 = vpop.f32.mrb[0].mxu0
  %v445 = vadd.f32 %v93, %v444
  %v446 = vpop.f32.mrb[0].mxu0
  %v447 = vpop.f32.mrb[0].mxu0
  %v448 = vadd.f32 %v93, %v447
  %v449 = vpop.f32.mrb[0].mxu0
  %450 = vmatprep.mubr.bf16.mxu0 0
  %451 = vmatmul.mubr.bf16.gmra.mrb[0].mxu0 %v293
  %v452 = vpop.f32.mrb[0].mxu0
  %v453 = vadd.f32 %v93, %v452
  %v454 = vpop.f32.mrb[0].mxu0
  %v455 = vpop.f32.mrb[0].mxu0
  %v456 = vadd.f32 %v93, %v455
  %v457 = vpop.f32.mrb[0].mxu0
  %458 = vmatprep.mubr.bf16.mxu0 0
  %459 = vmatmul.mubr.bf16.gmra.mrb[0].mxu0 %v296
  %v460 = vpop.f32.mrb[0].mxu0
  %v461 = vadd.f32 %v93, %v460
  %v462 = vpop.f32.mrb[0].mxu0
  %v463 = vpop.f32.mrb[0].mxu0
  %v464 = vadd.f32 %v93, %v463
  %v465 = vpop.f32.mrb[0].mxu0
  %466 = vmatprep.mubr.bf16.mxu0 0
  %467 = vmatmul.mubr.bf16.gmra.mrb[0].mxu0 %v299
  %v468 = vpop.f32.mrb[0].mxu0
  %v469 = vadd.f32 %v93, %v468
  %v470 = vpop.f32.mrb[0].mxu0
  %v471 = vpop.f32.mrb[0].mxu0
  %v472 = vadd.f32 %v93, %v471
  %v473 = vpop.f32.mrb[0].mxu0
  %474 = vmatprep.mubr.bf16.mxu0 0
  %475 = vmatmul.mubr.bf16.gmra.mrb[0].mxu0 %v302
  %v476 = vpop.f32.mrb[0].mxu0
  %v477 = vadd.f32 %v93, %v476
  %v478 = vpop.f32.mrb[0].mxu0
  %v479 = vpop.f32.mrb[0].mxu0
  %v480 = vadd.f32 %v93, %v479
  %v481 = vpop.f32.mrb[0].mxu0
  %482 = vmatprep.mubr.bf16.mxu0 0
  %483 = vmatmul.mubr.bf16.gmra.mrb[0].mxu0 %v305
  %v484 = vpop.f32.mrb[0].mxu0
  %v485 = vadd.f32 %v93, %v484
  %v486 = vpop.f32.mrb[0].mxu0
  %v487 = vpop.f32.mrb[0].mxu0
  %v488 = vadd.f32 %v93, %v487
  %v489 = vpop.f32.mrb[0].mxu0
  %490 = vmatprep.mubr.bf16.mxu0 0
  %491 = vmatmul.mubr.bf16.gmra.mrb[0].mxu0 %v308
  %v492 = vpop.f32.mrb[0].mxu0
  %v493 = vadd.f32 %v93, %v492
  %v494 = vpop.f32.mrb[0].mxu0
  %v495 = vpop.f32.mrb[0].mxu0
  %v496 = vadd.f32 %v93, %v495
  %v497 = vpop.f32.mrb[0].mxu0
  %498 = vmatprep.mubr.bf16.mxu0 0
  %499 = vmatmul.mubr.bf16.gmra.mrb[0].mxu0 %v311
  %v500 = vpop.f32.mrb[0].mxu0
  %v501 = vadd.f32 %v93, %v500
  %v502 = vpop.f32.mrb[0].mxu0
  %v503 = vpop.f32.mrb[0].mxu0
  %v504 = vadd.f32 %v93, %v503
  %v505 = vpop.f32.mrb[0].mxu0
  %506 = vmatprep.mubr.bf16.mxu0 0
  %507 = vmatmul.mubr.bf16.gmra.mrb[0].mxu0 %v314
  %v508 = vpop.f32.mrb[0].mxu0
  %v509 = vadd.f32 %v93, %v508
  %v510 = vpop.f32.mrb[0].mxu0
  %v511 = vpop.f32.mrb[0].mxu0
  %v512 = vadd.f32 %v93, %v511
  %v513 = vpop.f32.mrb[0].mxu0
  %514 = vmatprep.mubr.bf16.mxu0 0
  %515 = vmatmul.mubr.bf16.gmra.mrb[0].mxu0 %v317
  %v516 = vpop.f32.mrb[0].mxu0
  %v517 = vadd.f32 %v93, %v516
  %v518 = vpop.f32.mrb[0].mxu0
  %v519 = vpop.f32.mrb[0].mxu0
  %v520 = vadd.f32 %v93, %v519
  %v521 = vpop.f32.mrb[0].mxu0
  %522 = vmatprep.mubr.bf16.mxu0 0
  %523 = vmatmul.mubr.bf16.gmra.mrb[0].mxu0 %v320
  %v524 = vpop.f32.mrb[0].mxu0
  %v525 = vadd.f32 %v93, %v524
  %v526 = vpop.f32.mrb[0].mxu0
  %v527 = vpop.f32.mrb[0].mxu0
  %v528 = vadd.f32 %v93, %v527
  %v529 = vpop.f32.mrb[0].mxu0
  %530 = vmatprep.mubr.bf16.mxu0 0
  %531 = vmatmul.mubr.bf16.gmra.mrb[0].mxu0 %v323
  %v532 = vpop.f32.mrb[0].mxu0
  %v533 = vadd.f32 %v93, %v532
  %v534 = vpop.f32.mrb[0].mxu0
  %v535 = vpop.f32.mrb[0].mxu0
  %v536 = vadd.f32 %v93, %v535
  %v537 = vpop.f32.mrb[0].mxu0
  %538 = vmatprep.mubr.bf16.mxu0 0
  %539 = vmatmul.mubr.bf16.gmra.mrb[0].mxu0 %v326
  %v540 = vpop.f32.mrb[0].mxu0
  %v541 = vadd.f32 %v93, %v540
  %v542 = vpop.f32.mrb[0].mxu0
  %v543 = vpop.f32.mrb[0].mxu0
  %v544 = vadd.f32 %v93, %v543
  %v545 = vpop.f32.mrb[0].mxu0
  %546 = vmatprep.mubr.bf16.mxu0 0
  %547 = vmatmul.mubr.bf16.gmra.mrb[0].mxu0 %v329
  %v548 = vpop.f32.mrb[0].mxu0
  %v549 = vadd.f32 %v93, %v548
  %v550 = vpop.f32.mrb[0].mxu0
  %v551 = vpop.f32.mrb[0].mxu0
  %v552 = vadd.f32 %v93, %v551
  %v553 = vpop.f32.mrb[0].mxu0
  %554 = vmatprep.mubr.bf16.mxu0 0
  %555 = vmatmul.mubr.bf16.gmra.mrb[0].mxu0 %v332
  %v556 = vpop.f32.mrb[0].mxu0
  %v557 = vadd.f32 %v93, %v556
  %v558 = vpop.f32.mrb[0].mxu0
  %v559 = vpop.f32.mrb[0].mxu0
  %v560 = vadd.f32 %v93, %v559
  %v561 = vpop.f32.mrb[0].mxu0
  %562 = vmatprep.mubr.bf16.mxu0 0
  %563 = vmatmul.mubr.bf16.gmra.mrb[0].mxu0 %v335
  %v564 = vpop.f32.mrb[0].mxu0
  %v565 = vadd.f32 %v93, %v564
  %v566 = vpop.f32.mrb[0].mxu0
  %v567 = vpop.f32.mrb[0].mxu0
  %v568 = vadd.f32 %v93, %v567
  %v569 = vpop.f32.mrb[0].mxu0
  %570 = vmatprep.mubr.bf16.mxu0 0
  %571 = vmatmul.mubr.bf16.gmra.mrb[0].mxu0 %v338
  %v572 = vpop.f32.mrb[0].mxu0
  %v573 = vadd.f32 %v93, %v572
  %v574 = vpop.f32.mrb[0].mxu0
  %v575 = vpop.f32.mrb[0].mxu0
  %v576 = vadd.f32 %v93, %v575
  %v577 = vpop.f32.mrb[0].mxu0
  %578 = vmatprep.mubr.bf16.mxu0 0
  %579 = vmatmul.mubr.bf16.gmra.mrb[0].mxu0 %v341
  %v580 = vpop.f32.mrb[0].mxu0
  %v581 = vadd.f32 %v93, %v580
  %v582 = vpop.f32.mrb[0].mxu0
  %v583 = vpop.f32.mrb[0].mxu0
  %v584 = vadd.f32 %v93, %v583
  %v585 = vpop.f32.mrb[0].mxu0
  %586 = vmatprep.mubr.bf16.mxu0 0
  %587 = vmatmul.mubr.bf16.gmra.mrb[0].mxu0 %v344
  %v588 = vpop.f32.mrb[0].mxu0
  %v589 = vadd.f32 %v93, %v588
  %v590 = vpop.f32.mrb[0].mxu0
  %v591 = vpop.f32.mrb[0].mxu0
  %v592 = vadd.f32 %v93, %v591
  %v593 = vpop.f32.mrb[0].mxu0
  %594 = vmatprep.mubr.bf16.mxu0 0
  %595 = vmatmul.mubr.bf16.gmra.mrb[0].mxu0 %v347
  %v596 = vpop.f32.mrb[0].mxu0
  %v597 = vadd.f32 %v93, %v596
  %v598 = vpop.f32.mrb[0].mxu0
  %v599 = vpop.f32.mrb[0].mxu0
  %v600 = vadd.f32 %v93, %v599
  %v601 = vpop.f32.mrb[0].mxu0
  %602 = vmatprep.mubr.bf16.mxu0 0
  %603 = vmatmul.mubr.bf16.gmra.mrb[0].mxu0 %v350
  %v604 = vpop.f32.mrb[0].mxu0
  %v605 = vadd.f32 %v93, %v604
  %v606 = vpop.f32.mrb[0].mxu0
  %v607 = vpop.f32.mrb[0].mxu0
  %v608 = vadd.f32 %v93, %v607
  %v609 = vpop.f32.mrb[0].mxu0
  %610 = vmatprep.mubr.bf16.mxu0 0
  %611 = vmatmul.mubr.bf16.gmra.mrb[0].mxu0 %v353
  %v612 = vpop.f32.mrb[0].mxu0
  %v613 = vadd.f32 %v93, %v612
  %v614 = vpop.f32.mrb[0].mxu0
  %v615 = vpop.f32.mrb[0].mxu0
  %v616 = vadd.f32 %v93, %v615
  %v617 = vpop.f32.mrb[0].mxu0
  %618 = vmatprep.mubr.bf16.mxu0 0
  %619 = vmatmul.mubr.bf16.gmra.mrb[0].mxu0 %v356
  %v620 = vpop.f32.mrb[0].mxu0
  %v621 = vadd.f32 %v93, %v620
  %v622 = vpop.f32.mrb[0].mxu0
  %v623 = vpop.f32.mrb[0].mxu0
  %v624 = vadd.f32 %v93, %v623
  %v625 = vpop.f32.mrb[0].mxu0
  %626 = vmatprep.mubr.bf16.mxu0 0
  %627 = vmatmul.mubr.bf16.gmra.mrb[0].mxu0 %v359
  %v628 = vpop.f32.mrb[0].mxu0
  %v629 = vadd.f32 %v93, %v628
  %v630 = vpop.f32.mrb[0].mxu0
  %v631 = vpop.f32.mrb[0].mxu0
  %v632 = vadd.f32 %v93, %v631
  %v633 = vpop.f32.mrb[0].mxu0
  %634 = vmatprep.mubr.bf16.mxu0 0
  %635 = vmatmul.mubr.bf16.gmra.mrb[0].mxu0 %v362
  %v636 = vpop.f32.mrb[0].mxu0
  %v637 = vadd.f32 %v93, %v636
  %v638 = vpop.f32.mrb[0].mxu0
  %v639 = vpop.f32.mrb[0].mxu0
  %v640 = vadd.f32 %v93, %v639
  %v641 = vpop.f32.mrb[0].mxu0
  %642 = vmatprep.mubr.bf16.mxu0 0
  %643 = vmatmul.mubr.bf16.gmra.mrb[0].mxu0 %v365
  %v644 = vpop.f32.mrb[0].mxu0
  %v645 = vadd.f32 %v93, %v644
  %v646 = vpop.f32.mrb[0].mxu0
  %v647 = vpop.f32.mrb[0].mxu0
  %v648 = vadd.f32 %v93, %v647
  %v649 = vpop.f32.mrb[0].mxu0
  %650 = vmatprep.mubr.bf16.mxu0 0
  %651 = vmatmul.mubr.bf16.gmra.mrb[0].mxu0 %v368
  %v652 = vpop.f32.mrb[0].mxu0
  %v653 = vadd.f32 %v93, %v652
  %v654 = vpop.f32.mrb[0].mxu0
  %v655 = vpop.f32.mrb[0].mxu0
  %v656 = vadd.f32 %v93, %v655
  %v657 = vpop.f32.mrb[0].mxu0
  %658 = vdwg.mxu0
  %vm659 = vcmask 261120
  %660 = vst.msk [vmem:[%s3] sm:$0xff] %vm659, %v405
  %661 = vst.msk [vmem:[%s3 + $0x8] sm:$0xff] %vm659, %v408
  %662 = vst.msk [vmem:[%s3 + $0x10] sm:$0xff] %vm659, %v413
  %663 = vst.msk [vmem:[%s3 + $0x18] sm:$0xff] %vm659, %v416
  %664 = vst.msk [vmem:[%s3 + $0x20] sm:$0xff] %vm659, %v421
  %665 = vst.msk [vmem:[%s3 + $0x28] sm:$0xff] %vm659, %v424
  %666 = vst.msk [vmem:[%s3 + $0x30] sm:$0xff] %vm659, %v429
  %667 = vst.msk [vmem:[%s3 + $0x38] sm:$0xff] %vm659, %v432
  %668 = vst.msk [vmem:[%s3 + $0x40] sm:$0xff] %vm659, %v437
  %669 = vst.msk [vmem:[%s3 + $0x48] sm:$0xff] %vm659, %v440
  %670 = vst.msk [vmem:[%s3 + $0x50] sm:$0xff] %vm659, %v445
  %671 = vst.msk [vmem:[%s3 + $0x58] sm:$0xff] %vm659, %v448
  %672 = vst.msk [vmem:[%s3 + $0x60] sm:$0xff] %vm659, %v453
  %673 = vst.msk [vmem:[%s3 + $0x68] sm:$0xff] %vm659, %v456
  %674 = vst.msk [vmem:[%s3 + $0x70] sm:$0xff] %vm659, %v461
  %675 = vst.msk [vmem:[%s3 + $0x78] sm:$0xff] %vm659, %v464
  %676 = vst.msk [vmem:[%s3 + $0x80] sm:$0xff] %vm659, %v469
  %677 = vst.msk [vmem:[%s3 + $0x88] sm:$0xff] %vm659, %v472
  %678 = vst.msk [vmem:[%s3 + $0x90] sm:$0xff] %vm659, %v477
  %679 = vst.msk [vmem:[%s3 + $0x98] sm:$0xff] %vm659, %v480
  %680 = vst.msk [vmem:[%s3 + $0xa0] sm:$0xff] %vm659, %v485
  %681 = vst.msk [vmem:[%s3 + $0xa8] sm:$0xff] %vm659, %v488
  %682 = vst.msk [vmem:[%s3 + $0xb0] sm:$0xff] %vm659, %v493
  %683 = vst.msk [vmem:[%s3 + $0xb8] sm:$0xff] %vm659, %v496
  %684 = vst.msk [vmem:[%s3 + $0xc0] sm:$0xff] %vm659, %v501
  %685 = vst.msk [vmem:[%s3 + $0xc8] sm:$0xff] %vm659, %v504
  %686 = vst.msk [vmem:[%s3 + $0xd0] sm:$0xff] %vm659, %v509
  %687 = vst.msk [vmem:[%s3 + $0xd8] sm:$0xff] %vm659, %v512
  %688 = vst.msk [vmem:[%s3 + $0xe0] sm:$0xff] %vm659, %v517
  %689 = vst.msk [vmem:[%s3 + $0xe8] sm:$0xff] %vm659, %v520
  %690 = vst.msk [vmem:[%s3 + $0xf0] sm:$0xff] %vm659, %v525
  %691 = vst.msk [vmem:[%s3 + $0xf8] sm:$0xff] %vm659, %v528
  %692 = vst.msk [vmem:[%s3 + $0x100] sm:$0xff] %vm659, %v533
  %693 = vst.msk [vmem:[%s3 + $0x108] sm:$0xff] %vm659, %v536
  %694 = vst.msk [vmem:[%s3 + $0x110] sm:$0xff] %vm659, %v541
  %695 = vst.msk [vmem:[%s3 + $0x118] sm:$0xff] %vm659, %v544
  %696 = vst.msk [vmem:[%s3 + $0x120] sm:$0xff] %vm659, %v549
  %697 = vst.msk [vmem:[%s3 + $0x128] sm:$0xff] %vm659, %v552
  %698 = vst.msk [vmem:[%s3 + $0x130] sm:$0xff] %vm659, %v557
  %699 = vst.msk [vmem:[%s3 + $0x138] sm:$0xff] %vm659, %v560
  %700 = vst.msk [vmem:[%s3 + $0x140] sm:$0xff] %vm659, %v565
  %701 = vst.msk [vmem:[%s3 + $0x148] sm:$0xff] %vm659, %v568
  %702 = vst.msk [vmem:[%s3 + $0x150] sm:$0xff] %vm659, %v573
  %703 = vst.msk [vmem:[%s3 + $0x158] sm:$0xff] %vm659, %v576
  %704 = vst.msk [vmem:[%s3 + $0x160] sm:$0xff] %vm659, %v581
  %705 = vst.msk [vmem:[%s3 + $0x168] sm:$0xff] %vm659, %v584
  %706 = vst.msk [vmem:[%s3 + $0x170] sm:$0xff] %vm659, %v589
  %707 = vst.msk [vmem:[%s3 + $0x178] sm:$0xff] %vm659, %v592
  %708 = vst.msk [vmem:[%s3 + $0x180] sm:$0xff] %vm659, %v597
  %709 = vst.msk [vmem:[%s3 + $0x188] sm:$0xff] %vm659, %v600
  %710 = vst.msk [vmem:[%s3 + $0x190] sm:$0xff] %vm659, %v605
  %711 = vst.msk [vmem:[%s3 + $0x198] sm:$0xff] %vm659, %v608
  %712 = vst.msk [vmem:[%s3 + $0x1a0] sm:$0xff] %vm659, %v613
  %713 = vst.msk [vmem:[%s3 + $0x1a8] sm:$0xff] %vm659, %v616
  %714 = vst.msk [vmem:[%s3 + $0x1b0] sm:$0xff] %vm659, %v621
  %715 = vst.msk [vmem:[%s3 + $0x1b8] sm:$0xff] %vm659, %v624
  %716 = vst.msk [vmem:[%s3 + $0x1c0] sm:$0xff] %vm659, %v629
  %717 = vst.msk [vmem:[%s3 + $0x1c8] sm:$0xff] %vm659, %v632
  %718 = vst.msk [vmem:[%s3 + $0x1d0] sm:$0xff] %vm659, %v637
  %719 = vst.msk [vmem:[%s3 + $0x1d8] sm:$0xff] %vm659, %v640
  %720 = vst.msk [vmem:[%s3 + $0x1e0] sm:$0xff] %vm659, %v645
  %721 = vst.msk [vmem:[%s3 + $0x1e8] sm:$0xff] %vm659, %v648
  %722 = vst.msk [vmem:[%s3 + $0x1f0] sm:$0xff] %vm659, %v653
  %723 = vst.msk [vmem:[%s3 + $0x1f8] sm:$0xff] %vm659, %v656
  %v724 = vsel %vm659, %v405, 0.0
  %v725 = vsel %vm659, %v408, 0.0
  %v726 = vadd.f32 %v724, %v725
  %v727 = vsel %vm659, %v413, 0.0
  %v728 = vadd.f32 %v726, %v727
  %v729 = vsel %vm659, %v416, 0.0
  %v730 = vadd.f32 %v728, %v729
  %v731 = vsel %vm659, %v421, 0.0
  %v732 = vadd.f32 %v730, %v731
  %v733 = vsel %vm659, %v424, 0.0
  %v734 = vadd.f32 %v732, %v733
  %v735 = vsel %vm659, %v429, 0.0
  %v736 = vadd.f32 %v734, %v735
  %v737 = vsel %vm659, %v432, 0.0
  %v738 = vadd.f32 %v736, %v737
  %v739 = vsel %vm659, %v437, 0.0
  %v740 = vadd.f32 %v738, %v739
  %v741 = vsel %vm659, %v440, 0.0
  %v742 = vadd.f32 %v740, %v741
  %v743 = vsel %vm659, %v445, 0.0
  %v744 = vadd.f32 %v742, %v743
  %v745 = vsel %vm659, %v448, 0.0
  %v746 = vadd.f32 %v744, %v745
  %v747 = vsel %vm659, %v453, 0.0
  %v748 = vadd.f32 %v746, %v747
  %v749 = vsel %vm659, %v456, 0.0
  %v750 = vadd.f32 %v748, %v749
  %v751 = vsel %vm659, %v461, 0.0
  %v752 = vadd.f32 %v750, %v751
  %v753 = vsel %vm659, %v464, 0.0
  %v754 = vadd.f32 %v752, %v753
  %v755 = vsel %vm659, %v469, 0.0
  %v756 = vadd.f32 %v754, %v755
  %v757 = vsel %vm659, %v472, 0.0
  %v758 = vadd.f32 %v756, %v757
  %v759 = vsel %vm659, %v477, 0.0
  %v760 = vadd.f32 %v758, %v759
  %v761 = vsel %vm659, %v480, 0.0
  %v762 = vadd.f32 %v760, %v761
  %v763 = vsel %vm659, %v485, 0.0
  %v764 = vadd.f32 %v762, %v763
  %v765 = vsel %vm659, %v488, 0.0
  %v766 = vadd.f32 %v764, %v765
  %v767 = vsel %vm659, %v493, 0.0
  %v768 = vadd.f32 %v766, %v767
  %v769 = vsel %vm659, %v496, 0.0
  %v770 = vadd.f32 %v768, %v769
  %v771 = vsel %vm659, %v501, 0.0
  %v772 = vadd.f32 %v770, %v771
  %v773 = vsel %vm659, %v504, 0.0
  %v774 = vadd.f32 %v772, %v773
  %v775 = vsel %vm659, %v509, 0.0
  %v776 = vadd.f32 %v774, %v775
  %v777 = vsel %vm659, %v512, 0.0
  %v778 = vadd.f32 %v776, %v777
  %v779 = vsel %vm659, %v517, 0.0
  %v780 = vadd.f32 %v778, %v779
  %v781 = vsel %vm659, %v520, 0.0
  %v782 = vadd.f32 %v780, %v781
  %v783 = vsel %vm659, %v525, 0.0
  %v784 = vadd.f32 %v782, %v783
  %v785 = vsel %vm659, %v528, 0.0
  %v786 = vadd.f32 %v784, %v785
  %v787 = vsel %vm659, %v533, 0.0
  %v788 = vadd.f32 %v786, %v787
  %v789 = vsel %vm659, %v536, 0.0
  %v790 = vadd.f32 %v788, %v789
  %v791 = vsel %vm659, %v541, 0.0
  %v792 = vadd.f32 %v790, %v791
  %v793 = vsel %vm659, %v544, 0.0
  %v794 = vadd.f32 %v792, %v793
  %v795 = vsel %vm659, %v549, 0.0
  %v796 = vadd.f32 %v794, %v795
  %v797 = vsel %vm659, %v552, 0.0
  %v798 = vadd.f32 %v796, %v797
  %v799 = vsel %vm659, %v557, 0.0
  %v800 = vadd.f32 %v798, %v799
  %v801 = vsel %vm659, %v560, 0.0
  %v802 = vadd.f32 %v800, %v801
  %v803 = vsel %vm659, %v565, 0.0
  %v804 = vadd.f32 %v802, %v803
  %v805 = vsel %vm659, %v568, 0.0
  %v806 = vadd.f32 %v804, %v805
  %v807 = vsel %vm659, %v573, 0.0
  %v808 = vadd.f32 %v806, %v807
  %v809 = vsel %vm659, %v576, 0.0
  %v810 = vadd.f32 %v808, %v809
  %v811 = vsel %vm659, %v581, 0.0
  %v812 = vadd.f32 %v810, %v811
  %v813 = vsel %vm659, %v584, 0.0
  %v814 = vadd.f32 %v812, %v813
  %v815 = vsel %vm659, %v589, 0.0
  %v816 = vadd.f32 %v814, %v815
  %v817 = vsel %vm659, %v592, 0.0
  %v818 = vadd.f32 %v816, %v817
  %v819 = vsel %vm659, %v597, 0.0
  %v820 = vadd.f32 %v818, %v819
  %v821 = vsel %vm659, %v600, 0.0
  %v822 = vadd.f32 %v820, %v821
  %v823 = vsel %vm659, %v605, 0.0
  %v824 = vadd.f32 %v822, %v823
  %v825 = vsel %vm659, %v608, 0.0
  %v826 = vadd.f32 %v824, %v825
  %v827 = vsel %vm659, %v613, 0.0
  %v828 = vadd.f32 %v826, %v827
  %v829 = vsel %vm659, %v616, 0.0
  %v830 = vadd.f32 %v828, %v829
  %v831 = vsel %vm659, %v621, 0.0
  %v832 = vadd.f32 %v830, %v831
  %v833 = vsel %vm659, %v624, 0.0
  %v834 = vadd.f32 %v832, %v833
  %v835 = vsel %vm659, %v629, 0.0
  %v836 = vadd.f32 %v834, %v835
  %v837 = vsel %vm659, %v632, 0.0
  %v838 = vadd.f32 %v836, %v837
  %v839 = vsel %vm659, %v637, 0.0
  %v840 = vadd.f32 %v838, %v839
  %v841 = vsel %vm659, %v640, 0.0
  %v842 = vadd.f32 %v840, %v841
  %v843 = vsel %vm659, %v645, 0.0
  %v844 = vadd.f32 %v842, %v843
  %v845 = vsel %vm659, %v648, 0.0
  %v846 = vadd.f32 %v844, %v845
  %v847 = vsel %vm659, %v653, 0.0
  %v848 = vadd.f32 %v846, %v847
  %v849 = vsel %vm659, %v656, 0.0
  %v850 = vadd.f32 %v848, %v849
  %v851 = vrot.slane %v850, 4
  %v852 = vadd.f32 %v850, %v851
  %v853 = vrot.slane %v852, 2
  %v854 = vadd.f32 %v852, %v853
  %v855 = vrot.slane %v854, 1
  %v856 = vadd.f32 %v854, %v855
  %vm857 = vcmask 253952
  %858 = vst.msk [vmem:[%s4] sm:$0x1] %vm857, %v856
  %v859 = vmul.f32 %v405, %v405
  %v860 = vmul.f32 %v408, %v408
  %v861 = vmul.f32 %v413, %v413
  %v862 = vmul.f32 %v416, %v416
  %v863 = vmul.f32 %v421, %v421
  %v864 = vmul.f32 %v424, %v424
  %v865 = vmul.f32 %v429, %v429
  %v866 = vmul.f32 %v432, %v432
  %v867 = vmul.f32 %v437, %v437
  %v868 = vmul.f32 %v440, %v440
  %v869 = vmul.f32 %v445, %v445
  %v870 = vmul.f32 %v448, %v448
  %v871 = vmul.f32 %v453, %v453
  %v872 = vmul.f32 %v456, %v456
  %v873 = vmul.f32 %v461, %v461
  %v874 = vmul.f32 %v464, %v464
  %v875 = vmul.f32 %v469, %v469
  %v876 = vmul.f32 %v472, %v472
  %v877 = vmul.f32 %v477, %v477
  %v878 = vmul.f32 %v480, %v480
  %v879 = vmul.f32 %v485, %v485
  %v880 = vmul.f32 %v488, %v488
  %v881 = vmul.f32 %v493, %v493
  %v882 = vmul.f32 %v496, %v496
  %v883 = vmul.f32 %v501, %v501
  %v884 = vmul.f32 %v504, %v504
  %v885 = vmul.f32 %v509, %v509
  %v886 = vmul.f32 %v512, %v512
  %v887 = vmul.f32 %v517, %v517
  %v888 = vmul.f32 %v520, %v520
  %v889 = vmul.f32 %v525, %v525
  %v890 = vmul.f32 %v528, %v528
  %v891 = vmul.f32 %v533, %v533
  %v892 = vmul.f32 %v536, %v536
  %v893 = vmul.f32 %v541, %v541
  %v894 = vmul.f32 %v544, %v544
  %v895 = vmul.f32 %v549, %v549
  %v896 = vmul.f32 %v552, %v552
  %v897 = vmul.f32 %v557, %v557
  %v898 = vmul.f32 %v560, %v560
  %v899 = vmul.f32 %v565, %v565
  %v900 = vmul.f32 %v568, %v568
  %v901 = vmul.f32 %v573, %v573
  %v902 = vmul.f32 %v576, %v576
  %v903 = vmul.f32 %v581, %v581
  %v904 = vmul.f32 %v584, %v584
  %v905 = vmul.f32 %v589, %v589
  %v906 = vmul.f32 %v592, %v592
  %v907 = vmul.f32 %v597, %v597
  %v908 = vmul.f32 %v600, %v600
  %v909 = vmul.f32 %v605, %v605
  %v910 = vmul.f32 %v608, %v608
  %v911 = vmul.f32 %v613, %v613
  %v912 = vmul.f32 %v616, %v616
  %v913 = vmul.f32 %v621, %v621
  %v914 = vmul.f32 %v624, %v624
  %v915 = vmul.f32 %v629, %v629
  %v916 = vmul.f32 %v632, %v632
  %v917 = vmul.f32 %v637, %v637
  %v918 = vmul.f32 %v640, %v640
  %v919 = vmul.f32 %v645, %v645
  %v920 = vmul.f32 %v648, %v648
  %v921 = vmul.f32 %v653, %v653
  %v922 = vmul.f32 %v656, %v656
  %v923 = vsel %vm659, %v859, 0.0
  %v924 = vsel %vm659, %v860, 0.0
  %v925 = vadd.f32 %v923, %v924
  %v926 = vsel %vm659, %v861, 0.0
  %v927 = vadd.f32 %v925, %v926
  %v928 = vsel %vm659, %v862, 0.0
  %v929 = vadd.f32 %v927, %v928
  %v930 = vsel %vm659, %v863, 0.0
  %v931 = vadd.f32 %v929, %v930
  %v932 = vsel %vm659, %v864, 0.0
  %v933 = vadd.f32 %v931, %v932
  %v934 = vsel %vm659, %v865, 0.0
  %v935 = vadd.f32 %v933, %v934
  %v936 = vsel %vm659, %v866, 0.0
  %v937 = vadd.f32 %v935, %v936
  %v938 = vsel %vm659, %v867, 0.0
  %v939 = vadd.f32 %v937, %v938
  %v940 = vsel %vm659, %v868, 0.0
  %v941 = vadd.f32 %v939, %v940
  %v942 = vsel %vm659, %v869, 0.0
  %v943 = vadd.f32 %v941, %v942
  %v944 = vsel %vm659, %v870, 0.0
  %v945 = vadd.f32 %v943, %v944
  %v946 = vsel %vm659, %v871, 0.0
  %v947 = vadd.f32 %v945, %v946
  %v948 = vsel %vm659, %v872, 0.0
  %v949 = vadd.f32 %v947, %v948
  %v950 = vsel %vm659, %v873, 0.0
  %v951 = vadd.f32 %v949, %v950
  %v952 = vsel %vm659, %v874, 0.0
  %v953 = vadd.f32 %v951, %v952
  %v954 = vsel %vm659, %v875, 0.0
  %v955 = vadd.f32 %v953, %v954
  %v956 = vsel %vm659, %v876, 0.0
  %v957 = vadd.f32 %v955, %v956
  %v958 = vsel %vm659, %v877, 0.0
  %v959 = vadd.f32 %v957, %v958
  %v960 = vsel %vm659, %v878, 0.0
  %v961 = vadd.f32 %v959, %v960
  %v962 = vsel %vm659, %v879, 0.0
  %v963 = vadd.f32 %v961, %v962
  %v964 = vsel %vm659, %v880, 0.0
  %v965 = vadd.f32 %v963, %v964
  %v966 = vsel %vm659, %v881, 0.0
  %v967 = vadd.f32 %v965, %v966
  %v968 = vsel %vm659, %v882, 0.0
  %v969 = vadd.f32 %v967, %v968
  %v970 = vsel %vm659, %v883, 0.0
  %v971 = vadd.f32 %v969, %v970
  %v972 = vsel %vm659, %v884, 0.0
  %v973 = vadd.f32 %v971, %v972
  %v974 = vsel %vm659, %v885, 0.0
  %v975 = vadd.f32 %v973, %v974
  %v976 = vsel %vm659, %v886, 0.0
  %v977 = vadd.f32 %v975, %v976
  %v978 = vsel %vm659, %v887, 0.0
  %v979 = vadd.f32 %v977, %v978
  %v980 = vsel %vm659, %v888, 0.0
  %v981 = vadd.f32 %v979, %v980
  %v982 = vsel %vm659, %v889, 0.0
  %v983 = vadd.f32 %v981, %v982
  %v984 = vsel %vm659, %v890, 0.0
  %v985 = vadd.f32 %v983, %v984
  %v986 = vsel %vm659, %v891, 0.0
  %v987 = vadd.f32 %v985, %v986
  %v988 = vsel %vm659, %v892, 0.0
  %v989 = vadd.f32 %v987, %v988
  %v990 = vsel %vm659, %v893, 0.0
  %v991 = vadd.f32 %v989, %v990
  %v992 = vsel %vm659, %v894, 0.0
  %v993 = vadd.f32 %v991, %v992
  %v994 = vsel %vm659, %v895, 0.0
  %v995 = vadd.f32 %v993, %v994
  %v996 = vsel %vm659, %v896, 0.0
  %v997 = vadd.f32 %v995, %v996
  %v998 = vsel %vm659, %v897, 0.0
  %v999 = vadd.f32 %v997, %v998
  %v1000 = vsel %vm659, %v898, 0.0
  %v1001 = vadd.f32 %v999, %v1000
  %v1002 = vsel %vm659, %v899, 0.0
  %v1003 = vadd.f32 %v1001, %v1002
  %v1004 = vsel %vm659, %v900, 0.0
  %v1005 = vadd.f32 %v1003, %v1004
  %v1006 = vsel %vm659, %v901, 0.0
  %v1007 = vadd.f32 %v1005, %v1006
  %v1008 = vsel %vm659, %v902, 0.0
  %v1009 = vadd.f32 %v1007, %v1008
  %v1010 = vsel %vm659, %v903, 0.0
  %v1011 = vadd.f32 %v1009, %v1010
  %v1012 = vsel %vm659, %v904, 0.0
  %v1013 = vadd.f32 %v1011, %v1012
  %v1014 = vsel %vm659, %v905, 0.0
  %v1015 = vadd.f32 %v1013, %v1014
  %v1016 = vsel %vm659, %v906, 0.0
  %v1017 = vadd.f32 %v1015, %v1016
  %v1018 = vsel %vm659, %v907, 0.0
  %v1019 = vadd.f32 %v1017, %v1018
  %v1020 = vsel %vm659, %v908, 0.0
  %v1021 = vadd.f32 %v1019, %v1020
  %v1022 = vsel %vm659, %v909, 0.0
  %v1023 = vadd.f32 %v1021, %v1022
  %v1024 = vsel %vm659, %v910, 0.0
  %v1025 = vadd.f32 %v1023, %v1024
  %v1026 = vsel %vm659, %v911, 0.0
  %v1027 = vadd.f32 %v1025, %v1026
  %v1028 = vsel %vm659, %v912, 0.0
  %v1029 = vadd.f32 %v1027, %v1028
  %v1030 = vsel %vm659, %v913, 0.0
  %v1031 = vadd.f32 %v1029, %v1030
  %v1032 = vsel %vm659, %v914, 0.0
  %v1033 = vadd.f32 %v1031, %v1032
  %v1034 = vsel %vm659, %v915, 0.0
  %v1035 = vadd.f32 %v1033, %v1034
  %v1036 = vsel %vm659, %v916, 0.0
  %v1037 = vadd.f32 %v1035, %v1036
  %v1038 = vsel %vm659, %v917, 0.0
  %v1039 = vadd.f32 %v1037, %v1038
  %v1040 = vsel %vm659, %v918, 0.0
  %v1041 = vadd.f32 %v1039, %v1040
  %v1042 = vsel %vm659, %v919, 0.0
  %v1043 = vadd.f32 %v1041, %v1042
  %v1044 = vsel %vm659, %v920, 0.0
  %v1045 = vadd.f32 %v1043, %v1044
  %v1046 = vsel %vm659, %v921, 0.0
  %v1047 = vadd.f32 %v1045, %v1046
  %v1048 = vsel %vm659, %v922, 0.0
  %v1049 = vadd.f32 %v1047, %v1048
  %v1050 = vrot.slane %v1049, 4
  %v1051 = vadd.f32 %v1049, %v1050
  %v1052 = vrot.slane %v1051, 2
  %v1053 = vadd.f32 %v1051, %v1052
  %v1054 = vrot.slane %v1053, 1
  %v1055 = vadd.f32 %v1053, %v1054
  %1056 = vst.msk [vmem:[%s5] sm:$0x1] %vm857, %v1055
  // Predicated region
  $region14: #{_lambda_.24} parent=0 // pred_check
    _
  $region15: #{_lambda_.24} parent=0 // pred_check_branch
    %1058 = sbr.rel (0) target = $region17
  $region16: #{_lambda_.24} parent=0 // pred_region
    _
  $region17: #{_lambda_.24} parent=0 // pred_fallthru
    _
  // Predicated region
  $region18: #{_lambda_.24} parent=0 // pred_check
    _
  $region19: #{_lambda_.24} parent=0 // pred_check_branch
    %1060 = sbr.rel (0) target = $region21
  $region20: #{_lambda_.24} parent=0 // pred_region
    _
  $region21: #{_lambda_.24} parent=0 // pred_fallthru
    _
  // Predicated region
  $region22: #{_lambda_.24} parent=0 // pred_check
    _
  $region23: #{_lambda_.24} parent=0 // pred_check_branch
    %1062 = sbr.rel (0) target = $region25
  $region24: #{_lambda_.24} parent=0 // pred_region
    _
  $region25: #{_lambda_.24} parent=0 // pred_fallthru
    _
  // Predicated region
  $region26: #{_lambda_.24} parent=0 // pred_check
    _
  $region27: #{_lambda_.24} parent=0 // pred_check_branch
    %1064 = sbr.rel (0) target = $region29
  $region28: #{_lambda_.24} parent=0 // pred_region
    _
  $region29: #{_lambda_.24} parent=0 // pred_fallthru
    _
  // Predicated region
  $region30: #{_lambda_.24} parent=0 // pred_check
    _
  $region31: #{_lambda_.24} parent=0 // pred_check_branch
    %1066 = sbr.rel (0) target = $region33
  $region32: #{_lambda_.24} parent=0 // pred_region
    _
  $region33: #{_lambda_.24} parent=0 // pred_fallthru
    _
  // Predicated region
  $region34: #{_lambda_.24} parent=0 // pred_check
    _
  $region35: #{_lambda_.24} parent=0 // pred_check_branch
    %1068 = sbr.rel (0) target = $region37
  $region36: #{_lambda_.24} parent=0 // pred_region
    _
  $region37: #{_lambda_.24} parent=0 // pred_fallthru
    _

// kernel: _lambda_.26
$region0: #{_lambda_.26}
  #allocation0 [shape = 'u32[]', space=smem, size = 0x4, offset = 0x4, fixed_abs, tag = 'smem constant byte address 0x4 - core index']
  #allocation1 [shape = 'u32[144,128]{1,0:T(1,128)}', space=vmem, size = 0x12000, scoped, tag = 'internal scratch']
  %s0 = inlined_call_operand.vmem [shape: bf16[128,512], index: 0, kind: input, shape index: {}]
  %s1 = inlined_call_operand.vmem [shape: bf16[512,32], index: 1, kind: input, shape index: {}]
  %s2 = inlined_call_operand.vmem [shape: f32[1,32], index: 2, kind: input, shape index: {}]
  %s3 = inlined_call_operand.vmem [shape: f32[128,32], index: 3, kind: output, shape index: {0}]
  %s4 = inlined_call_operand.vmem [shape: f32[1,1,32], index: 4, kind: output, shape index: {1}]
  %s5 = inlined_call_operand.vmem [shape: f32[1,1,32], index: 5, kind: output, shape index: {2}]
  %6 = xla_tuple %s3, %s4, %s5
  %s7 = sld [smem:[#allocation0]]
  $region38: #{_lambda_.26} parent=0
    _
  %s9 = ssub.s32 1, %s7
  %s10 = scalar_select 0, %s9, %s7
  // Predicated region
  $region2: #{_lambda_.26} parent=0 // pred_check
    _
  $region3: #{_lambda_.26} parent=0 // pred_check_branch
    %12 = sbr.rel (0) target = $region5
  $region4: #{_lambda_.26} parent=0 // pred_region
    _
  $region5: #{_lambda_.26} parent=0 // pred_fallthru
    _
  // Predicated region
  $region6: #{_lambda_.26} parent=0 // pred_check
    _
  $region7: #{_lambda_.26} parent=0 // pred_check_branch
    %14 = sbr.rel (0) target = $region9
  $region8: #{_lambda_.26} parent=0 // pred_region
    _
  $region9: #{_lambda_.26} parent=0 // pred_fallthru
    _
  // Predicated region
  $region10: #{_lambda_.26} parent=0 // pred_check
    _
  $region11: #{_lambda_.26} parent=0 // pred_check_branch
    %16 = sbr.rel (0) target = $region13
  $region12: #{_lambda_.26} parent=0 // pred_region
    _
  $region13: #{_lambda_.26} parent=0 // pred_fallthru
    _
  %v18 = vld [vmem:[%s0] sm:$0xff]
  %v19 = vld [vmem:[%s0 + $0x8] sm:$0xff]
  %v20 = vld [vmem:[%s0 + $0x10] sm:$0xff]
  %v21 = vld [vmem:[%s0 + $0x18] sm:$0xff]
  %v22 = vld [vmem:[%s0 + $0x20] sm:$0xff]
  %v23 = vld [vmem:[%s0 + $0x28] sm:$0xff]
  %v24 = vld [vmem:[%s0 + $0x30] sm:$0xff]
  %v25 = vld [vmem:[%s0 + $0x38] sm:$0xff]
  %v26 = vld [vmem:[%s0 + $0x40] sm:$0xff]
  %v27 = vld [vmem:[%s0 + $0x48] sm:$0xff]
  %v28 = vld [vmem:[%s0 + $0x50] sm:$0xff]
  %v29 = vld [vmem:[%s0 + $0x58] sm:$0xff]
  %v30 = vld [vmem:[%s0 + $0x60] sm:$0xff]
  %v31 = vld [vmem:[%s0 + $0x68] sm:$0xff]
  %v32 = vld [vmem:[%s0 + $0x70] sm:$0xff]
  %v33 = vld [vmem:[%s0 + $0x78] sm:$0xff]
  %v34 = vld [vmem:[%s0 + $0x80] sm:$0xff]
  %v35 = vld [vmem:[%s0 + $0x88] sm:$0xff]
  %v36 = vld [vmem:[%s0 + $0x90] sm:$0xff]
  %v37 = vld [vmem:[%s0 + $0x98] sm:$0xff]
  %v38 = vld [vmem:[%s0 + $0xa0] sm:$0xff]
  %v39 = vld [vmem:[%s0 + $0xa8] sm:$0xff]
  %v40 = vld [vmem:[%s0 + $0xb0] sm:$0xff]
  %v41 = vld [vmem:[%s0 + $0xb8] sm:$0xff]
  %v42 = vld [vmem:[%s0 + $0xc0] sm:$0xff]
  %v43 = vld [vmem:[%s0 + $0xc8] sm:$0xff]
  %v44 = vld [vmem:[%s0 + $0xd0] sm:$0xff]
  %v45 = vld [vmem:[%s0 + $0xd8] sm:$0xff]
  %v46 = vld [vmem:[%s0 + $0xe0] sm:$0xff]
  %v47 = vld [vmem:[%s0 + $0xe8] sm:$0xff]
  %v48 = vld [vmem:[%s0 + $0xf0] sm:$0xff]
  %v49 = vld [vmem:[%s0 + $0xf8] sm:$0xff]
  %v50 = vld [vmem:[%s1] sm:$0xf]
  %v51 = vld [vmem:[%s1 + $0x4] sm:$0xf]
  %v52 = vld [vmem:[%s1 + $0x8] sm:$0xf]
  %v53 = vld [vmem:[%s1 + $0xc] sm:$0xf]
  %v54 = vld [vmem:[%s1 + $0x10] sm:$0xf]
  %v55 = vld [vmem:[%s1 + $0x14] sm:$0xf]
  %v56 = vld [vmem:[%s1 + $0x18] sm:$0xf]
  %v57 = vld [vmem:[%s1 + $0x1c] sm:$0xf]
  %v58 = vld [vmem:[%s1 + $0x20] sm:$0xf]
  %v59 = vld [vmem:[%s1 + $0x24] sm:$0xf]
  %v60 = vld [vmem:[%s1 + $0x28] sm:$0xf]
  %v61 = vld [vmem:[%s1 + $0x2c] sm:$0xf]
  %v62 = vld [vmem:[%s1 + $0x30] sm:$0xf]
  %v63 = vld [vmem:[%s1 + $0x34] sm:$0xf]
  %v64 = vld [vmem:[%s1 + $0x38] sm:$0xf]
  %v65 = vld [vmem:[%s1 + $0x3c] sm:$0xf]
  %v66 = vld [vmem:[%s1 + $0x40] sm:$0xf]
  %v67 = vld [vmem:[%s1 + $0x44] sm:$0xf]
  %v68 = vld [vmem:[%s1 + $0x48] sm:$0xf]
  %v69 = vld [vmem:[%s1 + $0x4c] sm:$0xf]
  %v70 = vld [vmem:[%s1 + $0x50] sm:$0xf]
  %v71 = vld [vmem:[%s1 + $0x54] sm:$0xf]
  %v72 = vld [vmem:[%s1 + $0x58] sm:$0xf]
  %v73 = vld [vmem:[%s1 + $0x5c] sm:$0xf]
  %v74 = vld [vmem:[%s1 + $0x60] sm:$0xf]
  %v75 = vld [vmem:[%s1 + $0x64] sm:$0xf]
  %v76 = vld [vmem:[%s1 + $0x68] sm:$0xf]
  %v77 = vld [vmem:[%s1 + $0x6c] sm:$0xf]
  %v78 = vld [vmem:[%s1 + $0x70] sm:$0xf]
  %v79 = vld [vmem:[%s1 + $0x74] sm:$0xf]
  %v80 = vld [vmem:[%s1 + $0x78] sm:$0xf]
  %v81 = vld [vmem:[%s1 + $0x7c] sm:$0xf]
  %v82 = vld [vmem:[%s1 + $0x80] sm:$0xf]
  %v83 = vld [vmem:[%s1 + $0x84] sm:$0xf]
  %v84 = vld [vmem:[%s1 + $0x88] sm:$0xf]
  %v85 = vld [vmem:[%s1 + $0x8c] sm:$0xf]
  %v86 = vld [vmem:[%s1 + $0x90] sm:$0xf]
  %v87 = vld [vmem:[%s1 + $0x94] sm:$0xf]
  %v88 = vld [vmem:[%s1 + $0x98] sm:$0xf]
  %v89 = vld [vmem:[%s1 + $0x9c] sm:$0xf]
  %v90 = vld [vmem:[%s1 + $0xa0] sm:$0xf]
  %v91 = vld [vmem:[%s1 + $0xa4] sm:$0xf]
  %v92 = vld [vmem:[%s1 + $0xa8] sm:$0xf]
  %v93 = vld [vmem:[%s1 + $0xac] sm:$0xf]
  %v94 = vld [vmem:[%s1 + $0xb0] sm:$0xf]
  %v95 = vld [vmem:[%s1 + $0xb4] sm:$0xf]
  %v96 = vld [vmem:[%s1 + $0xb8] sm:$0xf]
  %v97 = vld [vmem:[%s1 + $0xbc] sm:$0xf]
  %v98 = vld [vmem:[%s1 + $0xc0] sm:$0xf]
  %v99 = vld [vmem:[%s1 + $0xc4] sm:$0xf]
  %v100 = vld [vmem:[%s1 + $0xc8] sm:$0xf]
  %v101 = vld [vmem:[%s1 + $0xcc] sm:$0xf]
  %v102 = vld [vmem:[%s1 + $0xd0] sm:$0xf]
  %v103 = vld [vmem:[%s1 + $0xd4] sm:$0xf]
  %v104 = vld [vmem:[%s1 + $0xd8] sm:$0xf]
  %v105 = vld [vmem:[%s1 + $0xdc] sm:$0xf]
  %v106 = vld [vmem:[%s1 + $0xe0] sm:$0xf]
  %v107 = vld [vmem:[%s1 + $0xe4] sm:$0xf]
  %v108 = vld [vmem:[%s1 + $0xe8] sm:$0xf]
  %v109 = vld [vmem:[%s1 + $0xec] sm:$0xf]
  %v110 = vld [vmem:[%s1 + $0xf0] sm:$0xf]
  %v111 = vld [vmem:[%s1 + $0xf4] sm:$0xf]
  %v112 = vld [vmem:[%s1 + $0xf8] sm:$0xf]
  %v113 = vld [vmem:[%s1 + $0xfc] sm:$0xf]
  %v114 = vld [vmem:[%s2] sm:$0x1]
  %v116 = vlaneseq
  %v117 = vshrl.u32 %v116, 7
  %v118 = vsub.s32 0, %v117
  %v119 = vrot.slane %v114, %v118
  %v153 = vunpack.c.l.b16 %v18
  %v154 = vunpack.c.h.b16 %v18
  %v155 = vunpack.c.l.b16 %v19
  %v156 = vunpack.c.h.b16 %v19
  %v157 = vunpack.c.l.b16 %v20
  %v158 = vunpack.c.h.b16 %v20
  %v159 = vunpack.c.l.b16 %v21
  %v160 = vunpack.c.h.b16 %v21
  %v161 = vunpack.c.l.b16 %v22
  %v162 = vunpack.c.h.b16 %v22
  %v163 = vunpack.c.l.b16 %v23
  %v164 = vunpack.c.h.b16 %v23
  %v165 = vunpack.c.l.b16 %v24
  %v166 = vunpack.c.h.b16 %v24
  %v167 = vunpack.c.l.b16 %v25
  %v168 = vunpack.c.h.b16 %v25
  %v169 = vunpack.c.l.b16 %v26
  %v170 = vunpack.c.h.b16 %v26
  %v171 = vunpack.c.l.b16 %v27
  %v172 = vunpack.c.h.b16 %v27
  %v173 = vunpack.c.l.b16 %v28
  %v174 = vunpack.c.h.b16 %v28
  %v175 = vunpack.c.l.b16 %v29
  %v176 = vunpack.c.h.b16 %v29
  %v177 = vunpack.c.l.b16 %v30
  %v178 = vunpack.c.h.b16 %v30
  %v179 = vunpack.c.l.b16 %v31
  %v180 = vunpack.c.h.b16 %v31
  %v181 = vunpack.c.l.b16 %v32
  %v182 = vunpack.c.h.b16 %v32
  %v183 = vunpack.c.l.b16 %v33
  %v184 = vunpack.c.h.b16 %v33
  %v185 = vunpack.c.l.b16 %v34
  %v186 = vunpack.c.h.b16 %v34
  %v187 = vunpack.c.l.b16 %v35
  %v188 = vunpack.c.h.b16 %v35
  %v189 = vunpack.c.l.b16 %v36
  %v190 = vunpack.c.h.b16 %v36
  %v191 = vunpack.c.l.b16 %v37
  %v192 = vunpack.c.h.b16 %v37
  %v193 = vunpack.c.l.b16 %v38
  %v194 = vunpack.c.h.b16 %v38
  %v195 = vunpack.c.l.b16 %v39
  %v196 = vunpack.c.h.b16 %v39
  %v197 = vunpack.c.l.b16 %v40
  %v198 = vunpack.c.h.b16 %v40
  %v199 = vunpack.c.l.b16 %v41
  %v200 = vunpack.c.h.b16 %v41
  %v201 = vunpack.c.l.b16 %v42
  %v202 = vunpack.c.h.b16 %v42
  %v203 = vunpack.c.l.b16 %v43
  %v204 = vunpack.c.h.b16 %v43
  %v205 = vunpack.c.l.b16 %v44
  %v206 = vunpack.c.h.b16 %v44
  %v207 = vunpack.c.l.b16 %v45
  %v208 = vunpack.c.h.b16 %v45
  %v209 = vunpack.c.l.b16 %v46
  %v210 = vunpack.c.h.b16 %v46
  %v211 = vunpack.c.l.b16 %v47
  %v212 = vunpack.c.h.b16 %v47
  %v213 = vunpack.c.l.b16 %v48
  %v214 = vunpack.c.h.b16 %v48
  %v215 = vunpack.c.l.b16 %v49
  %v216 = vunpack.c.h.b16 %v49
  %v217 = vpack.c.b16 %v157, %v153
  %v218 = vpack.c.b16 %v158, %v154
  %v219 = vpack.c.b16 %v159, %v155
  %v220 = vpack.c.b16 %v160, %v156
  %v221 = vpack.c.b16 %v165, %v161
  %v222 = vpack.c.b16 %v166, %v162
  %v223 = vpack.c.b16 %v167, %v163
  %v224 = vpack.c.b16 %v168, %v164
  %v225 = vpack.c.b16 %v173, %v169
  %v226 = vpack.c.b16 %v174, %v170
  %v227 = vpack.c.b16 %v175, %v171
  %v228 = vpack.c.b16 %v176, %v172
  %v229 = vpack.c.b16 %v181, %v177
  %v230 = vpack.c.b16 %v182, %v178
  %v231 = vpack.c.b16 %v183, %v179
  %v232 = vpack.c.b16 %v184, %v180
  %v233 = vpack.c.b16 %v189, %v185
  %v234 = vpack.c.b16 %v190, %v186
  %v235 = vpack.c.b16 %v191, %v187
  %v236 = vpack.c.b16 %v192, %v188
  %v237 = vpack.c.b16 %v197, %v193
  %v238 = vpack.c.b16 %v198, %v194
  %v239 = vpack.c.b16 %v199, %v195
  %v240 = vpack.c.b16 %v200, %v196
  %v241 = vpack.c.b16 %v205, %v201
  %v242 = vpack.c.b16 %v206, %v202
  %v243 = vpack.c.b16 %v207, %v203
  %v244 = vpack.c.b16 %v208, %v204
  %v245 = vpack.c.b16 %v213, %v209
  %v246 = vpack.c.b16 %v214, %v210
  %v247 = vpack.c.b16 %v215, %v211
  %v248 = vpack.c.b16 %v216, %v212
  %v345 = vunpack.c.l.b16 %v50
  %v346 = vunpack.c.l.b16 %v51
  %v347 = vunpack.c.l.b16 %v52
  %v348 = vunpack.c.l.b16 %v53
  %v349 = vunpack.c.l.b16 %v54
  %v350 = vunpack.c.l.b16 %v55
  %v351 = vunpack.c.l.b16 %v56
  %v352 = vunpack.c.l.b16 %v57
  %v353 = vunpack.c.l.b16 %v58
  %v354 = vunpack.c.l.b16 %v59
  %v355 = vunpack.c.l.b16 %v60
  %v356 = vunpack.c.l.b16 %v61
  %v357 = vunpack.c.l.b16 %v62
  %v358 = vunpack.c.l.b16 %v63
  %v359 = vunpack.c.l.b16 %v64
  %v360 = vunpack.c.l.b16 %v65
  %v361 = vunpack.c.l.b16 %v66
  %v362 = vunpack.c.l.b16 %v67
  %v363 = vunpack.c.l.b16 %v68
  %v364 = vunpack.c.l.b16 %v69
  %v365 = vunpack.c.l.b16 %v70
  %v366 = vunpack.c.l.b16 %v71
  %v367 = vunpack.c.l.b16 %v72
  %v368 = vunpack.c.l.b16 %v73
  %v369 = vunpack.c.l.b16 %v74
  %v370 = vunpack.c.l.b16 %v75
  %v371 = vunpack.c.l.b16 %v76
  %v372 = vunpack.c.l.b16 %v77
  %v373 = vunpack.c.l.b16 %v78
  %v374 = vunpack.c.l.b16 %v79
  %v375 = vunpack.c.l.b16 %v80
  %v376 = vunpack.c.l.b16 %v81
  %v377 = vunpack.c.l.b16 %v82
  %v378 = vunpack.c.l.b16 %v83
  %v379 = vunpack.c.l.b16 %v84
  %v380 = vunpack.c.l.b16 %v85
  %v381 = vunpack.c.l.b16 %v86
  %v382 = vunpack.c.l.b16 %v87
  %v383 = vunpack.c.l.b16 %v88
  %v384 = vunpack.c.l.b16 %v89
  %v385 = vunpack.c.l.b16 %v90
  %v386 = vunpack.c.l.b16 %v91
  %v387 = vunpack.c.l.b16 %v92
  %v388 = vunpack.c.l.b16 %v93
  %v389 = vunpack.c.l.b16 %v94
  %v390 = vunpack.c.l.b16 %v95
  %v391 = vunpack.c.l.b16 %v96
  %v392 = vunpack.c.l.b16 %v97
  %v393 = vunpack.c.l.b16 %v98
  %v394 = vunpack.c.l.b16 %v99
  %v395 = vunpack.c.l.b16 %v100
  %v396 = vunpack.c.l.b16 %v101
  %v397 = vunpack.c.l.b16 %v102
  %v398 = vunpack.c.l.b16 %v103
  %v399 = vunpack.c.l.b16 %v104
  %v400 = vunpack.c.l.b16 %v105
  %v401 = vunpack.c.l.b16 %v106
  %v402 = vunpack.c.l.b16 %v107
  %v403 = vunpack.c.l.b16 %v108
  %v404 = vunpack.c.l.b16 %v109
  %v405 = vunpack.c.l.b16 %v110
  %v406 = vunpack.c.l.b16 %v111
  %v407 = vunpack.c.l.b16 %v112
  %v408 = vunpack.c.l.b16 %v113
  %v409 = vpack.c.b16 %v346, %v345
  %v410 = vpack.c.b16 %v348, %v347
  %v411 = vpack.c.b16 %v350, %v349
  %v412 = vpack.c.b16 %v352, %v351
  %v413 = vpack.c.b16 %v354, %v353
  %v414 = vpack.c.b16 %v356, %v355
  %v415 = vpack.c.b16 %v358, %v357
  %v416 = vpack.c.b16 %v360, %v359
  %v417 = vpack.c.b16 %v362, %v361
  %v418 = vpack.c.b16 %v364, %v363
  %v419 = vpack.c.b16 %v366, %v365
  %v420 = vpack.c.b16 %v368, %v367
  %v421 = vpack.c.b16 %v370, %v369
  %v422 = vpack.c.b16 %v372, %v371
  %v423 = vpack.c.b16 %v374, %v373
  %v424 = vpack.c.b16 %v376, %v375
  %v425 = vpack.c.b16 %v378, %v377
  %v426 = vpack.c.b16 %v380, %v379
  %v427 = vpack.c.b16 %v382, %v381
  %v428 = vpack.c.b16 %v384, %v383
  %v429 = vpack.c.b16 %v386, %v385
  %v430 = vpack.c.b16 %v388, %v387
  %v431 = vpack.c.b16 %v390, %v389
  %v432 = vpack.c.b16 %v392, %v391
  %v433 = vpack.c.b16 %v394, %v393
  %v434 = vpack.c.b16 %v396, %v395
  %v435 = vpack.c.b16 %v398, %v397
  %v436 = vpack.c.b16 %v400, %v399
  %v437 = vpack.c.b16 %v402, %v401
  %v438 = vpack.c.b16 %v404, %v403
  %v439 = vpack.c.b16 %v406, %v405
  %v440 = vpack.c.b16 %v408, %v407
  %473 = vmatprep.subr.bf16.mxu0 0
  %474 = vmatpush1.bf16.msra.mxu0 %v409
  %475 = vmatprep.subr.bf16.mxu0 0
  %476 = vmatpush1.bf16.msra.mxu0 %v410
  %477 = vmatprep.subr.bf16.mxu0 0
  %478 = vmatpush1.bf16.msra.mxu0 %v411
  %479 = vmatprep.subr.bf16.mxu0 0
  %480 = vmatpush1.bf16.msra.mxu0 %v412
  %481 = vmatprep.subr.bf16.mxu0 0
  %482 = vmatpush1.bf16.msra.mxu0 %v413
  %483 = vmatprep.subr.bf16.mxu0 0
  %484 = vmatpush1.bf16.msra.mxu0 %v414
  %485 = vmatprep.subr.bf16.mxu0 0
  %486 = vmatpush1.bf16.msra.mxu0 %v415
  %487 = vmatprep.subr.bf16.mxu0 0
  %488 = vmatpush1.bf16.msra.mxu0 %v416
  %489 = vmatprep.subr.bf16.mxu0 0
  %490 = vmatpush1.bf16.msra.mxu0 %v417
  %491 = vmatprep.subr.bf16.mxu0 0
  %492 = vmatpush1.bf16.msra.mxu0 %v418
  %493 = vmatprep.subr.bf16.mxu0 0
  %494 = vmatpush1.bf16.msra.mxu0 %v419
  %495 = vmatprep.subr.bf16.mxu0 0
  %496 = vmatpush1.bf16.msra.mxu0 %v420
  %497 = vmatprep.subr.bf16.mxu0 0
  %498 = vmatpush1.bf16.msra.mxu0 %v421
  %499 = vmatprep.subr.bf16.mxu0 0
  %500 = vmatpush1.bf16.msra.mxu0 %v422
  %501 = vmatprep.subr.bf16.mxu0 0
  %502 = vmatpush1.bf16.msra.mxu0 %v423
  %503 = vmatprep.subr.bf16.mxu0 0
  %504 = vmatpush1.bf16.msra.mxu0 %v424
  %505 = vmatprep.mubr.bf16.mxu0 %v218
  %506 = vmatmul.mubr.bf16.gmra.mrb[0].mxu0 %v217
  %v507 = vpop.f32.mrb[0].mxu0
  %v508 = vadd.f32 %v119, %v507
  %v509 = vpop.f32.mrb[0].mxu0
  %v510 = vpop.f32.mrb[0].mxu0
  %v511 = vadd.f32 %v119, %v510
  %v512 = vpop.f32.mrb[0].mxu0
  %513 = vmatprep.mubr.bf16.mxu0 %v222
  %514 = vmatmul.mubr.bf16.gmra.mrb[0].mxu0 %v221
  %v515 = vpop.f32.mrb[0].mxu0
  %v516 = vadd.f32 %v119, %v515
  %v517 = vpop.f32.mrb[0].mxu0
  %v518 = vpop.f32.mrb[0].mxu0
  %v519 = vadd.f32 %v119, %v518
  %v520 = vpop.f32.mrb[0].mxu0
  %521 = vmatprep.mubr.bf16.mxu0 %v226
  %522 = vmatmul.mubr.bf16.gmra.mrb[0].mxu0 %v225
  %v523 = vpop.f32.mrb[0].mxu0
  %v524 = vadd.f32 %v119, %v523
  %v525 = vpop.f32.mrb[0].mxu0
  %v526 = vpop.f32.mrb[0].mxu0
  %v527 = vadd.f32 %v119, %v526
  %v528 = vpop.f32.mrb[0].mxu0
  %529 = vmatprep.mubr.bf16.mxu0 %v230
  %530 = vmatmul.mubr.bf16.gmra.mrb[0].mxu0 %v229
  %v531 = vpop.f32.mrb[0].mxu0
  %v532 = vadd.f32 %v119, %v531
  %v533 = vpop.f32.mrb[0].mxu0
  %v534 = vpop.f32.mrb[0].mxu0
  %v535 = vadd.f32 %v119, %v534
  %v536 = vpop.f32.mrb[0].mxu0
  %537 = vmatprep.mubr.bf16.mxu0 %v234
  %538 = vmatmul.mubr.bf16.gmra.mrb[0].mxu0 %v233
  %v539 = vpop.f32.mrb[0].mxu0
  %v540 = vadd.f32 %v119, %v539
  %v541 = vpop.f32.mrb[0].mxu0
  %v542 = vpop.f32.mrb[0].mxu0
  %v543 = vadd.f32 %v119, %v542
  %v544 = vpop.f32.mrb[0].mxu0
  %545 = vmatprep.mubr.bf16.mxu0 %v238
  %546 = vmatmul.mubr.bf16.gmra.mrb[0].mxu0 %v237
  %v547 = vpop.f32.mrb[0].mxu0
  %v548 = vadd.f32 %v119, %v547
  %v549 = vpop.f32.mrb[0].mxu0
  %v550 = vpop.f32.mrb[0].mxu0
  %v551 = vadd.f32 %v119, %v550
  %v552 = vpop.f32.mrb[0].mxu0
  %553 = vmatprep.mubr.bf16.mxu0 %v242
  %554 = vmatmul.mubr.bf16.gmra.mrb[0].mxu0 %v241
  %v555 = vpop.f32.mrb[0].mxu0
  %v556 = vadd.f32 %v119, %v555
  %v557 = vpop.f32.mrb[0].mxu0
  %v558 = vpop.f32.mrb[0].mxu0
  %v559 = vadd.f32 %v119, %v558
  %v560 = vpop.f32.mrb[0].mxu0
  %561 = vmatprep.mubr.bf16.mxu0 %v246
  %562 = vmatmul.mubr.bf16.gmra.mrb[0].mxu0 %v245
  %v563 = vpop.f32.mrb[0].mxu0
  %v564 = vadd.f32 %v119, %v563
  %v565 = vpop.f32.mrb[0].mxu0
  %v566 = vpop.f32.mrb[0].mxu0
  %v567 = vadd.f32 %v119, %v566
  %v568 = vpop.f32.mrb[0].mxu0
  %569 = vdwg.mxu0
  %570 = vmatprep.subr.bf16.mxu0 0
  %571 = vmatpush1.bf16.msra.mxu0 %v425
  %572 = vmatprep.subr.bf16.mxu0 0
  %573 = vmatpush1.bf16.msra.mxu0 %v426
  %574 = vmatprep.subr.bf16.mxu0 0
  %575 = vmatpush1.bf16.msra.mxu0 %v427
  %576 = vmatprep.subr.bf16.mxu0 0
  %577 = vmatpush1.bf16.msra.mxu0 %v428
  %578 = vmatprep.subr.bf16.mxu0 0
  %579 = vmatpush1.bf16.msra.mxu0 %v429
  %580 = vmatprep.subr.bf16.mxu0 0
  %581 = vmatpush1.bf16.msra.mxu0 %v430
  %582 = vmatprep.subr.bf16.mxu0 0
  %583 = vmatpush1.bf16.msra.mxu0 %v431
  %584 = vmatprep.subr.bf16.mxu0 0
  %585 = vmatpush1.bf16.msra.mxu0 %v432
  %586 = vmatprep.subr.bf16.mxu0 0
  %587 = vmatpush1.bf16.msra.mxu0 %v433
  %588 = vmatprep.subr.bf16.mxu0 0
  %589 = vmatpush1.bf16.msra.mxu0 %v434
  %590 = vmatprep.subr.bf16.mxu0 0
  %591 = vmatpush1.bf16.msra.mxu0 %v435
  %592 = vmatprep.subr.bf16.mxu0 0
  %593 = vmatpush1.bf16.msra.mxu0 %v436
  %594 = vmatprep.subr.bf16.mxu0 0
  %595 = vmatpush1.bf16.msra.mxu0 %v437
  %596 = vmatprep.subr.bf16.mxu0 0
  %597 = vmatpush1.bf16.msra.mxu0 %v438
  %598 = vmatprep.subr.bf16.mxu0 0
  %599 = vmatpush1.bf16.msra.mxu0 %v439
  %600 = vmatprep.subr.bf16.mxu0 0
  %601 = vmatpush1.bf16.msra.mxu0 %v440
  %602 = vmatprep.mubr.bf16.mxu0 %v220
  %603 = vmatmul.mubr.bf16.gmra.mrb[0].mxu0 %v219
  %v604 = vpop.f32.mrb[0].mxu0
  %v605 = vadd.f32 %v508, %v604
  %v606 = vpop.f32.mrb[0].mxu0
  %v607 = vpop.f32.mrb[0].mxu0
  %v608 = vadd.f32 %v511, %v607
  %v609 = vpop.f32.mrb[0].mxu0
  %610 = vmatprep.mubr.bf16.mxu0 %v224
  %611 = vmatmul.mubr.bf16.gmra.mrb[0].mxu0 %v223
  %v612 = vpop.f32.mrb[0].mxu0
  %v613 = vadd.f32 %v516, %v612
  %v614 = vpop.f32.mrb[0].mxu0
  %v615 = vpop.f32.mrb[0].mxu0
  %v616 = vadd.f32 %v519, %v615
  %v617 = vpop.f32.mrb[0].mxu0
  %618 = vmatprep.mubr.bf16.mxu0 %v228
  %619 = vmatmul.mubr.bf16.gmra.mrb[0].mxu0 %v227
  %v620 = vpop.f32.mrb[0].mxu0
  %v621 = vadd.f32 %v524, %v620
  %v622 = vpop.f32.mrb[0].mxu0
  %v623 = vpop.f32.mrb[0].mxu0
  %v624 = vadd.f32 %v527, %v623
  %v625 = vpop.f32.mrb[0].mxu0
  %626 = vmatprep.mubr.bf16.mxu0 %v232
  %627 = vmatmul.mubr.bf16.gmra.mrb[0].mxu0 %v231
  %v628 = vpop.f32.mrb[0].mxu0
  %v629 = vadd.f32 %v532, %v628
  %v630 = vpop.f32.mrb[0].mxu0
  %v631 = vpop.f32.mrb[0].mxu0
  %v632 = vadd.f32 %v535, %v631
  %v633 = vpop.f32.mrb[0].mxu0
  %634 = vmatprep.mubr.bf16.mxu0 %v236
  %635 = vmatmul.mubr.bf16.gmra.mrb[0].mxu0 %v235
  %v636 = vpop.f32.mrb[0].mxu0
  %v637 = vadd.f32 %v540, %v636
  %v638 = vpop.f32.mrb[0].mxu0
  %v639 = vpop.f32.mrb[0].mxu0
  %v640 = vadd.f32 %v543, %v639
  %v641 = vpop.f32.mrb[0].mxu0
  %642 = vmatprep.mubr.bf16.mxu0 %v240
  %643 = vmatmul.mubr.bf16.gmra.mrb[0].mxu0 %v239
  %v644 = vpop.f32.mrb[0].mxu0
  %v645 = vadd.f32 %v548, %v644
  %v646 = vpop.f32.mrb[0].mxu0
  %v647 = vpop.f32.mrb[0].mxu0
  %v648 = vadd.f32 %v551, %v647
  %v649 = vpop.f32.mrb[0].mxu0
  %650 = vmatprep.mubr.bf16.mxu0 %v244
  %651 = vmatmul.mubr.bf16.gmra.mrb[0].mxu0 %v243
  %v652 = vpop.f32.mrb[0].mxu0
  %v653 = vadd.f32 %v556, %v652
  %v654 = vpop.f32.mrb[0].mxu0
  %v655 = vpop.f32.mrb[0].mxu0
  %v656 = vadd.f32 %v559, %v655
  %v657 = vpop.f32.mrb[0].mxu0
  %658 = vmatprep.mubr.bf16.mxu0 %v248
  %659 = vmatmul.mubr.bf16.gmra.mrb[0].mxu0 %v247
  %v660 = vpop.f32.mrb[0].mxu0
  %v661 = vadd.f32 %v564, %v660
  %v662 = vpop.f32.mrb[0].mxu0
  %v663 = vpop.f32.mrb[0].mxu0
  %v664 = vadd.f32 %v567, %v663
  %v665 = vpop.f32.mrb[0].mxu0
  %666 = vdwg.mxu0
  %vm667 = vcmask 261120
  %668 = vst.msk [vmem:[%s3] sm:$0xff] %vm667, %v605
  %669 = vst.msk [vmem:[%s3 + $0x8] sm:$0xff] %vm667, %v608
  %670 = vst.msk [vmem:[%s3 + $0x10] sm:$0xff] %vm667, %v613
  %671 = vst.msk [vmem:[%s3 + $0x18] sm:$0xff] %vm667, %v616
  %672 = vst.msk [vmem:[%s3 + $0x20] sm:$0xff] %vm667, %v621
  %673 = vst.msk [vmem:[%s3 + $0x28] sm:$0xff] %vm667, %v624
  %674 = vst.msk [vmem:[%s3 + $0x30] sm:$0xff] %vm667, %v629
  %675 = vst.msk [vmem:[%s3 + $0x38] sm:$0xff] %vm667, %v632
  %676 = vst.msk [vmem:[%s3 + $0x40] sm:$0xff] %vm667, %v637
  %677 = vst.msk [vmem:[%s3 + $0x48] sm:$0xff] %vm667, %v640
  %678 = vst.msk [vmem:[%s3 + $0x50] sm:$0xff] %vm667, %v645
  %679 = vst.msk [vmem:[%s3 + $0x58] sm:$0xff] %vm667, %v648
  %680 = vst.msk [vmem:[%s3 + $0x60] sm:$0xff] %vm667, %v653
  %681 = vst.msk [vmem:[%s3 + $0x68] sm:$0xff] %vm667, %v656
  %682 = vst.msk [vmem:[%s3 + $0x70] sm:$0xff] %vm667, %v661
  %683 = vst.msk [vmem:[%s3 + $0x78] sm:$0xff] %vm667, %v664
  %v684 = vsel %vm667, %v605, 0.0
  %v685 = vsel %vm667, %v608, 0.0
  %v686 = vadd.f32 %v684, %v685
  %v687 = vsel %vm667, %v613, 0.0
  %v688 = vadd.f32 %v686, %v687
  %v689 = vsel %vm667, %v616, 0.0
  %v690 = vadd.f32 %v688, %v689
  %v691 = vsel %vm667, %v621, 0.0
  %v692 = vadd.f32 %v690, %v691
  %v693 = vsel %vm667, %v624, 0.0
  %v694 = vadd.f32 %v692, %v693
  %v695 = vsel %vm667, %v629, 0.0
  %v696 = vadd.f32 %v694, %v695
  %v697 = vsel %vm667, %v632, 0.0
  %v698 = vadd.f32 %v696, %v697
  %v699 = vsel %vm667, %v637, 0.0
  %v700 = vadd.f32 %v698, %v699
  %v701 = vsel %vm667, %v640, 0.0
  %v702 = vadd.f32 %v700, %v701
  %v703 = vsel %vm667, %v645, 0.0
  %v704 = vadd.f32 %v702, %v703
  %v705 = vsel %vm667, %v648, 0.0
  %v706 = vadd.f32 %v704, %v705
  %v707 = vsel %vm667, %v653, 0.0
  %v708 = vadd.f32 %v706, %v707
  %v709 = vsel %vm667, %v656, 0.0
  %v710 = vadd.f32 %v708, %v709
  %v711 = vsel %vm667, %v661, 0.0
  %v712 = vadd.f32 %v710, %v711
  %v713 = vsel %vm667, %v664, 0.0
  %v714 = vadd.f32 %v712, %v713
  %v715 = vrot.slane %v714, 4
  %v716 = vadd.f32 %v714, %v715
  %v717 = vrot.slane %v716, 2
  %v718 = vadd.f32 %v716, %v717
  %v719 = vrot.slane %v718, 1
  %v720 = vadd.f32 %v718, %v719
  %vm721 = vcmask 253952
  %722 = vst.msk [vmem:[%s4] sm:$0x1] %vm721, %v720
  %v723 = vmul.f32 %v605, %v605
  %v724 = vmul.f32 %v608, %v608
  %v725 = vmul.f32 %v613, %v613
  %v726 = vmul.f32 %v616, %v616
  %v727 = vmul.f32 %v621, %v621
  %v728 = vmul.f32 %v624, %v624
  %v729 = vmul.f32 %v629, %v629
  %v730 = vmul.f32 %v632, %v632
  %v731 = vmul.f32 %v637, %v637
  %v732 = vmul.f32 %v640, %v640
  %v733 = vmul.f32 %v645, %v645
  %v734 = vmul.f32 %v648, %v648
  %v735 = vmul.f32 %v653, %v653
  %v736 = vmul.f32 %v656, %v656
  %v737 = vmul.f32 %v661, %v661
  %v738 = vmul.f32 %v664, %v664
  %v739 = vsel %vm667, %v723, 0.0
  %v740 = vsel %vm667, %v724, 0.0
  %v741 = vadd.f32 %v739, %v740
  %v742 = vsel %vm667, %v725, 0.0
  %v743 = vadd.f32 %v741, %v742
  %v744 = vsel %vm667, %v726, 0.0
  %v745 = vadd.f32 %v743, %v744
  %v746 = vsel %vm667, %v727, 0.0
  %v747 = vadd.f32 %v745, %v746
  %v748 = vsel %vm667, %v728, 0.0
  %v749 = vadd.f32 %v747, %v748
  %v750 = vsel %vm667, %v729, 0.0
  %v751 = vadd.f32 %v749, %v750
  %v752 = vsel %vm667, %v730, 0.0
  %v753 = vadd.f32 %v751, %v752
  %v754 = vsel %vm667, %v731, 0.0
  %v755 = vadd.f32 %v753, %v754
  %v756 = vsel %vm667, %v732, 0.0
  %v757 = vadd.f32 %v755, %v756
  %v758 = vsel %vm667, %v733, 0.0
  %v759 = vadd.f32 %v757, %v758
  %v760 = vsel %vm667, %v734, 0.0
  %v761 = vadd.f32 %v759, %v760
  %v762 = vsel %vm667, %v735, 0.0
  %v763 = vadd.f32 %v761, %v762
  %v764 = vsel %vm667, %v736, 0.0
  %v765 = vadd.f32 %v763, %v764
  %v766 = vsel %vm667, %v737, 0.0
  %v767 = vadd.f32 %v765, %v766
  %v768 = vsel %vm667, %v738, 0.0
  %v769 = vadd.f32 %v767, %v768
  %v770 = vrot.slane %v769, 4
  %v771 = vadd.f32 %v769, %v770
  %v772 = vrot.slane %v771, 2
  %v773 = vadd.f32 %v771, %v772
  %v774 = vrot.slane %v773, 1
  %v775 = vadd.f32 %v773, %v774
  %776 = vst.msk [vmem:[%s5] sm:$0x1] %vm721, %v775
  // Predicated region
  $region14: #{_lambda_.26} parent=0 // pred_check
    _
  $region15: #{_lambda_.26} parent=0 // pred_check_branch
    %778 = sbr.rel (0) target = $region17
  $region16: #{_lambda_.26} parent=0 // pred_region
    _
  $region17: #{_lambda_.26} parent=0 // pred_fallthru
    _
  // Predicated region
  $region18: #{_lambda_.26} parent=0 // pred_check
    _
  $region19: #{_lambda_.26} parent=0 // pred_check_branch
    %780 = sbr.rel (0) target = $region21
  $region20: #{_lambda_.26} parent=0 // pred_region
    _
  $region21: #{_lambda_.26} parent=0 // pred_fallthru
    _
  // Predicated region
  $region22: #{_lambda_.26} parent=0 // pred_check
    _
  $region23: #{_lambda_.26} parent=0 // pred_check_branch
    %782 = sbr.rel (0) target = $region25
  $region24: #{_lambda_.26} parent=0 // pred_region
    _
  $region25: #{_lambda_.26} parent=0 // pred_fallthru
    _
  // Predicated region
  $region26: #{_lambda_.26} parent=0 // pred_check
    _
  $region27: #{_lambda_.26} parent=0 // pred_check_branch
    %784 = sbr.rel (0) target = $region29
  $region28: #{_lambda_.26} parent=0 // pred_region
    _
  $region29: #{_lambda_.26} parent=0 // pred_fallthru
    _
  // Predicated region
  $region30: #{_lambda_.26} parent=0 // pred_check
    _
  $region31: #{_lambda_.26} parent=0 // pred_check_branch
    %786 = sbr.rel (0) target = $region33
  $region32: #{_lambda_.26} parent=0 // pred_region
    _
  $region33: #{_lambda_.26} parent=0 // pred_fallthru
    _
  // Predicated region
  $region34: #{_lambda_.26} parent=0 // pred_check
    _
  $region35: #{_lambda_.26} parent=0 // pred_check_branch
    %788 = sbr.rel (0) target = $region37
  $region36: #{_lambda_.26} parent=0 // pred_region
    _
  $region37: #{_lambda_.26} parent=0 // pred_fallthru
    _

// kernel: _lambda_.27
$region0: #{_lambda_.27}
  #allocation0 [shape = 'u32[]', space=smem, size = 0x4, offset = 0x4, fixed_abs, tag = 'smem constant byte address 0x4 - core index']
  #allocation1 [shape = 'u32[144,128]{1,0:T(1,128)}', space=vmem, size = 0x12000, scoped, tag = 'internal scratch']
  %s0 = inlined_call_operand.vmem [shape: f32[32,128], index: 0, kind: input, shape index: {}]
  %s1 = inlined_call_operand.vmem [shape: f32[1,128], index: 1, kind: input, shape index: {}]
  %s2 = inlined_call_operand.vmem [shape: f32[1,128], index: 2, kind: input, shape index: {}]
  %s3 = inlined_call_operand.vmem [shape: f32[32,128], index: 3, kind: output, shape index: {}]
  %s4 = sld [smem:[#allocation0]]
  $region22: #{_lambda_.27} parent=0
    _
  %s6 = ssub.s32 1, %s4
  %s7 = scalar_select 0, %s6, %s4
  // Predicated region
  $region2: #{_lambda_.27} parent=0 // pred_check
    _
  $region3: #{_lambda_.27} parent=0 // pred_check_branch
    %9 = sbr.rel (0) target = $region5
  $region4: #{_lambda_.27} parent=0 // pred_region
    _
  $region5: #{_lambda_.27} parent=0 // pred_fallthru
    _
  // Predicated region
  $region6: #{_lambda_.27} parent=0 // pred_check
    _
  $region7: #{_lambda_.27} parent=0 // pred_check_branch
    %11 = sbr.rel (0) target = $region9
  $region8: #{_lambda_.27} parent=0 // pred_region
    _
  $region9: #{_lambda_.27} parent=0 // pred_fallthru
    _
  // Predicated region
  $region10: #{_lambda_.27} parent=0 // pred_check
    _
  $region11: #{_lambda_.27} parent=0 // pred_check_branch
    %13 = sbr.rel (0) target = $region13
  $region12: #{_lambda_.27} parent=0 // pred_region
    _
  $region13: #{_lambda_.27} parent=0 // pred_fallthru
    _
  %v14 = vld [vmem:[%s0] sm:$0xff]
  %v15 = vld [vmem:[%s0 + $0x8] sm:$0xff]
  %v16 = vld [vmem:[%s0 + $0x10] sm:$0xff]
  %v17 = vld [vmem:[%s0 + $0x18] sm:$0xff]
  %v18 = vld [vmem:[%s1] sm:$0x1]
  %v20 = vlaneseq
  %v21 = vshrl.u32 %v20, 7
  %v22 = vsub.s32 0, %v21
  %v23 = vrot.slane %v18, %v22
  %v25 = vmul.f32 %v14, %v23
  %v26 = vmul.f32 %v15, %v23
  %v27 = vmul.f32 %v16, %v23
  %v28 = vmul.f32 %v17, %v23
  %v29 = vld [vmem:[%s2] sm:$0x1]
  %v31 = vlaneseq
  %v32 = vshrl.u32 %v31, 7
  %v33 = vsub.s32 0, %v32
  %v34 = vrot.slane %v29, %v33
  %v36 = vadd.f32 %v25, %v34
  %v37 = vadd.f32 %v26, %v34
  %v38 = vadd.f32 %v27, %v34
  %v39 = vadd.f32 %v28, %v34
  %v40 = vmax.f32 %v36, 0.0
  %v41 = vmax.f32 %v37, 0.0
  %v42 = vmax.f32 %v38, 0.0
  %v43 = vmax.f32 %v39, 0.0
  %44 = vst [vmem:[%s3] sm:$0xff] %v40
  %45 = vst [vmem:[%s3 + $0x8] sm:$0xff] %v41
  %46 = vst [vmem:[%s3 + $0x10] sm:$0xff] %v42
  %47 = vst [vmem:[%s3 + $0x18] sm:$0xff] %v43
  // Predicated region
  $region14: #{_lambda_.27} parent=0 // pred_check
    _
  $region15: #{_lambda_.27} parent=0 // pred_check_branch
    %49 = sbr.rel (0) target = $region17
  $region16: #{_lambda_.27} parent=0 // pred_region
    _
  $region17: #{_lambda_.27} parent=0 // pred_fallthru
    _
  // Predicated region
  $region18: #{_lambda_.27} parent=0 // pred_check
    _
  $region19: #{_lambda_.27} parent=0 // pred_check_branch
    %51 = sbr.rel (0) target = $region21
  $region20: #{_lambda_.27} parent=0 // pred_region
    _
  $region21: #{_lambda_.27} parent=0 // pred_fallthru
    _

// kernel: _lambda_.29
$region0: #{_lambda_.29}
  #allocation0 [shape = 'u32[]', space=smem, size = 0x4, offset = 0x4, fixed_abs, tag = 'smem constant byte address 0x4 - core index']
  #allocation1 [shape = 'u32[144,128]{1,0:T(1,128)}', space=vmem, size = 0x12000, scoped, tag = 'internal scratch']
  %s0 = inlined_call_operand.vmem [shape: f32[8,128], index: 0, kind: input, shape index: {}]
  %s1 = inlined_call_operand.vmem [shape: f32[1,128], index: 1, kind: input, shape index: {}]
  %s2 = inlined_call_operand.vmem [shape: f32[1,128], index: 2, kind: input, shape index: {}]
  %s3 = inlined_call_operand.vmem [shape: f32[8,128], index: 3, kind: input, shape index: {}]
  %s4 = inlined_call_operand.vmem [shape: f32[8,128], index: 4, kind: output, shape index: {}]
  %s5 = sld [smem:[#allocation0]]
  $region26: #{_lambda_.29} parent=0
    _
  %s7 = ssub.s32 1, %s5
  %s8 = scalar_select 0, %s7, %s5
  // Predicated region
  $region2: #{_lambda_.29} parent=0 // pred_check
    _
  $region3: #{_lambda_.29} parent=0 // pred_check_branch
    %10 = sbr.rel (0) target = $region5
  $region4: #{_lambda_.29} parent=0 // pred_region
    _
  $region5: #{_lambda_.29} parent=0 // pred_fallthru
    _
  // Predicated region
  $region6: #{_lambda_.29} parent=0 // pred_check
    _
  $region7: #{_lambda_.29} parent=0 // pred_check_branch
    %12 = sbr.rel (0) target = $region9
  $region8: #{_lambda_.29} parent=0 // pred_region
    _
  $region9: #{_lambda_.29} parent=0 // pred_fallthru
    _
  // Predicated region
  $region10: #{_lambda_.29} parent=0 // pred_check
    _
  $region11: #{_lambda_.29} parent=0 // pred_check_branch
    %14 = sbr.rel (0) target = $region13
  $region12: #{_lambda_.29} parent=0 // pred_region
    _
  $region13: #{_lambda_.29} parent=0 // pred_fallthru
    _
  // Predicated region
  $region14: #{_lambda_.29} parent=0 // pred_check
    _
  $region15: #{_lambda_.29} parent=0 // pred_check_branch
    %16 = sbr.rel (0) target = $region17
  $region16: #{_lambda_.29} parent=0 // pred_region
    _
  $region17: #{_lambda_.29} parent=0 // pred_fallthru
    _
  %v17 = vld [vmem:[%s0] sm:$0xff]
  %v18 = vld [vmem:[%s1] sm:$0x1]
  %v20 = vlaneseq
  %v21 = vshrl.u32 %v20, 7
  %v22 = vsub.s32 0, %v21
  %v23 = vrot.slane %v18, %v22
  %v25 = vmul.f32 %v17, %v23
  %v26 = vld [vmem:[%s2] sm:$0x1]
  %v28 = vlaneseq
  %v29 = vshrl.u32 %v28, 7
  %v30 = vsub.s32 0, %v29
  %v31 = vrot.slane %v26, %v30
  %v33 = vadd.f32 %v25, %v31
  %v34 = vmax.f32 %v33, 0.0
  %v35 = vld [vmem:[%s3] sm:$0xff]
  %v36 = vadd.f32 %v34, %v35
  %37 = vst [vmem:[%s4] sm:$0xff] %v36
  // Predicated region
  $region18: #{_lambda_.29} parent=0 // pred_check
    _
  $region19: #{_lambda_.29} parent=0 // pred_check_branch
    %39 = sbr.rel (0) target = $region21
  $region20: #{_lambda_.29} parent=0 // pred_region
    _
  $region21: #{_lambda_.29} parent=0 // pred_fallthru
    _
  // Predicated region
  $region22: #{_lambda_.29} parent=0 // pred_check
    _
  $region23: #{_lambda_.29} parent=0 // pred_check_branch
    %41 = sbr.rel (0) target = $region25
  $region24: #{_lambda_.29} parent=0 // pred_region
    _
  $region25: #{_lambda_.29} parent=0 // pred_fallthru
    _

// kernel: _lambda_.28
$region0: #{_lambda_.28}
  #allocation0 [shape = 'u32[]', space=smem, size = 0x4, offset = 0x4, fixed_abs, tag = 'smem constant byte address 0x4 - core index']
  #allocation1 [shape = 'u32[144,128]{1,0:T(1,128)}', space=vmem, size = 0x12000, scoped, tag = 'internal scratch']
  %s0 = inlined_call_operand.vmem [shape: bf16[32,512], index: 0, kind: input, shape index: {}]
  %s1 = inlined_call_operand.vmem [shape: bf16[512,32], index: 1, kind: input, shape index: {}]
  %s2 = inlined_call_operand.vmem [shape: f32[1,32], index: 2, kind: input, shape index: {}]
  %s3 = inlined_call_operand.vmem [shape: f32[32,32], index: 3, kind: output, shape index: {0}]
  %s4 = inlined_call_operand.vmem [shape: f32[1,1,32], index: 4, kind: output, shape index: {1}]
  %s5 = inlined_call_operand.vmem [shape: f32[1,1,32], index: 5, kind: output, shape index: {2}]
  %6 = xla_tuple %s3, %s4, %s5
  %s7 = sld [smem:[#allocation0]]
  $region38: #{_lambda_.28} parent=0
    _
  %s9 = ssub.s32 1, %s7
  %s10 = scalar_select 0, %s9, %s7
  // Predicated region
  $region2: #{_lambda_.28} parent=0 // pred_check
    _
  $region3: #{_lambda_.28} parent=0 // pred_check_branch
    %12 = sbr.rel (0) target = $region5
  $region4: #{_lambda_.28} parent=0 // pred_region
    _
  $region5: #{_lambda_.28} parent=0 // pred_fallthru
    _
  // Predicated region
  $region6: #{_lambda_.28} parent=0 // pred_check
    _
  $region7: #{_lambda_.28} parent=0 // pred_check_branch
    %14 = sbr.rel (0) target = $region9
  $region8: #{_lambda_.28} parent=0 // pred_region
    _
  $region9: #{_lambda_.28} parent=0 // pred_fallthru
    _
  // Predicated region
  $region10: #{_lambda_.28} parent=0 // pred_check
    _
  $region11: #{_lambda_.28} parent=0 // pred_check_branch
    %16 = sbr.rel (0) target = $region13
  $region12: #{_lambda_.28} parent=0 // pred_region
    _
  $region13: #{_lambda_.28} parent=0 // pred_fallthru
    _
  %v18 = vld [vmem:[%s0] sm:$0xff]
  %v19 = vld [vmem:[%s0 + $0x8] sm:$0xff]
  %v20 = vld [vmem:[%s0 + $0x10] sm:$0xff]
  %v21 = vld [vmem:[%s0 + $0x18] sm:$0xff]
  %v22 = vld [vmem:[%s0 + $0x20] sm:$0xff]
  %v23 = vld [vmem:[%s0 + $0x28] sm:$0xff]
  %v24 = vld [vmem:[%s0 + $0x30] sm:$0xff]
  %v25 = vld [vmem:[%s0 + $0x38] sm:$0xff]
  %v26 = vld [vmem:[%s1] sm:$0xf]
  %v27 = vld [vmem:[%s1 + $0x4] sm:$0xf]
  %v28 = vld [vmem:[%s1 + $0x8] sm:$0xf]
  %v29 = vld [vmem:[%s1 + $0xc] sm:$0xf]
  %v30 = vld [vmem:[%s1 + $0x10] sm:$0xf]
  %v31 = vld [vmem:[%s1 + $0x14] sm:$0xf]
  %v32 = vld [vmem:[%s1 + $0x18] sm:$0xf]
  %v33 = vld [vmem:[%s1 + $0x1c] sm:$0xf]
  %v34 = vld [vmem:[%s1 + $0x20] sm:$0xf]
  %v35 = vld [vmem:[%s1 + $0x24] sm:$0xf]
  %v36 = vld [vmem:[%s1 + $0x28] sm:$0xf]
  %v37 = vld [vmem:[%s1 + $0x2c] sm:$0xf]
  %v38 = vld [vmem:[%s1 + $0x30] sm:$0xf]
  %v39 = vld [vmem:[%s1 + $0x34] sm:$0xf]
  %v40 = vld [vmem:[%s1 + $0x38] sm:$0xf]
  %v41 = vld [vmem:[%s1 + $0x3c] sm:$0xf]
  %v42 = vld [vmem:[%s1 + $0x40] sm:$0xf]
  %v43 = vld [vmem:[%s1 + $0x44] sm:$0xf]
  %v44 = vld [vmem:[%s1 + $0x48] sm:$0xf]
  %v45 = vld [vmem:[%s1 + $0x4c] sm:$0xf]
  %v46 = vld [vmem:[%s1 + $0x50] sm:$0xf]
  %v47 = vld [vmem:[%s1 + $0x54] sm:$0xf]
  %v48 = vld [vmem:[%s1 + $0x58] sm:$0xf]
  %v49 = vld [vmem:[%s1 + $0x5c] sm:$0xf]
  %v50 = vld [vmem:[%s1 + $0x60] sm:$0xf]
  %v51 = vld [vmem:[%s1 + $0x64] sm:$0xf]
  %v52 = vld [vmem:[%s1 + $0x68] sm:$0xf]
  %v53 = vld [vmem:[%s1 + $0x6c] sm:$0xf]
  %v54 = vld [vmem:[%s1 + $0x70] sm:$0xf]
  %v55 = vld [vmem:[%s1 + $0x74] sm:$0xf]
  %v56 = vld [vmem:[%s1 + $0x78] sm:$0xf]
  %v57 = vld [vmem:[%s1 + $0x7c] sm:$0xf]
  %v58 = vld [vmem:[%s1 + $0x80] sm:$0xf]
  %v59 = vld [vmem:[%s1 + $0x84] sm:$0xf]
  %v60 = vld [vmem:[%s1 + $0x88] sm:$0xf]
  %v61 = vld [vmem:[%s1 + $0x8c] sm:$0xf]
  %v62 = vld [vmem:[%s1 + $0x90] sm:$0xf]
  %v63 = vld [vmem:[%s1 + $0x94] sm:$0xf]
  %v64 = vld [vmem:[%s1 + $0x98] sm:$0xf]
  %v65 = vld [vmem:[%s1 + $0x9c] sm:$0xf]
  %v66 = vld [vmem:[%s1 + $0xa0] sm:$0xf]
  %v67 = vld [vmem:[%s1 + $0xa4] sm:$0xf]
  %v68 = vld [vmem:[%s1 + $0xa8] sm:$0xf]
  %v69 = vld [vmem:[%s1 + $0xac] sm:$0xf]
  %v70 = vld [vmem:[%s1 + $0xb0] sm:$0xf]
  %v71 = vld [vmem:[%s1 + $0xb4] sm:$0xf]
  %v72 = vld [vmem:[%s1 + $0xb8] sm:$0xf]
  %v73 = vld [vmem:[%s1 + $0xbc] sm:$0xf]
  %v74 = vld [vmem:[%s1 + $0xc0] sm:$0xf]
  %v75 = vld [vmem:[%s1 + $0xc4] sm:$0xf]
  %v76 = vld [vmem:[%s1 + $0xc8] sm:$0xf]
  %v77 = vld [vmem:[%s1 + $0xcc] sm:$0xf]
  %v78 = vld [vmem:[%s1 + $0xd0] sm:$0xf]
  %v79 = vld [vmem:[%s1 + $0xd4] sm:$0xf]
  %v80 = vld [vmem:[%s1 + $0xd8] sm:$0xf]
  %v81 = vld [vmem:[%s1 + $0xdc] sm:$0xf]
  %v82 = vld [vmem:[%s1 + $0xe0] sm:$0xf]
  %v83 = vld [vmem:[%s1 + $0xe4] sm:$0xf]
  %v84 = vld [vmem:[%s1 + $0xe8] sm:$0xf]
  %v85 = vld [vmem:[%s1 + $0xec] sm:$0xf]
  %v86 = vld [vmem:[%s1 + $0xf0] sm:$0xf]
  %v87 = vld [vmem:[%s1 + $0xf4] sm:$0xf]
  %v88 = vld [vmem:[%s1 + $0xf8] sm:$0xf]
  %v89 = vld [vmem:[%s1 + $0xfc] sm:$0xf]
  %v90 = vld [vmem:[%s2] sm:$0x1]
  %v92 = vlaneseq
  %v93 = vshrl.u32 %v92, 7
  %v94 = vsub.s32 0, %v93
  %v95 = vrot.slane %v90, %v94
  %v105 = vunpack.c.l.b16 %v18
  %v106 = vunpack.c.h.b16 %v18
  %v107 = vunpack.c.l.b16 %v19
  %v108 = vunpack.c.h.b16 %v19
  %v109 = vunpack.c.l.b16 %v20
  %v110 = vunpack.c.h.b16 %v20
  %v111 = vunpack.c.l.b16 %v21
  %v112 = vunpack.c.h.b16 %v21
  %v113 = vunpack.c.l.b16 %v22
  %v114 = vunpack.c.h.b16 %v22
  %v115 = vunpack.c.l.b16 %v23
  %v116 = vunpack.c.h.b16 %v23
  %v117 = vunpack.c.l.b16 %v24
  %v118 = vunpack.c.h.b16 %v24
  %v119 = vunpack.c.l.b16 %v25
  %v120 = vunpack.c.h.b16 %v25
  %v121 = vpack.c.b16 %v109, %v105
  %v122 = vpack.c.b16 %v110, %v106
  %v123 = vpack.c.b16 %v111, %v107
  %v124 = vpack.c.b16 %v112, %v108
  %v125 = vpack.c.b16 %v117, %v113
  %v126 = vpack.c.b16 %v118, %v114
  %v127 = vpack.c.b16 %v119, %v115
  %v128 = vpack.c.b16 %v120, %v116
  %v201 = vunpack.c.l.b16 %v26
  %v202 = vunpack.c.l.b16 %v27
  %v203 = vunpack.c.l.b16 %v28
  %v204 = vunpack.c.l.b16 %v29
  %v205 = vunpack.c.l.b16 %v30
  %v206 = vunpack.c.l.b16 %v31
  %v207 = vunpack.c.l.b16 %v32
  %v208 = vunpack.c.l.b16 %v33
  %v209 = vunpack.c.l.b16 %v34
  %v210 = vunpack.c.l.b16 %v35
  %v211 = vunpack.c.l.b16 %v36
  %v212 = vunpack.c.l.b16 %v37
  %v213 = vunpack.c.l.b16 %v38
  %v214 = vunpack.c.l.b16 %v39
  %v215 = vunpack.c.l.b16 %v40
  %v216 = vunpack.c.l.b16 %v41
  %v217 = vunpack.c.l.b16 %v42
  %v218 = vunpack.c.l.b16 %v43
  %v219 = vunpack.c.l.b16 %v44
  %v220 = vunpack.c.l.b16 %v45
  %v221 = vunpack.c.l.b16 %v46
  %v222 = vunpack.c.l.b16 %v47
  %v223 = vunpack.c.l.b16 %v48
  %v224 = vunpack.c.l.b16 %v49
  %v225 = vunpack.c.l.b16 %v50
  %v226 = vunpack.c.l.b16 %v51
  %v227 = vunpack.c.l.b16 %v52
  %v228 = vunpack.c.l.b16 %v53
  %v229 = vunpack.c.l.b16 %v54
  %v230 = vunpack.c.l.b16 %v55
  %v231 = vunpack.c.l.b16 %v56
  %v232 = vunpack.c.l.b16 %v57
  %v233 = vunpack.c.l.b16 %v58
  %v234 = vunpack.c.l.b16 %v59
  %v235 = vunpack.c.l.b16 %v60
  %v236 = vunpack.c.l.b16 %v61
  %v237 = vunpack.c.l.b16 %v62
  %v238 = vunpack.c.l.b16 %v63
  %v239 = vunpack.c.l.b16 %v64
  %v240 = vunpack.c.l.b16 %v65
  %v241 = vunpack.c.l.b16 %v66
  %v242 = vunpack.c.l.b16 %v67
  %v243 = vunpack.c.l.b16 %v68
  %v244 = vunpack.c.l.b16 %v69
  %v245 = vunpack.c.l.b16 %v70
  %v246 = vunpack.c.l.b16 %v71
  %v247 = vunpack.c.l.b16 %v72
  %v248 = vunpack.c.l.b16 %v73
  %v249 = vunpack.c.l.b16 %v74
  %v250 = vunpack.c.l.b16 %v75
  %v251 = vunpack.c.l.b16 %v76
  %v252 = vunpack.c.l.b16 %v77
  %v253 = vunpack.c.l.b16 %v78
  %v254 = vunpack.c.l.b16 %v79
  %v255 = vunpack.c.l.b16 %v80
  %v256 = vunpack.c.l.b16 %v81
  %v257 = vunpack.c.l.b16 %v82
  %v258 = vunpack.c.l.b16 %v83
  %v259 = vunpack.c.l.b16 %v84
  %v260 = vunpack.c.l.b16 %v85
  %v261 = vunpack.c.l.b16 %v86
  %v262 = vunpack.c.l.b16 %v87
  %v263 = vunpack.c.l.b16 %v88
  %v264 = vunpack.c.l.b16 %v89
  %v265 = vpack.c.b16 %v202, %v201
  %v266 = vpack.c.b16 %v204, %v203
  %v267 = vpack.c.b16 %v206, %v205
  %v268 = vpack.c.b16 %v208, %v207
  %v269 = vpack.c.b16 %v210, %v209
  %v270 = vpack.c.b16 %v212, %v211
  %v271 = vpack.c.b16 %v214, %v213
  %v272 = vpack.c.b16 %v216, %v215
  %v273 = vpack.c.b16 %v218, %v217
  %v274 = vpack.c.b16 %v220, %v219
  %v275 = vpack.c.b16 %v222, %v221
  %v276 = vpack.c.b16 %v224, %v223
  %v277 = vpack.c.b16 %v226, %v225
  %v278 = vpack.c.b16 %v228, %v227
  %v279 = vpack.c.b16 %v230, %v229
  %v280 = vpack.c.b16 %v232, %v231
  %v281 = vpack.c.b16 %v234, %v233
  %v282 = vpack.c.b16 %v236, %v235
  %v283 = vpack.c.b16 %v238, %v237
  %v284 = vpack.c.b16 %v240, %v239
  %v285 = vpack.c.b16 %v242, %v241
  %v286 = vpack.c.b16 %v244, %v243
  %v287 = vpack.c.b16 %v246, %v245
  %v288 = vpack.c.b16 %v248, %v247
  %v289 = vpack.c.b16 %v250, %v249
  %v290 = vpack.c.b16 %v252, %v251
  %v291 = vpack.c.b16 %v254, %v253
  %v292 = vpack.c.b16 %v256, %v255
  %v293 = vpack.c.b16 %v258, %v257
  %v294 = vpack.c.b16 %v260, %v259
  %v295 = vpack.c.b16 %v262, %v261
  %v296 = vpack.c.b16 %v264, %v263
  %329 = vmatprep.subr.bf16.mxu0 0
  %330 = vmatpush1.bf16.msra.mxu0 %v265
  %331 = vmatprep.subr.bf16.mxu0 0
  %332 = vmatpush1.bf16.msra.mxu0 %v266
  %333 = vmatprep.subr.bf16.mxu0 0
  %334 = vmatpush1.bf16.msra.mxu0 %v267
  %335 = vmatprep.subr.bf16.mxu0 0
  %336 = vmatpush1.bf16.msra.mxu0 %v268
  %337 = vmatprep.subr.bf16.mxu0 0
  %338 = vmatpush1.bf16.msra.mxu0 %v269
  %339 = vmatprep.subr.bf16.mxu0 0
  %340 = vmatpush1.bf16.msra.mxu0 %v270
  %341 = vmatprep.subr.bf16.mxu0 0
  %342 = vmatpush1.bf16.msra.mxu0 %v271
  %343 = vmatprep.subr.bf16.mxu0 0
  %344 = vmatpush1.bf16.msra.mxu0 %v272
  %345 = vmatprep.subr.bf16.mxu0 0
  %346 = vmatpush1.bf16.msra.mxu0 %v273
  %347 = vmatprep.subr.bf16.mxu0 0
  %348 = vmatpush1.bf16.msra.mxu0 %v274
  %349 = vmatprep.subr.bf16.mxu0 0
  %350 = vmatpush1.bf16.msra.mxu0 %v275
  %351 = vmatprep.subr.bf16.mxu0 0
  %352 = vmatpush1.bf16.msra.mxu0 %v276
  %353 = vmatprep.subr.bf16.mxu0 0
  %354 = vmatpush1.bf16.msra.mxu0 %v277
  %355 = vmatprep.subr.bf16.mxu0 0
  %356 = vmatpush1.bf16.msra.mxu0 %v278
  %357 = vmatprep.subr.bf16.mxu0 0
  %358 = vmatpush1.bf16.msra.mxu0 %v279
  %359 = vmatprep.subr.bf16.mxu0 0
  %360 = vmatpush1.bf16.msra.mxu0 %v280
  %361 = vmatprep.mubr.bf16.mxu0 %v122
  %362 = vmatmul.mubr.bf16.gmra.mrb[0].mxu0 %v121
  %v363 = vpop.f32.mrb[0].mxu0
  %v364 = vadd.f32 %v95, %v363
  %v365 = vpop.f32.mrb[0].mxu0
  %v366 = vpop.f32.mrb[0].mxu0
  %v367 = vadd.f32 %v95, %v366
  %v368 = vpop.f32.mrb[0].mxu0
  %369 = vmatprep.mubr.bf16.mxu0 %v126
  %370 = vmatmul.mubr.bf16.gmra.mrb[0].mxu0 %v125
  %v371 = vpop.f32.mrb[0].mxu0
  %v372 = vadd.f32 %v95, %v371
  %v373 = vpop.f32.mrb[0].mxu0
  %v374 = vpop.f32.mrb[0].mxu0
  %v375 = vadd.f32 %v95, %v374
  %v376 = vpop.f32.mrb[0].mxu0
  %377 = vdwg.mxu0
  %378 = vmatprep.subr.bf16.mxu0 0
  %379 = vmatpush1.bf16.msra.mxu0 %v281
  %380 = vmatprep.subr.bf16.mxu0 0
  %381 = vmatpush1.bf16.msra.mxu0 %v282
  %382 = vmatprep.subr.bf16.mxu0 0
  %383 = vmatpush1.bf16.msra.mxu0 %v283
  %384 = vmatprep.subr.bf16.mxu0 0
  %385 = vmatpush1.bf16.msra.mxu0 %v284
  %386 = vmatprep.subr.bf16.mxu0 0
  %387 = vmatpush1.bf16.msra.mxu0 %v285
  %388 = vmatprep.subr.bf16.mxu0 0
  %389 = vmatpush1.bf16.msra.mxu0 %v286
  %390 = vmatprep.subr.bf16.mxu0 0
  %391 = vmatpush1.bf16.msra.mxu0 %v287
  %392 = vmatprep.subr.bf16.mxu0 0
  %393 = vmatpush1.bf16.msra.mxu0 %v288
  %394 = vmatprep.subr.bf16.mxu0 0
  %395 = vmatpush1.bf16.msra.mxu0 %v289
  %396 = vmatprep.subr.bf16.mxu0 0
  %397 = vmatpush1.bf16.msra.mxu0 %v290
  %398 = vmatprep.subr.bf16.mxu0 0
  %399 = vmatpush1.bf16.msra.mxu0 %v291
  %400 = vmatprep.subr.bf16.mxu0 0
  %401 = vmatpush1.bf16.msra.mxu0 %v292
  %402 = vmatprep.subr.bf16.mxu0 0
  %403 = vmatpush1.bf16.msra.mxu0 %v293
  %404 = vmatprep.subr.bf16.mxu0 0
  %405 = vmatpush1.bf16.msra.mxu0 %v294
  %406 = vmatprep.subr.bf16.mxu0 0
  %407 = vmatpush1.bf16.msra.mxu0 %v295
  %408 = vmatprep.subr.bf16.mxu0 0
  %409 = vmatpush1.bf16.msra.mxu0 %v296
  %410 = vmatprep.mubr.bf16.mxu0 %v124
  %411 = vmatmul.mubr.bf16.gmra.mrb[0].mxu0 %v123
  %v412 = vpop.f32.mrb[0].mxu0
  %v413 = vadd.f32 %v364, %v412
  %v414 = vpop.f32.mrb[0].mxu0
  %v415 = vpop.f32.mrb[0].mxu0
  %v416 = vadd.f32 %v367, %v415
  %v417 = vpop.f32.mrb[0].mxu0
  %418 = vmatprep.mubr.bf16.mxu0 %v128
  %419 = vmatmul.mubr.bf16.gmra.mrb[0].mxu0 %v127
  %v420 = vpop.f32.mrb[0].mxu0
  %v421 = vadd.f32 %v372, %v420
  %v422 = vpop.f32.mrb[0].mxu0
  %v423 = vpop.f32.mrb[0].mxu0
  %v424 = vadd.f32 %v375, %v423
  %v425 = vpop.f32.mrb[0].mxu0
  %426 = vdwg.mxu0
  %vm427 = vcmask 261120
  %428 = vst.msk [vmem:[%s3] sm:$0xff] %vm427, %v413
  %429 = vst.msk [vmem:[%s3 + $0x8] sm:$0xff] %vm427, %v416
  %430 = vst.msk [vmem:[%s3 + $0x10] sm:$0xff] %vm427, %v421
  %431 = vst.msk [vmem:[%s3 + $0x18] sm:$0xff] %vm427, %v424
  %v432 = vsel %vm427, %v413, 0.0
  %v433 = vsel %vm427, %v416, 0.0
  %v434 = vadd.f32 %v432, %v433
  %v435 = vsel %vm427, %v421, 0.0
  %v436 = vadd.f32 %v434, %v435
  %v437 = vsel %vm427, %v424, 0.0
  %v438 = vadd.f32 %v436, %v437
  %v439 = vrot.slane %v438, 4
  %v440 = vadd.f32 %v438, %v439
  %v441 = vrot.slane %v440, 2
  %v442 = vadd.f32 %v440, %v441
  %v443 = vrot.slane %v442, 1
  %v444 = vadd.f32 %v442, %v443
  %vm445 = vcmask 253952
  %446 = vst.msk [vmem:[%s4] sm:$0x1] %vm445, %v444
  %v447 = vmul.f32 %v413, %v413
  %v448 = vmul.f32 %v416, %v416
  %v449 = vmul.f32 %v421, %v421
  %v450 = vmul.f32 %v424, %v424
  %v451 = vsel %vm427, %v447, 0.0
  %v452 = vsel %vm427, %v448, 0.0
  %v453 = vadd.f32 %v451, %v452
  %v454 = vsel %vm427, %v449, 0.0
  %v455 = vadd.f32 %v453, %v454
  %v456 = vsel %vm427, %v450, 0.0
  %v457 = vadd.f32 %v455, %v456
  %v458 = vrot.slane %v457, 4
  %v459 = vadd.f32 %v457, %v458
  %v460 = vrot.slane %v459, 2
  %v461 = vadd.f32 %v459, %v460
  %v462 = vrot.slane %v461, 1
  %v463 = vadd.f32 %v461, %v462
  %464 = vst.msk [vmem:[%s5] sm:$0x1] %vm445, %v463
  // Predicated region
  $region14: #{_lambda_.28} parent=0 // pred_check
    _
  $region15: #{_lambda_.28} parent=0 // pred_check_branch
    %466 = sbr.rel (0) target = $region17
  $region16: #{_lambda_.28} parent=0 // pred_region
    _
  $region17: #{_lambda_.28} parent=0 // pred_fallthru
    _
  // Predicated region
  $region18: #{_lambda_.28} parent=0 // pred_check
    _
  $region19: #{_lambda_.28} parent=0 // pred_check_branch
    %468 = sbr.rel (0) target = $region21
  $region20: #{_lambda_.28} parent=0 // pred_region
    _
  $region21: #{_lambda_.28} parent=0 // pred_fallthru
    _
  // Predicated region
  $region22: #{_lambda_.28} parent=0 // pred_check
    _
  $region23: #{_lambda_.28} parent=0 // pred_check_branch
    %470 = sbr.rel (0) target = $region25
  $region24: #{_lambda_.28} parent=0 // pred_region
    _
  $region25: #{_lambda_.28} parent=0 // pred_fallthru
    _
  // Predicated region
  $region26: #{_lambda_.28} parent=0 // pred_check
    _
  $region27: #{_lambda_.28} parent=0 // pred_check_branch
    %472 = sbr.rel (0) target = $region29
  $region28: #{_lambda_.28} parent=0 // pred_region
    _
  $region29: #{_lambda_.28} parent=0 // pred_fallthru
    _
  // Predicated region
  $region30: #{_lambda_.28} parent=0 // pred_check
    _
  $region31: #{_lambda_.28} parent=0 // pred_check_branch
    %474 = sbr.rel (0) target = $region33
  $region32: #{_lambda_.28} parent=0 // pred_region
    _
  $region33: #{_lambda_.28} parent=0 // pred_fallthru
    _
  // Predicated region
  $region34: #{_lambda_.28} parent=0 // pred_check
    _
  $region35: #{_lambda_.28} parent=0 // pred_check_branch
    %476 = sbr.rel (0) target = $region37
  $region36: #{_lambda_.28} parent=0 // pred_region
    _
  $region37: #{_lambda_.28} parent=0 // pred_fallthru
    _

// kernel: _lambda_.30
$region0: #{_lambda_.30}
  #allocation0 [shape = 'u32[]', space=smem, size = 0x4, offset = 0x4, fixed_abs, tag = 'smem constant byte address 0x4 - core index']
  #allocation1 [shape = 'u32[144,128]{1,0:T(1,128)}', space=vmem, size = 0x12000, scoped, tag = 'internal scratch']
  %s0 = inlined_call_operand.vmem [shape: bf16[8,512], index: 0, kind: input, shape index: {}]
  %s1 = inlined_call_operand.vmem [shape: bf16[512,32], index: 1, kind: input, shape index: {}]
  %s2 = inlined_call_operand.vmem [shape: f32[1,32], index: 2, kind: input, shape index: {}]
  %s3 = inlined_call_operand.vmem [shape: f32[8,32], index: 3, kind: output, shape index: {0}]
  %s4 = inlined_call_operand.vmem [shape: f32[1,1,32], index: 4, kind: output, shape index: {1}]
  %s5 = inlined_call_operand.vmem [shape: f32[1,1,32], index: 5, kind: output, shape index: {2}]
  %6 = xla_tuple %s3, %s4, %s5
  %s7 = sld [smem:[#allocation0]]
  $region38: #{_lambda_.30} parent=0
    _
  %s9 = ssub.s32 1, %s7
  %s10 = scalar_select 0, %s9, %s7
  // Predicated region
  $region2: #{_lambda_.30} parent=0 // pred_check
    _
  $region3: #{_lambda_.30} parent=0 // pred_check_branch
    %12 = sbr.rel (0) target = $region5
  $region4: #{_lambda_.30} parent=0 // pred_region
    _
  $region5: #{_lambda_.30} parent=0 // pred_fallthru
    _
  // Predicated region
  $region6: #{_lambda_.30} parent=0 // pred_check
    _
  $region7: #{_lambda_.30} parent=0 // pred_check_branch
    %14 = sbr.rel (0) target = $region9
  $region8: #{_lambda_.30} parent=0 // pred_region
    _
  $region9: #{_lambda_.30} parent=0 // pred_fallthru
    _
  // Predicated region
  $region10: #{_lambda_.30} parent=0 // pred_check
    _
  $region11: #{_lambda_.30} parent=0 // pred_check_branch
    %16 = sbr.rel (0) target = $region13
  $region12: #{_lambda_.30} parent=0 // pred_region
    _
  $region13: #{_lambda_.30} parent=0 // pred_fallthru
    _
  %v18 = vld [vmem:[%s0] sm:$0xff]
  %v19 = vld [vmem:[%s0 + $0x8] sm:$0xff]
  %v20 = vld [vmem:[%s1] sm:$0xf]
  %v21 = vld [vmem:[%s1 + $0x4] sm:$0xf]
  %v22 = vld [vmem:[%s1 + $0x8] sm:$0xf]
  %v23 = vld [vmem:[%s1 + $0xc] sm:$0xf]
  %v24 = vld [vmem:[%s1 + $0x10] sm:$0xf]
  %v25 = vld [vmem:[%s1 + $0x14] sm:$0xf]
  %v26 = vld [vmem:[%s1 + $0x18] sm:$0xf]
  %v27 = vld [vmem:[%s1 + $0x1c] sm:$0xf]
  %v28 = vld [vmem:[%s1 + $0x20] sm:$0xf]
  %v29 = vld [vmem:[%s1 + $0x24] sm:$0xf]
  %v30 = vld [vmem:[%s1 + $0x28] sm:$0xf]
  %v31 = vld [vmem:[%s1 + $0x2c] sm:$0xf]
  %v32 = vld [vmem:[%s1 + $0x30] sm:$0xf]
  %v33 = vld [vmem:[%s1 + $0x34] sm:$0xf]
  %v34 = vld [vmem:[%s1 + $0x38] sm:$0xf]
  %v35 = vld [vmem:[%s1 + $0x3c] sm:$0xf]
  %v36 = vld [vmem:[%s1 + $0x40] sm:$0xf]
  %v37 = vld [vmem:[%s1 + $0x44] sm:$0xf]
  %v38 = vld [vmem:[%s1 + $0x48] sm:$0xf]
  %v39 = vld [vmem:[%s1 + $0x4c] sm:$0xf]
  %v40 = vld [vmem:[%s1 + $0x50] sm:$0xf]
  %v41 = vld [vmem:[%s1 + $0x54] sm:$0xf]
  %v42 = vld [vmem:[%s1 + $0x58] sm:$0xf]
  %v43 = vld [vmem:[%s1 + $0x5c] sm:$0xf]
  %v44 = vld [vmem:[%s1 + $0x60] sm:$0xf]
  %v45 = vld [vmem:[%s1 + $0x64] sm:$0xf]
  %v46 = vld [vmem:[%s1 + $0x68] sm:$0xf]
  %v47 = vld [vmem:[%s1 + $0x6c] sm:$0xf]
  %v48 = vld [vmem:[%s1 + $0x70] sm:$0xf]
  %v49 = vld [vmem:[%s1 + $0x74] sm:$0xf]
  %v50 = vld [vmem:[%s1 + $0x78] sm:$0xf]
  %v51 = vld [vmem:[%s1 + $0x7c] sm:$0xf]
  %v52 = vld [vmem:[%s1 + $0x80] sm:$0xf]
  %v53 = vld [vmem:[%s1 + $0x84] sm:$0xf]
  %v54 = vld [vmem:[%s1 + $0x88] sm:$0xf]
  %v55 = vld [vmem:[%s1 + $0x8c] sm:$0xf]
  %v56 = vld [vmem:[%s1 + $0x90] sm:$0xf]
  %v57 = vld [vmem:[%s1 + $0x94] sm:$0xf]
  %v58 = vld [vmem:[%s1 + $0x98] sm:$0xf]
  %v59 = vld [vmem:[%s1 + $0x9c] sm:$0xf]
  %v60 = vld [vmem:[%s1 + $0xa0] sm:$0xf]
  %v61 = vld [vmem:[%s1 + $0xa4] sm:$0xf]
  %v62 = vld [vmem:[%s1 + $0xa8] sm:$0xf]
  %v63 = vld [vmem:[%s1 + $0xac] sm:$0xf]
  %v64 = vld [vmem:[%s1 + $0xb0] sm:$0xf]
  %v65 = vld [vmem:[%s1 + $0xb4] sm:$0xf]
  %v66 = vld [vmem:[%s1 + $0xb8] sm:$0xf]
  %v67 = vld [vmem:[%s1 + $0xbc] sm:$0xf]
  %v68 = vld [vmem:[%s1 + $0xc0] sm:$0xf]
  %v69 = vld [vmem:[%s1 + $0xc4] sm:$0xf]
  %v70 = vld [vmem:[%s1 + $0xc8] sm:$0xf]
  %v71 = vld [vmem:[%s1 + $0xcc] sm:$0xf]
  %v72 = vld [vmem:[%s1 + $0xd0] sm:$0xf]
  %v73 = vld [vmem:[%s1 + $0xd4] sm:$0xf]
  %v74 = vld [vmem:[%s1 + $0xd8] sm:$0xf]
  %v75 = vld [vmem:[%s1 + $0xdc] sm:$0xf]
  %v76 = vld [vmem:[%s1 + $0xe0] sm:$0xf]
  %v77 = vld [vmem:[%s1 + $0xe4] sm:$0xf]
  %v78 = vld [vmem:[%s1 + $0xe8] sm:$0xf]
  %v79 = vld [vmem:[%s1 + $0xec] sm:$0xf]
  %v80 = vld [vmem:[%s1 + $0xf0] sm:$0xf]
  %v81 = vld [vmem:[%s1 + $0xf4] sm:$0xf]
  %v82 = vld [vmem:[%s1 + $0xf8] sm:$0xf]
  %v83 = vld [vmem:[%s1 + $0xfc] sm:$0xf]
  %v84 = vld [vmem:[%s2] sm:$0x1]
  %v86 = vlaneseq
  %v87 = vshrl.u32 %v86, 7
  %v88 = vsub.s32 0, %v87
  %v89 = vrot.slane %v84, %v88
  %v93 = vunpack.c.l.b16 %v18
  %v94 = vunpack.c.h.b16 %v18
  %v95 = vunpack.c.l.b16 %v19
  %v96 = vunpack.c.h.b16 %v19
  %v97 = vpack.c.b16 %v93, %v93
  %v98 = vpack.c.b16 %v94, %v94
  %v99 = vpack.c.b16 %v95, %v95
  %v100 = vpack.c.b16 %v96, %v96
  %v169 = vunpack.c.l.b16 %v20
  %v170 = vunpack.c.l.b16 %v21
  %v171 = vunpack.c.l.b16 %v22
  %v172 = vunpack.c.l.b16 %v23
  %v173 = vunpack.c.l.b16 %v24
  %v174 = vunpack.c.l.b16 %v25
  %v175 = vunpack.c.l.b16 %v26
  %v176 = vunpack.c.l.b16 %v27
  %v177 = vunpack.c.l.b16 %v28
  %v178 = vunpack.c.l.b16 %v29
  %v179 = vunpack.c.l.b16 %v30
  %v180 = vunpack.c.l.b16 %v31
  %v181 = vunpack.c.l.b16 %v32
  %v182 = vunpack.c.l.b16 %v33
  %v183 = vunpack.c.l.b16 %v34
  %v184 = vunpack.c.l.b16 %v35
  %v185 = vunpack.c.l.b16 %v36
  %v186 = vunpack.c.l.b16 %v37
  %v187 = vunpack.c.l.b16 %v38
  %v188 = vunpack.c.l.b16 %v39
  %v189 = vunpack.c.l.b16 %v40
  %v190 = vunpack.c.l.b16 %v41
  %v191 = vunpack.c.l.b16 %v42
  %v192 = vunpack.c.l.b16 %v43
  %v193 = vunpack.c.l.b16 %v44
  %v194 = vunpack.c.l.b16 %v45
  %v195 = vunpack.c.l.b16 %v46
  %v196 = vunpack.c.l.b16 %v47
  %v197 = vunpack.c.l.b16 %v48
  %v198 = vunpack.c.l.b16 %v49
  %v199 = vunpack.c.l.b16 %v50
  %v200 = vunpack.c.l.b16 %v51
  %v201 = vunpack.c.l.b16 %v52
  %v202 = vunpack.c.l.b16 %v53
  %v203 = vunpack.c.l.b16 %v54
  %v204 = vunpack.c.l.b16 %v55
  %v205 = vunpack.c.l.b16 %v56
  %v206 = vunpack.c.l.b16 %v57
  %v207 = vunpack.c.l.b16 %v58
  %v208 = vunpack.c.l.b16 %v59
  %v209 = vunpack.c.l.b16 %v60
  %v210 = vunpack.c.l.b16 %v61
  %v211 = vunpack.c.l.b16 %v62
  %v212 = vunpack.c.l.b16 %v63
  %v213 = vunpack.c.l.b16 %v64
  %v214 = vunpack.c.l.b16 %v65
  %v215 = vunpack.c.l.b16 %v66
  %v216 = vunpack.c.l.b16 %v67
  %v217 = vunpack.c.l.b16 %v68
  %v218 = vunpack.c.l.b16 %v69
  %v219 = vunpack.c.l.b16 %v70
  %v220 = vunpack.c.l.b16 %v71
  %v221 = vunpack.c.l.b16 %v72
  %v222 = vunpack.c.l.b16 %v73
  %v223 = vunpack.c.l.b16 %v74
  %v224 = vunpack.c.l.b16 %v75
  %v225 = vunpack.c.l.b16 %v76
  %v226 = vunpack.c.l.b16 %v77
  %v227 = vunpack.c.l.b16 %v78
  %v228 = vunpack.c.l.b16 %v79
  %v229 = vunpack.c.l.b16 %v80
  %v230 = vunpack.c.l.b16 %v81
  %v231 = vunpack.c.l.b16 %v82
  %v232 = vunpack.c.l.b16 %v83
  %v233 = vpack.c.b16 %v170, %v169
  %v234 = vpack.c.b16 %v172, %v171
  %v235 = vpack.c.b16 %v174, %v173
  %v236 = vpack.c.b16 %v176, %v175
  %v237 = vpack.c.b16 %v178, %v177
  %v238 = vpack.c.b16 %v180, %v179
  %v239 = vpack.c.b16 %v182, %v181
  %v240 = vpack.c.b16 %v184, %v183
  %v241 = vpack.c.b16 %v186, %v185
  %v242 = vpack.c.b16 %v188, %v187
  %v243 = vpack.c.b16 %v190, %v189
  %v244 = vpack.c.b16 %v192, %v191
  %v245 = vpack.c.b16 %v194, %v193
  %v246 = vpack.c.b16 %v196, %v195
  %v247 = vpack.c.b16 %v198, %v197
  %v248 = vpack.c.b16 %v200, %v199
  %v249 = vpack.c.b16 %v202, %v201
  %v250 = vpack.c.b16 %v204, %v203
  %v251 = vpack.c.b16 %v206, %v205
  %v252 = vpack.c.b16 %v208, %v207
  %v253 = vpack.c.b16 %v210, %v209
  %v254 = vpack.c.b16 %v212, %v211
  %v255 = vpack.c.b16 %v214, %v213
  %v256 = vpack.c.b16 %v216, %v215
  %v257 = vpack.c.b16 %v218, %v217
  %v258 = vpack.c.b16 %v220, %v219
  %v259 = vpack.c.b16 %v222, %v221
  %v260 = vpack.c.b16 %v224, %v223
  %v261 = vpack.c.b16 %v226, %v225
  %v262 = vpack.c.b16 %v228, %v227
  %v263 = vpack.c.b16 %v230, %v229
  %v264 = vpack.c.b16 %v232, %v231
  %297 = vmatprep.subr.bf16.mxu0 0
  %298 = vmatpush1.bf16.msra.mxu0 %v233
  %299 = vmatprep.subr.bf16.mxu0 0
  %300 = vmatpush1.bf16.msra.mxu0 %v234
  %301 = vmatprep.subr.bf16.mxu0 0
  %302 = vmatpush1.bf16.msra.mxu0 %v235
  %303 = vmatprep.subr.bf16.mxu0 0
  %304 = vmatpush1.bf16.msra.mxu0 %v236
  %305 = vmatprep.subr.bf16.mxu0 0
  %306 = vmatpush1.bf16.msra.mxu0 %v237
  %307 = vmatprep.subr.bf16.mxu0 0
  %308 = vmatpush1.bf16.msra.mxu0 %v238
  %309 = vmatprep.subr.bf16.mxu0 0
  %310 = vmatpush1.bf16.msra.mxu0 %v239
  %311 = vmatprep.subr.bf16.mxu0 0
  %312 = vmatpush1.bf16.msra.mxu0 %v240
  %313 = vmatprep.subr.bf16.mxu0 0
  %314 = vmatpush1.bf16.msra.mxu0 %v241
  %315 = vmatprep.subr.bf16.mxu0 0
  %316 = vmatpush1.bf16.msra.mxu0 %v242
  %317 = vmatprep.subr.bf16.mxu0 0
  %318 = vmatpush1.bf16.msra.mxu0 %v243
  %319 = vmatprep.subr.bf16.mxu0 0
  %320 = vmatpush1.bf16.msra.mxu0 %v244
  %321 = vmatprep.subr.bf16.mxu0 0
  %322 = vmatpush1.bf16.msra.mxu0 %v245
  %323 = vmatprep.subr.bf16.mxu0 0
  %324 = vmatpush1.bf16.msra.mxu0 %v246
  %325 = vmatprep.subr.bf16.mxu0 0
  %326 = vmatpush1.bf16.msra.mxu0 %v247
  %327 = vmatprep.subr.bf16.mxu0 0
  %328 = vmatpush1.bf16.msra.mxu0 %v248
  %329 = vmatprep.mubr.bf16.mxu0 %v98
  %330 = vmatmul.mubr.bf16.gmra.mrb[0].mxu0 %v97
  %v331 = vpop.f32.mrb[0].mxu0
  %v332 = vadd.f32 %v89, %v331
  %v333 = vpop.f32.mrb[0].mxu0
  %v334 = vpop.f32.mrb[0].mxu0
  %v335 = vpop.f32.mrb[0].mxu0
  %336 = vdwg.mxu0
  %337 = vmatprep.subr.bf16.mxu0 0
  %338 = vmatpush1.bf16.msra.mxu0 %v249
  %339 = vmatprep.subr.bf16.mxu0 0
  %340 = vmatpush1.bf16.msra.mxu0 %v250
  %341 = vmatprep.subr.bf16.mxu0 0
  %342 = vmatpush1.bf16.msra.mxu0 %v251
  %343 = vmatprep.subr.bf16.mxu0 0
  %344 = vmatpush1.bf16.msra.mxu0 %v252
  %345 = vmatprep.subr.bf16.mxu0 0
  %346 = vmatpush1.bf16.msra.mxu0 %v253
  %347 = vmatprep.subr.bf16.mxu0 0
  %348 = vmatpush1.bf16.msra.mxu0 %v254
  %349 = vmatprep.subr.bf16.mxu0 0
  %350 = vmatpush1.bf16.msra.mxu0 %v255
  %351 = vmatprep.subr.bf16.mxu0 0
  %352 = vmatpush1.bf16.msra.mxu0 %v256
  %353 = vmatprep.subr.bf16.mxu0 0
  %354 = vmatpush1.bf16.msra.mxu0 %v257
  %355 = vmatprep.subr.bf16.mxu0 0
  %356 = vmatpush1.bf16.msra.mxu0 %v258
  %357 = vmatprep.subr.bf16.mxu0 0
  %358 = vmatpush1.bf16.msra.mxu0 %v259
  %359 = vmatprep.subr.bf16.mxu0 0
  %360 = vmatpush1.bf16.msra.mxu0 %v260
  %361 = vmatprep.subr.bf16.mxu0 0
  %362 = vmatpush1.bf16.msra.mxu0 %v261
  %363 = vmatprep.subr.bf16.mxu0 0
  %364 = vmatpush1.bf16.msra.mxu0 %v262
  %365 = vmatprep.subr.bf16.mxu0 0
  %366 = vmatpush1.bf16.msra.mxu0 %v263
  %367 = vmatprep.subr.bf16.mxu0 0
  %368 = vmatpush1.bf16.msra.mxu0 %v264
  %369 = vmatprep.mubr.bf16.mxu0 %v100
  %370 = vmatmul.mubr.bf16.gmra.mrb[0].mxu0 %v99
  %v371 = vpop.f32.mrb[0].mxu0
  %v372 = vadd.f32 %v332, %v371
  %v373 = vpop.f32.mrb[0].mxu0
  %v374 = vpop.f32.mrb[0].mxu0
  %v375 = vpop.f32.mrb[0].mxu0
  %376 = vdwg.mxu0
  %vm377 = vcmask 261120
  %378 = vst.msk [vmem:[%s3] sm:$0xff] %vm377, %v372
  %v379 = vsel %vm377, %v372, 0.0
  %v380 = vrot.slane %v379, 4
  %v381 = vadd.f32 %v379, %v380
  %v382 = vrot.slane %v381, 2
  %v383 = vadd.f32 %v381, %v382
  %v384 = vrot.slane %v383, 1
  %v385 = vadd.f32 %v383, %v384
  %vm386 = vcmask 253952
  %387 = vst.msk [vmem:[%s4] sm:$0x1] %vm386, %v385
  %v388 = vmul.f32 %v372, %v372
  %v389 = vsel %vm377, %v388, 0.0
  %v390 = vrot.slane %v389, 4
  %v391 = vadd.f32 %v389, %v390
  %v392 = vrot.slane %v391, 2
  %v393 = vadd.f32 %v391, %v392
  %v394 = vrot.slane %v393, 1
  %v395 = vadd.f32 %v393, %v394
  %396 = vst.msk [vmem:[%s5] sm:$0x1] %vm386, %v395
  // Predicated region
  $region14: #{_lambda_.30} parent=0 // pred_check
    _
  $region15: #{_lambda_.30} parent=0 // pred_check_branch
    %398 = sbr.rel (0) target = $region17
  $region16: #{_lambda_.30} parent=0 // pred_region
    _
  $region17: #{_lambda_.30} parent=0 // pred_fallthru
    _
  // Predicated region
  $region18: #{_lambda_.30} parent=0 // pred_check
    _
  $region19: #{_lambda_.30} parent=0 // pred_check_branch
    %400 = sbr.rel (0) target = $region21
  $region20: #{_lambda_.30} parent=0 // pred_region
    _
  $region21: #{_lambda_.30} parent=0 // pred_fallthru
    _
  // Predicated region
  $region22: #{_lambda_.30} parent=0 // pred_check
    _
  $region23: #{_lambda_.30} parent=0 // pred_check_branch
    %402 = sbr.rel (0) target = $region25
  $region24: #{_lambda_.30} parent=0 // pred_region
    _
  $region25: #{_lambda_.30} parent=0 // pred_fallthru
    _
  // Predicated region
  $region26: #{_lambda_.30} parent=0 // pred_check
    _
  $region27: #{_lambda_.30} parent=0 // pred_check_branch
    %404 = sbr.rel (0) target = $region29
  $region28: #{_lambda_.30} parent=0 // pred_region
    _
  $region29: #{_lambda_.30} parent=0 // pred_fallthru
    _
  // Predicated region
  $region30: #{_lambda_.30} parent=0 // pred_check
    _
  $region31: #{_lambda_.30} parent=0 // pred_check_branch
    %406 = sbr.rel (0) target = $region33
  $region32: #{_lambda_.30} parent=0 // pred_region
    _
  $region33: #{_lambda_.30} parent=0 // pred_fallthru
    _
  // Predicated region
  $region34: #{_lambda_.30} parent=0 // pred_check
    _
  $region35: #{_lambda_.30} parent=0 // pred_check_branch
    %408 = sbr.rel (0) target = $region37
  $region36: #{_lambda_.30} parent=0 // pred_region
    _
  $region37: #{_lambda_.30} parent=0 // pred_fallthru
    _

// kernel: _lambda_.31
$region0: #{_lambda_.31}
  #allocation0 [shape = 'u32[]', space=smem, size = 0x4, offset = 0x4, fixed_abs, tag = 'smem constant byte address 0x4 - core index']
  #allocation1 [shape = 'u32[144,128]{1,0:T(1,128)}', space=vmem, size = 0x12000, scoped, tag = 'internal scratch']
  %s0 = inlined_call_operand.vmem [shape: f32[2,128], index: 0, kind: input, shape index: {}]
  %s1 = inlined_call_operand.vmem [shape: f32[1,128], index: 1, kind: input, shape index: {}]
  %s2 = inlined_call_operand.vmem [shape: f32[1,128], index: 2, kind: input, shape index: {}]
  %s3 = inlined_call_operand.vmem [shape: f32[2,128], index: 3, kind: input, shape index: {}]
  %s4 = inlined_call_operand.vmem [shape: f32[2,128], index: 4, kind: output, shape index: {}]
  %s5 = sld [smem:[#allocation0]]
  $region26: #{_lambda_.31} parent=0
    _
  %s7 = ssub.s32 1, %s5
  %s8 = scalar_select 0, %s7, %s5
  // Predicated region
  $region2: #{_lambda_.31} parent=0 // pred_check
    _
  $region3: #{_lambda_.31} parent=0 // pred_check_branch
    %10 = sbr.rel (0) target = $region5
  $region4: #{_lambda_.31} parent=0 // pred_region
    _
  $region5: #{_lambda_.31} parent=0 // pred_fallthru
    _
  // Predicated region
  $region6: #{_lambda_.31} parent=0 // pred_check
    _
  $region7: #{_lambda_.31} parent=0 // pred_check_branch
    %12 = sbr.rel (0) target = $region9
  $region8: #{_lambda_.31} parent=0 // pred_region
    _
  $region9: #{_lambda_.31} parent=0 // pred_fallthru
    _
  // Predicated region
  $region10: #{_lambda_.31} parent=0 // pred_check
    _
  $region11: #{_lambda_.31} parent=0 // pred_check_branch
    %14 = sbr.rel (0) target = $region13
  $region12: #{_lambda_.31} parent=0 // pred_region
    _
  $region13: #{_lambda_.31} parent=0 // pred_fallthru
    _
  // Predicated region
  $region14: #{_lambda_.31} parent=0 // pred_check
    _
  $region15: #{_lambda_.31} parent=0 // pred_check_branch
    %16 = sbr.rel (0) target = $region17
  $region16: #{_lambda_.31} parent=0 // pred_region
    _
  $region17: #{_lambda_.31} parent=0 // pred_fallthru
    _
  %v17 = vld [vmem:[%s0] sm:$0x3]
  %v18 = vld [vmem:[%s1] sm:$0x1]
  %v20 = vlaneseq
  %v21 = vshrl.u32 %v20, 7
  %v22 = vsub.s32 0, %v21
  %v23 = vrot.slane %v18, %v22
  %v25 = vmul.f32 %v17, %v23
  %v26 = vld [vmem:[%s2] sm:$0x1]
  %v28 = vlaneseq
  %v29 = vshrl.u32 %v28, 7
  %v30 = vsub.s32 0, %v29
  %v31 = vrot.slane %v26, %v30
  %v33 = vadd.f32 %v25, %v31
  %v34 = vld [vmem:[%s3] sm:$0x3]
  %v35 = vadd.f32 %v33, %v34
  %36 = vst [vmem:[%s4] sm:$0x3] %v35
  // Predicated region
  $region18: #{_lambda_.31} parent=0 // pred_check
    _
  $region19: #{_lambda_.31} parent=0 // pred_check_branch
    %38 = sbr.rel (0) target = $region21
  $region20: #{_lambda_.31} parent=0 // pred_region
    _
  $region21: #{_lambda_.31} parent=0 // pred_fallthru
    _
  // Predicated region
  $region22: #{_lambda_.31} parent=0 // pred_check
    _
  $region23: #{_lambda_.31} parent=0 // pred_check_branch
    %40 = sbr.rel (0) target = $region25
  $region24: #{_lambda_.31} parent=0 // pred_region
    _
  $region25: #{_lambda_.31} parent=0 // pred_fallthru
    _

// kernel: _lambda_.34
$region0: #{_lambda_.34}
  #allocation0 [shape = 'u32[]', space=smem, size = 0x4, offset = 0x4, fixed_abs, tag = 'smem constant byte address 0x4 - core index']
  #allocation1 [shape = 'u32[144,128]{1,0:T(1,128)}', space=vmem, size = 0x12000, scoped, tag = 'internal scratch']
  %s0 = inlined_call_operand.vmem [shape: bf16[8,32], index: 0, kind: input, shape index: {}]
  %s1 = inlined_call_operand.vmem [shape: bf16[32,32], index: 1, kind: input, shape index: {}]
  %s2 = inlined_call_operand.vmem [shape: f32[1,32], index: 2, kind: input, shape index: {}]
  %s3 = inlined_call_operand.vmem [shape: f32[8,32], index: 3, kind: output, shape index: {0}]
  %s4 = inlined_call_operand.vmem [shape: f32[1,1,32], index: 4, kind: output, shape index: {1}]
  %s5 = inlined_call_operand.vmem [shape: f32[1,1,32], index: 5, kind: output, shape index: {2}]
  %6 = xla_tuple %s3, %s4, %s5
  %s7 = sld [smem:[#allocation0]]
  $region38: #{_lambda_.34} parent=0
    _
  %s9 = ssub.s32 1, %s7
  %s10 = scalar_select 0, %s9, %s7
  // Predicated region
  $region2: #{_lambda_.34} parent=0 // pred_check
    _
  $region3: #{_lambda_.34} parent=0 // pred_check_branch
    %12 = sbr.rel (0) target = $region5
  $region4: #{_lambda_.34} parent=0 // pred_region
    _
  $region5: #{_lambda_.34} parent=0 // pred_fallthru
    _
  // Predicated region
  $region6: #{_lambda_.34} parent=0 // pred_check
    _
  $region7: #{_lambda_.34} parent=0 // pred_check_branch
    %14 = sbr.rel (0) target = $region9
  $region8: #{_lambda_.34} parent=0 // pred_region
    _
  $region9: #{_lambda_.34} parent=0 // pred_fallthru
    _
  // Predicated region
  $region10: #{_lambda_.34} parent=0 // pred_check
    _
  $region11: #{_lambda_.34} parent=0 // pred_check_branch
    %16 = sbr.rel (0) target = $region13
  $region12: #{_lambda_.34} parent=0 // pred_region
    _
  $region13: #{_lambda_.34} parent=0 // pred_fallthru
    _
  %v18 = vld [vmem:[%s0] sm:$0xf]
  %v19 = vld [vmem:[%s1] sm:$0xf]
  %v20 = vld [vmem:[%s1 + $0x4] sm:$0xf]
  %v21 = vld [vmem:[%s1 + $0x8] sm:$0xf]
  %v22 = vld [vmem:[%s1 + $0xc] sm:$0xf]
  %v23 = vld [vmem:[%s2] sm:$0x1]
  %v25 = vlaneseq
  %v26 = vshrl.u32 %v25, 7
  %v27 = vsub.s32 0, %v26
  %v28 = vrot.slane %v23, %v27
  %v34 = vunpack.c.l.b16 %v19
  %v35 = vunpack.c.l.b16 %v20
  %v36 = vunpack.c.l.b16 %v21
  %v37 = vunpack.c.l.b16 %v22
  %v38 = vpack.c.b16 %v35, %v34
  %v39 = vpack.c.b16 %v37, %v36
  %vm42 = vcmask 261120
  %v44 = vsel %vm42, %v18, 0
  %46 = vmatprep.subr.bf16.mxu0 0
  %47 = vmatpush1.bf16.msra.mxu0 %v38
  %48 = vmatprep.subr.bf16.mxu0 0
  %49 = vmatpush1.bf16.msra.mxu0 %v39
  %50 = vmatprep.subr.bf16.mxu0 0
  %51 = vmatpush1.bf16.msra.mxu0 0
  %52 = vmatprep.subr.bf16.mxu0 0
  %53 = vmatpush1.bf16.msra.mxu0 0
  %54 = vmatprep.subr.bf16.mxu0 0
  %55 = vmatpush1.bf16.msra.mxu0 0
  %56 = vmatprep.subr.bf16.mxu0 0
  %57 = vmatpush1.bf16.msra.mxu0 0
  %58 = vmatprep.subr.bf16.mxu0 0
  %59 = vmatpush1.bf16.msra.mxu0 0
  %60 = vmatprep.subr.bf16.mxu0 0
  %61 = vmatpush1.bf16.msra.mxu0 0
  %62 = vmatprep.subr.bf16.mxu0 0
  %63 = vmatpush1.bf16.msra.mxu0 0
  %64 = vmatprep.subr.bf16.mxu0 0
  %65 = vmatpush1.bf16.msra.mxu0 0
  %66 = vmatprep.subr.bf16.mxu0 0
  %67 = vmatpush1.bf16.msra.mxu0 0
  %68 = vmatprep.subr.bf16.mxu0 0
  %69 = vmatpush1.bf16.msra.mxu0 0
  %70 = vmatprep.subr.bf16.mxu0 0
  %71 = vmatpush1.bf16.msra.mxu0 0
  %72 = vmatprep.subr.bf16.mxu0 0
  %73 = vmatpush1.bf16.msra.mxu0 0
  %74 = vmatprep.subr.bf16.mxu0 0
  %75 = vmatpush1.bf16.msra.mxu0 0
  %76 = vmatprep.subr.bf16.mxu0 0
  %77 = vmatpush1.bf16.msra.mxu0 0
  %78 = vmatprep.mubr.bf16.mxu0 0
  %79 = vmatmul.mubr.bf16.gmra.mrb[0].mxu0 %v44
  %v80 = vpop.f32.mrb[0].mxu0
  %v81 = vadd.f32 %v28, %v80
  %v82 = vpop.f32.mrb[0].mxu0
  %v83 = vpop.f32.mrb[0].mxu0
  %v84 = vpop.f32.mrb[0].mxu0
  %85 = vdwg.mxu0
  %86 = vst.msk [vmem:[%s3] sm:$0xff] %vm42, %v81
  %v87 = vsel %vm42, %v81, 0.0
  %v88 = vrot.slane %v87, 4
  %v89 = vadd.f32 %v87, %v88
  %v90 = vrot.slane %v89, 2
  %v91 = vadd.f32 %v89, %v90
  %v92 = vrot.slane %v91, 1
  %v93 = vadd.f32 %v91, %v92
  %vm94 = vcmask 253952
  %95 = vst.msk [vmem:[%s4] sm:$0x1] %vm94, %v93
  %v96 = vmul.f32 %v81, %v81
  %v97 = vsel %vm42, %v96, 0.0
  %v98 = vrot.slane %v97, 4
  %v99 = vadd.f32 %v97, %v98
  %v100 = vrot.slane %v99, 2
  %v101 = vadd.f32 %v99, %v100
  %v102 = vrot.slane %v101, 1
  %v103 = vadd.f32 %v101, %v102
  %104 = vst.msk [vmem:[%s5] sm:$0x1] %vm94, %v103
  // Predicated region
  $region14: #{_lambda_.34} parent=0 // pred_check
    _
  $region15: #{_lambda_.34} parent=0 // pred_check_branch
    %106 = sbr.rel (0) target = $region17
  $region16: #{_lambda_.34} parent=0 // pred_region
    _
  $region17: #{_lambda_.34} parent=0 // pred_fallthru
    _
  // Predicated region
  $region18: #{_lambda_.34} parent=0 // pred_check
    _
  $region19: #{_lambda_.34} parent=0 // pred_check_branch
    %108 = sbr.rel (0) target = $region21
  $region20: #{_lambda_.34} parent=0 // pred_region
    _
  $region21: #{_lambda_.34} parent=0 // pred_fallthru
    _
  // Predicated region
  $region22: #{_lambda_.34} parent=0 // pred_check
    _
  $region23: #{_lambda_.34} parent=0 // pred_check_branch
    %110 = sbr.rel (0) target = $region25
  $region24: #{_lambda_.34} parent=0 // pred_region
    _
  $region25: #{_lambda_.34} parent=0 // pred_fallthru
    _
  // Predicated region
  $region26: #{_lambda_.34} parent=0 // pred_check
    _
  $region27: #{_lambda_.34} parent=0 // pred_check_branch
    %112 = sbr.rel (0) target = $region29
  $region28: #{_lambda_.34} parent=0 // pred_region
    _
  $region29: #{_lambda_.34} parent=0 // pred_fallthru
    _
  // Predicated region
  $region30: #{_lambda_.34} parent=0 // pred_check
    _
  $region31: #{_lambda_.34} parent=0 // pred_check_branch
    %114 = sbr.rel (0) target = $region33
  $region32: #{_lambda_.34} parent=0 // pred_region
    _
  $region33: #{_lambda_.34} parent=0 // pred_fallthru
    _
  // Predicated region
  $region34: #{_lambda_.34} parent=0 // pred_check
    _
  $region35: #{_lambda_.34} parent=0 // pred_check_branch
    %116 = sbr.rel (0) target = $region37
  $region36: #{_lambda_.34} parent=0 // pred_region
    _
  $region37: #{_lambda_.34} parent=0 // pred_fallthru
    _

// kernel: _lambda_.33
$region0: #{_lambda_.33}
  #allocation0 [shape = 'u32[]', space=smem, size = 0x4, offset = 0x4, fixed_abs, tag = 'smem constant byte address 0x4 - core index']
  #allocation1 [shape = 'u32[144,128]{1,0:T(1,128)}', space=vmem, size = 0x12000, scoped, tag = 'internal scratch']
  %s0 = inlined_call_operand.vmem [shape: f32[2,128], index: 0, kind: input, shape index: {}]
  %s1 = inlined_call_operand.vmem [shape: f32[1,128], index: 1, kind: input, shape index: {}]
  %s2 = inlined_call_operand.vmem [shape: f32[1,128], index: 2, kind: input, shape index: {}]
  %s3 = inlined_call_operand.vmem [shape: f32[2,128], index: 3, kind: output, shape index: {}]
  %s4 = sld [smem:[#allocation0]]
  $region22: #{_lambda_.33} parent=0
    _
  %s6 = ssub.s32 1, %s4
  %s7 = scalar_select 0, %s6, %s4
  // Predicated region
  $region2: #{_lambda_.33} parent=0 // pred_check
    _
  $region3: #{_lambda_.33} parent=0 // pred_check_branch
    %9 = sbr.rel (0) target = $region5
  $region4: #{_lambda_.33} parent=0 // pred_region
    _
  $region5: #{_lambda_.33} parent=0 // pred_fallthru
    _
  // Predicated region
  $region6: #{_lambda_.33} parent=0 // pred_check
    _
  $region7: #{_lambda_.33} parent=0 // pred_check_branch
    %11 = sbr.rel (0) target = $region9
  $region8: #{_lambda_.33} parent=0 // pred_region
    _
  $region9: #{_lambda_.33} parent=0 // pred_fallthru
    _
  // Predicated region
  $region10: #{_lambda_.33} parent=0 // pred_check
    _
  $region11: #{_lambda_.33} parent=0 // pred_check_branch
    %13 = sbr.rel (0) target = $region13
  $region12: #{_lambda_.33} parent=0 // pred_region
    _
  $region13: #{_lambda_.33} parent=0 // pred_fallthru
    _
  %v14 = vld [vmem:[%s0] sm:$0x3]
  %v15 = vld [vmem:[%s1] sm:$0x1]
  %v17 = vlaneseq
  %v18 = vshrl.u32 %v17, 7
  %v19 = vsub.s32 0, %v18
  %v20 = vrot.slane %v15, %v19
  %v22 = vmul.f32 %v14, %v20
  %v23 = vld [vmem:[%s2] sm:$0x1]
  %v25 = vlaneseq
  %v26 = vshrl.u32 %v25, 7
  %v27 = vsub.s32 0, %v26
  %v28 = vrot.slane %v23, %v27
  %v30 = vadd.f32 %v22, %v28
  %v31 = vmax.f32 %v30, 0.0
  %32 = vst [vmem:[%s3] sm:$0x3] %v31
  // Predicated region
  $region14: #{_lambda_.33} parent=0 // pred_check
    _
  $region15: #{_lambda_.33} parent=0 // pred_check_branch
    %34 = sbr.rel (0) target = $region17
  $region16: #{_lambda_.33} parent=0 // pred_region
    _
  $region17: #{_lambda_.33} parent=0 // pred_fallthru
    _
  // Predicated region
  $region18: #{_lambda_.33} parent=0 // pred_check
    _
  $region19: #{_lambda_.33} parent=0 // pred_check_branch
    %36 = sbr.rel (0) target = $region21
  $region20: #{_lambda_.33} parent=0 // pred_region
    _
  $region21: #{_lambda_.33} parent=0 // pred_fallthru
    _

// kernel: _lambda_.32
$region0: #{_lambda_.32}
  #allocation0 [shape = 'u32[]', space=smem, size = 0x4, offset = 0x4, fixed_abs, tag = 'smem constant byte address 0x4 - core index']
  #allocation1 [shape = 'u32[144,128]{1,0:T(1,128)}', space=vmem, size = 0x12000, scoped, tag = 'internal scratch']
  %s0 = inlined_call_operand.vmem [shape: bf16[8,288], index: 0, kind: input, shape index: {}]
  %s1 = inlined_call_operand.vmem [shape: bf16[288,32], index: 1, kind: input, shape index: {}]
  %s2 = inlined_call_operand.vmem [shape: f32[1,32], index: 2, kind: input, shape index: {}]
  %s3 = inlined_call_operand.vmem [shape: f32[8,32], index: 3, kind: output, shape index: {0}]
  %s4 = inlined_call_operand.vmem [shape: f32[1,1,32], index: 4, kind: output, shape index: {1}]
  %s5 = inlined_call_operand.vmem [shape: f32[1,1,32], index: 5, kind: output, shape index: {2}]
  %6 = xla_tuple %s3, %s4, %s5
  %s7 = sld [smem:[#allocation0]]
  $region38: #{_lambda_.32} parent=0
    _
  %s9 = ssub.s32 1, %s7
  %s10 = scalar_select 0, %s9, %s7
  // Predicated region
  $region2: #{_lambda_.32} parent=0 // pred_check
    _
  $region3: #{_lambda_.32} parent=0 // pred_check_branch
    %12 = sbr.rel (0) target = $region5
  $region4: #{_lambda_.32} parent=0 // pred_region
    _
  $region5: #{_lambda_.32} parent=0 // pred_fallthru
    _
  // Predicated region
  $region6: #{_lambda_.32} parent=0 // pred_check
    _
  $region7: #{_lambda_.32} parent=0 // pred_check_branch
    %14 = sbr.rel (0) target = $region9
  $region8: #{_lambda_.32} parent=0 // pred_region
    _
  $region9: #{_lambda_.32} parent=0 // pred_fallthru
    _
  // Predicated region
  $region10: #{_lambda_.32} parent=0 // pred_check
    _
  $region11: #{_lambda_.32} parent=0 // pred_check_branch
    %16 = sbr.rel (0) target = $region13
  $region12: #{_lambda_.32} parent=0 // pred_region
    _
  $region13: #{_lambda_.32} parent=0 // pred_fallthru
    _
  %v18 = vld [vmem:[%s0] sm:$0xff]
  %v19 = vld [vmem:[%s0 + $0x8] sm:$0xf]
  %v20 = vld [vmem:[%s1] sm:$0xf]
  %v21 = vld [vmem:[%s1 + $0x4] sm:$0xf]
  %v22 = vld [vmem:[%s1 + $0x8] sm:$0xf]
  %v23 = vld [vmem:[%s1 + $0xc] sm:$0xf]
  %v24 = vld [vmem:[%s1 + $0x10] sm:$0xf]
  %v25 = vld [vmem:[%s1 + $0x14] sm:$0xf]
  %v26 = vld [vmem:[%s1 + $0x18] sm:$0xf]
  %v27 = vld [vmem:[%s1 + $0x1c] sm:$0xf]
  %v28 = vld [vmem:[%s1 + $0x20] sm:$0xf]
  %v29 = vld [vmem:[%s1 + $0x24] sm:$0xf]
  %v30 = vld [vmem:[%s1 + $0x28] sm:$0xf]
  %v31 = vld [vmem:[%s1 + $0x2c] sm:$0xf]
  %v32 = vld [vmem:[%s1 + $0x30] sm:$0xf]
  %v33 = vld [vmem:[%s1 + $0x34] sm:$0xf]
  %v34 = vld [vmem:[%s1 + $0x38] sm:$0xf]
  %v35 = vld [vmem:[%s1 + $0x3c] sm:$0xf]
  %v36 = vld [vmem:[%s1 + $0x40] sm:$0xf]
  %v37 = vld [vmem:[%s1 + $0x44] sm:$0xf]
  %v38 = vld [vmem:[%s1 + $0x48] sm:$0xf]
  %v39 = vld [vmem:[%s1 + $0x4c] sm:$0xf]
  %v40 = vld [vmem:[%s1 + $0x50] sm:$0xf]
  %v41 = vld [vmem:[%s1 + $0x54] sm:$0xf]
  %v42 = vld [vmem:[%s1 + $0x58] sm:$0xf]
  %v43 = vld [vmem:[%s1 + $0x5c] sm:$0xf]
  %v44 = vld [vmem:[%s1 + $0x60] sm:$0xf]
  %v45 = vld [vmem:[%s1 + $0x64] sm:$0xf]
  %v46 = vld [vmem:[%s1 + $0x68] sm:$0xf]
  %v47 = vld [vmem:[%s1 + $0x6c] sm:$0xf]
  %v48 = vld [vmem:[%s1 + $0x70] sm:$0xf]
  %v49 = vld [vmem:[%s1 + $0x74] sm:$0xf]
  %v50 = vld [vmem:[%s1 + $0x78] sm:$0xf]
  %v51 = vld [vmem:[%s1 + $0x7c] sm:$0xf]
  %v52 = vld [vmem:[%s1 + $0x80] sm:$0xf]
  %v53 = vld [vmem:[%s1 + $0x84] sm:$0xf]
  %v54 = vld [vmem:[%s1 + $0x88] sm:$0xf]
  %v55 = vld [vmem:[%s1 + $0x8c] sm:$0xf]
  %v56 = vld [vmem:[%s2] sm:$0x1]
  %v58 = vlaneseq
  %v59 = vshrl.u32 %v58, 7
  %v60 = vsub.s32 0, %v59
  %v61 = vrot.slane %v56, %v60
  %v65 = vunpack.c.l.b16 %v18
  %v66 = vunpack.c.h.b16 %v18
  %v67 = vunpack.c.l.b16 %v19
  %v68 = vpack.c.b16 %v65, %v65
  %v69 = vpack.c.b16 %v66, %v66
  %v70 = vpack.c.b16 %v67, %v67
  %v109 = vunpack.c.l.b16 %v20
  %v110 = vunpack.c.l.b16 %v21
  %v111 = vunpack.c.l.b16 %v22
  %v112 = vunpack.c.l.b16 %v23
  %v113 = vunpack.c.l.b16 %v24
  %v114 = vunpack.c.l.b16 %v25
  %v115 = vunpack.c.l.b16 %v26
  %v116 = vunpack.c.l.b16 %v27
  %v117 = vunpack.c.l.b16 %v28
  %v118 = vunpack.c.l.b16 %v29
  %v119 = vunpack.c.l.b16 %v30
  %v120 = vunpack.c.l.b16 %v31
  %v121 = vunpack.c.l.b16 %v32
  %v122 = vunpack.c.l.b16 %v33
  %v123 = vunpack.c.l.b16 %v34
  %v124 = vunpack.c.l.b16 %v35
  %v125 = vunpack.c.l.b16 %v36
  %v126 = vunpack.c.l.b16 %v37
  %v127 = vunpack.c.l.b16 %v38
  %v128 = vunpack.c.l.b16 %v39
  %v129 = vunpack.c.l.b16 %v40
  %v130 = vunpack.c.l.b16 %v41
  %v131 = vunpack.c.l.b16 %v42
  %v132 = vunpack.c.l.b16 %v43
  %v133 = vunpack.c.l.b16 %v44
  %v134 = vunpack.c.l.b16 %v45
  %v135 = vunpack.c.l.b16 %v46
  %v136 = vunpack.c.l.b16 %v47
  %v137 = vunpack.c.l.b16 %v48
  %v138 = vunpack.c.l.b16 %v49
  %v139 = vunpack.c.l.b16 %v50
  %v140 = vunpack.c.l.b16 %v51
  %v141 = vunpack.c.l.b16 %v52
  %v142 = vunpack.c.l.b16 %v53
  %v143 = vunpack.c.l.b16 %v54
  %v144 = vunpack.c.l.b16 %v55
  %v145 = vpack.c.b16 %v110, %v109
  %v146 = vpack.c.b16 %v112, %v111
  %v147 = vpack.c.b16 %v114, %v113
  %v148 = vpack.c.b16 %v116, %v115
  %v149 = vpack.c.b16 %v118, %v117
  %v150 = vpack.c.b16 %v120, %v119
  %v151 = vpack.c.b16 %v122, %v121
  %v152 = vpack.c.b16 %v124, %v123
  %v153 = vpack.c.b16 %v126, %v125
  %v154 = vpack.c.b16 %v128, %v127
  %v155 = vpack.c.b16 %v130, %v129
  %v156 = vpack.c.b16 %v132, %v131
  %v157 = vpack.c.b16 %v134, %v133
  %v158 = vpack.c.b16 %v136, %v135
  %v159 = vpack.c.b16 %v138, %v137
  %v160 = vpack.c.b16 %v140, %v139
  %v161 = vpack.c.b16 %v142, %v141
  %v162 = vpack.c.b16 %v144, %v143
  %vm181 = vcmask 261120
  %v183 = vsel %vm181, %v70, 0
  %185 = vmatprep.subr.bf16.mxu0 0
  %186 = vmatpush1.bf16.msra.mxu0 %v145
  %187 = vmatprep.subr.bf16.mxu0 0
  %188 = vmatpush1.bf16.msra.mxu0 %v146
  %189 = vmatprep.subr.bf16.mxu0 0
  %190 = vmatpush1.bf16.msra.mxu0 %v147
  %191 = vmatprep.subr.bf16.mxu0 0
  %192 = vmatpush1.bf16.msra.mxu0 %v148
  %193 = vmatprep.subr.bf16.mxu0 0
  %194 = vmatpush1.bf16.msra.mxu0 %v149
  %195 = vmatprep.subr.bf16.mxu0 0
  %196 = vmatpush1.bf16.msra.mxu0 %v150
  %197 = vmatprep.subr.bf16.mxu0 0
  %198 = vmatpush1.bf16.msra.mxu0 %v151
  %199 = vmatprep.subr.bf16.mxu0 0
  %200 = vmatpush1.bf16.msra.mxu0 %v152
  %201 = vmatprep.subr.bf16.mxu0 0
  %202 = vmatpush1.bf16.msra.mxu0 %v153
  %203 = vmatprep.subr.bf16.mxu0 0
  %204 = vmatpush1.bf16.msra.mxu0 %v154
  %205 = vmatprep.subr.bf16.mxu0 0
  %206 = vmatpush1.bf16.msra.mxu0 %v155
  %207 = vmatprep.subr.bf16.mxu0 0
  %208 = vmatpush1.bf16.msra.mxu0 %v156
  %209 = vmatprep.subr.bf16.mxu0 0
  %210 = vmatpush1.bf16.msra.mxu0 %v157
  %211 = vmatprep.subr.bf16.mxu0 0
  %212 = vmatpush1.bf16.msra.mxu0 %v158
  %213 = vmatprep.subr.bf16.mxu0 0
  %214 = vmatpush1.bf16.msra.mxu0 %v159
  %215 = vmatprep.subr.bf16.mxu0 0
  %216 = vmatpush1.bf16.msra.mxu0 %v160
  %217 = vmatprep.mubr.bf16.mxu0 %v69
  %218 = vmatmul.mubr.bf16.gmra.mrb[0].mxu0 %v68
  %v219 = vpop.f32.mrb[0].mxu0
  %v220 = vadd.f32 %v61, %v219
  %v221 = vpop.f32.mrb[0].mxu0
  %v222 = vpop.f32.mrb[0].mxu0
  %v223 = vpop.f32.mrb[0].mxu0
  %224 = vdwg.mxu0
  %225 = vmatprep.subr.bf16.mxu0 0
  %226 = vmatpush1.bf16.msra.mxu0 %v161
  %227 = vmatprep.subr.bf16.mxu0 0
  %228 = vmatpush1.bf16.msra.mxu0 %v162
  %229 = vmatprep.subr.bf16.mxu0 0
  %230 = vmatpush1.bf16.msra.mxu0 0
  %231 = vmatprep.subr.bf16.mxu0 0
  %232 = vmatpush1.bf16.msra.mxu0 0
  %233 = vmatprep.subr.bf16.mxu0 0
  %234 = vmatpush1.bf16.msra.mxu0 0
  %235 = vmatprep.subr.bf16.mxu0 0
  %236 = vmatpush1.bf16.msra.mxu0 0
  %237 = vmatprep.subr.bf16.mxu0 0
  %238 = vmatpush1.bf16.msra.mxu0 0
  %239 = vmatprep.subr.bf16.mxu0 0
  %240 = vmatpush1.bf16.msra.mxu0 0
  %241 = vmatprep.subr.bf16.mxu0 0
  %242 = vmatpush1.bf16.msra.mxu0 0
  %243 = vmatprep.subr.bf16.mxu0 0
  %244 = vmatpush1.bf16.msra.mxu0 0
  %245 = vmatprep.subr.bf16.mxu0 0
  %246 = vmatpush1.bf16.msra.mxu0 0
  %247 = vmatprep.subr.bf16.mxu0 0
  %248 = vmatpush1.bf16.msra.mxu0 0
  %249 = vmatprep.subr.bf16.mxu0 0
  %250 = vmatpush1.bf16.msra.mxu0 0
  %251 = vmatprep.subr.bf16.mxu0 0
  %252 = vmatpush1.bf16.msra.mxu0 0
  %253 = vmatprep.subr.bf16.mxu0 0
  %254 = vmatpush1.bf16.msra.mxu0 0
  %255 = vmatprep.subr.bf16.mxu0 0
  %256 = vmatpush1.bf16.msra.mxu0 0
  %257 = vmatprep.mubr.bf16.mxu0 0
  %258 = vmatmul.mubr.bf16.gmra.mrb[0].mxu0 %v183
  %v259 = vpop.f32.mrb[0].mxu0
  %v260 = vadd.f32 %v220, %v259
  %v261 = vpop.f32.mrb[0].mxu0
  %v262 = vpop.f32.mrb[0].mxu0
  %v263 = vpop.f32.mrb[0].mxu0
  %264 = vdwg.mxu0
  %265 = vst.msk [vmem:[%s3] sm:$0xff] %vm181, %v260
  %v266 = vsel %vm181, %v260, 0.0
  %v267 = vrot.slane %v266, 4
  %v268 = vadd.f32 %v266, %v267
  %v269 = vrot.slane %v268, 2
  %v270 = vadd.f32 %v268, %v269
  %v271 = vrot.slane %v270, 1
  %v272 = vadd.f32 %v270, %v271
  %vm273 = vcmask 253952
  %274 = vst.msk [vmem:[%s4] sm:$0x1] %vm273, %v272
  %v275 = vmul.f32 %v260, %v260
  %v276 = vsel %vm181, %v275, 0.0
  %v277 = vrot.slane %v276, 4
  %v278 = vadd.f32 %v276, %v277
  %v279 = vrot.slane %v278, 2
  %v280 = vadd.f32 %v278, %v279
  %v281 = vrot.slane %v280, 1
  %v282 = vadd.f32 %v280, %v281
  %283 = vst.msk [vmem:[%s5] sm:$0x1] %vm273, %v282
  // Predicated region
  $region14: #{_lambda_.32} parent=0 // pred_check
    _
  $region15: #{_lambda_.32} parent=0 // pred_check_branch
    %285 = sbr.rel (0) target = $region17
  $region16: #{_lambda_.32} parent=0 // pred_region
    _
  $region17: #{_lambda_.32} parent=0 // pred_fallthru
    _
  // Predicated region
  $region18: #{_lambda_.32} parent=0 // pred_check
    _
  $region19: #{_lambda_.32} parent=0 // pred_check_branch
    %287 = sbr.rel (0) target = $region21
  $region20: #{_lambda_.32} parent=0 // pred_region
    _
  $region21: #{_lambda_.32} parent=0 // pred_fallthru
    _
  // Predicated region
  $region22: #{_lambda_.32} parent=0 // pred_check
    _
  $region23: #{_lambda_.32} parent=0 // pred_check_branch
    %289 = sbr.rel (0) target = $region25
  $region24: #{_lambda_.32} parent=0 // pred_region
    _
  $region25: #{_lambda_.32} parent=0 // pred_fallthru
    _
  // Predicated region
  $region26: #{_lambda_.32} parent=0 // pred_check
    _
  $region27: #{_lambda_.32} parent=0 // pred_check_branch
    %291 = sbr.rel (0) target = $region29
  $region28: #{_lambda_.32} parent=0 // pred_region
    _
  $region29: #{_lambda_.32} parent=0 // pred_fallthru
    _
  // Predicated region
  $region30: #{_lambda_.32} parent=0 // pred_check
    _
  $region31: #{_lambda_.32} parent=0 // pred_check_branch
    %293 = sbr.rel (0) target = $region33
  $region32: #{_lambda_.32} parent=0 // pred_region
    _
  $region33: #{_lambda_.32} parent=0 // pred_fallthru
    _
  // Predicated region
  $region34: #{_lambda_.32} parent=0 // pred_check
    _
  $region35: #{_lambda_.32} parent=0 // pred_check_branch
    %295 = sbr.rel (0) target = $region37
  $region36: #{_lambda_.32} parent=0 // pred_region
    _
  $region37: #{_lambda_.32} parent=0 // pred_fallthru
    _

// kernel: _lambda_.36
$region0: #{_lambda_.36}
  #allocation0 [shape = 'u32[]', space=smem, size = 0x4, offset = 0x4, fixed_abs, tag = 'smem constant byte address 0x4 - core index']
  #allocation1 [shape = 'u32[144,128]{1,0:T(1,128)}', space=vmem, size = 0x12000, scoped, tag = 'internal scratch']
  %s0 = inlined_call_operand.vmem [shape: f32[8,32], index: 0, kind: input, shape index: {}]
  %s1 = inlined_call_operand.vmem [shape: f32[64,32], index: 1, kind: input, shape index: {}]
  %s2 = inlined_call_operand.vmem [shape: f32[1,64], index: 2, kind: input, shape index: {}]
  %s3 = inlined_call_operand.hbm [shape: s32[8,1], index: 3, kind: output, shape index: {0}]
  %s4 = inlined_call_operand.vmem [shape: f32[8,32], index: 4, kind: output, shape index: {1}]
  %5 = xla_tuple %s3, %s4
  %s6 = sld [smem:[#allocation0]]
  $region30: #{_lambda_.36} parent=0
    _
  %s8 = ssub.s32 1, %s6
  %s9 = scalar_select 0, %s8, %s6
  $region1: #{_lambda_.36} parent=0
    #allocation2 [shape = 'u8[4096]{0}', space=vmem, size = 0x1000, scoped, tag = 'output window, operand 0, single buffered']
    #allocation3 [shape = 's32[1]{0}', space=sflag, size = 0x4, scoped, tag = 'scoped memory for _lambda_.36']
    %10 = vsyncpa [#allocation3], 0
    // Predicated region
    $region2: #{_lambda_.36} parent=1 // pred_check
      _
    $region3: #{_lambda_.36} parent=1 // pred_check_branch
      %12 = sbr.rel (0) target = $region5
    $region4: #{_lambda_.36} parent=1 // pred_region
      _
    $region5: #{_lambda_.36} parent=1 // pred_fallthru
      _
    // Predicated region
    $region6: #{_lambda_.36} parent=1 // pred_check
      _
    $region7: #{_lambda_.36} parent=1 // pred_check_branch
      %14 = sbr.rel (0) target = $region9
    $region8: #{_lambda_.36} parent=1 // pred_region
      _
    $region9: #{_lambda_.36} parent=1 // pred_fallthru
      _
    // Predicated region
    $region10: #{_lambda_.36} parent=1 // pred_check
      _
    $region11: #{_lambda_.36} parent=1 // pred_check_branch
      %16 = sbr.rel (0) target = $region13
    $region12: #{_lambda_.36} parent=1 // pred_region
      _
    $region13: #{_lambda_.36} parent=1 // pred_fallthru
      _
    %v17 = vld [vmem:[%s0] sm:$0xff]
    %v18 = vld [vmem:[%s1] sm:$0xff]
    %v19 = vld [vmem:[%s1 + $0x8] sm:$0xff]
    %v20 = vld [vmem:[%s1 + $0x10] sm:$0xff]
    %v21 = vld [vmem:[%s1 + $0x18] sm:$0xff]
    %v22 = vld [vmem:[%s1 + $0x20] sm:$0xff]
    %v23 = vld [vmem:[%s1 + $0x28] sm:$0xff]
    %v24 = vld [vmem:[%s1 + $0x30] sm:$0xff]
    %v25 = vld [vmem:[%s1 + $0x38] sm:$0xff]
    %v26 = vmul.f32 %v17, %v17
    %vm27 = vcmask 261120
    %v28 = vsel %vm27, %v26, 0.0
    %29 = vadd.xlane.f32.xlu0 %v28
    %v30 = vpop.xlane.xlu0 %29
    %v32 = vsel %vm27, %v17, 0
    %v35 = vsel %vm27, %v18, 0
    %v38 = vsel %vm27, %v19, 0
    %v41 = vsel %vm27, %v20, 0
    %v44 = vsel %vm27, %v21, 0
    %v47 = vsel %vm27, %v22, 0
    %v50 = vsel %vm27, %v23, 0
    %v53 = vsel %vm27, %v24, 0
    %v56 = vsel %vm27, %v25, 0
    %58 = vmatprep.subr.mxu0 0.0
    %59 = vmatpush1.xpose.msra.mxu0 %v35
    %60 = vmatprep.subr.mxu0 0.0
    %61 = vmatpush1.xpose.msra.mxu0 %v38
    %62 = vmatprep.subr.mxu0 0.0
    %63 = vmatpush1.xpose.msra.mxu0 %v41
    %64 = vmatprep.subr.mxu0 0.0
    %65 = vmatpush1.xpose.msra.mxu0 %v44
    %66 = vmatprep.subr.mxu0 0.0
    %67 = vmatpush1.xpose.msra.mxu0 %v47
    %68 = vmatprep.subr.mxu0 0.0
    %69 = vmatpush1.xpose.msra.mxu0 %v50
    %70 = vmatprep.subr.mxu0 0.0
    %71 = vmatpush1.xpose.msra.mxu0 %v53
    %72 = vmatprep.subr.mxu0 0.0
    %73 = vmatpush1.xpose.msra.mxu0 %v56
    %74 = vmatprep.subr.mxu0 0.0
    %75 = vmatpush1.xpose.msra.mxu0 0.0
    %76 = vmatprep.subr.mxu0 0.0
    %77 = vmatpush1.xpose.msra.mxu0 0.0
    %78 = vmatprep.subr.mxu0 0.0
    %79 = vmatpush1.xpose.msra.mxu0 0.0
    %80 = vmatprep.subr.mxu0 0.0
    %81 = vmatpush1.xpose.msra.mxu0 0.0
    %82 = vmatprep.subr.mxu0 0.0
    %83 = vmatpush1.xpose.msra.mxu0 0.0
    %84 = vmatprep.subr.mxu0 0.0
    %85 = vmatpush1.xpose.msra.mxu0 0.0
    %86 = vmatprep.subr.mxu0 0.0
    %87 = vmatpush1.xpose.msra.mxu0 0.0
    %88 = vmatprep.subr.mxu0 0.0
    %89 = vmatpush1.xpose.msra.mxu0 0.0
    %90 = vmatprep.subr.mxu0 0.0
    %91 = vmatpush1.xpose.msra.mxu0 0.0
    %92 = vmatprep.subr.mxu0 0.0
    %93 = vmatpush1.xpose.msra.mxu0 0.0
    %94 = vmatprep.subr.mxu0 0.0
    %95 = vmatpush1.xpose.msra.mxu0 0.0
    %96 = vmatprep.subr.mxu0 0.0
    %97 = vmatpush1.xpose.msra.mxu0 0.0
    %98 = vmatprep.subr.mxu0 0.0
    %99 = vmatpush1.xpose.msra.mxu0 0.0
    %100 = vmatprep.subr.mxu0 0.0
    %101 = vmatpush1.xpose.msra.mxu0 0.0
    %102 = vmatprep.subr.mxu0 0.0
    %103 = vmatpush1.xpose.msra.mxu0 0.0
    %104 = vmatprep.subr.mxu0 0.0
    %105 = vmatpush1.xpose.msra.mxu0 0.0
    %106 = vmatprep.subr.mxu0 0.0
    %107 = vmatpush1.xpose.msra.mxu0 0.0
    %108 = vmatprep.subr.mxu0 0.0
    %109 = vmatpush1.xpose.msra.mxu0 0.0
    %110 = vmatprep.subr.mxu0 0.0
    %111 = vmatpush1.xpose.msra.mxu0 0.0
    %112 = vmatprep.subr.mxu0 0.0
    %113 = vmatpush1.xpose.msra.mxu0 0.0
    %114 = vmatprep.subr.mxu0 0.0
    %115 = vmatpush1.xpose.msra.mxu0 0.0
    %116 = vmatprep.subr.mxu0 0.0
    %117 = vmatpush1.xpose.msra.mxu0 0.0
    %118 = vmatprep.subr.mxu0 0.0
    %119 = vmatpush1.xpose.msra.mxu0 0.0
    %120 = vmatprep.subr.mxu0 0.0
    %121 = vmatpush1.xpose.msra.mxu0 0.0
    %122 = vmatprep.mubr.f32.mxu0 0.0
    %123 = vmatmul.mubr.f32.gmra.mrb[0].mxu0 %v32
    %v124 = vpop.f32.mrb[0].mxu0
    %v125 = vadd.f32 0.0, %v124
    %v126 = vpop.f32.mrb[0].mxu0
    %127 = vdwg.mxu0
    %v128 = vld [vmem:[%s2] sm:$0x1]
    %v130 = vlaneseq
    %v131 = vshrl.u32 %v130, 7
    %v132 = vsub.s32 0, %v131
    %v133 = vrot.slane %v128, %v132
    %v135 = vadd.f32 %v30, %v133
    %v136 = vmul.f32 %v125, 2.0
    %v137 = vsub.f32 %v135, %v136
    %vm138 = vcmask 523264
    %v139 = vsel %vm138, %v137, inf
    %140 = vmin.xlane.f32.xlu0 %v139
    %v141 = vpop.xlane.xlu0 %140
    %v142 = vlaneseq
    %v143 = vand.u32 %v142, 127
    %vm144 = vcmp.eq.f32.partialorder %v137, %v141
    %v145 = vsel %vm144, %v143, 64
    %v146 = vsel %vm138, %v145, 2147483647
    %v147 = vand.u32 %v146, 65535
    %v148 = vshra.s32 %v146, 16
    %v149 = vcvt.s32.f32 %v147
    %v150 = vcvt.s32.f32 %v148
    %151 = vmin.xlane.f32.xlu0 %v150
    %v152 = vpop.xlane.xlu0 %151
    %vm153 = vcmp.eq.f32.partialorder %v150, %v152
    %v154 = vsel %vm153, %v149, inf
    %155 = vmin.xlane.f32.xlu0 %v154
    %v156 = vpop.xlane.xlu0 %155
    %v157 = vcvt.f32.s32 %v156
    %v158 = vcvt.f32.s32 %v152
    %v159 = vshll.u32 %v158, 16
    %v160 = vadd.s32 %v159, %v157
    %vm161 = vcmask 7168
    %162 = vst.msk [vmem:[#allocation2] sm:$0xff] %vm161, %v160
    %vm163 = vcmp.eq.s32.totalorder %v143, %v160
    %v164 = vsel %vm163, 1, 0
    %v165 = vcvt.s32.f32 %v164
    %v167 = vsel %vm138, %v165, 0
    %169 = vmatprep.subr.mxu0 0.0
    %170 = vmatpush1.msra.mxu0 %v18
    %171 = vmatprep.subr.mxu0 0.0
    %172 = vmatpush1.msra.mxu0 %v19
    %173 = vmatprep.subr.mxu0 0.0
    %174 = vmatpush1.msra.mxu0 %v20
    %175 = vmatprep.subr.mxu0 0.0
    %176 = vmatpush1.msra.mxu0 %v21
    %177 = vmatprep.subr.mxu0 0.0
    %178 = vmatpush1.msra.mxu0 %v22
    %179 = vmatprep.subr.mxu0 0.0
    %180 = vmatpush1.msra.mxu0 %v23
    %181 = vmatprep.subr.mxu0 0.0
    %182 = vmatpush1.msra.mxu0 %v24
    %183 = vmatprep.subr.mxu0 0.0
    %184 = vmatpush1.msra.mxu0 %v25
    %185 = vmatprep.subr.mxu0 0.0
    %186 = vmatpush1.msra.mxu0 0.0
    %187 = vmatprep.subr.mxu0 0.0
    %188 = vmatpush1.msra.mxu0 0.0
    %189 = vmatprep.subr.mxu0 0.0
    %190 = vmatpush1.msra.mxu0 0.0
    %191 = vmatprep.subr.mxu0 0.0
    %192 = vmatpush1.msra.mxu0 0.0
    %193 = vmatprep.subr.mxu0 0.0
    %194 = vmatpush1.msra.mxu0 0.0
    %195 = vmatprep.subr.mxu0 0.0
    %196 = vmatpush1.msra.mxu0 0.0
    %197 = vmatprep.subr.mxu0 0.0
    %198 = vmatpush1.msra.mxu0 0.0
    %199 = vmatprep.subr.mxu0 0.0
    %200 = vmatpush1.msra.mxu0 0.0
    %201 = vmatprep.subr.mxu0 0.0
    %202 = vmatpush1.msra.mxu0 0.0
    %203 = vmatprep.subr.mxu0 0.0
    %204 = vmatpush1.msra.mxu0 0.0
    %205 = vmatprep.subr.mxu0 0.0
    %206 = vmatpush1.msra.mxu0 0.0
    %207 = vmatprep.subr.mxu0 0.0
    %208 = vmatpush1.msra.mxu0 0.0
    %209 = vmatprep.subr.mxu0 0.0
    %210 = vmatpush1.msra.mxu0 0.0
    %211 = vmatprep.subr.mxu0 0.0
    %212 = vmatpush1.msra.mxu0 0.0
    %213 = vmatprep.subr.mxu0 0.0
    %214 = vmatpush1.msra.mxu0 0.0
    %215 = vmatprep.subr.mxu0 0.0
    %216 = vmatpush1.msra.mxu0 0.0
    %217 = vmatprep.subr.mxu0 0.0
    %218 = vmatpush1.msra.mxu0 0.0
    %219 = vmatprep.subr.mxu0 0.0
    %220 = vmatpush1.msra.mxu0 0.0
    %221 = vmatprep.subr.mxu0 0.0
    %222 = vmatpush1.msra.mxu0 0.0
    %223 = vmatprep.subr.mxu0 0.0
    %224 = vmatpush1.msra.mxu0 0.0
    %225 = vmatprep.subr.mxu0 0.0
    %226 = vmatpush1.msra.mxu0 0.0
    %227 = vmatprep.subr.mxu0 0.0
    %228 = vmatpush1.msra.mxu0 0.0
    %229 = vmatprep.subr.mxu0 0.0
    %230 = vmatpush1.msra.mxu0 0.0
    %231 = vmatprep.subr.mxu0 0.0
    %232 = vmatpush1.msra.mxu0 0.0
    %233 = vmatprep.mubr.f32.mxu0 0.0
    %234 = vmatmul.mubr.f32.gmra.mrb[0].mxu0 %v167
    %v235 = vpop.f32.mrb[0].mxu0
    %v236 = vadd.f32 0.0, %v235
    %v237 = vpop.f32.mrb[0].mxu0
    %238 = vdwg.mxu0
    %239 = vst.msk [vmem:[%s4] sm:$0xff] %vm27, %v236
    // Predicated region
    $region14: #{_lambda_.36} parent=1 // pred_check
      _
    $region15: #{_lambda_.36} parent=1 // pred_check_branch
      %241 = sbr.rel (0) target = $region17
    $region16: #{_lambda_.36} parent=1 // pred_region
      %s243 = ssub.s32 128, 128
      %244 = vsyncadd [#allocation3], %s243
      %s246 = sshll.u32 [#allocation2], 4
      %s247 = int_to_ptr.vmem [resolvable:$true] %s246
      %249 = dma.vmem_to_hbm [thread:$0]  %s247, 128, %s3, [#allocation3]
    $region17: #{_lambda_.36} parent=1 // pred_fallthru
      _
    // Predicated region
    $region18: #{_lambda_.36} parent=1 // pred_check
      _
    $region19: #{_lambda_.36} parent=1 // pred_check_branch
      %251 = sbr.rel (0) target = $region21
    $region20: #{_lambda_.36} parent=1 // pred_region
      _
    $region21: #{_lambda_.36} parent=1 // pred_fallthru
      _
    // Predicated region
    $region22: #{_lambda_.36} parent=1 // pred_check
      _
    $region23: #{_lambda_.36} parent=1 // pred_check_branch
      %253 = sbr.rel (0) target = $region25
    $region24: #{_lambda_.36} parent=1 // pred_region
      %254 = dma.done [#allocation3], 128
    $region25: #{_lambda_.36} parent=1 // pred_fallthru
      _
    // Predicated region
    $region26: #{_lambda_.36} parent=1 // pred_check
      _
    $region27: #{_lambda_.36} parent=1 // pred_check_branch
      %256 = sbr.rel (0) target = $region29
    $region28: #{_lambda_.36} parent=1 // pred_region
      _
    $region29: #{_lambda_.36} parent=1 // pred_fallthru
      _
    %257 = vsyncpa [#allocation3], 1

// kernel: _lambda_.42
$region0: #{_lambda_.42}
  #allocation0 [shape = 'u32[]', space=smem, size = 0x4, offset = 0x4, fixed_abs, tag = 'smem constant byte address 0x4 - core index']
  #allocation1 [shape = 'u32[144,128]{1,0:T(1,128)}', space=vmem, size = 0x12000, scoped, tag = 'internal scratch']
  %s0 = inlined_call_operand.vmem [shape: f32[8,128], index: 0, kind: input, shape index: {}]
  %s1 = inlined_call_operand.vmem [shape: f32[1,128], index: 1, kind: input, shape index: {}]
  %s2 = inlined_call_operand.vmem [shape: f32[1,128], index: 2, kind: input, shape index: {}]
  %s3 = inlined_call_operand.vmem [shape: f32[8,128], index: 3, kind: input, shape index: {}]
  %s4 = inlined_call_operand.vmem [shape: f32[8,128], index: 4, kind: output, shape index: {}]
  %s5 = sld [smem:[#allocation0]]
  $region26: #{_lambda_.42} parent=0
    _
  %s7 = ssub.s32 1, %s5
  %s8 = scalar_select 0, %s7, %s5
  // Predicated region
  $region2: #{_lambda_.42} parent=0 // pred_check
    _
  $region3: #{_lambda_.42} parent=0 // pred_check_branch
    %10 = sbr.rel (0) target = $region5
  $region4: #{_lambda_.42} parent=0 // pred_region
    _
  $region5: #{_lambda_.42} parent=0 // pred_fallthru
    _
  // Predicated region
  $region6: #{_lambda_.42} parent=0 // pred_check
    _
  $region7: #{_lambda_.42} parent=0 // pred_check_branch
    %12 = sbr.rel (0) target = $region9
  $region8: #{_lambda_.42} parent=0 // pred_region
    _
  $region9: #{_lambda_.42} parent=0 // pred_fallthru
    _
  // Predicated region
  $region10: #{_lambda_.42} parent=0 // pred_check
    _
  $region11: #{_lambda_.42} parent=0 // pred_check_branch
    %14 = sbr.rel (0) target = $region13
  $region12: #{_lambda_.42} parent=0 // pred_region
    _
  $region13: #{_lambda_.42} parent=0 // pred_fallthru
    _
  // Predicated region
  $region14: #{_lambda_.42} parent=0 // pred_check
    _
  $region15: #{_lambda_.42} parent=0 // pred_check_branch
    %16 = sbr.rel (0) target = $region17
  $region16: #{_lambda_.42} parent=0 // pred_region
    _
  $region17: #{_lambda_.42} parent=0 // pred_fallthru
    _
  %v17 = vld [vmem:[%s0] sm:$0xff]
  %v18 = vld [vmem:[%s1] sm:$0x1]
  %v20 = vlaneseq
  %v21 = vshrl.u32 %v20, 7
  %v22 = vsub.s32 0, %v21
  %v23 = vrot.slane %v18, %v22
  %v25 = vmul.f32 %v17, %v23
  %v26 = vld [vmem:[%s2] sm:$0x1]
  %v28 = vlaneseq
  %v29 = vshrl.u32 %v28, 7
  %v30 = vsub.s32 0, %v29
  %v31 = vrot.slane %v26, %v30
  %v33 = vadd.f32 %v25, %v31
  %v34 = vld [vmem:[%s3] sm:$0xff]
  %v35 = vadd.f32 %v33, %v34
  %36 = vst [vmem:[%s4] sm:$0xff] %v35
  // Predicated region
  $region18: #{_lambda_.42} parent=0 // pred_check
    _
  $region19: #{_lambda_.42} parent=0 // pred_check_branch
    %38 = sbr.rel (0) target = $region21
  $region20: #{_lambda_.42} parent=0 // pred_region
    _
  $region21: #{_lambda_.42} parent=0 // pred_fallthru
    _
  // Predicated region
  $region22: #{_lambda_.42} parent=0 // pred_check
    _
  $region23: #{_lambda_.42} parent=0 // pred_check_branch
    %40 = sbr.rel (0) target = $region25
  $region24: #{_lambda_.42} parent=0 // pred_region
    _
  $region25: #{_lambda_.42} parent=0 // pred_fallthru
    _

// kernel: _lambda_.44
$region0: #{_lambda_.44}
  #allocation0 [shape = 'u32[]', space=smem, size = 0x4, offset = 0x4, fixed_abs, tag = 'smem constant byte address 0x4 - core index']
  #allocation1 [shape = 'u32[144,128]{1,0:T(1,128)}', space=vmem, size = 0x12000, scoped, tag = 'internal scratch']
  %s0 = inlined_call_operand.vmem [shape: f32[32,128], index: 0, kind: input, shape index: {}]
  %s1 = inlined_call_operand.vmem [shape: f32[1,128], index: 1, kind: input, shape index: {}]
  %s2 = inlined_call_operand.vmem [shape: f32[1,128], index: 2, kind: input, shape index: {}]
  %s3 = inlined_call_operand.vmem [shape: f32[32,128], index: 3, kind: input, shape index: {}]
  %s4 = inlined_call_operand.vmem [shape: f32[32,128], index: 4, kind: output, shape index: {}]
  %s5 = sld [smem:[#allocation0]]
  $region26: #{_lambda_.44} parent=0
    _
  %s7 = ssub.s32 1, %s5
  %s8 = scalar_select 0, %s7, %s5
  // Predicated region
  $region2: #{_lambda_.44} parent=0 // pred_check
    _
  $region3: #{_lambda_.44} parent=0 // pred_check_branch
    %10 = sbr.rel (0) target = $region5
  $region4: #{_lambda_.44} parent=0 // pred_region
    _
  $region5: #{_lambda_.44} parent=0 // pred_fallthru
    _
  // Predicated region
  $region6: #{_lambda_.44} parent=0 // pred_check
    _
  $region7: #{_lambda_.44} parent=0 // pred_check_branch
    %12 = sbr.rel (0) target = $region9
  $region8: #{_lambda_.44} parent=0 // pred_region
    _
  $region9: #{_lambda_.44} parent=0 // pred_fallthru
    _
  // Predicated region
  $region10: #{_lambda_.44} parent=0 // pred_check
    _
  $region11: #{_lambda_.44} parent=0 // pred_check_branch
    %14 = sbr.rel (0) target = $region13
  $region12: #{_lambda_.44} parent=0 // pred_region
    _
  $region13: #{_lambda_.44} parent=0 // pred_fallthru
    _
  // Predicated region
  $region14: #{_lambda_.44} parent=0 // pred_check
    _
  $region15: #{_lambda_.44} parent=0 // pred_check_branch
    %16 = sbr.rel (0) target = $region17
  $region16: #{_lambda_.44} parent=0 // pred_region
    _
  $region17: #{_lambda_.44} parent=0 // pred_fallthru
    _
  %v17 = vld [vmem:[%s0] sm:$0xff]
  %v18 = vld [vmem:[%s0 + $0x8] sm:$0xff]
  %v19 = vld [vmem:[%s0 + $0x10] sm:$0xff]
  %v20 = vld [vmem:[%s0 + $0x18] sm:$0xff]
  %v21 = vld [vmem:[%s1] sm:$0x1]
  %v23 = vlaneseq
  %v24 = vshrl.u32 %v23, 7
  %v25 = vsub.s32 0, %v24
  %v26 = vrot.slane %v21, %v25
  %v28 = vmul.f32 %v17, %v26
  %v29 = vmul.f32 %v18, %v26
  %v30 = vmul.f32 %v19, %v26
  %v31 = vmul.f32 %v20, %v26
  %v32 = vld [vmem:[%s2] sm:$0x1]
  %v34 = vlaneseq
  %v35 = vshrl.u32 %v34, 7
  %v36 = vsub.s32 0, %v35
  %v37 = vrot.slane %v32, %v36
  %v39 = vadd.f32 %v28, %v37
  %v40 = vadd.f32 %v29, %v37
  %v41 = vadd.f32 %v30, %v37
  %v42 = vadd.f32 %v31, %v37
  %v43 = vld [vmem:[%s3] sm:$0xff]
  %v44 = vld [vmem:[%s3 + $0x8] sm:$0xff]
  %v45 = vld [vmem:[%s3 + $0x10] sm:$0xff]
  %v46 = vld [vmem:[%s3 + $0x18] sm:$0xff]
  %v47 = vadd.f32 %v39, %v43
  %v48 = vadd.f32 %v40, %v44
  %v49 = vadd.f32 %v41, %v45
  %v50 = vadd.f32 %v42, %v46
  %51 = vst [vmem:[%s4] sm:$0xff] %v47
  %52 = vst [vmem:[%s4 + $0x8] sm:$0xff] %v48
  %53 = vst [vmem:[%s4 + $0x10] sm:$0xff] %v49
  %54 = vst [vmem:[%s4 + $0x18] sm:$0xff] %v50
  // Predicated region
  $region18: #{_lambda_.44} parent=0 // pred_check
    _
  $region19: #{_lambda_.44} parent=0 // pred_check_branch
    %56 = sbr.rel (0) target = $region21
  $region20: #{_lambda_.44} parent=0 // pred_region
    _
  $region21: #{_lambda_.44} parent=0 // pred_fallthru
    _
  // Predicated region
  $region22: #{_lambda_.44} parent=0 // pred_check
    _
  $region23: #{_lambda_.44} parent=0 // pred_check_branch
    %58 = sbr.rel (0) target = $region25
  $region24: #{_lambda_.44} parent=0 // pred_region
    _
  $region25: #{_lambda_.44} parent=0 // pred_fallthru
    _

// kernel: _lambda_.45
$region0: #{_lambda_.45}
  #allocation0 [shape = 'u32[]', space=smem, size = 0x4, offset = 0x4, fixed_abs, tag = 'smem constant byte address 0x4 - core index']
  #allocation1 [shape = 'u32[144,128]{1,0:T(1,128)}', space=vmem, size = 0x12000, scoped, tag = 'internal scratch']
  %s0 = inlined_call_operand.vmem [shape: bf16[512,512], index: 0, kind: input, shape index: {}]
  %s1 = inlined_call_operand.vmem [shape: bf16[512,32], index: 1, kind: input, shape index: {}]
  %s2 = inlined_call_operand.vmem [shape: f32[1,32], index: 2, kind: input, shape index: {}]
  %s3 = inlined_call_operand.vmem [shape: f32[512,32], index: 3, kind: output, shape index: {0}]
  %s4 = inlined_call_operand.vmem [shape: f32[1,1,32], index: 4, kind: output, shape index: {1}]
  %s5 = inlined_call_operand.vmem [shape: f32[1,1,32], index: 5, kind: output, shape index: {2}]
  %6 = xla_tuple %s3, %s4, %s5
  %s7 = sld [smem:[#allocation0]]
  $region38: #{_lambda_.45} parent=0
    _
  %s9 = ssub.s32 1, %s7
  %s10 = scalar_select 0, %s9, %s7
  // Predicated region
  $region2: #{_lambda_.45} parent=0 // pred_check
    _
  $region3: #{_lambda_.45} parent=0 // pred_check_branch
    %12 = sbr.rel (0) target = $region5
  $region4: #{_lambda_.45} parent=0 // pred_region
    _
  $region5: #{_lambda_.45} parent=0 // pred_fallthru
    _
  // Predicated region
  $region6: #{_lambda_.45} parent=0 // pred_check
    _
  $region7: #{_lambda_.45} parent=0 // pred_check_branch
    %14 = sbr.rel (0) target = $region9
  $region8: #{_lambda_.45} parent=0 // pred_region
    _
  $region9: #{_lambda_.45} parent=0 // pred_fallthru
    _
  // Predicated region
  $region10: #{_lambda_.45} parent=0 // pred_check
    _
  $region11: #{_lambda_.45} parent=0 // pred_check_branch
    %16 = sbr.rel (0) target = $region13
  $region12: #{_lambda_.45} parent=0 // pred_region
    _
  $region13: #{_lambda_.45} parent=0 // pred_fallthru
    _
  %v18 = vld [vmem:[%s0] sm:$0xff]
  %v19 = vld [vmem:[%s0 + $0x8] sm:$0xff]
  %v20 = vld [vmem:[%s0 + $0x10] sm:$0xff]
  %v21 = vld [vmem:[%s0 + $0x18] sm:$0xff]
  %v22 = vld [vmem:[%s0 + $0x20] sm:$0xff]
  %v23 = vld [vmem:[%s0 + $0x28] sm:$0xff]
  %v24 = vld [vmem:[%s0 + $0x30] sm:$0xff]
  %v25 = vld [vmem:[%s0 + $0x38] sm:$0xff]
  %v26 = vld [vmem:[%s0 + $0x40] sm:$0xff]
  %v27 = vld [vmem:[%s0 + $0x48] sm:$0xff]
  %v28 = vld [vmem:[%s0 + $0x50] sm:$0xff]
  %v29 = vld [vmem:[%s0 + $0x58] sm:$0xff]
  %v30 = vld [vmem:[%s0 + $0x60] sm:$0xff]
  %v31 = vld [vmem:[%s0 + $0x68] sm:$0xff]
  %v32 = vld [vmem:[%s0 + $0x70] sm:$0xff]
  %v33 = vld [vmem:[%s0 + $0x78] sm:$0xff]
  %v34 = vld [vmem:[%s0 + $0x80] sm:$0xff]
  %v35 = vld [vmem:[%s0 + $0x88] sm:$0xff]
  %v36 = vld [vmem:[%s0 + $0x90] sm:$0xff]
  %v37 = vld [vmem:[%s0 + $0x98] sm:$0xff]
  %v38 = vld [vmem:[%s0 + $0xa0] sm:$0xff]
  %v39 = vld [vmem:[%s0 + $0xa8] sm:$0xff]
  %v40 = vld [vmem:[%s0 + $0xb0] sm:$0xff]
  %v41 = vld [vmem:[%s0 + $0xb8] sm:$0xff]
  %v42 = vld [vmem:[%s0 + $0xc0] sm:$0xff]
  %v43 = vld [vmem:[%s0 + $0xc8] sm:$0xff]
  %v44 = vld [vmem:[%s0 + $0xd0] sm:$0xff]
  %v45 = vld [vmem:[%s0 + $0xd8] sm:$0xff]
  %v46 = vld [vmem:[%s0 + $0xe0] sm:$0xff]
  %v47 = vld [vmem:[%s0 + $0xe8] sm:$0xff]
  %v48 = vld [vmem:[%s0 + $0xf0] sm:$0xff]
  %v49 = vld [vmem:[%s0 + $0xf8] sm:$0xff]
  %v50 = vld [vmem:[%s0 + $0x100] sm:$0xff]
  %v51 = vld [vmem:[%s0 + $0x108] sm:$0xff]
  %v52 = vld [vmem:[%s0 + $0x110] sm:$0xff]
  %v53 = vld [vmem:[%s0 + $0x118] sm:$0xff]
  %v54 = vld [vmem:[%s0 + $0x120] sm:$0xff]
  %v55 = vld [vmem:[%s0 + $0x128] sm:$0xff]
  %v56 = vld [vmem:[%s0 + $0x130] sm:$0xff]
  %v57 = vld [vmem:[%s0 + $0x138] sm:$0xff]
  %v58 = vld [vmem:[%s0 + $0x140] sm:$0xff]
  %v59 = vld [vmem:[%s0 + $0x148] sm:$0xff]
  %v60 = vld [vmem:[%s0 + $0x150] sm:$0xff]
  %v61 = vld [vmem:[%s0 + $0x158] sm:$0xff]
  %v62 = vld [vmem:[%s0 + $0x160] sm:$0xff]
  %v63 = vld [vmem:[%s0 + $0x168] sm:$0xff]
  %v64 = vld [vmem:[%s0 + $0x170] sm:$0xff]
  %v65 = vld [vmem:[%s0 + $0x178] sm:$0xff]
  %v66 = vld [vmem:[%s0 + $0x180] sm:$0xff]
  %v67 = vld [vmem:[%s0 + $0x188] sm:$0xff]
  %v68 = vld [vmem:[%s0 + $0x190] sm:$0xff]
  %v69 = vld [vmem:[%s0 + $0x198] sm:$0xff]
  %v70 = vld [vmem:[%s0 + $0x1a0] sm:$0xff]
  %v71 = vld [vmem:[%s0 + $0x1a8] sm:$0xff]
  %v72 = vld [vmem:[%s0 + $0x1b0] sm:$0xff]
  %v73 = vld [vmem:[%s0 + $0x1b8] sm:$0xff]
  %v74 = vld [vmem:[%s0 + $0x1c0] sm:$0xff]
  %v75 = vld [vmem:[%s0 + $0x1c8] sm:$0xff]
  %v76 = vld [vmem:[%s0 + $0x1d0] sm:$0xff]
  %v77 = vld [vmem:[%s0 + $0x1d8] sm:$0xff]
  %v78 = vld [vmem:[%s0 + $0x1e0] sm:$0xff]
  %v79 = vld [vmem:[%s0 + $0x1e8] sm:$0xff]
  %v80 = vld [vmem:[%s0 + $0x1f0] sm:$0xff]
  %v81 = vld [vmem:[%s0 + $0x1f8] sm:$0xff]
  %v82 = vld [vmem:[%s0 + $0x200] sm:$0xff]
  %v83 = vld [vmem:[%s0 + $0x208] sm:$0xff]
  %v84 = vld [vmem:[%s0 + $0x210] sm:$0xff]
  %v85 = vld [vmem:[%s0 + $0x218] sm:$0xff]
  %v86 = vld [vmem:[%s0 + $0x220] sm:$0xff]
  %v87 = vld [vmem:[%s0 + $0x228] sm:$0xff]
  %v88 = vld [vmem:[%s0 + $0x230] sm:$0xff]
  %v89 = vld [vmem:[%s0 + $0x238] sm:$0xff]
  %v90 = vld [vmem:[%s0 + $0x240] sm:$0xff]
  %v91 = vld [vmem:[%s0 + $0x248] sm:$0xff]
  %v92 = vld [vmem:[%s0 + $0x250] sm:$0xff]
  %v93 = vld [vmem:[%s0 + $0x258] sm:$0xff]
  %v94 = vld [vmem:[%s0 + $0x260] sm:$0xff]
  %v95 = vld [vmem:[%s0 + $0x268] sm:$0xff]
  %v96 = vld [vmem:[%s0 + $0x270] sm:$0xff]
  %v97 = vld [vmem:[%s0 + $0x278] sm:$0xff]
  %v98 = vld [vmem:[%s0 + $0x280] sm:$0xff]
  %v99 = vld [vmem:[%s0 + $0x288] sm:$0xff]
  %v100 = vld [vmem:[%s0 + $0x290] sm:$0xff]
  %v101 = vld [vmem:[%s0 + $0x298] sm:$0xff]
  %v102 = vld [vmem:[%s0 + $0x2a0] sm:$0xff]
  %v103 = vld [vmem:[%s0 + $0x2a8] sm:$0xff]
  %v104 = vld [vmem:[%s0 + $0x2b0] sm:$0xff]
  %v105 = vld [vmem:[%s0 + $0x2b8] sm:$0xff]
  %v106 = vld [vmem:[%s0 + $0x2c0] sm:$0xff]
  %v107 = vld [vmem:[%s0 + $0x2c8] sm:$0xff]
  %v108 = vld [vmem:[%s0 + $0x2d0] sm:$0xff]
  %v109 = vld [vmem:[%s0 + $0x2d8] sm:$0xff]
  %v110 = vld [vmem:[%s0 + $0x2e0] sm:$0xff]
  %v111 = vld [vmem:[%s0 + $0x2e8] sm:$0xff]
  %v112 = vld [vmem:[%s0 + $0x2f0] sm:$0xff]
  %v113 = vld [vmem:[%s0 + $0x2f8] sm:$0xff]
  %v114 = vld [vmem:[%s0 + $0x300] sm:$0xff]
  %v115 = vld [vmem:[%s0 + $0x308] sm:$0xff]
  %v116 = vld [vmem:[%s0 + $0x310] sm:$0xff]
  %v117 = vld [vmem:[%s0 + $0x318] sm:$0xff]
  %v118 = vld [vmem:[%s0 + $0x320] sm:$0xff]
  %v119 = vld [vmem:[%s0 + $0x328] sm:$0xff]
  %v120 = vld [vmem:[%s0 + $0x330] sm:$0xff]
  %v121 = vld [vmem:[%s0 + $0x338] sm:$0xff]
  %v122 = vld [vmem:[%s0 + $0x340] sm:$0xff]
  %v123 = vld [vmem:[%s0 + $0x348] sm:$0xff]
  %v124 = vld [vmem:[%s0 + $0x350] sm:$0xff]
  %v125 = vld [vmem:[%s0 + $0x358] sm:$0xff]
  %v126 = vld [vmem:[%s0 + $0x360] sm:$0xff]
  %v127 = vld [vmem:[%s0 + $0x368] sm:$0xff]
  %v128 = vld [vmem:[%s0 + $0x370] sm:$0xff]
  %v129 = vld [vmem:[%s0 + $0x378] sm:$0xff]
  %v130 = vld [vmem:[%s0 + $0x380] sm:$0xff]
  %v131 = vld [vmem:[%s0 + $0x388] sm:$0xff]
  %v132 = vld [vmem:[%s0 + $0x390] sm:$0xff]
  %v133 = vld [vmem:[%s0 + $0x398] sm:$0xff]
  %v134 = vld [vmem:[%s0 + $0x3a0] sm:$0xff]
  %v135 = vld [vmem:[%s0 + $0x3a8] sm:$0xff]
  %v136 = vld [vmem:[%s0 + $0x3b0] sm:$0xff]
  %v137 = vld [vmem:[%s0 + $0x3b8] sm:$0xff]
  %v138 = vld [vmem:[%s0 + $0x3c0] sm:$0xff]
  %v139 = vld [vmem:[%s0 + $0x3c8] sm:$0xff]
  %v140 = vld [vmem:[%s0 + $0x3d0] sm:$0xff]
  %v141 = vld [vmem:[%s0 + $0x3d8] sm:$0xff]
  %v142 = vld [vmem:[%s0 + $0x3e0] sm:$0xff]
  %v143 = vld [vmem:[%s0 + $0x3e8] sm:$0xff]
  %v144 = vld [vmem:[%s0 + $0x3f0] sm:$0xff]
  %v145 = vld [vmem:[%s0 + $0x3f8] sm:$0xff]
  %v146 = vld [vmem:[%s1] sm:$0xf]
  %v147 = vld [vmem:[%s1 + $0x4] sm:$0xf]
  %v148 = vld [vmem:[%s1 + $0x8] sm:$0xf]
  %v149 = vld [vmem:[%s1 + $0xc] sm:$0xf]
  %v150 = vld [vmem:[%s1 + $0x10] sm:$0xf]
  %v151 = vld [vmem:[%s1 + $0x14] sm:$0xf]
  %v152 = vld [vmem:[%s1 + $0x18] sm:$0xf]
  %v153 = vld [vmem:[%s1 + $0x1c] sm:$0xf]
  %v154 = vld [vmem:[%s1 + $0x20] sm:$0xf]
  %v155 = vld [vmem:[%s1 + $0x24] sm:$0xf]
  %v156 = vld [vmem:[%s1 + $0x28] sm:$0xf]
  %v157 = vld [vmem:[%s1 + $0x2c] sm:$0xf]
  %v158 = vld [vmem:[%s1 + $0x30] sm:$0xf]
  %v159 = vld [vmem:[%s1 + $0x34] sm:$0xf]
  %v160 = vld [vmem:[%s1 + $0x38] sm:$0xf]
  %v161 = vld [vmem:[%s1 + $0x3c] sm:$0xf]
  %v162 = vld [vmem:[%s1 + $0x40] sm:$0xf]
  %v163 = vld [vmem:[%s1 + $0x44] sm:$0xf]
  %v164 = vld [vmem:[%s1 + $0x48] sm:$0xf]
  %v165 = vld [vmem:[%s1 + $0x4c] sm:$0xf]
  %v166 = vld [vmem:[%s1 + $0x50] sm:$0xf]
  %v167 = vld [vmem:[%s1 + $0x54] sm:$0xf]
  %v168 = vld [vmem:[%s1 + $0x58] sm:$0xf]
  %v169 = vld [vmem:[%s1 + $0x5c] sm:$0xf]
  %v170 = vld [vmem:[%s1 + $0x60] sm:$0xf]
  %v171 = vld [vmem:[%s1 + $0x64] sm:$0xf]
  %v172 = vld [vmem:[%s1 + $0x68] sm:$0xf]
  %v173 = vld [vmem:[%s1 + $0x6c] sm:$0xf]
  %v174 = vld [vmem:[%s1 + $0x70] sm:$0xf]
  %v175 = vld [vmem:[%s1 + $0x74] sm:$0xf]
  %v176 = vld [vmem:[%s1 + $0x78] sm:$0xf]
  %v177 = vld [vmem:[%s1 + $0x7c] sm:$0xf]
  %v178 = vld [vmem:[%s1 + $0x80] sm:$0xf]
  %v179 = vld [vmem:[%s1 + $0x84] sm:$0xf]
  %v180 = vld [vmem:[%s1 + $0x88] sm:$0xf]
  %v181 = vld [vmem:[%s1 + $0x8c] sm:$0xf]
  %v182 = vld [vmem:[%s1 + $0x90] sm:$0xf]
  %v183 = vld [vmem:[%s1 + $0x94] sm:$0xf]
  %v184 = vld [vmem:[%s1 + $0x98] sm:$0xf]
  %v185 = vld [vmem:[%s1 + $0x9c] sm:$0xf]
  %v186 = vld [vmem:[%s1 + $0xa0] sm:$0xf]
  %v187 = vld [vmem:[%s1 + $0xa4] sm:$0xf]
  %v188 = vld [vmem:[%s1 + $0xa8] sm:$0xf]
  %v189 = vld [vmem:[%s1 + $0xac] sm:$0xf]
  %v190 = vld [vmem:[%s1 + $0xb0] sm:$0xf]
  %v191 = vld [vmem:[%s1 + $0xb4] sm:$0xf]
  %v192 = vld [vmem:[%s1 + $0xb8] sm:$0xf]
  %v193 = vld [vmem:[%s1 + $0xbc] sm:$0xf]
  %v194 = vld [vmem:[%s1 + $0xc0] sm:$0xf]
  %v195 = vld [vmem:[%s1 + $0xc4] sm:$0xf]
  %v196 = vld [vmem:[%s1 + $0xc8] sm:$0xf]
  %v197 = vld [vmem:[%s1 + $0xcc] sm:$0xf]
  %v198 = vld [vmem:[%s1 + $0xd0] sm:$0xf]
  %v199 = vld [vmem:[%s1 + $0xd4] sm:$0xf]
  %v200 = vld [vmem:[%s1 + $0xd8] sm:$0xf]
  %v201 = vld [vmem:[%s1 + $0xdc] sm:$0xf]
  %v202 = vld [vmem:[%s1 + $0xe0] sm:$0xf]
  %v203 = vld [vmem:[%s1 + $0xe4] sm:$0xf]
  %v204 = vld [vmem:[%s1 + $0xe8] sm:$0xf]
  %v205 = vld [vmem:[%s1 + $0xec] sm:$0xf]
  %v206 = vld [vmem:[%s1 + $0xf0] sm:$0xf]
  %v207 = vld [vmem:[%s1 + $0xf4] sm:$0xf]
  %v208 = vld [vmem:[%s1 + $0xf8] sm:$0xf]
  %v209 = vld [vmem:[%s1 + $0xfc] sm:$0xf]
  %v210 = vld [vmem:[%s2] sm:$0x1]
  %v212 = vlaneseq
  %v213 = vshrl.u32 %v212, 7
  %v214 = vsub.s32 0, %v213
  %v215 = vrot.slane %v210, %v214
  %v345 = vunpack.c.l.b16 %v18
  %v346 = vunpack.c.h.b16 %v18
  %v347 = vunpack.c.l.b16 %v19
  %v348 = vunpack.c.h.b16 %v19
  %v349 = vunpack.c.l.b16 %v20
  %v350 = vunpack.c.h.b16 %v20
  %v351 = vunpack.c.l.b16 %v21
  %v352 = vunpack.c.h.b16 %v21
  %v353 = vunpack.c.l.b16 %v22
  %v354 = vunpack.c.h.b16 %v22
  %v355 = vunpack.c.l.b16 %v23
  %v356 = vunpack.c.h.b16 %v23
  %v357 = vunpack.c.l.b16 %v24
  %v358 = vunpack.c.h.b16 %v24
  %v359 = vunpack.c.l.b16 %v25
  %v360 = vunpack.c.h.b16 %v25
  %v361 = vunpack.c.l.b16 %v26
  %v362 = vunpack.c.h.b16 %v26
  %v363 = vunpack.c.l.b16 %v27
  %v364 = vunpack.c.h.b16 %v27
  %v365 = vunpack.c.l.b16 %v28
  %v366 = vunpack.c.h.b16 %v28
  %v367 = vunpack.c.l.b16 %v29
  %v368 = vunpack.c.h.b16 %v29
  %v369 = vunpack.c.l.b16 %v30
  %v370 = vunpack.c.h.b16 %v30
  %v371 = vunpack.c.l.b16 %v31
  %v372 = vunpack.c.h.b16 %v31
  %v373 = vunpack.c.l.b16 %v32
  %v374 = vunpack.c.h.b16 %v32
  %v375 = vunpack.c.l.b16 %v33
  %v376 = vunpack.c.h.b16 %v33
  %v377 = vunpack.c.l.b16 %v34
  %v378 = vunpack.c.h.b16 %v34
  %v379 = vunpack.c.l.b16 %v35
  %v380 = vunpack.c.h.b16 %v35
  %v381 = vunpack.c.l.b16 %v36
  %v382 = vunpack.c.h.b16 %v36
  %v383 = vunpack.c.l.b16 %v37
  %v384 = vunpack.c.h.b16 %v37
  %v385 = vunpack.c.l.b16 %v38
  %v386 = vunpack.c.h.b16 %v38
  %v387 = vunpack.c.l.b16 %v39
  %v388 = vunpack.c.h.b16 %v39
  %v389 = vunpack.c.l.b16 %v40
  %v390 = vunpack.c.h.b16 %v40
  %v391 = vunpack.c.l.b16 %v41
  %v392 = vunpack.c.h.b16 %v41
  %v393 = vunpack.c.l.b16 %v42
  %v394 = vunpack.c.h.b16 %v42
  %v395 = vunpack.c.l.b16 %v43
  %v396 = vunpack.c.h.b16 %v43
  %v397 = vunpack.c.l.b16 %v44
  %v398 = vunpack.c.h.b16 %v44
  %v399 = vunpack.c.l.b16 %v45
  %v400 = vunpack.c.h.b16 %v45
  %v401 = vunpack.c.l.b16 %v46
  %v402 = vunpack.c.h.b16 %v46
  %v403 = vunpack.c.l.b16 %v47
  %v404 = vunpack.c.h.b16 %v47
  %v405 = vunpack.c.l.b16 %v48
  %v406 = vunpack.c.h.b16 %v48
  %v407 = vunpack.c.l.b16 %v49
  %v408 = vunpack.c.h.b16 %v49
  %v409 = vunpack.c.l.b16 %v50
  %v410 = vunpack.c.h.b16 %v50
  %v411 = vunpack.c.l.b16 %v51
  %v412 = vunpack.c.h.b16 %v51
  %v413 = vunpack.c.l.b16 %v52
  %v414 = vunpack.c.h.b16 %v52
  %v415 = vunpack.c.l.b16 %v53
  %v416 = vunpack.c.h.b16 %v53
  %v417 = vunpack.c.l.b16 %v54
  %v418 = vunpack.c.h.b16 %v54
  %v419 = vunpack.c.l.b16 %v55
  %v420 = vunpack.c.h.b16 %v55
  %v421 = vunpack.c.l.b16 %v56
  %v422 = vunpack.c.h.b16 %v56
  %v423 = vunpack.c.l.b16 %v57
  %v424 = vunpack.c.h.b16 %v57
  %v425 = vunpack.c.l.b16 %v58
  %v426 = vunpack.c.h.b16 %v58
  %v427 = vunpack.c.l.b16 %v59
  %v428 = vunpack.c.h.b16 %v59
  %v429 = vunpack.c.l.b16 %v60
  %v430 = vunpack.c.h.b16 %v60
  %v431 = vunpack.c.l.b16 %v61
  %v432 = vunpack.c.h.b16 %v61
  %v433 = vunpack.c.l.b16 %v62
  %v434 = vunpack.c.h.b16 %v62
  %v435 = vunpack.c.l.b16 %v63
  %v436 = vunpack.c.h.b16 %v63
  %v437 = vunpack.c.l.b16 %v64
  %v438 = vunpack.c.h.b16 %v64
  %v439 = vunpack.c.l.b16 %v65
  %v440 = vunpack.c.h.b16 %v65
  %v441 = vunpack.c.l.b16 %v66
  %v442 = vunpack.c.h.b16 %v66
  %v443 = vunpack.c.l.b16 %v67
  %v444 = vunpack.c.h.b16 %v67
  %v445 = vunpack.c.l.b16 %v68
  %v446 = vunpack.c.h.b16 %v68
  %v447 = vunpack.c.l.b16 %v69
  %v448 = vunpack.c.h.b16 %v69
  %v449 = vunpack.c.l.b16 %v70
  %v450 = vunpack.c.h.b16 %v70
  %v451 = vunpack.c.l.b16 %v71
  %v452 = vunpack.c.h.b16 %v71
  %v453 = vunpack.c.l.b16 %v72
  %v454 = vunpack.c.h.b16 %v72
  %v455 = vunpack.c.l.b16 %v73
  %v456 = vunpack.c.h.b16 %v73
  %v457 = vunpack.c.l.b16 %v74
  %v458 = vunpack.c.h.b16 %v74
  %v459 = vunpack.c.l.b16 %v75
  %v460 = vunpack.c.h.b16 %v75
  %v461 = vunpack.c.l.b16 %v76
  %v462 = vunpack.c.h.b16 %v76
  %v463 = vunpack.c.l.b16 %v77
  %v464 = vunpack.c.h.b16 %v77
  %v465 = vunpack.c.l.b16 %v78
  %v466 = vunpack.c.h.b16 %v78
  %v467 = vunpack.c.l.b16 %v79
  %v468 = vunpack.c.h.b16 %v79
  %v469 = vunpack.c.l.b16 %v80
  %v470 = vunpack.c.h.b16 %v80
  %v471 = vunpack.c.l.b16 %v81
  %v472 = vunpack.c.h.b16 %v81
  %v473 = vunpack.c.l.b16 %v82
  %v474 = vunpack.c.h.b16 %v82
  %v475 = vunpack.c.l.b16 %v83
  %v476 = vunpack.c.h.b16 %v83
  %v477 = vunpack.c.l.b16 %v84
  %v478 = vunpack.c.h.b16 %v84
  %v479 = vunpack.c.l.b16 %v85
  %v480 = vunpack.c.h.b16 %v85
  %v481 = vunpack.c.l.b16 %v86
  %v482 = vunpack.c.h.b16 %v86
  %v483 = vunpack.c.l.b16 %v87
  %v484 = vunpack.c.h.b16 %v87
  %v485 = vunpack.c.l.b16 %v88
  %v486 = vunpack.c.h.b16 %v88
  %v487 = vunpack.c.l.b16 %v89
  %v488 = vunpack.c.h.b16 %v89
  %v489 = vunpack.c.l.b16 %v90
  %v490 = vunpack.c.h.b16 %v90
  %v491 = vunpack.c.l.b16 %v91
  %v492 = vunpack.c.h.b16 %v91
  %v493 = vunpack.c.l.b16 %v92
  %v494 = vunpack.c.h.b16 %v92
  %v495 = vunpack.c.l.b16 %v93
  %v496 = vunpack.c.h.b16 %v93
  %v497 = vunpack.c.l.b16 %v94
  %v498 = vunpack.c.h.b16 %v94
  %v499 = vunpack.c.l.b16 %v95
  %v500 = vunpack.c.h.b16 %v95
  %v501 = vunpack.c.l.b16 %v96
  %v502 = vunpack.c.h.b16 %v96
  %v503 = vunpack.c.l.b16 %v97
  %v504 = vunpack.c.h.b16 %v97
  %v505 = vunpack.c.l.b16 %v98
  %v506 = vunpack.c.h.b16 %v98
  %v507 = vunpack.c.l.b16 %v99
  %v508 = vunpack.c.h.b16 %v99
  %v509 = vunpack.c.l.b16 %v100
  %v510 = vunpack.c.h.b16 %v100
  %v511 = vunpack.c.l.b16 %v101
  %v512 = vunpack.c.h.b16 %v101
  %v513 = vunpack.c.l.b16 %v102
  %v514 = vunpack.c.h.b16 %v102
  %v515 = vunpack.c.l.b16 %v103
  %v516 = vunpack.c.h.b16 %v103
  %v517 = vunpack.c.l.b16 %v104
  %v518 = vunpack.c.h.b16 %v104
  %v519 = vunpack.c.l.b16 %v105
  %v520 = vunpack.c.h.b16 %v105
  %v521 = vunpack.c.l.b16 %v106
  %v522 = vunpack.c.h.b16 %v106
  %v523 = vunpack.c.l.b16 %v107
  %v524 = vunpack.c.h.b16 %v107
  %v525 = vunpack.c.l.b16 %v108
  %v526 = vunpack.c.h.b16 %v108
  %v527 = vunpack.c.l.b16 %v109
  %v528 = vunpack.c.h.b16 %v109
  %v529 = vunpack.c.l.b16 %v110
  %v530 = vunpack.c.h.b16 %v110
  %v531 = vunpack.c.l.b16 %v111
  %v532 = vunpack.c.h.b16 %v111
  %v533 = vunpack.c.l.b16 %v112
  %v534 = vunpack.c.h.b16 %v112
  %v535 = vunpack.c.l.b16 %v113
  %v536 = vunpack.c.h.b16 %v113
  %v537 = vunpack.c.l.b16 %v114
  %v538 = vunpack.c.h.b16 %v114
  %v539 = vunpack.c.l.b16 %v115
  %v540 = vunpack.c.h.b16 %v115
  %v541 = vunpack.c.l.b16 %v116
  %v542 = vunpack.c.h.b16 %v116
  %v543 = vunpack.c.l.b16 %v117
  %v544 = vunpack.c.h.b16 %v117
  %v545 = vunpack.c.l.b16 %v118
  %v546 = vunpack.c.h.b16 %v118
  %v547 = vunpack.c.l.b16 %v119
  %v548 = vunpack.c.h.b16 %v119
  %v549 = vunpack.c.l.b16 %v120
  %v550 = vunpack.c.h.b16 %v120
  %v551 = vunpack.c.l.b16 %v121
  %v552 = vunpack.c.h.b16 %v121
  %v553 = vunpack.c.l.b16 %v122
  %v554 = vunpack.c.h.b16 %v122
  %v555 = vunpack.c.l.b16 %v123
  %v556 = vunpack.c.h.b16 %v123
  %v557 = vunpack.c.l.b16 %v124
  %v558 = vunpack.c.h.b16 %v124
  %v559 = vunpack.c.l.b16 %v125
  %v560 = vunpack.c.h.b16 %v125
  %v561 = vunpack.c.l.b16 %v126
  %v562 = vunpack.c.h.b16 %v126
  %v563 = vunpack.c.l.b16 %v127
  %v564 = vunpack.c.h.b16 %v127
  %v565 = vunpack.c.l.b16 %v128
  %v566 = vunpack.c.h.b16 %v128
  %v567 = vunpack.c.l.b16 %v129
  %v568 = vunpack.c.h.b16 %v129
  %v569 = vunpack.c.l.b16 %v130
  %v570 = vunpack.c.h.b16 %v130
  %v571 = vunpack.c.l.b16 %v131
  %v572 = vunpack.c.h.b16 %v131
  %v573 = vunpack.c.l.b16 %v132
  %v574 = vunpack.c.h.b16 %v132
  %v575 = vunpack.c.l.b16 %v133
  %v576 = vunpack.c.h.b16 %v133
  %v577 = vunpack.c.l.b16 %v134
  %v578 = vunpack.c.h.b16 %v134
  %v579 = vunpack.c.l.b16 %v135
  %v580 = vunpack.c.h.b16 %v135
  %v581 = vunpack.c.l.b16 %v136
  %v582 = vunpack.c.h.b16 %v136
  %v583 = vunpack.c.l.b16 %v137
  %v584 = vunpack.c.h.b16 %v137
  %v585 = vunpack.c.l.b16 %v138
  %v586 = vunpack.c.h.b16 %v138
  %v587 = vunpack.c.l.b16 %v139
  %v588 = vunpack.c.h.b16 %v139
  %v589 = vunpack.c.l.b16 %v140
  %v590 = vunpack.c.h.b16 %v140
  %v591 = vunpack.c.l.b16 %v141
  %v592 = vunpack.c.h.b16 %v141
  %v593 = vunpack.c.l.b16 %v142
  %v594 = vunpack.c.h.b16 %v142
  %v595 = vunpack.c.l.b16 %v143
  %v596 = vunpack.c.h.b16 %v143
  %v597 = vunpack.c.l.b16 %v144
  %v598 = vunpack.c.h.b16 %v144
  %v599 = vunpack.c.l.b16 %v145
  %v600 = vunpack.c.h.b16 %v145
  %v601 = vpack.c.b16 %v349, %v345
  %v602 = vpack.c.b16 %v350, %v346
  %v603 = vpack.c.b16 %v351, %v347
  %v604 = vpack.c.b16 %v352, %v348
  %v605 = vpack.c.b16 %v357, %v353
  %v606 = vpack.c.b16 %v358, %v354
  %v607 = vpack.c.b16 %v359, %v355
  %v608 = vpack.c.b16 %v360, %v356
  %v609 = vpack.c.b16 %v365, %v361
  %v610 = vpack.c.b16 %v366, %v362
  %v611 = vpack.c.b16 %v367, %v363
  %v612 = vpack.c.b16 %v368, %v364
  %v613 = vpack.c.b16 %v373, %v369
  %v614 = vpack.c.b16 %v374, %v370
  %v615 = vpack.c.b16 %v375, %v371
  %v616 = vpack.c.b16 %v376, %v372
  %v617 = vpack.c.b16 %v381, %v377
  %v618 = vpack.c.b16 %v382, %v378
  %v619 = vpack.c.b16 %v383, %v379
  %v620 = vpack.c.b16 %v384, %v380
  %v621 = vpack.c.b16 %v389, %v385
  %v622 = vpack.c.b16 %v390, %v386
  %v623 = vpack.c.b16 %v391, %v387
  %v624 = vpack.c.b16 %v392, %v388
  %v625 = vpack.c.b16 %v397, %v393
  %v626 = vpack.c.b16 %v398, %v394
  %v627 = vpack.c.b16 %v399, %v395
  %v628 = vpack.c.b16 %v400, %v396
  %v629 = vpack.c.b16 %v405, %v401
  %v630 = vpack.c.b16 %v406, %v402
  %v631 = vpack.c.b16 %v407, %v403
  %v632 = vpack.c.b16 %v408, %v404
  %v633 = vpack.c.b16 %v413, %v409
  %v634 = vpack.c.b16 %v414, %v410
  %v635 = vpack.c.b16 %v415, %v411
  %v636 = vpack.c.b16 %v416, %v412
  %v637 = vpack.c.b16 %v421, %v417
  %v638 = vpack.c.b16 %v422, %v418
  %v639 = vpack.c.b16 %v423, %v419
  %v640 = vpack.c.b16 %v424, %v420
  %v641 = vpack.c.b16 %v429, %v425
  %v642 = vpack.c.b16 %v430, %v426
  %v643 = vpack.c.b16 %v431, %v427
  %v644 = vpack.c.b16 %v432, %v428
  %v645 = vpack.c.b16 %v437, %v433
  %v646 = vpack.c.b16 %v438, %v434
  %v647 = vpack.c.b16 %v439, %v435
  %v648 = vpack.c.b16 %v440, %v436
  %v649 = vpack.c.b16 %v445, %v441
  %v650 = vpack.c.b16 %v446, %v442
  %v651 = vpack.c.b16 %v447, %v443
  %v652 = vpack.c.b16 %v448, %v444
  %v653 = vpack.c.b16 %v453, %v449
  %v654 = vpack.c.b16 %v454, %v450
  %v655 = vpack.c.b16 %v455, %v451
  %v656 = vpack.c.b16 %v456, %v452
  %v657 = vpack.c.b16 %v461, %v457
  %v658 = vpack.c.b16 %v462, %v458
  %v659 = vpack.c.b16 %v463, %v459
  %v660 = vpack.c.b16 %v464, %v460
  %v661 = vpack.c.b16 %v469, %v465
  %v662 = vpack.c.b16 %v470, %v466
  %v663 = vpack.c.b16 %v471, %v467
  %v664 = vpack.c.b16 %v472, %v468
  %v665 = vpack.c.b16 %v477, %v473
  %v666 = vpack.c.b16 %v478, %v474
  %v667 = vpack.c.b16 %v479, %v475
  %v668 = vpack.c.b16 %v480, %v476
  %v669 = vpack.c.b16 %v485, %v481
  %v670 = vpack.c.b16 %v486, %v482
  %v671 = vpack.c.b16 %v487, %v483
  %v672 = vpack.c.b16 %v488, %v484
  %v673 = vpack.c.b16 %v493, %v489
  %v674 = vpack.c.b16 %v494, %v490
  %v675 = vpack.c.b16 %v495, %v491
  %v676 = vpack.c.b16 %v496, %v492
  %v677 = vpack.c.b16 %v501, %v497
  %v678 = vpack.c.b16 %v502, %v498
  %v679 = vpack.c.b16 %v503, %v499
  %v680 = vpack.c.b16 %v504, %v500
  %v681 = vpack.c.b16 %v509, %v505
  %v682 = vpack.c.b16 %v510, %v506
  %v683 = vpack.c.b16 %v511, %v507
  %v684 = vpack.c.b16 %v512, %v508
  %v685 = vpack.c.b16 %v517, %v513
  %v686 = vpack.c.b16 %v518, %v514
  %v687 = vpack.c.b16 %v519, %v515
  %v688 = vpack.c.b16 %v520, %v516
  %v689 = vpack.c.b16 %v525, %v521
  %v690 = vpack.c.b16 %v526, %v522
  %v691 = vpack.c.b16 %v527, %v523
  %v692 = vpack.c.b16 %v528, %v524
  %v693 = vpack.c.b16 %v533, %v529
  %v694 = vpack.c.b16 %v534, %v530
  %v695 = vpack.c.b16 %v535, %v531
  %v696 = vpack.c.b16 %v536, %v532
  %v697 = vpack.c.b16 %v541, %v537
  %v698 = vpack.c.b16 %v542, %v538
  %v699 = vpack.c.b16 %v543, %v539
  %v700 = vpack.c.b16 %v544, %v540
  %v701 = vpack.c.b16 %v549, %v545
  %v702 = vpack.c.b16 %v550, %v546
  %v703 = vpack.c.b16 %v551, %v547
  %v704 = vpack.c.b16 %v552, %v548
  %v705 = vpack.c.b16 %v557, %v553
  %v706 = vpack.c.b16 %v558, %v554
  %v707 = vpack.c.b16 %v559, %v555
  %v708 = vpack.c.b16 %v560, %v556
  %v709 = vpack.c.b16 %v565, %v561
  %v710 = vpack.c.b16 %v566, %v562
  %v711 = vpack.c.b16 %v567, %v563
  %v712 = vpack.c.b16 %v568, %v564
  %v713 = vpack.c.b16 %v573, %v569
  %v714 = vpack.c.b16 %v574, %v570
  %v715 = vpack.c.b16 %v575, %v571
  %v716 = vpack.c.b16 %v576, %v572
  %v717 = vpack.c.b16 %v581, %v577
  %v718 = vpack.c.b16 %v582, %v578
  %v719 = vpack.c.b16 %v583, %v579
  %v720 = vpack.c.b16 %v584, %v580
  %v721 = vpack.c.b16 %v589, %v585
  %v722 = vpack.c.b16 %v590, %v586
  %v723 = vpack.c.b16 %v591, %v587
  %v724 = vpack.c.b16 %v592, %v588
  %v725 = vpack.c.b16 %v597, %v593
  %v726 = vpack.c.b16 %v598, %v594
  %v727 = vpack.c.b16 %v599, %v595
  %v728 = vpack.c.b16 %v600, %v596
  %v921 = vunpack.c.l.b16 %v146
  %v922 = vunpack.c.l.b16 %v147
  %v923 = vunpack.c.l.b16 %v148
  %v924 = vunpack.c.l.b16 %v149
  %v925 = vunpack.c.l.b16 %v150
  %v926 = vunpack.c.l.b16 %v151
  %v927 = vunpack.c.l.b16 %v152
  %v928 = vunpack.c.l.b16 %v153
  %v929 = vunpack.c.l.b16 %v154
  %v930 = vunpack.c.l.b16 %v155
  %v931 = vunpack.c.l.b16 %v156
  %v932 = vunpack.c.l.b16 %v157
  %v933 = vunpack.c.l.b16 %v158
  %v934 = vunpack.c.l.b16 %v159
  %v935 = vunpack.c.l.b16 %v160
  %v936 = vunpack.c.l.b16 %v161
  %v937 = vunpack.c.l.b16 %v162
  %v938 = vunpack.c.l.b16 %v163
  %v939 = vunpack.c.l.b16 %v164
  %v940 = vunpack.c.l.b16 %v165
  %v941 = vunpack.c.l.b16 %v166
  %v942 = vunpack.c.l.b16 %v167
  %v943 = vunpack.c.l.b16 %v168
  %v944 = vunpack.c.l.b16 %v169
  %v945 = vunpack.c.l.b16 %v170
  %v946 = vunpack.c.l.b16 %v171
  %v947 = vunpack.c.l.b16 %v172
  %v948 = vunpack.c.l.b16 %v173
  %v949 = vunpack.c.l.b16 %v174
  %v950 = vunpack.c.l.b16 %v175
  %v951 = vunpack.c.l.b16 %v176
  %v952 = vunpack.c.l.b16 %v177
  %v953 = vunpack.c.l.b16 %v178
  %v954 = vunpack.c.l.b16 %v179
  %v955 = vunpack.c.l.b16 %v180
  %v956 = vunpack.c.l.b16 %v181
  %v957 = vunpack.c.l.b16 %v182
  %v958 = vunpack.c.l.b16 %v183
  %v959 = vunpack.c.l.b16 %v184
  %v960 = vunpack.c.l.b16 %v185
  %v961 = vunpack.c.l.b16 %v186
  %v962 = vunpack.c.l.b16 %v187
  %v963 = vunpack.c.l.b16 %v188
  %v964 = vunpack.c.l.b16 %v189
  %v965 = vunpack.c.l.b16 %v190
  %v966 = vunpack.c.l.b16 %v191
  %v967 = vunpack.c.l.b16 %v192
  %v968 = vunpack.c.l.b16 %v193
  %v969 = vunpack.c.l.b16 %v194
  %v970 = vunpack.c.l.b16 %v195
  %v971 = vunpack.c.l.b16 %v196
  %v972 = vunpack.c.l.b16 %v197
  %v973 = vunpack.c.l.b16 %v198
  %v974 = vunpack.c.l.b16 %v199
  %v975 = vunpack.c.l.b16 %v200
  %v976 = vunpack.c.l.b16 %v201
  %v977 = vunpack.c.l.b16 %v202
  %v978 = vunpack.c.l.b16 %v203
  %v979 = vunpack.c.l.b16 %v204
  %v980 = vunpack.c.l.b16 %v205
  %v981 = vunpack.c.l.b16 %v206
  %v982 = vunpack.c.l.b16 %v207
  %v983 = vunpack.c.l.b16 %v208
  %v984 = vunpack.c.l.b16 %v209
  %v985 = vpack.c.b16 %v922, %v921
  %v986 = vpack.c.b16 %v924, %v923
  %v987 = vpack.c.b16 %v926, %v925
  %v988 = vpack.c.b16 %v928, %v927
  %v989 = vpack.c.b16 %v930, %v929
  %v990 = vpack.c.b16 %v932, %v931
  %v991 = vpack.c.b16 %v934, %v933
  %v992 = vpack.c.b16 %v936, %v935
  %v993 = vpack.c.b16 %v938, %v937
  %v994 = vpack.c.b16 %v940, %v939
  %v995 = vpack.c.b16 %v942, %v941
  %v996 = vpack.c.b16 %v944, %v943
  %v997 = vpack.c.b16 %v946, %v945
  %v998 = vpack.c.b16 %v948, %v947
  %v999 = vpack.c.b16 %v950, %v949
  %v1000 = vpack.c.b16 %v952, %v951
  %v1001 = vpack.c.b16 %v954, %v953
  %v1002 = vpack.c.b16 %v956, %v955
  %v1003 = vpack.c.b16 %v958, %v957
  %v1004 = vpack.c.b16 %v960, %v959
  %v1005 = vpack.c.b16 %v962, %v961
  %v1006 = vpack.c.b16 %v964, %v963
  %v1007 = vpack.c.b16 %v966, %v965
  %v1008 = vpack.c.b16 %v968, %v967
  %v1009 = vpack.c.b16 %v970, %v969
  %v1010 = vpack.c.b16 %v972, %v971
  %v1011 = vpack.c.b16 %v974, %v973
  %v1012 = vpack.c.b16 %v976, %v975
  %v1013 = vpack.c.b16 %v978, %v977
  %v1014 = vpack.c.b16 %v980, %v979
  %v1015 = vpack.c.b16 %v982, %v981
  %v1016 = vpack.c.b16 %v984, %v983
  %1049 = vmatprep.subr.bf16.mxu0 0
  %1050 = vmatpush1.bf16.msra.mxu0 %v985
  %1051 = vmatprep.subr.bf16.mxu0 0
  %1052 = vmatpush1.bf16.msra.mxu0 %v986
  %1053 = vmatprep.subr.bf16.mxu0 0
  %1054 = vmatpush1.bf16.msra.mxu0 %v987
  %1055 = vmatprep.subr.bf16.mxu0 0
  %1056 = vmatpush1.bf16.msra.mxu0 %v988
  %1057 = vmatprep.subr.bf16.mxu0 0
  %1058 = vmatpush1.bf16.msra.mxu0 %v989
  %1059 = vmatprep.subr.bf16.mxu0 0
  %1060 = vmatpush1.bf16.msra.mxu0 %v990
  %1061 = vmatprep.subr.bf16.mxu0 0
  %1062 = vmatpush1.bf16.msra.mxu0 %v991
  %1063 = vmatprep.subr.bf16.mxu0 0
  %1064 = vmatpush1.bf16.msra.mxu0 %v992
  %1065 = vmatprep.subr.bf16.mxu0 0
  %1066 = vmatpush1.bf16.msra.mxu0 %v993
  %1067 = vmatprep.subr.bf16.mxu0 0
  %1068 = vmatpush1.bf16.msra.mxu0 %v994
  %1069 = vmatprep.subr.bf16.mxu0 0
  %1070 = vmatpush1.bf16.msra.mxu0 %v995
  %1071 = vmatprep.subr.bf16.mxu0 0
  %1072 = vmatpush1.bf16.msra.mxu0 %v996
  %1073 = vmatprep.subr.bf16.mxu0 0
  %1074 = vmatpush1.bf16.msra.mxu0 %v997
  %1075 = vmatprep.subr.bf16.mxu0 0
  %1076 = vmatpush1.bf16.msra.mxu0 %v998
  %1077 = vmatprep.subr.bf16.mxu0 0
  %1078 = vmatpush1.bf16.msra.mxu0 %v999
  %1079 = vmatprep.subr.bf16.mxu0 0
  %1080 = vmatpush1.bf16.msra.mxu0 %v1000
  %1081 = vmatprep.mubr.bf16.mxu0 %v602
  %1082 = vmatmul.mubr.bf16.gmra.mrb[0].mxu0 %v601
  %v1083 = vpop.f32.mrb[0].mxu0
  %v1084 = vadd.f32 %v215, %v1083
  %v1085 = vpop.f32.mrb[0].mxu0
  %v1086 = vpop.f32.mrb[0].mxu0
  %v1087 = vadd.f32 %v215, %v1086
  %v1088 = vpop.f32.mrb[0].mxu0
  %1089 = vmatprep.mubr.bf16.mxu0 %v606
  %1090 = vmatmul.mubr.bf16.gmra.mrb[0].mxu0 %v605
  %v1091 = vpop.f32.mrb[0].mxu0
  %v1092 = vadd.f32 %v215, %v1091
  %v1093 = vpop.f32.mrb[0].mxu0
  %v1094 = vpop.f32.mrb[0].mxu0
  %v1095 = vadd.f32 %v215, %v1094
  %v1096 = vpop.f32.mrb[0].mxu0
  %1097 = vmatprep.mubr.bf16.mxu0 %v610
  %1098 = vmatmul.mubr.bf16.gmra.mrb[0].mxu0 %v609
  %v1099 = vpop.f32.mrb[0].mxu0
  %v1100 = vadd.f32 %v215, %v1099
  %v1101 = vpop.f32.mrb[0].mxu0
  %v1102 = vpop.f32.mrb[0].mxu0
  %v1103 = vadd.f32 %v215, %v1102
  %v1104 = vpop.f32.mrb[0].mxu0
  %1105 = vmatprep.mubr.bf16.mxu0 %v614
  %1106 = vmatmul.mubr.bf16.gmra.mrb[0].mxu0 %v613
  %v1107 = vpop.f32.mrb[0].mxu0
  %v1108 = vadd.f32 %v215, %v1107
  %v1109 = vpop.f32.mrb[0].mxu0
  %v1110 = vpop.f32.mrb[0].mxu0
  %v1111 = vadd.f32 %v215, %v1110
  %v1112 = vpop.f32.mrb[0].mxu0
  %1113 = vmatprep.mubr.bf16.mxu0 %v618
  %1114 = vmatmul.mubr.bf16.gmra.mrb[0].mxu0 %v617
  %v1115 = vpop.f32.mrb[0].mxu0
  %v1116 = vadd.f32 %v215, %v1115
  %v1117 = vpop.f32.mrb[0].mxu0
  %v1118 = vpop.f32.mrb[0].mxu0
  %v1119 = vadd.f32 %v215, %v1118
  %v1120 = vpop.f32.mrb[0].mxu0
  %1121 = vmatprep.mubr.bf16.mxu0 %v622
  %1122 = vmatmul.mubr.bf16.gmra.mrb[0].mxu0 %v621
  %v1123 = vpop.f32.mrb[0].mxu0
  %v1124 = vadd.f32 %v215, %v1123
  %v1125 = vpop.f32.mrb[0].mxu0
  %v1126 = vpop.f32.mrb[0].mxu0
  %v1127 = vadd.f32 %v215, %v1126
  %v1128 = vpop.f32.mrb[0].mxu0
  %1129 = vmatprep.mubr.bf16.mxu0 %v626
  %1130 = vmatmul.mubr.bf16.gmra.mrb[0].mxu0 %v625
  %v1131 = vpop.f32.mrb[0].mxu0
  %v1132 = vadd.f32 %v215, %v1131
  %v1133 = vpop.f32.mrb[0].mxu0
  %v1134 = vpop.f32.mrb[0].mxu0
  %v1135 = vadd.f32 %v215, %v1134
  %v1136 = vpop.f32.mrb[0].mxu0
  %1137 = vmatprep.mubr.bf16.mxu0 %v630
  %1138 = vmatmul.mubr.bf16.gmra.mrb[0].mxu0 %v629
  %v1139 = vpop.f32.mrb[0].mxu0
  %v1140 = vadd.f32 %v215, %v1139
  %v1141 = vpop.f32.mrb[0].mxu0
  %v1142 = vpop.f32.mrb[0].mxu0
  %v1143 = vadd.f32 %v215, %v1142
  %v1144 = vpop.f32.mrb[0].mxu0
  %1145 = vmatprep.mubr.bf16.mxu0 %v634
  %1146 = vmatmul.mubr.bf16.gmra.mrb[0].mxu0 %v633
  %v1147 = vpop.f32.mrb[0].mxu0
  %v1148 = vadd.f32 %v215, %v1147
  %v1149 = vpop.f32.mrb[0].mxu0
  %v1150 = vpop.f32.mrb[0].mxu0
  %v1151 = vadd.f32 %v215, %v1150
  %v1152 = vpop.f32.mrb[0].mxu0
  %1153 = vmatprep.mubr.bf16.mxu0 %v638
  %1154 = vmatmul.mubr.bf16.gmra.mrb[0].mxu0 %v637
  %v1155 = vpop.f32.mrb[0].mxu0
  %v1156 = vadd.f32 %v215, %v1155
  %v1157 = vpop.f32.mrb[0].mxu0
  %v1158 = vpop.f32.mrb[0].mxu0
  %v1159 = vadd.f32 %v215, %v1158
  %v1160 = vpop.f32.mrb[0].mxu0
  %1161 = vmatprep.mubr.bf16.mxu0 %v642
  %1162 = vmatmul.mubr.bf16.gmra.mrb[0].mxu0 %v641
  %v1163 = vpop.f32.mrb[0].mxu0
  %v1164 = vadd.f32 %v215, %v1163
  %v1165 = vpop.f32.mrb[0].mxu0
  %v1166 = vpop.f32.mrb[0].mxu0
  %v1167 = vadd.f32 %v215, %v1166
  %v1168 = vpop.f32.mrb[0].mxu0
  %1169 = vmatprep.mubr.bf16.mxu0 %v646
  %1170 = vmatmul.mubr.bf16.gmra.mrb[0].mxu0 %v645
  %v1171 = vpop.f32.mrb[0].mxu0
  %v1172 = vadd.f32 %v215, %v1171
  %v1173 = vpop.f32.mrb[0].mxu0
  %v1174 = vpop.f32.mrb[0].mxu0
  %v1175 = vadd.f32 %v215, %v1174
  %v1176 = vpop.f32.mrb[0].mxu0
  %1177 = vmatprep.mubr.bf16.mxu0 %v650
  %1178 = vmatmul.mubr.bf16.gmra.mrb[0].mxu0 %v649
  %v1179 = vpop.f32.mrb[0].mxu0
  %v1180 = vadd.f32 %v215, %v1179
  %v1181 = vpop.f32.mrb[0].mxu0
  %v1182 = vpop.f32.mrb[0].mxu0
  %v1183 = vadd.f32 %v215, %v1182
  %v1184 = vpop.f32.mrb[0].mxu0
  %1185 = vmatprep.mubr.bf16.mxu0 %v654
  %1186 = vmatmul.mubr.bf16.gmra.mrb[0].mxu0 %v653
  %v1187 = vpop.f32.mrb[0].mxu0
  %v1188 = vadd.f32 %v215, %v1187
  %v1189 = vpop.f32.mrb[0].mxu0
  %v1190 = vpop.f32.mrb[0].mxu0
  %v1191 = vadd.f32 %v215, %v1190
  %v1192 = vpop.f32.mrb[0].mxu0
  %1193 = vmatprep.mubr.bf16.mxu0 %v658
  %1194 = vmatmul.mubr.bf16.gmra.mrb[0].mxu0 %v657
  %v1195 = vpop.f32.mrb[0].mxu0
  %v1196 = vadd.f32 %v215, %v1195
  %v1197 = vpop.f32.mrb[0].mxu0
  %v1198 = vpop.f32.mrb[0].mxu0
  %v1199 = vadd.f32 %v215, %v1198
  %v1200 = vpop.f32.mrb[0].mxu0
  %1201 = vmatprep.mubr.bf16.mxu0 %v662
  %1202 = vmatmul.mubr.bf16.gmra.mrb[0].mxu0 %v661
  %v1203 = vpop.f32.mrb[0].mxu0
  %v1204 = vadd.f32 %v215, %v1203
  %v1205 = vpop.f32.mrb[0].mxu0
  %v1206 = vpop.f32.mrb[0].mxu0
  %v1207 = vadd.f32 %v215, %v1206
  %v1208 = vpop.f32.mrb[0].mxu0
  %1209 = vmatprep.mubr.bf16.mxu0 %v666
  %1210 = vmatmul.mubr.bf16.gmra.mrb[0].mxu0 %v665
  %v1211 = vpop.f32.mrb[0].mxu0
  %v1212 = vadd.f32 %v215, %v1211
  %v1213 = vpop.f32.mrb[0].mxu0
  %v1214 = vpop.f32.mrb[0].mxu0
  %v1215 = vadd.f32 %v215, %v1214
  %v1216 = vpop.f32.mrb[0].mxu0
  %1217 = vmatprep.mubr.bf16.mxu0 %v670
  %1218 = vmatmul.mubr.bf16.gmra.mrb[0].mxu0 %v669
  %v1219 = vpop.f32.mrb[0].mxu0
  %v1220 = vadd.f32 %v215, %v1219
  %v1221 = vpop.f32.mrb[0].mxu0
  %v1222 = vpop.f32.mrb[0].mxu0
  %v1223 = vadd.f32 %v215, %v1222
  %v1224 = vpop.f32.mrb[0].mxu0
  %1225 = vmatprep.mubr.bf16.mxu0 %v674
  %1226 = vmatmul.mubr.bf16.gmra.mrb[0].mxu0 %v673
  %v1227 = vpop.f32.mrb[0].mxu0
  %v1228 = vadd.f32 %v215, %v1227
  %v1229 = vpop.f32.mrb[0].mxu0
  %v1230 = vpop.f32.mrb[0].mxu0
  %v1231 = vadd.f32 %v215, %v1230
  %v1232 = vpop.f32.mrb[0].mxu0
  %1233 = vmatprep.mubr.bf16.mxu0 %v678
  %1234 = vmatmul.mubr.bf16.gmra.mrb[0].mxu0 %v677
  %v1235 = vpop.f32.mrb[0].mxu0
  %v1236 = vadd.f32 %v215, %v1235
  %v1237 = vpop.f32.mrb[0].mxu0
  %v1238 = vpop.f32.mrb[0].mxu0
  %v1239 = vadd.f32 %v215, %v1238
  %v1240 = vpop.f32.mrb[0].mxu0
  %1241 = vmatprep.mubr.bf16.mxu0 %v682
  %1242 = vmatmul.mubr.bf16.gmra.mrb[0].mxu0 %v681
  %v1243 = vpop.f32.mrb[0].mxu0
  %v1244 = vadd.f32 %v215, %v1243
  %v1245 = vpop.f32.mrb[0].mxu0
  %v1246 = vpop.f32.mrb[0].mxu0
  %v1247 = vadd.f32 %v215, %v1246
  %v1248 = vpop.f32.mrb[0].mxu0
  %1249 = vmatprep.mubr.bf16.mxu0 %v686
  %1250 = vmatmul.mubr.bf16.gmra.mrb[0].mxu0 %v685
  %v1251 = vpop.f32.mrb[0].mxu0
  %v1252 = vadd.f32 %v215, %v1251
  %v1253 = vpop.f32.mrb[0].mxu0
  %v1254 = vpop.f32.mrb[0].mxu0
  %v1255 = vadd.f32 %v215, %v1254
  %v1256 = vpop.f32.mrb[0].mxu0
  %1257 = vmatprep.mubr.bf16.mxu0 %v690
  %1258 = vmatmul.mubr.bf16.gmra.mrb[0].mxu0 %v689
  %v1259 = vpop.f32.mrb[0].mxu0
  %v1260 = vadd.f32 %v215, %v1259
  %v1261 = vpop.f32.mrb[0].mxu0
  %v1262 = vpop.f32.mrb[0].mxu0
  %v1263 = vadd.f32 %v215, %v1262
  %v1264 = vpop.f32.mrb[0].mxu0
  %1265 = vmatprep.mubr.bf16.mxu0 %v694
  %1266 = vmatmul.mubr.bf16.gmra.mrb[0].mxu0 %v693
  %v1267 = vpop.f32.mrb[0].mxu0
  %v1268 = vadd.f32 %v215, %v1267
  %v1269 = vpop.f32.mrb[0].mxu0
  %v1270 = vpop.f32.mrb[0].mxu0
  %v1271 = vadd.f32 %v215, %v1270
  %v1272 = vpop.f32.mrb[0].mxu0
  %1273 = vmatprep.mubr.bf16.mxu0 %v698
  %1274 = vmatmul.mubr.bf16.gmra.mrb[0].mxu0 %v697
  %v1275 = vpop.f32.mrb[0].mxu0
  %v1276 = vadd.f32 %v215, %v1275
  %v1277 = vpop.f32.mrb[0].mxu0
  %v1278 = vpop.f32.mrb[0].mxu0
  %v1279 = vadd.f32 %v215, %v1278
  %v1280 = vpop.f32.mrb[0].mxu0
  %1281 = vmatprep.mubr.bf16.mxu0 %v702
  %1282 = vmatmul.mubr.bf16.gmra.mrb[0].mxu0 %v701
  %v1283 = vpop.f32.mrb[0].mxu0
  %v1284 = vadd.f32 %v215, %v1283
  %v1285 = vpop.f32.mrb[0].mxu0
  %v1286 = vpop.f32.mrb[0].mxu0
  %v1287 = vadd.f32 %v215, %v1286
  %v1288 = vpop.f32.mrb[0].mxu0
  %1289 = vmatprep.mubr.bf16.mxu0 %v706
  %1290 = vmatmul.mubr.bf16.gmra.mrb[0].mxu0 %v705
  %v1291 = vpop.f32.mrb[0].mxu0
  %v1292 = vadd.f32 %v215, %v1291
  %v1293 = vpop.f32.mrb[0].mxu0
  %v1294 = vpop.f32.mrb[0].mxu0
  %v1295 = vadd.f32 %v215, %v1294
  %v1296 = vpop.f32.mrb[0].mxu0
  %1297 = vmatprep.mubr.bf16.mxu0 %v710
  %1298 = vmatmul.mubr.bf16.gmra.mrb[0].mxu0 %v709
  %v1299 = vpop.f32.mrb[0].mxu0
  %v1300 = vadd.f32 %v215, %v1299
  %v1301 = vpop.f32.mrb[0].mxu0
  %v1302 = vpop.f32.mrb[0].mxu0
  %v1303 = vadd.f32 %v215, %v1302
  %v1304 = vpop.f32.mrb[0].mxu0
  %1305 = vmatprep.mubr.bf16.mxu0 %v714
  %1306 = vmatmul.mubr.bf16.gmra.mrb[0].mxu0 %v713
  %v1307 = vpop.f32.mrb[0].mxu0
  %v1308 = vadd.f32 %v215, %v1307
  %v1309 = vpop.f32.mrb[0].mxu0
  %v1310 = vpop.f32.mrb[0].mxu0
  %v1311 = vadd.f32 %v215, %v1310
  %v1312 = vpop.f32.mrb[0].mxu0
  %1313 = vmatprep.mubr.bf16.mxu0 %v718
  %1314 = vmatmul.mubr.bf16.gmra.mrb[0].mxu0 %v717
  %v1315 = vpop.f32.mrb[0].mxu0
  %v1316 = vadd.f32 %v215, %v1315
  %v1317 = vpop.f32.mrb[0].mxu0
  %v1318 = vpop.f32.mrb[0].mxu0
  %v1319 = vadd.f32 %v215, %v1318
  %v1320 = vpop.f32.mrb[0].mxu0
  %1321 = vmatprep.mubr.bf16.mxu0 %v722
  %1322 = vmatmul.mubr.bf16.gmra.mrb[0].mxu0 %v721
  %v1323 = vpop.f32.mrb[0].mxu0
  %v1324 = vadd.f32 %v215, %v1323
  %v1325 = vpop.f32.mrb[0].mxu0
  %v1326 = vpop.f32.mrb[0].mxu0
  %v1327 = vadd.f32 %v215, %v1326
  %v1328 = vpop.f32.mrb[0].mxu0
  %1329 = vmatprep.mubr.bf16.mxu0 %v726
  %1330 = vmatmul.mubr.bf16.gmra.mrb[0].mxu0 %v725
  %v1331 = vpop.f32.mrb[0].mxu0
  %v1332 = vadd.f32 %v215, %v1331
  %v1333 = vpop.f32.mrb[0].mxu0
  %v1334 = vpop.f32.mrb[0].mxu0
  %v1335 = vadd.f32 %v215, %v1334
  %v1336 = vpop.f32.mrb[0].mxu0
  %1337 = vdwg.mxu0
  %1338 = vmatprep.subr.bf16.mxu0 0
  %1339 = vmatpush1.bf16.msra.mxu0 %v1001
  %1340 = vmatprep.subr.bf16.mxu0 0
  %1341 = vmatpush1.bf16.msra.mxu0 %v1002
  %1342 = vmatprep.subr.bf16.mxu0 0
  %1343 = vmatpush1.bf16.msra.mxu0 %v1003
  %1344 = vmatprep.subr.bf16.mxu0 0
  %1345 = vmatpush1.bf16.msra.mxu0 %v1004
  %1346 = vmatprep.subr.bf16.mxu0 0
  %1347 = vmatpush1.bf16.msra.mxu0 %v1005
  %1348 = vmatprep.subr.bf16.mxu0 0
  %1349 = vmatpush1.bf16.msra.mxu0 %v1006
  %1350 = vmatprep.subr.bf16.mxu0 0
  %1351 = vmatpush1.bf16.msra.mxu0 %v1007
  %1352 = vmatprep.subr.bf16.mxu0 0
  %1353 = vmatpush1.bf16.msra.mxu0 %v1008
  %1354 = vmatprep.subr.bf16.mxu0 0
  %1355 = vmatpush1.bf16.msra.mxu0 %v1009
  %1356 = vmatprep.subr.bf16.mxu0 0
  %1357 = vmatpush1.bf16.msra.mxu0 %v1010
  %1358 = vmatprep.subr.bf16.mxu0 0
  %1359 = vmatpush1.bf16.msra.mxu0 %v1011
  %1360 = vmatprep.subr.bf16.mxu0 0
  %1361 = vmatpush1.bf16.msra.mxu0 %v1012
  %1362 = vmatprep.subr.bf16.mxu0 0
  %1363 = vmatpush1.bf16.msra.mxu0 %v1013
  %1364 = vmatprep.subr.bf16.mxu0 0
  %1365 = vmatpush1.bf16.msra.mxu0 %v1014
  %1366 = vmatprep.subr.bf16.mxu0 0
  %1367 = vmatpush1.bf16.msra.mxu0 %v1015
  %1368 = vmatprep.subr.bf16.mxu0 0
  %1369 = vmatpush1.bf16.msra.mxu0 %v1016
  %1370 = vmatprep.mubr.bf16.mxu0 %v604
  %1371 = vmatmul.mubr.bf16.gmra.mrb[0].mxu0 %v603
  %v1372 = vpop.f32.mrb[0].mxu0
  %v1373 = vadd.f32 %v1084, %v1372
  %v1374 = vpop.f32.mrb[0].mxu0
  %v1375 = vpop.f32.mrb[0].mxu0
  %v1376 = vadd.f32 %v1087, %v1375
  %v1377 = vpop.f32.mrb[0].mxu0
  %1378 = vmatprep.mubr.bf16.mxu0 %v608
  %1379 = vmatmul.mubr.bf16.gmra.mrb[0].mxu0 %v607
  %v1380 = vpop.f32.mrb[0].mxu0
  %v1381 = vadd.f32 %v1092, %v1380
  %v1382 = vpop.f32.mrb[0].mxu0
  %v1383 = vpop.f32.mrb[0].mxu0
  %v1384 = vadd.f32 %v1095, %v1383
  %v1385 = vpop.f32.mrb[0].mxu0
  %1386 = vmatprep.mubr.bf16.mxu0 %v612
  %1387 = vmatmul.mubr.bf16.gmra.mrb[0].mxu0 %v611
  %v1388 = vpop.f32.mrb[0].mxu0
  %v1389 = vadd.f32 %v1100, %v1388
  %v1390 = vpop.f32.mrb[0].mxu0
  %v1391 = vpop.f32.mrb[0].mxu0
  %v1392 = vadd.f32 %v1103, %v1391
  %v1393 = vpop.f32.mrb[0].mxu0
  %1394 = vmatprep.mubr.bf16.mxu0 %v616
  %1395 = vmatmul.mubr.bf16.gmra.mrb[0].mxu0 %v615
  %v1396 = vpop.f32.mrb[0].mxu0
  %v1397 = vadd.f32 %v1108, %v1396
  %v1398 = vpop.f32.mrb[0].mxu0
  %v1399 = vpop.f32.mrb[0].mxu0
  %v1400 = vadd.f32 %v1111, %v1399
  %v1401 = vpop.f32.mrb[0].mxu0
  %1402 = vmatprep.mubr.bf16.mxu0 %v620
  %1403 = vmatmul.mubr.bf16.gmra.mrb[0].mxu0 %v619
  %v1404 = vpop.f32.mrb[0].mxu0
  %v1405 = vadd.f32 %v1116, %v1404
  %v1406 = vpop.f32.mrb[0].mxu0
  %v1407 = vpop.f32.mrb[0].mxu0
  %v1408 = vadd.f32 %v1119, %v1407
  %v1409 = vpop.f32.mrb[0].mxu0
  %1410 = vmatprep.mubr.bf16.mxu0 %v624
  %1411 = vmatmul.mubr.bf16.gmra.mrb[0].mxu0 %v623
  %v1412 = vpop.f32.mrb[0].mxu0
  %v1413 = vadd.f32 %v1124, %v1412
  %v1414 = vpop.f32.mrb[0].mxu0
  %v1415 = vpop.f32.mrb[0].mxu0
  %v1416 = vadd.f32 %v1127, %v1415
  %v1417 = vpop.f32.mrb[0].mxu0
  %1418 = vmatprep.mubr.bf16.mxu0 %v628
  %1419 = vmatmul.mubr.bf16.gmra.mrb[0].mxu0 %v627
  %v1420 = vpop.f32.mrb[0].mxu0
  %v1421 = vadd.f32 %v1132, %v1420
  %v1422 = vpop.f32.mrb[0].mxu0
  %v1423 = vpop.f32.mrb[0].mxu0
  %v1424 = vadd.f32 %v1135, %v1423
  %v1425 = vpop.f32.mrb[0].mxu0
  %1426 = vmatprep.mubr.bf16.mxu0 %v632
  %1427 = vmatmul.mubr.bf16.gmra.mrb[0].mxu0 %v631
  %v1428 = vpop.f32.mrb[0].mxu0
  %v1429 = vadd.f32 %v1140, %v1428
  %v1430 = vpop.f32.mrb[0].mxu0
  %v1431 = vpop.f32.mrb[0].mxu0
  %v1432 = vadd.f32 %v1143, %v1431
  %v1433 = vpop.f32.mrb[0].mxu0
  %1434 = vmatprep.mubr.bf16.mxu0 %v636
  %1435 = vmatmul.mubr.bf16.gmra.mrb[0].mxu0 %v635
  %v1436 = vpop.f32.mrb[0].mxu0
  %v1437 = vadd.f32 %v1148, %v1436
  %v1438 = vpop.f32.mrb[0].mxu0
  %v1439 = vpop.f32.mrb[0].mxu0
  %v1440 = vadd.f32 %v1151, %v1439
  %v1441 = vpop.f32.mrb[0].mxu0
  %1442 = vmatprep.mubr.bf16.mxu0 %v640
  %1443 = vmatmul.mubr.bf16.gmra.mrb[0].mxu0 %v639
  %v1444 = vpop.f32.mrb[0].mxu0
  %v1445 = vadd.f32 %v1156, %v1444
  %v1446 = vpop.f32.mrb[0].mxu0
  %v1447 = vpop.f32.mrb[0].mxu0
  %v1448 = vadd.f32 %v1159, %v1447
  %v1449 = vpop.f32.mrb[0].mxu0
  %1450 = vmatprep.mubr.bf16.mxu0 %v644
  %1451 = vmatmul.mubr.bf16.gmra.mrb[0].mxu0 %v643
  %v1452 = vpop.f32.mrb[0].mxu0
  %v1453 = vadd.f32 %v1164, %v1452
  %v1454 = vpop.f32.mrb[0].mxu0
  %v1455 = vpop.f32.mrb[0].mxu0
  %v1456 = vadd.f32 %v1167, %v1455
  %v1457 = vpop.f32.mrb[0].mxu0
  %1458 = vmatprep.mubr.bf16.mxu0 %v648
  %1459 = vmatmul.mubr.bf16.gmra.mrb[0].mxu0 %v647
  %v1460 = vpop.f32.mrb[0].mxu0
  %v1461 = vadd.f32 %v1172, %v1460
  %v1462 = vpop.f32.mrb[0].mxu0
  %v1463 = vpop.f32.mrb[0].mxu0
  %v1464 = vadd.f32 %v1175, %v1463
  %v1465 = vpop.f32.mrb[0].mxu0
  %1466 = vmatprep.mubr.bf16.mxu0 %v652
  %1467 = vmatmul.mubr.bf16.gmra.mrb[0].mxu0 %v651
  %v1468 = vpop.f32.mrb[0].mxu0
  %v1469 = vadd.f32 %v1180, %v1468
  %v1470 = vpop.f32.mrb[0].mxu0
  %v1471 = vpop.f32.mrb[0].mxu0
  %v1472 = vadd.f32 %v1183, %v1471
  %v1473 = vpop.f32.mrb[0].mxu0
  %1474 = vmatprep.mubr.bf16.mxu0 %v656
  %1475 = vmatmul.mubr.bf16.gmra.mrb[0].mxu0 %v655
  %v1476 = vpop.f32.mrb[0].mxu0
  %v1477 = vadd.f32 %v1188, %v1476
  %v1478 = vpop.f32.mrb[0].mxu0
  %v1479 = vpop.f32.mrb[0].mxu0
  %v1480 = vadd.f32 %v1191, %v1479
  %v1481 = vpop.f32.mrb[0].mxu0
  %1482 = vmatprep.mubr.bf16.mxu0 %v660
  %1483 = vmatmul.mubr.bf16.gmra.mrb[0].mxu0 %v659
  %v1484 = vpop.f32.mrb[0].mxu0
  %v1485 = vadd.f32 %v1196, %v1484
  %v1486 = vpop.f32.mrb[0].mxu0
  %v1487 = vpop.f32.mrb[0].mxu0
  %v1488 = vadd.f32 %v1199, %v1487
  %v1489 = vpop.f32.mrb[0].mxu0
  %1490 = vmatprep.mubr.bf16.mxu0 %v664
  %1491 = vmatmul.mubr.bf16.gmra.mrb[0].mxu0 %v663
  %v1492 = vpop.f32.mrb[0].mxu0
  %v1493 = vadd.f32 %v1204, %v1492
  %v1494 = vpop.f32.mrb[0].mxu0
  %v1495 = vpop.f32.mrb[0].mxu0
  %v1496 = vadd.f32 %v1207, %v1495
  %v1497 = vpop.f32.mrb[0].mxu0
  %1498 = vmatprep.mubr.bf16.mxu0 %v668
  %1499 = vmatmul.mubr.bf16.gmra.mrb[0].mxu0 %v667
  %v1500 = vpop.f32.mrb[0].mxu0
  %v1501 = vadd.f32 %v1212, %v1500
  %v1502 = vpop.f32.mrb[0].mxu0
  %v1503 = vpop.f32.mrb[0].mxu0
  %v1504 = vadd.f32 %v1215, %v1503
  %v1505 = vpop.f32.mrb[0].mxu0
  %1506 = vmatprep.mubr.bf16.mxu0 %v672
  %1507 = vmatmul.mubr.bf16.gmra.mrb[0].mxu0 %v671
  %v1508 = vpop.f32.mrb[0].mxu0
  %v1509 = vadd.f32 %v1220, %v1508
  %v1510 = vpop.f32.mrb[0].mxu0
  %v1511 = vpop.f32.mrb[0].mxu0
  %v1512 = vadd.f32 %v1223, %v1511
  %v1513 = vpop.f32.mrb[0].mxu0
  %1514 = vmatprep.mubr.bf16.mxu0 %v676
  %1515 = vmatmul.mubr.bf16.gmra.mrb[0].mxu0 %v675
  %v1516 = vpop.f32.mrb[0].mxu0
  %v1517 = vadd.f32 %v1228, %v1516
  %v1518 = vpop.f32.mrb[0].mxu0
  %v1519 = vpop.f32.mrb[0].mxu0
  %v1520 = vadd.f32 %v1231, %v1519
  %v1521 = vpop.f32.mrb[0].mxu0
  %1522 = vmatprep.mubr.bf16.mxu0 %v680
  %1523 = vmatmul.mubr.bf16.gmra.mrb[0].mxu0 %v679
  %v1524 = vpop.f32.mrb[0].mxu0
  %v1525 = vadd.f32 %v1236, %v1524
  %v1526 = vpop.f32.mrb[0].mxu0
  %v1527 = vpop.f32.mrb[0].mxu0
  %v1528 = vadd.f32 %v1239, %v1527
  %v1529 = vpop.f32.mrb[0].mxu0
  %1530 = vmatprep.mubr.bf16.mxu0 %v684
  %1531 = vmatmul.mubr.bf16.gmra.mrb[0].mxu0 %v683
  %v1532 = vpop.f32.mrb[0].mxu0
  %v1533 = vadd.f32 %v1244, %v1532
  %v1534 = vpop.f32.mrb[0].mxu0
  %v1535 = vpop.f32.mrb[0].mxu0
  %v1536 = vadd.f32 %v1247, %v1535
  %v1537 = vpop.f32.mrb[0].mxu0
  %1538 = vmatprep.mubr.bf16.mxu0 %v688
  %1539 = vmatmul.mubr.bf16.gmra.mrb[0].mxu0 %v687
  %v1540 = vpop.f32.mrb[0].mxu0
  %v1541 = vadd.f32 %v1252, %v1540
  %v1542 = vpop.f32.mrb[0].mxu0
  %v1543 = vpop.f32.mrb[0].mxu0
  %v1544 = vadd.f32 %v1255, %v1543
  %v1545 = vpop.f32.mrb[0].mxu0
  %1546 = vmatprep.mubr.bf16.mxu0 %v692
  %1547 = vmatmul.mubr.bf16.gmra.mrb[0].mxu0 %v691
  %v1548 = vpop.f32.mrb[0].mxu0
  %v1549 = vadd.f32 %v1260, %v1548
  %v1550 = vpop.f32.mrb[0].mxu0
  %v1551 = vpop.f32.mrb[0].mxu0
  %v1552 = vadd.f32 %v1263, %v1551
  %v1553 = vpop.f32.mrb[0].mxu0
  %1554 = vmatprep.mubr.bf16.mxu0 %v696
  %1555 = vmatmul.mubr.bf16.gmra.mrb[0].mxu0 %v695
  %v1556 = vpop.f32.mrb[0].mxu0
  %v1557 = vadd.f32 %v1268, %v1556
  %v1558 = vpop.f32.mrb[0].mxu0
  %v1559 = vpop.f32.mrb[0].mxu0
  %v1560 = vadd.f32 %v1271, %v1559
  %v1561 = vpop.f32.mrb[0].mxu0
  %1562 = vmatprep.mubr.bf16.mxu0 %v700
  %1563 = vmatmul.mubr.bf16.gmra.mrb[0].mxu0 %v699
  %v1564 = vpop.f32.mrb[0].mxu0
  %v1565 = vadd.f32 %v1276, %v1564
  %v1566 = vpop.f32.mrb[0].mxu0
  %v1567 = vpop.f32.mrb[0].mxu0
  %v1568 = vadd.f32 %v1279, %v1567
  %v1569 = vpop.f32.mrb[0].mxu0
  %1570 = vmatprep.mubr.bf16.mxu0 %v704
  %1571 = vmatmul.mubr.bf16.gmra.mrb[0].mxu0 %v703
  %v1572 = vpop.f32.mrb[0].mxu0
  %v1573 = vadd.f32 %v1284, %v1572
  %v1574 = vpop.f32.mrb[0].mxu0
  %v1575 = vpop.f32.mrb[0].mxu0
  %v1576 = vadd.f32 %v1287, %v1575
  %v1577 = vpop.f32.mrb[0].mxu0
  %1578 = vmatprep.mubr.bf16.mxu0 %v708
  %1579 = vmatmul.mubr.bf16.gmra.mrb[0].mxu0 %v707
  %v1580 = vpop.f32.mrb[0].mxu0
  %v1581 = vadd.f32 %v1292, %v1580
  %v1582 = vpop.f32.mrb[0].mxu0
  %v1583 = vpop.f32.mrb[0].mxu0
  %v1584 = vadd.f32 %v1295, %v1583
  %v1585 = vpop.f32.mrb[0].mxu0
  %1586 = vmatprep.mubr.bf16.mxu0 %v712
  %1587 = vmatmul.mubr.bf16.gmra.mrb[0].mxu0 %v711
  %v1588 = vpop.f32.mrb[0].mxu0
  %v1589 = vadd.f32 %v1300, %v1588
  %v1590 = vpop.f32.mrb[0].mxu0
  %v1591 = vpop.f32.mrb[0].mxu0
  %v1592 = vadd.f32 %v1303, %v1591
  %v1593 = vpop.f32.mrb[0].mxu0
  %1594 = vmatprep.mubr.bf16.mxu0 %v716
  %1595 = vmatmul.mubr.bf16.gmra.mrb[0].mxu0 %v715
  %v1596 = vpop.f32.mrb[0].mxu0
  %v1597 = vadd.f32 %v1308, %v1596
  %v1598 = vpop.f32.mrb[0].mxu0
  %v1599 = vpop.f32.mrb[0].mxu0
  %v1600 = vadd.f32 %v1311, %v1599
  %v1601 = vpop.f32.mrb[0].mxu0
  %1602 = vmatprep.mubr.bf16.mxu0 %v720
  %1603 = vmatmul.mubr.bf16.gmra.mrb[0].mxu0 %v719
  %v1604 = vpop.f32.mrb[0].mxu0
  %v1605 = vadd.f32 %v1316, %v1604
  %v1606 = vpop.f32.mrb[0].mxu0
  %v1607 = vpop.f32.mrb[0].mxu0
  %v1608 = vadd.f32 %v1319, %v1607
  %v1609 = vpop.f32.mrb[0].mxu0
  %1610 = vmatprep.mubr.bf16.mxu0 %v724
  %1611 = vmatmul.mubr.bf16.gmra.mrb[0].mxu0 %v723
  %v1612 = vpop.f32.mrb[0].mxu0
  %v1613 = vadd.f32 %v1324, %v1612
  %v1614 = vpop.f32.mrb[0].mxu0
  %v1615 = vpop.f32.mrb[0].mxu0
  %v1616 = vadd.f32 %v1327, %v1615
  %v1617 = vpop.f32.mrb[0].mxu0
  %1618 = vmatprep.mubr.bf16.mxu0 %v728
  %1619 = vmatmul.mubr.bf16.gmra.mrb[0].mxu0 %v727
  %v1620 = vpop.f32.mrb[0].mxu0
  %v1621 = vadd.f32 %v1332, %v1620
  %v1622 = vpop.f32.mrb[0].mxu0
  %v1623 = vpop.f32.mrb[0].mxu0
  %v1624 = vadd.f32 %v1335, %v1623
  %v1625 = vpop.f32.mrb[0].mxu0
  %1626 = vdwg.mxu0
  %vm1627 = vcmask 261120
  %1628 = vst.msk [vmem:[%s3] sm:$0xff] %vm1627, %v1373
  %1629 = vst.msk [vmem:[%s3 + $0x8] sm:$0xff] %vm1627, %v1376
  %1630 = vst.msk [vmem:[%s3 + $0x10] sm:$0xff] %vm1627, %v1381
  %1631 = vst.msk [vmem:[%s3 + $0x18] sm:$0xff] %vm1627, %v1384
  %1632 = vst.msk [vmem:[%s3 + $0x20] sm:$0xff] %vm1627, %v1389
  %1633 = vst.msk [vmem:[%s3 + $0x28] sm:$0xff] %vm1627, %v1392
  %1634 = vst.msk [vmem:[%s3 + $0x30] sm:$0xff] %vm1627, %v1397
  %1635 = vst.msk [vmem:[%s3 + $0x38] sm:$0xff] %vm1627, %v1400
  %1636 = vst.msk [vmem:[%s3 + $0x40] sm:$0xff] %vm1627, %v1405
  %1637 = vst.msk [vmem:[%s3 + $0x48] sm:$0xff] %vm1627, %v1408
  %1638 = vst.msk [vmem:[%s3 + $0x50] sm:$0xff] %vm1627, %v1413
  %1639 = vst.msk [vmem:[%s3 + $0x58] sm:$0xff] %vm1627, %v1416
  %1640 = vst.msk [vmem:[%s3 + $0x60] sm:$0xff] %vm1627, %v1421
  %1641 = vst.msk [vmem:[%s3 + $0x68] sm:$0xff] %vm1627, %v1424
  %1642 = vst.msk [vmem:[%s3 + $0x70] sm:$0xff] %vm1627, %v1429
  %1643 = vst.msk [vmem:[%s3 + $0x78] sm:$0xff] %vm1627, %v1432
  %1644 = vst.msk [vmem:[%s3 + $0x80] sm:$0xff] %vm1627, %v1437
  %1645 = vst.msk [vmem:[%s3 + $0x88] sm:$0xff] %vm1627, %v1440
  %1646 = vst.msk [vmem:[%s3 + $0x90] sm:$0xff] %vm1627, %v1445
  %1647 = vst.msk [vmem:[%s3 + $0x98] sm:$0xff] %vm1627, %v1448
  %1648 = vst.msk [vmem:[%s3 + $0xa0] sm:$0xff] %vm1627, %v1453
  %1649 = vst.msk [vmem:[%s3 + $0xa8] sm:$0xff] %vm1627, %v1456
  %1650 = vst.msk [vmem:[%s3 + $0xb0] sm:$0xff] %vm1627, %v1461
  %1651 = vst.msk [vmem:[%s3 + $0xb8] sm:$0xff] %vm1627, %v1464
  %1652 = vst.msk [vmem:[%s3 + $0xc0] sm:$0xff] %vm1627, %v1469
  %1653 = vst.msk [vmem:[%s3 + $0xc8] sm:$0xff] %vm1627, %v1472
  %1654 = vst.msk [vmem:[%s3 + $0xd0] sm:$0xff] %vm1627, %v1477
  %1655 = vst.msk [vmem:[%s3 + $0xd8] sm:$0xff] %vm1627, %v1480
  %1656 = vst.msk [vmem:[%s3 + $0xe0] sm:$0xff] %vm1627, %v1485
  %1657 = vst.msk [vmem:[%s3 + $0xe8] sm:$0xff] %vm1627, %v1488
  %1658 = vst.msk [vmem:[%s3 + $0xf0] sm:$0xff] %vm1627, %v1493
  %1659 = vst.msk [vmem:[%s3 + $0xf8] sm:$0xff] %vm1627, %v1496
  %1660 = vst.msk [vmem:[%s3 + $0x100] sm:$0xff] %vm1627, %v1501
  %1661 = vst.msk [vmem:[%s3 + $0x108] sm:$0xff] %vm1627, %v1504
  %1662 = vst.msk [vmem:[%s3 + $0x110] sm:$0xff] %vm1627, %v1509
  %1663 = vst.msk [vmem:[%s3 + $0x118] sm:$0xff] %vm1627, %v1512
  %1664 = vst.msk [vmem:[%s3 + $0x120] sm:$0xff] %vm1627, %v1517
  %1665 = vst.msk [vmem:[%s3 + $0x128] sm:$0xff] %vm1627, %v1520
  %1666 = vst.msk [vmem:[%s3 + $0x130] sm:$0xff] %vm1627, %v1525
  %1667 = vst.msk [vmem:[%s3 + $0x138] sm:$0xff] %vm1627, %v1528
  %1668 = vst.msk [vmem:[%s3 + $0x140] sm:$0xff] %vm1627, %v1533
  %1669 = vst.msk [vmem:[%s3 + $0x148] sm:$0xff] %vm1627, %v1536
  %1670 = vst.msk [vmem:[%s3 + $0x150] sm:$0xff] %vm1627, %v1541
  %1671 = vst.msk [vmem:[%s3 + $0x158] sm:$0xff] %vm1627, %v1544
  %1672 = vst.msk [vmem:[%s3 + $0x160] sm:$0xff] %vm1627, %v1549
  %1673 = vst.msk [vmem:[%s3 + $0x168] sm:$0xff] %vm1627, %v1552
  %1674 = vst.msk [vmem:[%s3 + $0x170] sm:$0xff] %vm1627, %v1557
  %1675 = vst.msk [vmem:[%s3 + $0x178] sm:$0xff] %vm1627, %v1560
  %1676 = vst.msk [vmem:[%s3 + $0x180] sm:$0xff] %vm1627, %v1565
  %1677 = vst.msk [vmem:[%s3 + $0x188] sm:$0xff] %vm1627, %v1568
  %1678 = vst.msk [vmem:[%s3 + $0x190] sm:$0xff] %vm1627, %v1573
  %1679 = vst.msk [vmem:[%s3 + $0x198] sm:$0xff] %vm1627, %v1576
  %1680 = vst.msk [vmem:[%s3 + $0x1a0] sm:$0xff] %vm1627, %v1581
  %1681 = vst.msk [vmem:[%s3 + $0x1a8] sm:$0xff] %vm1627, %v1584
  %1682 = vst.msk [vmem:[%s3 + $0x1b0] sm:$0xff] %vm1627, %v1589
  %1683 = vst.msk [vmem:[%s3 + $0x1b8] sm:$0xff] %vm1627, %v1592
  %1684 = vst.msk [vmem:[%s3 + $0x1c0] sm:$0xff] %vm1627, %v1597
  %1685 = vst.msk [vmem:[%s3 + $0x1c8] sm:$0xff] %vm1627, %v1600
  %1686 = vst.msk [vmem:[%s3 + $0x1d0] sm:$0xff] %vm1627, %v1605
  %1687 = vst.msk [vmem:[%s3 + $0x1d8] sm:$0xff] %vm1627, %v1608
  %1688 = vst.msk [vmem:[%s3 + $0x1e0] sm:$0xff] %vm1627, %v1613
  %1689 = vst.msk [vmem:[%s3 + $0x1e8] sm:$0xff] %vm1627, %v1616
  %1690 = vst.msk [vmem:[%s3 + $0x1f0] sm:$0xff] %vm1627, %v1621
  %1691 = vst.msk [vmem:[%s3 + $0x1f8] sm:$0xff] %vm1627, %v1624
  %v1692 = vsel %vm1627, %v1373, 0.0
  %v1693 = vsel %vm1627, %v1376, 0.0
  %v1694 = vadd.f32 %v1692, %v1693
  %v1695 = vsel %vm1627, %v1381, 0.0
  %v1696 = vadd.f32 %v1694, %v1695
  %v1697 = vsel %vm1627, %v1384, 0.0
  %v1698 = vadd.f32 %v1696, %v1697
  %v1699 = vsel %vm1627, %v1389, 0.0
  %v1700 = vadd.f32 %v1698, %v1699
  %v1701 = vsel %vm1627, %v1392, 0.0
  %v1702 = vadd.f32 %v1700, %v1701
  %v1703 = vsel %vm1627, %v1397, 0.0
  %v1704 = vadd.f32 %v1702, %v1703
  %v1705 = vsel %vm1627, %v1400, 0.0
  %v1706 = vadd.f32 %v1704, %v1705
  %v1707 = vsel %vm1627, %v1405, 0.0
  %v1708 = vadd.f32 %v1706, %v1707
  %v1709 = vsel %vm1627, %v1408, 0.0
  %v1710 = vadd.f32 %v1708, %v1709
  %v1711 = vsel %vm1627, %v1413, 0.0
  %v1712 = vadd.f32 %v1710, %v1711
  %v1713 = vsel %vm1627, %v1416, 0.0
  %v1714 = vadd.f32 %v1712, %v1713
  %v1715 = vsel %vm1627, %v1421, 0.0
  %v1716 = vadd.f32 %v1714, %v1715
  %v1717 = vsel %vm1627, %v1424, 0.0
  %v1718 = vadd.f32 %v1716, %v1717
  %v1719 = vsel %vm1627, %v1429, 0.0
  %v1720 = vadd.f32 %v1718, %v1719
  %v1721 = vsel %vm1627, %v1432, 0.0
  %v1722 = vadd.f32 %v1720, %v1721
  %v1723 = vsel %vm1627, %v1437, 0.0
  %v1724 = vadd.f32 %v1722, %v1723
  %v1725 = vsel %vm1627, %v1440, 0.0
  %v1726 = vadd.f32 %v1724, %v1725
  %v1727 = vsel %vm1627, %v1445, 0.0
  %v1728 = vadd.f32 %v1726, %v1727
  %v1729 = vsel %vm1627, %v1448, 0.0
  %v1730 = vadd.f32 %v1728, %v1729
  %v1731 = vsel %vm1627, %v1453, 0.0
  %v1732 = vadd.f32 %v1730, %v1731
  %v1733 = vsel %vm1627, %v1456, 0.0
  %v1734 = vadd.f32 %v1732, %v1733
  %v1735 = vsel %vm1627, %v1461, 0.0
  %v1736 = vadd.f32 %v1734, %v1735
  %v1737 = vsel %vm1627, %v1464, 0.0
  %v1738 = vadd.f32 %v1736, %v1737
  %v1739 = vsel %vm1627, %v1469, 0.0
  %v1740 = vadd.f32 %v1738, %v1739
  %v1741 = vsel %vm1627, %v1472, 0.0
  %v1742 = vadd.f32 %v1740, %v1741
  %v1743 = vsel %vm1627, %v1477, 0.0
  %v1744 = vadd.f32 %v1742, %v1743
  %v1745 = vsel %vm1627, %v1480, 0.0
  %v1746 = vadd.f32 %v1744, %v1745
  %v1747 = vsel %vm1627, %v1485, 0.0
  %v1748 = vadd.f32 %v1746, %v1747
  %v1749 = vsel %vm1627, %v1488, 0.0
  %v1750 = vadd.f32 %v1748, %v1749
  %v1751 = vsel %vm1627, %v1493, 0.0
  %v1752 = vadd.f32 %v1750, %v1751
  %v1753 = vsel %vm1627, %v1496, 0.0
  %v1754 = vadd.f32 %v1752, %v1753
  %v1755 = vsel %vm1627, %v1501, 0.0
  %v1756 = vadd.f32 %v1754, %v1755
  %v1757 = vsel %vm1627, %v1504, 0.0
  %v1758 = vadd.f32 %v1756, %v1757
  %v1759 = vsel %vm1627, %v1509, 0.0
  %v1760 = vadd.f32 %v1758, %v1759
  %v1761 = vsel %vm1627, %v1512, 0.0
  %v1762 = vadd.f32 %v1760, %v1761
  %v1763 = vsel %vm1627, %v1517, 0.0
  %v1764 = vadd.f32 %v1762, %v1763
  %v1765 = vsel %vm1627, %v1520, 0.0
  %v1766 = vadd.f32 %v1764, %v1765
  %v1767 = vsel %vm1627, %v1525, 0.0
  %v1768 = vadd.f32 %v1766, %v1767
  %v1769 = vsel %vm1627, %v1528, 0.0
  %v1770 = vadd.f32 %v1768, %v1769
  %v1771 = vsel %vm1627, %v1533, 0.0
  %v1772 = vadd.f32 %v1770, %v1771
  %v1773 = vsel %vm1627, %v1536, 0.0
  %v1774 = vadd.f32 %v1772, %v1773
  %v1775 = vsel %vm1627, %v1541, 0.0
  %v1776 = vadd.f32 %v1774, %v1775
  %v1777 = vsel %vm1627, %v1544, 0.0
  %v1778 = vadd.f32 %v1776, %v1777
  %v1779 = vsel %vm1627, %v1549, 0.0
  %v1780 = vadd.f32 %v1778, %v1779
  %v1781 = vsel %vm1627, %v1552, 0.0
  %v1782 = vadd.f32 %v1780, %v1781
  %v1783 = vsel %vm1627, %v1557, 0.0
  %v1784 = vadd.f32 %v1782, %v1783
  %v1785 = vsel %vm1627, %v1560, 0.0
  %v1786 = vadd.f32 %v1784, %v1785
  %v1787 = vsel %vm1627, %v1565, 0.0
  %v1788 = vadd.f32 %v1786, %v1787
  %v1789 = vsel %vm1627, %v1568, 0.0
  %v1790 = vadd.f32 %v1788, %v1789
  %v1791 = vsel %vm1627, %v1573, 0.0
  %v1792 = vadd.f32 %v1790, %v1791
  %v1793 = vsel %vm1627, %v1576, 0.0
  %v1794 = vadd.f32 %v1792, %v1793
  %v1795 = vsel %vm1627, %v1581, 0.0
  %v1796 = vadd.f32 %v1794, %v1795
  %v1797 = vsel %vm1627, %v1584, 0.0
  %v1798 = vadd.f32 %v1796, %v1797
  %v1799 = vsel %vm1627, %v1589, 0.0
  %v1800 = vadd.f32 %v1798, %v1799
  %v1801 = vsel %vm1627, %v1592, 0.0
  %v1802 = vadd.f32 %v1800, %v1801
  %v1803 = vsel %vm1627, %v1597, 0.0
  %v1804 = vadd.f32 %v1802, %v1803
  %v1805 = vsel %vm1627, %v1600, 0.0
  %v1806 = vadd.f32 %v1804, %v1805
  %v1807 = vsel %vm1627, %v1605, 0.0
  %v1808 = vadd.f32 %v1806, %v1807
  %v1809 = vsel %vm1627, %v1608, 0.0
  %v1810 = vadd.f32 %v1808, %v1809
  %v1811 = vsel %vm1627, %v1613, 0.0
  %v1812 = vadd.f32 %v1810, %v1811
  %v1813 = vsel %vm1627, %v1616, 0.0
  %v1814 = vadd.f32 %v1812, %v1813
  %v1815 = vsel %vm1627, %v1621, 0.0
  %v1816 = vadd.f32 %v1814, %v1815
  %v1817 = vsel %vm1627, %v1624, 0.0
  %v1818 = vadd.f32 %v1816, %v1817
  %v1819 = vrot.slane %v1818, 4
  %v1820 = vadd.f32 %v1818, %v1819
  %v1821 = vrot.slane %v1820, 2
  %v1822 = vadd.f32 %v1820, %v1821
  %v1823 = vrot.slane %v1822, 1
  %v1824 = vadd.f32 %v1822, %v1823
  %vm1825 = vcmask 253952
  %1826 = vst.msk [vmem:[%s4] sm:$0x1] %vm1825, %v1824
  %v1827 = vmul.f32 %v1373, %v1373
  %v1828 = vmul.f32 %v1376, %v1376
  %v1829 = vmul.f32 %v1381, %v1381
  %v1830 = vmul.f32 %v1384, %v1384
  %v1831 = vmul.f32 %v1389, %v1389
  %v1832 = vmul.f32 %v1392, %v1392
  %v1833 = vmul.f32 %v1397, %v1397
  %v1834 = vmul.f32 %v1400, %v1400
  %v1835 = vmul.f32 %v1405, %v1405
  %v1836 = vmul.f32 %v1408, %v1408
  %v1837 = vmul.f32 %v1413, %v1413
  %v1838 = vmul.f32 %v1416, %v1416
  %v1839 = vmul.f32 %v1421, %v1421
  %v1840 = vmul.f32 %v1424, %v1424
  %v1841 = vmul.f32 %v1429, %v1429
  %v1842 = vmul.f32 %v1432, %v1432
  %v1843 = vmul.f32 %v1437, %v1437
  %v1844 = vmul.f32 %v1440, %v1440
  %v1845 = vmul.f32 %v1445, %v1445
  %v1846 = vmul.f32 %v1448, %v1448
  %v1847 = vmul.f32 %v1453, %v1453
  %v1848 = vmul.f32 %v1456, %v1456
  %v1849 = vmul.f32 %v1461, %v1461
  %v1850 = vmul.f32 %v1464, %v1464
  %v1851 = vmul.f32 %v1469, %v1469
  %v1852 = vmul.f32 %v1472, %v1472
  %v1853 = vmul.f32 %v1477, %v1477
  %v1854 = vmul.f32 %v1480, %v1480
  %v1855 = vmul.f32 %v1485, %v1485
  %v1856 = vmul.f32 %v1488, %v1488
  %v1857 = vmul.f32 %v1493, %v1493
  %v1858 = vmul.f32 %v1496, %v1496
  %v1859 = vmul.f32 %v1501, %v1501
  %v1860 = vmul.f32 %v1504, %v1504
  %v1861 = vmul.f32 %v1509, %v1509
  %v1862 = vmul.f32 %v1512, %v1512
  %v1863 = vmul.f32 %v1517, %v1517
  %v1864 = vmul.f32 %v1520, %v1520
  %v1865 = vmul.f32 %v1525, %v1525
  %v1866 = vmul.f32 %v1528, %v1528
  %v1867 = vmul.f32 %v1533, %v1533
  %v1868 = vmul.f32 %v1536, %v1536
  %v1869 = vmul.f32 %v1541, %v1541
  %v1870 = vmul.f32 %v1544, %v1544
  %v1871 = vmul.f32 %v1549, %v1549
  %v1872 = vmul.f32 %v1552, %v1552
  %v1873 = vmul.f32 %v1557, %v1557
  %v1874 = vmul.f32 %v1560, %v1560
  %v1875 = vmul.f32 %v1565, %v1565
  %v1876 = vmul.f32 %v1568, %v1568
  %v1877 = vmul.f32 %v1573, %v1573
  %v1878 = vmul.f32 %v1576, %v1576
  %v1879 = vmul.f32 %v1581, %v1581
  %v1880 = vmul.f32 %v1584, %v1584
  %v1881 = vmul.f32 %v1589, %v1589
  %v1882 = vmul.f32 %v1592, %v1592
  %v1883 = vmul.f32 %v1597, %v1597
  %v1884 = vmul.f32 %v1600, %v1600
  %v1885 = vmul.f32 %v1605, %v1605
  %v1886 = vmul.f32 %v1608, %v1608
  %v1887 = vmul.f32 %v1613, %v1613
  %v1888 = vmul.f32 %v1616, %v1616
  %v1889 = vmul.f32 %v1621, %v1621
  %v1890 = vmul.f32 %v1624, %v1624
  %v1891 = vsel %vm1627, %v1827, 0.0
  %v1892 = vsel %vm1627, %v1828, 0.0
  %v1893 = vadd.f32 %v1891, %v1892
  %v1894 = vsel %vm1627, %v1829, 0.0
  %v1895 = vadd.f32 %v1893, %v1894
  %v1896 = vsel %vm1627, %v1830, 0.0
  %v1897 = vadd.f32 %v1895, %v1896
  %v1898 = vsel %vm1627, %v1831, 0.0
  %v1899 = vadd.f32 %v1897, %v1898
  %v1900 = vsel %vm1627, %v1832, 0.0
  %v1901 = vadd.f32 %v1899, %v1900
  %v1902 = vsel %vm1627, %v1833, 0.0
  %v1903 = vadd.f32 %v1901, %v1902
  %v1904 = vsel %vm1627, %v1834, 0.0
  %v1905 = vadd.f32 %v1903, %v1904
  %v1906 = vsel %vm1627, %v1835, 0.0
  %v1907 = vadd.f32 %v1905, %v1906
  %v1908 = vsel %vm1627, %v1836, 0.0
  %v1909 = vadd.f32 %v1907, %v1908
  %v1910 = vsel %vm1627, %v1837, 0.0
  %v1911 = vadd.f32 %v1909, %v1910
  %v1912 = vsel %vm1627, %v1838, 0.0
  %v1913 = vadd.f32 %v1911, %v1912
  %v1914 = vsel %vm1627, %v1839, 0.0
  %v1915 = vadd.f32 %v1913, %v1914
  %v1916 = vsel %vm1627, %v1840, 0.0
  %v1917 = vadd.f32 %v1915, %v1916
  %v1918 = vsel %vm1627, %v1841, 0.0
  %v1919 = vadd.f32 %v1917, %v1918
  %v1920 = vsel %vm1627, %v1842, 0.0
  %v1921 = vadd.f32 %v1919, %v1920
  %v1922 = vsel %vm1627, %v1843, 0.0
  %v1923 = vadd.f32 %v1921, %v1922
  %v1924 = vsel %vm1627, %v1844, 0.0
  %v1925 = vadd.f32 %v1923, %v1924
  %v1926 = vsel %vm1627, %v1845, 0.0
  %v1927 = vadd.f32 %v1925, %v1926
  %v1928 = vsel %vm1627, %v1846, 0.0
  %v1929 = vadd.f32 %v1927, %v1928
  %v1930 = vsel %vm1627, %v1847, 0.0
  %v1931 = vadd.f32 %v1929, %v1930
  %v1932 = vsel %vm1627, %v1848, 0.0
  %v1933 = vadd.f32 %v1931, %v1932
  %v1934 = vsel %vm1627, %v1849, 0.0
  %v1935 = vadd.f32 %v1933, %v1934
  %v1936 = vsel %vm1627, %v1850, 0.0
  %v1937 = vadd.f32 %v1935, %v1936
  %v1938 = vsel %vm1627, %v1851, 0.0
  %v1939 = vadd.f32 %v1937, %v1938
  %v1940 = vsel %vm1627, %v1852, 0.0
  %v1941 = vadd.f32 %v1939, %v1940
  %v1942 = vsel %vm1627, %v1853, 0.0
  %v1943 = vadd.f32 %v1941, %v1942
  %v1944 = vsel %vm1627, %v1854, 0.0
  %v1945 = vadd.f32 %v1943, %v1944
  %v1946 = vsel %vm1627, %v1855, 0.0
  %v1947 = vadd.f32 %v1945, %v1946
  %v1948 = vsel %vm1627, %v1856, 0.0
  %v1949 = vadd.f32 %v1947, %v1948
  %v1950 = vsel %vm1627, %v1857, 0.0
  %v1951 = vadd.f32 %v1949, %v1950
  %v1952 = vsel %vm1627, %v1858, 0.0
  %v1953 = vadd.f32 %v1951, %v1952
  %v1954 = vsel %vm1627, %v1859, 0.0
  %v1955 = vadd.f32 %v1953, %v1954
  %v1956 = vsel %vm1627, %v1860, 0.0
  %v1957 = vadd.f32 %v1955, %v1956
  %v1958 = vsel %vm1627, %v1861, 0.0
  %v1959 = vadd.f32 %v1957, %v1958
  %v1960 = vsel %vm1627, %v1862, 0.0
  %v1961 = vadd.f32 %v1959, %v1960
  %v1962 = vsel %vm1627, %v1863, 0.0
  %v1963 = vadd.f32 %v1961, %v1962
  %v1964 = vsel %vm1627, %v1864, 0.0
  %v1965 = vadd.f32 %v1963, %v1964
  %v1966 = vsel %vm1627, %v1865, 0.0
  %v1967 = vadd.f32 %v1965, %v1966
  %v1968 = vsel %vm1627, %v1866, 0.0
  %v1969 = vadd.f32 %v1967, %v1968
  %v1970 = vsel %vm1627, %v1867, 0.0
  %v1971 = vadd.f32 %v1969, %v1970
  %v1972 = vsel %vm1627, %v1868, 0.0
  %v1973 = vadd.f32 %v1971, %v1972
  %v1974 = vsel %vm1627, %v1869, 0.0
  %v1975 = vadd.f32 %v1973, %v1974
  %v1976 = vsel %vm1627, %v1870, 0.0
  %v1977 = vadd.f32 %v1975, %v1976
  %v1978 = vsel %vm1627, %v1871, 0.0
  %v1979 = vadd.f32 %v1977, %v1978
  %v1980 = vsel %vm1627, %v1872, 0.0
  %v1981 = vadd.f32 %v1979, %v1980
  %v1982 = vsel %vm1627, %v1873, 0.0
  %v1983 = vadd.f32 %v1981, %v1982
  %v1984 = vsel %vm1627, %v1874, 0.0
  %v1985 = vadd.f32 %v1983, %v1984
  %v1986 = vsel %vm1627, %v1875, 0.0
  %v1987 = vadd.f32 %v1985, %v1986
  %v1988 = vsel %vm1627, %v1876, 0.0
  %v1989 = vadd.f32 %v1987, %v1988
  %v1990 = vsel %vm1627, %v1877, 0.0
  %v1991 = vadd.f32 %v1989, %v1990
  %v1992 = vsel %vm1627, %v1878, 0.0
  %v1993 = vadd.f32 %v1991, %v1992
  %v1994 = vsel %vm1627, %v1879, 0.0
  %v1995 = vadd.f32 %v1993, %v1994
  %v1996 = vsel %vm1627, %v1880, 0.0
  %v1997 = vadd.f32 %v1995, %v1996
  %v1998 = vsel %vm1627, %v1881, 0.0
  %v1999 = vadd.f32 %v1997, %v1998
  %v2000 = vsel %vm1627, %v1882, 0.0
  %v2001 = vadd.f32 %v1999, %v2000
  %v2002 = vsel %vm1627, %v1883, 0.0
  %v2003 = vadd.f32 %v2001, %v2002
  %v2004 = vsel %vm1627, %v1884, 0.0
  %v2005 = vadd.f32 %v2003, %v2004
  %v2006 = vsel %vm1627, %v1885, 0.0
  %v2007 = vadd.f32 %v2005, %v2006
  %v2008 = vsel %vm1627, %v1886, 0.0
  %v2009 = vadd.f32 %v2007, %v2008
  %v2010 = vsel %vm1627, %v1887, 0.0
  %v2011 = vadd.f32 %v2009, %v2010
  %v2012 = vsel %vm1627, %v1888, 0.0
  %v2013 = vadd.f32 %v2011, %v2012
  %v2014 = vsel %vm1627, %v1889, 0.0
  %v2015 = vadd.f32 %v2013, %v2014
  %v2016 = vsel %vm1627, %v1890, 0.0
  %v2017 = vadd.f32 %v2015, %v2016
  %v2018 = vrot.slane %v2017, 4
  %v2019 = vadd.f32 %v2017, %v2018
  %v2020 = vrot.slane %v2019, 2
  %v2021 = vadd.f32 %v2019, %v2020
  %v2022 = vrot.slane %v2021, 1
  %v2023 = vadd.f32 %v2021, %v2022
  %2024 = vst.msk [vmem:[%s5] sm:$0x1] %vm1825, %v2023
  // Predicated region
  $region14: #{_lambda_.45} parent=0 // pred_check
    _
  $region15: #{_lambda_.45} parent=0 // pred_check_branch
    %2026 = sbr.rel (0) target = $region17
  $region16: #{_lambda_.45} parent=0 // pred_region
    _
  $region17: #{_lambda_.45} parent=0 // pred_fallthru
    _
  // Predicated region
  $region18: #{_lambda_.45} parent=0 // pred_check
    _
  $region19: #{_lambda_.45} parent=0 // pred_check_branch
    %2028 = sbr.rel (0) target = $region21
  $region20: #{_lambda_.45} parent=0 // pred_region
    _
  $region21: #{_lambda_.45} parent=0 // pred_fallthru
    _
  // Predicated region
  $region22: #{_lambda_.45} parent=0 // pred_check
    _
  $region23: #{_lambda_.45} parent=0 // pred_check_branch
    %2030 = sbr.rel (0) target = $region25
  $region24: #{_lambda_.45} parent=0 // pred_region
    _
  $region25: #{_lambda_.45} parent=0 // pred_fallthru
    _
  // Predicated region
  $region26: #{_lambda_.45} parent=0 // pred_check
    _
  $region27: #{_lambda_.45} parent=0 // pred_check_branch
    %2032 = sbr.rel (0) target = $region29
  $region28: #{_lambda_.45} parent=0 // pred_region
    _
  $region29: #{_lambda_.45} parent=0 // pred_fallthru
    _
  // Predicated region
  $region30: #{_lambda_.45} parent=0 // pred_check
    _
  $region31: #{_lambda_.45} parent=0 // pred_check_branch
    %2034 = sbr.rel (0) target = $region33
  $region32: #{_lambda_.45} parent=0 // pred_region
    _
  $region33: #{_lambda_.45} parent=0 // pred_fallthru
    _
  // Predicated region
  $region34: #{_lambda_.45} parent=0 // pred_check
    _
  $region35: #{_lambda_.45} parent=0 // pred_check_branch
    %2036 = sbr.rel (0) target = $region37
  $region36: #{_lambda_.45} parent=0 // pred_region
    _
  $region37: #{_lambda_.45} parent=0 // pred_fallthru
    _

// kernel: _lambda_.46
$region0: #{_lambda_.46}
  #allocation0 [shape = 'u32[]', space=smem, size = 0x4, offset = 0x4, fixed_abs, tag = 'smem constant byte address 0x4 - core index']
  #allocation1 [shape = 'u32[144,128]{1,0:T(1,128)}', space=vmem, size = 0x12000, scoped, tag = 'internal scratch']
  %s0 = inlined_call_operand.vmem [shape: f32[128,128], index: 0, kind: input, shape index: {}]
  %s1 = inlined_call_operand.vmem [shape: f32[1,128], index: 1, kind: input, shape index: {}]
  %s2 = inlined_call_operand.vmem [shape: f32[1,128], index: 2, kind: input, shape index: {}]
  %s3 = inlined_call_operand.vmem [shape: f32[128,128], index: 3, kind: output, shape index: {}]
  %s4 = sld [smem:[#allocation0]]
  $region22: #{_lambda_.46} parent=0
    _
  %s6 = ssub.s32 1, %s4
  %s7 = scalar_select 0, %s6, %s4
  // Predicated region
  $region2: #{_lambda_.46} parent=0 // pred_check
    _
  $region3: #{_lambda_.46} parent=0 // pred_check_branch
    %9 = sbr.rel (0) target = $region5
  $region4: #{_lambda_.46} parent=0 // pred_region
    _
  $region5: #{_lambda_.46} parent=0 // pred_fallthru
    _
  // Predicated region
  $region6: #{_lambda_.46} parent=0 // pred_check
    _
  $region7: #{_lambda_.46} parent=0 // pred_check_branch
    %11 = sbr.rel (0) target = $region9
  $region8: #{_lambda_.46} parent=0 // pred_region
    _
  $region9: #{_lambda_.46} parent=0 // pred_fallthru
    _
  // Predicated region
  $region10: #{_lambda_.46} parent=0 // pred_check
    _
  $region11: #{_lambda_.46} parent=0 // pred_check_branch
    %13 = sbr.rel (0) target = $region13
  $region12: #{_lambda_.46} parent=0 // pred_region
    _
  $region13: #{_lambda_.46} parent=0 // pred_fallthru
    _
  %v14 = vld [vmem:[%s0] sm:$0xff]
  %v15 = vld [vmem:[%s0 + $0x8] sm:$0xff]
  %v16 = vld [vmem:[%s0 + $0x10] sm:$0xff]
  %v17 = vld [vmem:[%s0 + $0x18] sm:$0xff]
  %v18 = vld [vmem:[%s0 + $0x20] sm:$0xff]
  %v19 = vld [vmem:[%s0 + $0x28] sm:$0xff]
  %v20 = vld [vmem:[%s0 + $0x30] sm:$0xff]
  %v21 = vld [vmem:[%s0 + $0x38] sm:$0xff]
  %v22 = vld [vmem:[%s0 + $0x40] sm:$0xff]
  %v23 = vld [vmem:[%s0 + $0x48] sm:$0xff]
  %v24 = vld [vmem:[%s0 + $0x50] sm:$0xff]
  %v25 = vld [vmem:[%s0 + $0x58] sm:$0xff]
  %v26 = vld [vmem:[%s0 + $0x60] sm:$0xff]
  %v27 = vld [vmem:[%s0 + $0x68] sm:$0xff]
  %v28 = vld [vmem:[%s0 + $0x70] sm:$0xff]
  %v29 = vld [vmem:[%s0 + $0x78] sm:$0xff]
  %v30 = vld [vmem:[%s1] sm:$0x1]
  %v32 = vlaneseq
  %v33 = vshrl.u32 %v32, 7
  %v34 = vsub.s32 0, %v33
  %v35 = vrot.slane %v30, %v34
  %v37 = vmul.f32 %v14, %v35
  %v38 = vmul.f32 %v15, %v35
  %v39 = vmul.f32 %v16, %v35
  %v40 = vmul.f32 %v17, %v35
  %v41 = vmul.f32 %v18, %v35
  %v42 = vmul.f32 %v19, %v35
  %v43 = vmul.f32 %v20, %v35
  %v44 = vmul.f32 %v21, %v35
  %v45 = vmul.f32 %v22, %v35
  %v46 = vmul.f32 %v23, %v35
  %v47 = vmul.f32 %v24, %v35
  %v48 = vmul.f32 %v25, %v35
  %v49 = vmul.f32 %v26, %v35
  %v50 = vmul.f32 %v27, %v35
  %v51 = vmul.f32 %v28, %v35
  %v52 = vmul.f32 %v29, %v35
  %v53 = vld [vmem:[%s2] sm:$0x1]
  %v55 = vlaneseq
  %v56 = vshrl.u32 %v55, 7
  %v57 = vsub.s32 0, %v56
  %v58 = vrot.slane %v53, %v57
  %v60 = vadd.f32 %v37, %v58
  %v61 = vadd.f32 %v38, %v58
  %v62 = vadd.f32 %v39, %v58
  %v63 = vadd.f32 %v40, %v58
  %v64 = vadd.f32 %v41, %v58
  %v65 = vadd.f32 %v42, %v58
  %v66 = vadd.f32 %v43, %v58
  %v67 = vadd.f32 %v44, %v58
  %v68 = vadd.f32 %v45, %v58
  %v69 = vadd.f32 %v46, %v58
  %v70 = vadd.f32 %v47, %v58
  %v71 = vadd.f32 %v48, %v58
  %v72 = vadd.f32 %v49, %v58
  %v73 = vadd.f32 %v50, %v58
  %v74 = vadd.f32 %v51, %v58
  %v75 = vadd.f32 %v52, %v58
  %76 = vst [vmem:[%s3] sm:$0xff] %v60
  %77 = vst [vmem:[%s3 + $0x8] sm:$0xff] %v61
  %78 = vst [vmem:[%s3 + $0x10] sm:$0xff] %v62
  %79 = vst [vmem:[%s3 + $0x18] sm:$0xff] %v63
  %80 = vst [vmem:[%s3 + $0x20] sm:$0xff] %v64
  %81 = vst [vmem:[%s3 + $0x28] sm:$0xff] %v65
  %82 = vst [vmem:[%s3 + $0x30] sm:$0xff] %v66
  %83 = vst [vmem:[%s3 + $0x38] sm:$0xff] %v67
  %84 = vst [vmem:[%s3 + $0x40] sm:$0xff] %v68
  %85 = vst [vmem:[%s3 + $0x48] sm:$0xff] %v69
  %86 = vst [vmem:[%s3 + $0x50] sm:$0xff] %v70
  %87 = vst [vmem:[%s3 + $0x58] sm:$0xff] %v71
  %88 = vst [vmem:[%s3 + $0x60] sm:$0xff] %v72
  %89 = vst [vmem:[%s3 + $0x68] sm:$0xff] %v73
  %90 = vst [vmem:[%s3 + $0x70] sm:$0xff] %v74
  %91 = vst [vmem:[%s3 + $0x78] sm:$0xff] %v75
  // Predicated region
  $region14: #{_lambda_.46} parent=0 // pred_check
    _
  $region15: #{_lambda_.46} parent=0 // pred_check_branch
    %93 = sbr.rel (0) target = $region17
  $region16: #{_lambda_.46} parent=0 // pred_region
    _
  $region17: #{_lambda_.46} parent=0 // pred_fallthru
    _
  // Predicated region
  $region18: #{_lambda_.46} parent=0 // pred_check
    _
  $region19: #{_lambda_.46} parent=0 // pred_check_branch
    %95 = sbr.rel (0) target = $region21
  $region20: #{_lambda_.46} parent=0 // pred_region
    _
  $region21: #{_lambda_.46} parent=0 // pred_fallthru
    _

// kernel: _lambda_.47
$region0: #{_lambda_.47}
  #allocation0 [shape = 'u32[]', space=smem, size = 0x4, offset = 0x4, fixed_abs, tag = 'smem constant byte address 0x4 - core index']
  #allocation1 [shape = 'u32[144,128]{1,0:T(1,128)}', space=vmem, size = 0x12000, scoped, tag = 'internal scratch']
  %s0 = inlined_call_operand.vmem [shape: bf16[2048,512], index: 0, kind: input, shape index: {}]
  %s1 = inlined_call_operand.vmem [shape: bf16[512,3], index: 1, kind: input, shape index: {}]
  %s2 = inlined_call_operand.vmem [shape: f32[1,3], index: 2, kind: input, shape index: {}]
  %s3 = inlined_call_operand.vmem [shape: f32[2048,3], index: 3, kind: output, shape index: {}]
  %s4 = sld [smem:[#allocation0]]
  $region45: #{_lambda_.47} parent=0
    _
  %s6 = ssub.s32 1, %s4
  %s7 = scalar_select 0, %s6, %s4
  loop: start=0, step=1, limit=4
  $region2: #{_lambda_.47} parent=0 // loop_pre_header
    _
  $region3: #{_lambda_.47} parent=0 // loop_header
    %s9 = sphi 0, %s13
    %p10 = scmp.ge.s32.totalorder %s9, 4
    %s19 = sphi 0, %s21
    %s22 = sphi 0, %s19
    %s23 = sphi 0, %s22
    %s39 = sphi 0, %s23
    %s43 = sphi 0, %s43
    %s45 = sphi 0, %s43
    %s46 = sphi 0, %s45
    %s60 = sphi 0, %s46
    %s64 = sphi 0, %s64
    %s66 = sphi 0, %s64
    %s67 = sphi 0, %s66
    %s81 = sphi 0, %s67
    %s87 = sphi 0, %s89
    %s90 = sphi 0, %s87
    %s91 = sphi 0, %s90
    %s107 = sphi 0, %s91
  $region4: #{_lambda_.47} parent=0 // loop_header_branch
    %12 = sbr.rel (%p10) target = $region8
  $region5: #{_lambda_.47} parent=0 // loop_body
    %s14 = ssub.s32 %s9, 1
    %s15 = ssub.s32 %s9, 2
    %s16 = sadd.s32 %s9, 1
    %s17 = ssub.s32 %s9, %s16
    %p18 = scmp.eq.s32.totalorder %s17, 0
    %s20 = sadd.s32 %s19, 1
    %s21 = scalar_select %p18, %s19, %s20
    %p24 = pneg %p18
    %p25 = scmp.eq.s32.totalorder %s9, 1
    %p26 = por %p24, %p25
    %p27 = scmp.ne.s32.totalorder %s19, %s22
    %p28 = scmp.eq.s32.totalorder %s9, 0
    %p29 = por %p27, %p28
    %p30 = scmp.ne.s32.totalorder %s19, %s22
    %p31 = scmp.eq.s32.totalorder %s14, 1
    %p32 = por %p30, %p31
    %p33 = scmp.ne.s32.totalorder %s22, %s23
    %p34 = scmp.eq.s32.totalorder %s14, 0
    %p35 = por %p33, %p34
    %p36 = scmp.ne.s32.totalorder %s22, %s23
    %p37 = scmp.eq.s32.totalorder %s15, 1
    %p38 = por %p36, %p37
    %p40 = scmp.ne.s32.totalorder %s23, %s39
    %p41 = scmp.eq.s32.totalorder %s15, 0
    %p42 = por %p40, %p41
    %s44 = sadd.s32 %s43, 1
    %p47 = scmp.eq.s32.totalorder %s9, 1
    %p48 = scmp.ne.s32.totalorder %s43, %s45
    %p49 = scmp.eq.s32.totalorder %s9, 0
    %p50 = por %p48, %p49
    %p51 = scmp.ne.s32.totalorder %s43, %s45
    %p52 = scmp.eq.s32.totalorder %s14, 1
    %p53 = por %p51, %p52
    %p54 = scmp.ne.s32.totalorder %s45, %s46
    %p55 = scmp.eq.s32.totalorder %s14, 0
    %p56 = por %p54, %p55
    %p57 = scmp.ne.s32.totalorder %s45, %s46
    %p58 = scmp.eq.s32.totalorder %s15, 1
    %p59 = por %p57, %p58
    %p61 = scmp.ne.s32.totalorder %s46, %s60
    %p62 = scmp.eq.s32.totalorder %s15, 0
    %p63 = por %p61, %p62
    %s65 = sadd.s32 %s64, 1
    %p68 = scmp.eq.s32.totalorder %s9, 1
    %p69 = scmp.ne.s32.totalorder %s64, %s66
    %p70 = scmp.eq.s32.totalorder %s9, 0
    %p71 = por %p69, %p70
    %p72 = scmp.ne.s32.totalorder %s64, %s66
    %p73 = scmp.eq.s32.totalorder %s14, 1
    %p74 = por %p72, %p73
    %p75 = scmp.ne.s32.totalorder %s66, %s67
    %p76 = scmp.eq.s32.totalorder %s14, 0
    %p77 = por %p75, %p76
    %p78 = scmp.ne.s32.totalorder %s66, %s67
    %p79 = scmp.eq.s32.totalorder %s15, 1
    %p80 = por %p78, %p79
    %p82 = scmp.ne.s32.totalorder %s67, %s81
    %p83 = scmp.eq.s32.totalorder %s15, 0
    %p84 = por %p82, %p83
    %s85 = ssub.s32 %s9, %s16
    %p86 = scmp.eq.s32.totalorder %s85, 0
    %s88 = sadd.s32 %s87, 1
    %s89 = scalar_select %p86, %s87, %s88
    %p92 = pneg %p86
    %p93 = scmp.eq.s32.totalorder %s9, 1
    %p94 = por %p92, %p93
    %p95 = scmp.ne.s32.totalorder %s87, %s90
    %p96 = scmp.eq.s32.totalorder %s9, 0
    %p97 = por %p95, %p96
    %p98 = scmp.ne.s32.totalorder %s87, %s90
    %p99 = scmp.eq.s32.totalorder %s14, 1
    %p100 = por %p98, %p99
    %p101 = scmp.ne.s32.totalorder %s90, %s91
    %p102 = scmp.eq.s32.totalorder %s14, 0
    %p103 = por %p101, %p102
    %p104 = scmp.ne.s32.totalorder %s90, %s91
    %p105 = scmp.eq.s32.totalorder %s15, 1
    %p106 = por %p104, %p105
    %p108 = scmp.ne.s32.totalorder %s91, %s107
    %p109 = scmp.eq.s32.totalorder %s15, 0
    %p110 = por %p108, %p109
    %p111 = scmp.le.s32.totalorder 1, %s9
    %p112 = scmp.lt.s32.totalorder %s9, 3
    %p113 = pnand %p111, %p112
    %p114 = pneg %p113
    // Predicated region
    $region9: #{_lambda_.47} parent=5 // pred_check
      _
    $region10: #{_lambda_.47} parent=5 // pred_check_branch
      %116 = sbr.rel (%p113) target = $region12
    $region11: #{_lambda_.47} parent=5 // pred_region
      %s117 = ssub.s32 %s9, 1
      // Predicated region
      $region13: #{_lambda_.47} parent=11 // pred_check
        %p118 = pneg %p56
      $region14: #{_lambda_.47} parent=11 // pred_check_branch
        %120 = sbr.rel (%p118) target = $region16
      $region15: #{_lambda_.47} parent=11 // pred_region
        _
      $region16: #{_lambda_.47} parent=11 // pred_fallthru
        _
      // Predicated region
      $region17: #{_lambda_.47} parent=11 // pred_check
        %p121 = pneg %p77
      $region18: #{_lambda_.47} parent=11 // pred_check_branch
        %123 = sbr.rel (%p121) target = $region20
      $region19: #{_lambda_.47} parent=11 // pred_region
        _
      $region20: #{_lambda_.47} parent=11 // pred_fallthru
        _
    $region12: #{_lambda_.47} parent=5 // pred_fallthru
      _
    %p124 = scmp.lt.s32.totalorder %s9, 2
    // Predicated region
    $region21: #{_lambda_.47} parent=5 // pred_check
      %p125 = pneg %p124
    $region22: #{_lambda_.47} parent=5 // pred_check_branch
      %127 = sbr.rel (%p125) target = $region24
    $region23: #{_lambda_.47} parent=5 // pred_region
      // Predicated region
      $region25: #{_lambda_.47} parent=23 // pred_check
        %p128 = pneg %p29
      $region26: #{_lambda_.47} parent=23 // pred_check_branch
        %130 = sbr.rel (%p128) target = $region28
      $region27: #{_lambda_.47} parent=23 // pred_region
        %s131 = smul.u32 128, %s9
        %p132 = scmp.lt.s32.totalorder %s131, 255
        %s133 = scalar_select %p132, %s131, 255
        %s134 = smul.addr %s133, 4
        %s135 = smul.addr %s134, 4
        %s136 = scalar_lea.vmem %s0, %s135
        %s137 = smul.u32 128, %s9
      $region28: #{_lambda_.47} parent=23 // pred_fallthru
        _
    $region24: #{_lambda_.47} parent=5 // pred_fallthru
      _
    %p138 = scmp.le.s32.totalorder 1, %s9
    %p139 = scmp.lt.s32.totalorder %s9, 3
    %p140 = pnand %p138, %p139
    %p141 = pneg %p140
    // Predicated region
    $region29: #{_lambda_.47} parent=5 // pred_check
      _
    $region30: #{_lambda_.47} parent=5 // pred_check_branch
      %143 = sbr.rel (%p140) target = $region32
    $region31: #{_lambda_.47} parent=5 // pred_region
      %s144 = ssub.s32 %s9, 1
      %s145 = smul.u32 128, %s14
      %p146 = scmp.lt.s32.totalorder %s145, 255
      %s147 = scalar_select %p146, %s145, 255
      %s148 = smul.addr %s147, 4
      %s149 = smul.addr %s148, 4
      %s150 = scalar_lea.vmem %s0, %s149
      %p151 = pneg %p35
      %p152 = pneg %p32
      %p153 = pneg %p56
      %p154 = pneg %p53
      %p155 = pneg %p77
      %p156 = pneg %p74
      %p157 = pneg %p103
      %p158 = pneg %p100
      %s159 = smul.u32 128, %s14
      %p160 = scmp.lt.s32.totalorder %s159, 255
      %s161 = scalar_select %p160, %s159, 255
      %s162 = smul.addr %s161, 8
      %s163 = scalar_lea.vmem %s3, %s162
      %s164 = smul.u32 128, %s14
      %p165 = scmp.lt.s32.totalorder %s164, 255
      %s166 = scalar_select %p165, %s164, 255
      %s167 = smul.addr %s166, 4
      %s168 = smul.addr %s167, 4
      %s169 = scalar_lea.vmem %s0, %s168
      %s170 = smul.u32 128, %s14
      %s171 = smul.u32 128, %s14
      %p172 = scmp.lt.s32.totalorder %s171, 255
      %s173 = scalar_select %p172, %s171, 255
      %s174 = smul.addr %s173, 8
      %s175 = scalar_lea.vmem %s3, %s174
      %s176 = smul.u32 128, %s14
      %v178 = vld [vmem:[%s169] sm:$0xff]
      %v179 = vld [vmem:[%s169 + $0x8] sm:$0xff]
      %v180 = vld [vmem:[%s169 + $0x10] sm:$0xff]
      %v181 = vld [vmem:[%s169 + $0x18] sm:$0xff]
      %v182 = vld [vmem:[%s169 + $0x20] sm:$0xff]
      %v183 = vld [vmem:[%s169 + $0x28] sm:$0xff]
      %v184 = vld [vmem:[%s169 + $0x30] sm:$0xff]
      %v185 = vld [vmem:[%s169 + $0x38] sm:$0xff]
      %v186 = vld [vmem:[%s169 + $0x40] sm:$0xff]
      %v187 = vld [vmem:[%s169 + $0x48] sm:$0xff]
      %v188 = vld [vmem:[%s169 + $0x50] sm:$0xff]
      %v189 = vld [vmem:[%s169 + $0x58] sm:$0xff]
      %v190 = vld [vmem:[%s169 + $0x60] sm:$0xff]
      %v191 = vld [vmem:[%s169 + $0x68] sm:$0xff]
      %v192 = vld [vmem:[%s169 + $0x70] sm:$0xff]
      %v193 = vld [vmem:[%s169 + $0x78] sm:$0xff]
      %v194 = vld [vmem:[%s169 + $0x80] sm:$0xff]
      %v195 = vld [vmem:[%s169 + $0x88] sm:$0xff]
      %v196 = vld [vmem:[%s169 + $0x90] sm:$0xff]
      %v197 = vld [vmem:[%s169 + $0x98] sm:$0xff]
      %v198 = vld [vmem:[%s169 + $0xa0] sm:$0xff]
      %v199 = vld [vmem:[%s169 + $0xa8] sm:$0xff]
      %v200 = vld [vmem:[%s169 + $0xb0] sm:$0xff]
      %v201 = vld [vmem:[%s169 + $0xb8] sm:$0xff]
      %v202 = vld [vmem:[%s169 + $0xc0] sm:$0xff]
      %v203 = vld [vmem:[%s169 + $0xc8] sm:$0xff]
      %v204 = vld [vmem:[%s169 + $0xd0] sm:$0xff]
      %v205 = vld [vmem:[%s169 + $0xd8] sm:$0xff]
      %v206 = vld [vmem:[%s169 + $0xe0] sm:$0xff]
      %v207 = vld [vmem:[%s169 + $0xe8] sm:$0xff]
      %v208 = vld [vmem:[%s169 + $0xf0] sm:$0xff]
      %v209 = vld [vmem:[%s169 + $0xf8] sm:$0xff]
      %v210 = vld [vmem:[%s169 + $0x100] sm:$0xff]
      %v211 = vld [vmem:[%s169 + $0x108] sm:$0xff]
      %v212 = vld [vmem:[%s169 + $0x110] sm:$0xff]
      %v213 = vld [vmem:[%s169 + $0x118] sm:$0xff]
      %v214 = vld [vmem:[%s169 + $0x120] sm:$0xff]
      %v215 = vld [vmem:[%s169 + $0x128] sm:$0xff]
      %v216 = vld [vmem:[%s169 + $0x130] sm:$0xff]
      %v217 = vld [vmem:[%s169 + $0x138] sm:$0xff]
      %v218 = vld [vmem:[%s169 + $0x140] sm:$0xff]
      %v219 = vld [vmem:[%s169 + $0x148] sm:$0xff]
      %v220 = vld [vmem:[%s169 + $0x150] sm:$0xff]
      %v221 = vld [vmem:[%s169 + $0x158] sm:$0xff]
      %v222 = vld [vmem:[%s169 + $0x160] sm:$0xff]
      %v223 = vld [vmem:[%s169 + $0x168] sm:$0xff]
      %v224 = vld [vmem:[%s169 + $0x170] sm:$0xff]
      %v225 = vld [vmem:[%s169 + $0x178] sm:$0xff]
      %v226 = vld [vmem:[%s169 + $0x180] sm:$0xff]
      %v227 = vld [vmem:[%s169 + $0x188] sm:$0xff]
      %v228 = vld [vmem:[%s169 + $0x190] sm:$0xff]
      %v229 = vld [vmem:[%s169 + $0x198] sm:$0xff]
      %v230 = vld [vmem:[%s169 + $0x1a0] sm:$0xff]
      %v231 = vld [vmem:[%s169 + $0x1a8] sm:$0xff]
      %v232 = vld [vmem:[%s169 + $0x1b0] sm:$0xff]
      %v233 = vld [vmem:[%s169 + $0x1b8] sm:$0xff]
      %v234 = vld [vmem:[%s169 + $0x1c0] sm:$0xff]
      %v235 = vld [vmem:[%s169 + $0x1c8] sm:$0xff]
      %v236 = vld [vmem:[%s169 + $0x1d0] sm:$0xff]
      %v237 = vld [vmem:[%s169 + $0x1d8] sm:$0xff]
      %v238 = vld [vmem:[%s169 + $0x1e0] sm:$0xff]
      %v239 = vld [vmem:[%s169 + $0x1e8] sm:$0xff]
      %v240 = vld [vmem:[%s169 + $0x1f0] sm:$0xff]
      %v241 = vld [vmem:[%s169 + $0x1f8] sm:$0xff]
      %v242 = vld [vmem:[%s169 + $0x200] sm:$0xff]
      %v243 = vld [vmem:[%s169 + $0x208] sm:$0xff]
      %v244 = vld [vmem:[%s169 + $0x210] sm:$0xff]
      %v245 = vld [vmem:[%s169 + $0x218] sm:$0xff]
      %v246 = vld [vmem:[%s169 + $0x220] sm:$0xff]
      %v247 = vld [vmem:[%s169 + $0x228] sm:$0xff]
      %v248 = vld [vmem:[%s169 + $0x230] sm:$0xff]
      %v249 = vld [vmem:[%s169 + $0x238] sm:$0xff]
      %v250 = vld [vmem:[%s169 + $0x240] sm:$0xff]
      %v251 = vld [vmem:[%s169 + $0x248] sm:$0xff]
      %v252 = vld [vmem:[%s169 + $0x250] sm:$0xff]
      %v253 = vld [vmem:[%s169 + $0x258] sm:$0xff]
      %v254 = vld [vmem:[%s169 + $0x260] sm:$0xff]
      %v255 = vld [vmem:[%s169 + $0x268] sm:$0xff]
      %v256 = vld [vmem:[%s169 + $0x270] sm:$0xff]
      %v257 = vld [vmem:[%s169 + $0x278] sm:$0xff]
      %v258 = vld [vmem:[%s169 + $0x280] sm:$0xff]
      %v259 = vld [vmem:[%s169 + $0x288] sm:$0xff]
      %v260 = vld [vmem:[%s169 + $0x290] sm:$0xff]
      %v261 = vld [vmem:[%s169 + $0x298] sm:$0xff]
      %v262 = vld [vmem:[%s169 + $0x2a0] sm:$0xff]
      %v263 = vld [vmem:[%s169 + $0x2a8] sm:$0xff]
      %v264 = vld [vmem:[%s169 + $0x2b0] sm:$0xff]
      %v265 = vld [vmem:[%s169 + $0x2b8] sm:$0xff]
      %v266 = vld [vmem:[%s169 + $0x2c0] sm:$0xff]
      %v267 = vld [vmem:[%s169 + $0x2c8] sm:$0xff]
      %v268 = vld [vmem:[%s169 + $0x2d0] sm:$0xff]
      %v269 = vld [vmem:[%s169 + $0x2d8] sm:$0xff]
      %v270 = vld [vmem:[%s169 + $0x2e0] sm:$0xff]
      %v271 = vld [vmem:[%s169 + $0x2e8] sm:$0xff]
      %v272 = vld [vmem:[%s169 + $0x2f0] sm:$0xff]
      %v273 = vld [vmem:[%s169 + $0x2f8] sm:$0xff]
      %v274 = vld [vmem:[%s169 + $0x300] sm:$0xff]
      %v275 = vld [vmem:[%s169 + $0x308] sm:$0xff]
      %v276 = vld [vmem:[%s169 + $0x310] sm:$0xff]
      %v277 = vld [vmem:[%s169 + $0x318] sm:$0xff]
      %v278 = vld [vmem:[%s169 + $0x320] sm:$0xff]
      %v279 = vld [vmem:[%s169 + $0x328] sm:$0xff]
      %v280 = vld [vmem:[%s169 + $0x330] sm:$0xff]
      %v281 = vld [vmem:[%s169 + $0x338] sm:$0xff]
      %v282 = vld [vmem:[%s169 + $0x340] sm:$0xff]
      %v283 = vld [vmem:[%s169 + $0x348] sm:$0xff]
      %v284 = vld [vmem:[%s169 + $0x350] sm:$0xff]
      %v285 = vld [vmem:[%s169 + $0x358] sm:$0xff]
      %v286 = vld [vmem:[%s169 + $0x360] sm:$0xff]
      %v287 = vld [vmem:[%s169 + $0x368] sm:$0xff]
      %v288 = vld [vmem:[%s169 + $0x370] sm:$0xff]
      %v289 = vld [vmem:[%s169 + $0x378] sm:$0xff]
      %v290 = vld [vmem:[%s169 + $0x380] sm:$0xff]
      %v291 = vld [vmem:[%s169 + $0x388] sm:$0xff]
      %v292 = vld [vmem:[%s169 + $0x390] sm:$0xff]
      %v293 = vld [vmem:[%s169 + $0x398] sm:$0xff]
      %v294 = vld [vmem:[%s169 + $0x3a0] sm:$0xff]
      %v295 = vld [vmem:[%s169 + $0x3a8] sm:$0xff]
      %v296 = vld [vmem:[%s169 + $0x3b0] sm:$0xff]
      %v297 = vld [vmem:[%s169 + $0x3b8] sm:$0xff]
      %v298 = vld [vmem:[%s169 + $0x3c0] sm:$0xff]
      %v299 = vld [vmem:[%s169 + $0x3c8] sm:$0xff]
      %v300 = vld [vmem:[%s169 + $0x3d0] sm:$0xff]
      %v301 = vld [vmem:[%s169 + $0x3d8] sm:$0xff]
      %v302 = vld [vmem:[%s169 + $0x3e0] sm:$0xff]
      %v303 = vld [vmem:[%s169 + $0x3e8] sm:$0xff]
      %v304 = vld [vmem:[%s169 + $0x3f0] sm:$0xff]
      %v305 = vld [vmem:[%s169 + $0x3f8] sm:$0xff]
      %v306 = vld [vmem:[%s169 + $0x400] sm:$0xff]
      %v307 = vld [vmem:[%s169 + $0x408] sm:$0xff]
      %v308 = vld [vmem:[%s169 + $0x410] sm:$0xff]
      %v309 = vld [vmem:[%s169 + $0x418] sm:$0xff]
      %v310 = vld [vmem:[%s169 + $0x420] sm:$0xff]
      %v311 = vld [vmem:[%s169 + $0x428] sm:$0xff]
      %v312 = vld [vmem:[%s169 + $0x430] sm:$0xff]
      %v313 = vld [vmem:[%s169 + $0x438] sm:$0xff]
      %v314 = vld [vmem:[%s169 + $0x440] sm:$0xff]
      %v315 = vld [vmem:[%s169 + $0x448] sm:$0xff]
      %v316 = vld [vmem:[%s169 + $0x450] sm:$0xff]
      %v317 = vld [vmem:[%s169 + $0x458] sm:$0xff]
      %v318 = vld [vmem:[%s169 + $0x460] sm:$0xff]
      %v319 = vld [vmem:[%s169 + $0x468] sm:$0xff]
      %v320 = vld [vmem:[%s169 + $0x470] sm:$0xff]
      %v321 = vld [vmem:[%s169 + $0x478] sm:$0xff]
      %v322 = vld [vmem:[%s169 + $0x480] sm:$0xff]
      %v323 = vld [vmem:[%s169 + $0x488] sm:$0xff]
      %v324 = vld [vmem:[%s169 + $0x490] sm:$0xff]
      %v325 = vld [vmem:[%s169 + $0x498] sm:$0xff]
      %v326 = vld [vmem:[%s169 + $0x4a0] sm:$0xff]
      %v327 = vld [vmem:[%s169 + $0x4a8] sm:$0xff]
      %v328 = vld [vmem:[%s169 + $0x4b0] sm:$0xff]
      %v329 = vld [vmem:[%s169 + $0x4b8] sm:$0xff]
      %v330 = vld [vmem:[%s169 + $0x4c0] sm:$0xff]
      %v331 = vld [vmem:[%s169 + $0x4c8] sm:$0xff]
      %v332 = vld [vmem:[%s169 + $0x4d0] sm:$0xff]
      %v333 = vld [vmem:[%s169 + $0x4d8] sm:$0xff]
      %v334 = vld [vmem:[%s169 + $0x4e0] sm:$0xff]
      %v335 = vld [vmem:[%s169 + $0x4e8] sm:$0xff]
      %v336 = vld [vmem:[%s169 + $0x4f0] sm:$0xff]
      %v337 = vld [vmem:[%s169 + $0x4f8] sm:$0xff]
      %v338 = vld [vmem:[%s169 + $0x500] sm:$0xff]
      %v339 = vld [vmem:[%s169 + $0x508] sm:$0xff]
      %v340 = vld [vmem:[%s169 + $0x510] sm:$0xff]
      %v341 = vld [vmem:[%s169 + $0x518] sm:$0xff]
      %v342 = vld [vmem:[%s169 + $0x520] sm:$0xff]
      %v343 = vld [vmem:[%s169 + $0x528] sm:$0xff]
      %v344 = vld [vmem:[%s169 + $0x530] sm:$0xff]
      %v345 = vld [vmem:[%s169 + $0x538] sm:$0xff]
      %v346 = vld [vmem:[%s169 + $0x540] sm:$0xff]
      %v347 = vld [vmem:[%s169 + $0x548] sm:$0xff]
      %v348 = vld [vmem:[%s169 + $0x550] sm:$0xff]
      %v349 = vld [vmem:[%s169 + $0x558] sm:$0xff]
      %v350 = vld [vmem:[%s169 + $0x560] sm:$0xff]
      %v351 = vld [vmem:[%s169 + $0x568] sm:$0xff]
      %v352 = vld [vmem:[%s169 + $0x570] sm:$0xff]
      %v353 = vld [vmem:[%s169 + $0x578] sm:$0xff]
      %v354 = vld [vmem:[%s169 + $0x580] sm:$0xff]
      %v355 = vld [vmem:[%s169 + $0x588] sm:$0xff]
      %v356 = vld [vmem:[%s169 + $0x590] sm:$0xff]
      %v357 = vld [vmem:[%s169 + $0x598] sm:$0xff]
      %v358 = vld [vmem:[%s169 + $0x5a0] sm:$0xff]
      %v359 = vld [vmem:[%s169 + $0x5a8] sm:$0xff]
      %v360 = vld [vmem:[%s169 + $0x5b0] sm:$0xff]
      %v361 = vld [vmem:[%s169 + $0x5b8] sm:$0xff]
      %v362 = vld [vmem:[%s169 + $0x5c0] sm:$0xff]
      %v363 = vld [vmem:[%s169 + $0x5c8] sm:$0xff]
      %v364 = vld [vmem:[%s169 + $0x5d0] sm:$0xff]
      %v365 = vld [vmem:[%s169 + $0x5d8] sm:$0xff]
      %v366 = vld [vmem:[%s169 + $0x5e0] sm:$0xff]
      %v367 = vld [vmem:[%s169 + $0x5e8] sm:$0xff]
      %v368 = vld [vmem:[%s169 + $0x5f0] sm:$0xff]
      %v369 = vld [vmem:[%s169 + $0x5f8] sm:$0xff]
      %v370 = vld [vmem:[%s169 + $0x600] sm:$0xff]
      %v371 = vld [vmem:[%s169 + $0x608] sm:$0xff]
      %v372 = vld [vmem:[%s169 + $0x610] sm:$0xff]
      %v373 = vld [vmem:[%s169 + $0x618] sm:$0xff]
      %v374 = vld [vmem:[%s169 + $0x620] sm:$0xff]
      %v375 = vld [vmem:[%s169 + $0x628] sm:$0xff]
      %v376 = vld [vmem:[%s169 + $0x630] sm:$0xff]
      %v377 = vld [vmem:[%s169 + $0x638] sm:$0xff]
      %v378 = vld [vmem:[%s169 + $0x640] sm:$0xff]
      %v379 = vld [vmem:[%s169 + $0x648] sm:$0xff]
      %v380 = vld [vmem:[%s169 + $0x650] sm:$0xff]
      %v381 = vld [vmem:[%s169 + $0x658] sm:$0xff]
      %v382 = vld [vmem:[%s169 + $0x660] sm:$0xff]
      %v383 = vld [vmem:[%s169 + $0x668] sm:$0xff]
      %v384 = vld [vmem:[%s169 + $0x670] sm:$0xff]
      %v385 = vld [vmem:[%s169 + $0x678] sm:$0xff]
      %v386 = vld [vmem:[%s169 + $0x680] sm:$0xff]
      %v387 = vld [vmem:[%s169 + $0x688] sm:$0xff]
      %v388 = vld [vmem:[%s169 + $0x690] sm:$0xff]
      %v389 = vld [vmem:[%s169 + $0x698] sm:$0xff]
      %v390 = vld [vmem:[%s169 + $0x6a0] sm:$0xff]
      %v391 = vld [vmem:[%s169 + $0x6a8] sm:$0xff]
      %v392 = vld [vmem:[%s169 + $0x6b0] sm:$0xff]
      %v393 = vld [vmem:[%s169 + $0x6b8] sm:$0xff]
      %v394 = vld [vmem:[%s169 + $0x6c0] sm:$0xff]
      %v395 = vld [vmem:[%s169 + $0x6c8] sm:$0xff]
      %v396 = vld [vmem:[%s169 + $0x6d0] sm:$0xff]
      %v397 = vld [vmem:[%s169 + $0x6d8] sm:$0xff]
      %v398 = vld [vmem:[%s169 + $0x6e0] sm:$0xff]
      %v399 = vld [vmem:[%s169 + $0x6e8] sm:$0xff]
      %v400 = vld [vmem:[%s169 + $0x6f0] sm:$0xff]
      %v401 = vld [vmem:[%s169 + $0x6f8] sm:$0xff]
      %v402 = vld [vmem:[%s169 + $0x700] sm:$0xff]
      %v403 = vld [vmem:[%s169 + $0x708] sm:$0xff]
      %v404 = vld [vmem:[%s169 + $0x710] sm:$0xff]
      %v405 = vld [vmem:[%s169 + $0x718] sm:$0xff]
      %v406 = vld [vmem:[%s169 + $0x720] sm:$0xff]
      %v407 = vld [vmem:[%s169 + $0x728] sm:$0xff]
      %v408 = vld [vmem:[%s169 + $0x730] sm:$0xff]
      %v409 = vld [vmem:[%s169 + $0x738] sm:$0xff]
      %v410 = vld [vmem:[%s169 + $0x740] sm:$0xff]
      %v411 = vld [vmem:[%s169 + $0x748] sm:$0xff]
      %v412 = vld [vmem:[%s169 + $0x750] sm:$0xff]
      %v413 = vld [vmem:[%s169 + $0x758] sm:$0xff]
      %v414 = vld [vmem:[%s169 + $0x760] sm:$0xff]
      %v415 = vld [vmem:[%s169 + $0x768] sm:$0xff]
      %v416 = vld [vmem:[%s169 + $0x770] sm:$0xff]
      %v417 = vld [vmem:[%s169 + $0x778] sm:$0xff]
      %v418 = vld [vmem:[%s169 + $0x780] sm:$0xff]
      %v419 = vld [vmem:[%s169 + $0x788] sm:$0xff]
      %v420 = vld [vmem:[%s169 + $0x790] sm:$0xff]
      %v421 = vld [vmem:[%s169 + $0x798] sm:$0xff]
      %v422 = vld [vmem:[%s169 + $0x7a0] sm:$0xff]
      %v423 = vld [vmem:[%s169 + $0x7a8] sm:$0xff]
      %v424 = vld [vmem:[%s169 + $0x7b0] sm:$0xff]
      %v425 = vld [vmem:[%s169 + $0x7b8] sm:$0xff]
      %v426 = vld [vmem:[%s169 + $0x7c0] sm:$0xff]
      %v427 = vld [vmem:[%s169 + $0x7c8] sm:$0xff]
      %v428 = vld [vmem:[%s169 + $0x7d0] sm:$0xff]
      %v429 = vld [vmem:[%s169 + $0x7d8] sm:$0xff]
      %v430 = vld [vmem:[%s169 + $0x7e0] sm:$0xff]
      %v431 = vld [vmem:[%s169 + $0x7e8] sm:$0xff]
      %v432 = vld [vmem:[%s169 + $0x7f0] sm:$0xff]
      %v433 = vld [vmem:[%s169 + $0x7f8] sm:$0xff]
      %v434 = vld [vmem:[%s1] sm:$0xf]
      %v435 = vld [vmem:[%s1 + $0x4] sm:$0xf]
      %v436 = vld [vmem:[%s1 + $0x8] sm:$0xf]
      %v437 = vld [vmem:[%s1 + $0xc] sm:$0xf]
      %v438 = vld [vmem:[%s1 + $0x10] sm:$0xf]
      %v439 = vld [vmem:[%s1 + $0x14] sm:$0xf]
      %v440 = vld [vmem:[%s1 + $0x18] sm:$0xf]
      %v441 = vld [vmem:[%s1 + $0x1c] sm:$0xf]
      %v442 = vld [vmem:[%s1 + $0x20] sm:$0xf]
      %v443 = vld [vmem:[%s1 + $0x24] sm:$0xf]
      %v444 = vld [vmem:[%s1 + $0x28] sm:$0xf]
      %v445 = vld [vmem:[%s1 + $0x2c] sm:$0xf]
      %v446 = vld [vmem:[%s1 + $0x30] sm:$0xf]
      %v447 = vld [vmem:[%s1 + $0x34] sm:$0xf]
      %v448 = vld [vmem:[%s1 + $0x38] sm:$0xf]
      %v449 = vld [vmem:[%s1 + $0x3c] sm:$0xf]
      %v450 = vld [vmem:[%s1 + $0x40] sm:$0xf]
      %v451 = vld [vmem:[%s1 + $0x44] sm:$0xf]
      %v452 = vld [vmem:[%s1 + $0x48] sm:$0xf]
      %v453 = vld [vmem:[%s1 + $0x4c] sm:$0xf]
      %v454 = vld [vmem:[%s1 + $0x50] sm:$0xf]
      %v455 = vld [vmem:[%s1 + $0x54] sm:$0xf]
      %v456 = vld [vmem:[%s1 + $0x58] sm:$0xf]
      %v457 = vld [vmem:[%s1 + $0x5c] sm:$0xf]
      %v458 = vld [vmem:[%s1 + $0x60] sm:$0xf]
      %v459 = vld [vmem:[%s1 + $0x64] sm:$0xf]
      %v460 = vld [vmem:[%s1 + $0x68] sm:$0xf]
      %v461 = vld [vmem:[%s1 + $0x6c] sm:$0xf]
      %v462 = vld [vmem:[%s1 + $0x70] sm:$0xf]
      %v463 = vld [vmem:[%s1 + $0x74] sm:$0xf]
      %v464 = vld [vmem:[%s1 + $0x78] sm:$0xf]
      %v465 = vld [vmem:[%s1 + $0x7c] sm:$0xf]
      %v466 = vld [vmem:[%s1 + $0x80] sm:$0xf]
      %v467 = vld [vmem:[%s1 + $0x84] sm:$0xf]
      %v468 = vld [vmem:[%s1 + $0x88] sm:$0xf]
      %v469 = vld [vmem:[%s1 + $0x8c] sm:$0xf]
      %v470 = vld [vmem:[%s1 + $0x90] sm:$0xf]
      %v471 = vld [vmem:[%s1 + $0x94] sm:$0xf]
      %v472 = vld [vmem:[%s1 + $0x98] sm:$0xf]
      %v473 = vld [vmem:[%s1 + $0x9c] sm:$0xf]
      %v474 = vld [vmem:[%s1 + $0xa0] sm:$0xf]
      %v475 = vld [vmem:[%s1 + $0xa4] sm:$0xf]
      %v476 = vld [vmem:[%s1 + $0xa8] sm:$0xf]
      %v477 = vld [vmem:[%s1 + $0xac] sm:$0xf]
      %v478 = vld [vmem:[%s1 + $0xb0] sm:$0xf]
      %v479 = vld [vmem:[%s1 + $0xb4] sm:$0xf]
      %v480 = vld [vmem:[%s1 + $0xb8] sm:$0xf]
      %v481 = vld [vmem:[%s1 + $0xbc] sm:$0xf]
      %v482 = vld [vmem:[%s1 + $0xc0] sm:$0xf]
      %v483 = vld [vmem:[%s1 + $0xc4] sm:$0xf]
      %v484 = vld [vmem:[%s1 + $0xc8] sm:$0xf]
      %v485 = vld [vmem:[%s1 + $0xcc] sm:$0xf]
      %v486 = vld [vmem:[%s1 + $0xd0] sm:$0xf]
      %v487 = vld [vmem:[%s1 + $0xd4] sm:$0xf]
      %v488 = vld [vmem:[%s1 + $0xd8] sm:$0xf]
      %v489 = vld [vmem:[%s1 + $0xdc] sm:$0xf]
      %v490 = vld [vmem:[%s1 + $0xe0] sm:$0xf]
      %v491 = vld [vmem:[%s1 + $0xe4] sm:$0xf]
      %v492 = vld [vmem:[%s1 + $0xe8] sm:$0xf]
      %v493 = vld [vmem:[%s1 + $0xec] sm:$0xf]
      %v494 = vld [vmem:[%s1 + $0xf0] sm:$0xf]
      %v495 = vld [vmem:[%s1 + $0xf4] sm:$0xf]
      %v496 = vld [vmem:[%s1 + $0xf8] sm:$0xf]
      %v497 = vld [vmem:[%s1 + $0xfc] sm:$0xf]
      %v498 = vld [vmem:[%s2] sm:$0x1]
      %v500 = vlaneseq
      %v501 = vshrl.u32 %v500, 7
      %v502 = vsub.s32 0, %v501
      %v503 = vrot.slane %v498, %v502
      %v761 = vunpack.c.l.b16 %v178
      %v762 = vunpack.c.h.b16 %v178
      %v763 = vunpack.c.l.b16 %v179
      %v764 = vunpack.c.h.b16 %v179
      %v765 = vunpack.c.l.b16 %v180
      %v766 = vunpack.c.h.b16 %v180
      %v767 = vunpack.c.l.b16 %v181
      %v768 = vunpack.c.h.b16 %v181
      %v769 = vunpack.c.l.b16 %v182
      %v770 = vunpack.c.h.b16 %v182
      %v771 = vunpack.c.l.b16 %v183
      %v772 = vunpack.c.h.b16 %v183
      %v773 = vunpack.c.l.b16 %v184
      %v774 = vunpack.c.h.b16 %v184
      %v775 = vunpack.c.l.b16 %v185
      %v776 = vunpack.c.h.b16 %v185
      %v777 = vunpack.c.l.b16 %v186
      %v778 = vunpack.c.h.b16 %v186
      %v779 = vunpack.c.l.b16 %v187
      %v780 = vunpack.c.h.b16 %v187
      %v781 = vunpack.c.l.b16 %v188
      %v782 = vunpack.c.h.b16 %v188
      %v783 = vunpack.c.l.b16 %v189
      %v784 = vunpack.c.h.b16 %v189
      %v785 = vunpack.c.l.b16 %v190
      %v786 = vunpack.c.h.b16 %v190
      %v787 = vunpack.c.l.b16 %v191
      %v788 = vunpack.c.h.b16 %v191
      %v789 = vunpack.c.l.b16 %v192
      %v790 = vunpack.c.h.b16 %v192
      %v791 = vunpack.c.l.b16 %v193
      %v792 = vunpack.c.h.b16 %v193
      %v793 = vunpack.c.l.b16 %v194
      %v794 = vunpack.c.h.b16 %v194
      %v795 = vunpack.c.l.b16 %v195
      %v796 = vunpack.c.h.b16 %v195
      %v797 = vunpack.c.l.b16 %v196
      %v798 = vunpack.c.h.b16 %v196
      %v799 = vunpack.c.l.b16 %v197
      %v800 = vunpack.c.h.b16 %v197
      %v801 = vunpack.c.l.b16 %v198
      %v802 = vunpack.c.h.b16 %v198
      %v803 = vunpack.c.l.b16 %v199
      %v804 = vunpack.c.h.b16 %v199
      %v805 = vunpack.c.l.b16 %v200
      %v806 = vunpack.c.h.b16 %v200
      %v807 = vunpack.c.l.b16 %v201
      %v808 = vunpack.c.h.b16 %v201
      %v809 = vunpack.c.l.b16 %v202
      %v810 = vunpack.c.h.b16 %v202
      %v811 = vunpack.c.l.b16 %v203
      %v812 = vunpack.c.h.b16 %v203
      %v813 = vunpack.c.l.b16 %v204
      %v814 = vunpack.c.h.b16 %v204
      %v815 = vunpack.c.l.b16 %v205
      %v816 = vunpack.c.h.b16 %v205
      %v817 = vunpack.c.l.b16 %v206
      %v818 = vunpack.c.h.b16 %v206
      %v819 = vunpack.c.l.b16 %v207
      %v820 = vunpack.c.h.b16 %v207
      %v821 = vunpack.c.l.b16 %v208
      %v822 = vunpack.c.h.b16 %v208
      %v823 = vunpack.c.l.b16 %v209
      %v824 = vunpack.c.h.b16 %v209
      %v825 = vunpack.c.l.b16 %v210
      %v826 = vunpack.c.h.b16 %v210
      %v827 = vunpack.c.l.b16 %v211
      %v828 = vunpack.c.h.b16 %v211
      %v829 = vunpack.c.l.b16 %v212
      %v830 = vunpack.c.h.b16 %v212
      %v831 = vunpack.c.l.b16 %v213
      %v832 = vunpack.c.h.b16 %v213
      %v833 = vunpack.c.l.b16 %v214
      %v834 = vunpack.c.h.b16 %v214
      %v835 = vunpack.c.l.b16 %v215
      %v836 = vunpack.c.h.b16 %v215
      %v837 = vunpack.c.l.b16 %v216
      %v838 = vunpack.c.h.b16 %v216
      %v839 = vunpack.c.l.b16 %v217
      %v840 = vunpack.c.h.b16 %v217
      %v841 = vunpack.c.l.b16 %v218
      %v842 = vunpack.c.h.b16 %v218
      %v843 = vunpack.c.l.b16 %v219
      %v844 = vunpack.c.h.b16 %v219
      %v845 = vunpack.c.l.b16 %v220
      %v846 = vunpack.c.h.b16 %v220
      %v847 = vunpack.c.l.b16 %v221
      %v848 = vunpack.c.h.b16 %v221
      %v849 = vunpack.c.l.b16 %v222
      %v850 = vunpack.c.h.b16 %v222
      %v851 = vunpack.c.l.b16 %v223
      %v852 = vunpack.c.h.b16 %v223
      %v853 = vunpack.c.l.b16 %v224
      %v854 = vunpack.c.h.b16 %v224
      %v855 = vunpack.c.l.b16 %v225
      %v856 = vunpack.c.h.b16 %v225
      %v857 = vunpack.c.l.b16 %v226
      %v858 = vunpack.c.h.b16 %v226
      %v859 = vunpack.c.l.b16 %v227
      %v860 = vunpack.c.h.b16 %v227
      %v861 = vunpack.c.l.b16 %v228
      %v862 = vunpack.c.h.b16 %v228
      %v863 = vunpack.c.l.b16 %v229
      %v864 = vunpack.c.h.b16 %v229
      %v865 = vunpack.c.l.b16 %v230
      %v866 = vunpack.c.h.b16 %v230
      %v867 = vunpack.c.l.b16 %v231
      %v868 = vunpack.c.h.b16 %v231
      %v869 = vunpack.c.l.b16 %v232
      %v870 = vunpack.c.h.b16 %v232
      %v871 = vunpack.c.l.b16 %v233
      %v872 = vunpack.c.h.b16 %v233
      %v873 = vunpack.c.l.b16 %v234
      %v874 = vunpack.c.h.b16 %v234
      %v875 = vunpack.c.l.b16 %v235
      %v876 = vunpack.c.h.b16 %v235
      %v877 = vunpack.c.l.b16 %v236
      %v878 = vunpack.c.h.b16 %v236
      %v879 = vunpack.c.l.b16 %v237
      %v880 = vunpack.c.h.b16 %v237
      %v881 = vunpack.c.l.b16 %v238
      %v882 = vunpack.c.h.b16 %v238
      %v883 = vunpack.c.l.b16 %v239
      %v884 = vunpack.c.h.b16 %v239
      %v885 = vunpack.c.l.b16 %v240
      %v886 = vunpack.c.h.b16 %v240
      %v887 = vunpack.c.l.b16 %v241
      %v888 = vunpack.c.h.b16 %v241
      %v889 = vunpack.c.l.b16 %v242
      %v890 = vunpack.c.h.b16 %v242
      %v891 = vunpack.c.l.b16 %v243
      %v892 = vunpack.c.h.b16 %v243
      %v893 = vunpack.c.l.b16 %v244
      %v894 = vunpack.c.h.b16 %v244
      %v895 = vunpack.c.l.b16 %v245
      %v896 = vunpack.c.h.b16 %v245
      %v897 = vunpack.c.l.b16 %v246
      %v898 = vunpack.c.h.b16 %v246
      %v899 = vunpack.c.l.b16 %v247
      %v900 = vunpack.c.h.b16 %v247
      %v901 = vunpack.c.l.b16 %v248
      %v902 = vunpack.c.h.b16 %v248
      %v903 = vunpack.c.l.b16 %v249
      %v904 = vunpack.c.h.b16 %v249
      %v905 = vunpack.c.l.b16 %v250
      %v906 = vunpack.c.h.b16 %v250
      %v907 = vunpack.c.l.b16 %v251
      %v908 = vunpack.c.h.b16 %v251
      %v909 = vunpack.c.l.b16 %v252
      %v910 = vunpack.c.h.b16 %v252
      %v911 = vunpack.c.l.b16 %v253
      %v912 = vunpack.c.h.b16 %v253
      %v913 = vunpack.c.l.b16 %v254
      %v914 = vunpack.c.h.b16 %v254
      %v915 = vunpack.c.l.b16 %v255
      %v916 = vunpack.c.h.b16 %v255
      %v917 = vunpack.c.l.b16 %v256
      %v918 = vunpack.c.h.b16 %v256
      %v919 = vunpack.c.l.b16 %v257
      %v920 = vunpack.c.h.b16 %v257
      %v921 = vunpack.c.l.b16 %v258
      %v922 = vunpack.c.h.b16 %v258
      %v923 = vunpack.c.l.b16 %v259
      %v924 = vunpack.c.h.b16 %v259
      %v925 = vunpack.c.l.b16 %v260
      %v926 = vunpack.c.h.b16 %v260
      %v927 = vunpack.c.l.b16 %v261
      %v928 = vunpack.c.h.b16 %v261
      %v929 = vunpack.c.l.b16 %v262
      %v930 = vunpack.c.h.b16 %v262
      %v931 = vunpack.c.l.b16 %v263
      %v932 = vunpack.c.h.b16 %v263
      %v933 = vunpack.c.l.b16 %v264
      %v934 = vunpack.c.h.b16 %v264
      %v935 = vunpack.c.l.b16 %v265
      %v936 = vunpack.c.h.b16 %v265
      %v937 = vunpack.c.l.b16 %v266
      %v938 = vunpack.c.h.b16 %v266
      %v939 = vunpack.c.l.b16 %v267
      %v940 = vunpack.c.h.b16 %v267
      %v941 = vunpack.c.l.b16 %v268
      %v942 = vunpack.c.h.b16 %v268
      %v943 = vunpack.c.l.b16 %v269
      %v944 = vunpack.c.h.b16 %v269
      %v945 = vunpack.c.l.b16 %v270
      %v946 = vunpack.c.h.b16 %v270
      %v947 = vunpack.c.l.b16 %v271
      %v948 = vunpack.c.h.b16 %v271
      %v949 = vunpack.c.l.b16 %v272
      %v950 = vunpack.c.h.b16 %v272
      %v951 = vunpack.c.l.b16 %v273
      %v952 = vunpack.c.h.b16 %v273
      %v953 = vunpack.c.l.b16 %v274
      %v954 = vunpack.c.h.b16 %v274
      %v955 = vunpack.c.l.b16 %v275
      %v956 = vunpack.c.h.b16 %v275
      %v957 = vunpack.c.l.b16 %v276
      %v958 = vunpack.c.h.b16 %v276
      %v959 = vunpack.c.l.b16 %v277
      %v960 = vunpack.c.h.b16 %v277
      %v961 = vunpack.c.l.b16 %v278
      %v962 = vunpack.c.h.b16 %v278
      %v963 = vunpack.c.l.b16 %v279
      %v964 = vunpack.c.h.b16 %v279
      %v965 = vunpack.c.l.b16 %v280
      %v966 = vunpack.c.h.b16 %v280
      %v967 = vunpack.c.l.b16 %v281
      %v968 = vunpack.c.h.b16 %v281
      %v969 = vunpack.c.l.b16 %v282
      %v970 = vunpack.c.h.b16 %v282
      %v971 = vunpack.c.l.b16 %v283
      %v972 = vunpack.c.h.b16 %v283
      %v973 = vunpack.c.l.b16 %v284
      %v974 = vunpack.c.h.b16 %v284
      %v975 = vunpack.c.l.b16 %v285
      %v976 = vunpack.c.h.b16 %v285
      %v977 = vunpack.c.l.b16 %v286
      %v978 = vunpack.c.h.b16 %v286
      %v979 = vunpack.c.l.b16 %v287
      %v980 = vunpack.c.h.b16 %v287
      %v981 = vunpack.c.l.b16 %v288
      %v982 = vunpack.c.h.b16 %v288
      %v983 = vunpack.c.l.b16 %v289
      %v984 = vunpack.c.h.b16 %v289
      %v985 = vunpack.c.l.b16 %v290
      %v986 = vunpack.c.h.b16 %v290
      %v987 = vunpack.c.l.b16 %v291
      %v988 = vunpack.c.h.b16 %v291
      %v989 = vunpack.c.l.b16 %v292
      %v990 = vunpack.c.h.b16 %v292
      %v991 = vunpack.c.l.b16 %v293
      %v992 = vunpack.c.h.b16 %v293
      %v993 = vunpack.c.l.b16 %v294
      %v994 = vunpack.c.h.b16 %v294
      %v995 = vunpack.c.l.b16 %v295
      %v996 = vunpack.c.h.b16 %v295
      %v997 = vunpack.c.l.b16 %v296
      %v998 = vunpack.c.h.b16 %v296
      %v999 = vunpack.c.l.b16 %v297
      %v1000 = vunpack.c.h.b16 %v297
      %v1001 = vunpack.c.l.b16 %v298
      %v1002 = vunpack.c.h.b16 %v298
      %v1003 = vunpack.c.l.b16 %v299
      %v1004 = vunpack.c.h.b16 %v299
      %v1005 = vunpack.c.l.b16 %v300
      %v1006 = vunpack.c.h.b16 %v300
      %v1007 = vunpack.c.l.b16 %v301
      %v1008 = vunpack.c.h.b16 %v301
      %v1009 = vunpack.c.l.b16 %v302
      %v1010 = vunpack.c.h.b16 %v302
      %v1011 = vunpack.c.l.b16 %v303
      %v1012 = vunpack.c.h.b16 %v303
      %v1013 = vunpack.c.l.b16 %v304
      %v1014 = vunpack.c.h.b16 %v304
      %v1015 = vunpack.c.l.b16 %v305
      %v1016 = vunpack.c.h.b16 %v305
      %v1017 = vunpack.c.l.b16 %v306
      %v1018 = vunpack.c.h.b16 %v306
      %v1019 = vunpack.c.l.b16 %v307
      %v1020 = vunpack.c.h.b16 %v307
      %v1021 = vunpack.c.l.b16 %v308
      %v1022 = vunpack.c.h.b16 %v308
      %v1023 = vunpack.c.l.b16 %v309
      %v1024 = vunpack.c.h.b16 %v309
      %v1025 = vunpack.c.l.b16 %v310
      %v1026 = vunpack.c.h.b16 %v310
      %v1027 = vunpack.c.l.b16 %v311
      %v1028 = vunpack.c.h.b16 %v311
      %v1029 = vunpack.c.l.b16 %v312
      %v1030 = vunpack.c.h.b16 %v312
      %v1031 = vunpack.c.l.b16 %v313
      %v1032 = vunpack.c.h.b16 %v313
      %v1033 = vunpack.c.l.b16 %v314
      %v1034 = vunpack.c.h.b16 %v314
      %v1035 = vunpack.c.l.b16 %v315
      %v1036 = vunpack.c.h.b16 %v315
      %v1037 = vunpack.c.l.b16 %v316
      %v1038 = vunpack.c.h.b16 %v316
      %v1039 = vunpack.c.l.b16 %v317
      %v1040 = vunpack.c.h.b16 %v317
      %v1041 = vunpack.c.l.b16 %v318
      %v1042 = vunpack.c.h.b16 %v318
      %v1043 = vunpack.c.l.b16 %v319
      %v1044 = vunpack.c.h.b16 %v319
      %v1045 = vunpack.c.l.b16 %v320
      %v1046 = vunpack.c.h.b16 %v320
      %v1047 = vunpack.c.l.b16 %v321
      %v1048 = vunpack.c.h.b16 %v321
      %v1049 = vunpack.c.l.b16 %v322
      %v1050 = vunpack.c.h.b16 %v322
      %v1051 = vunpack.c.l.b16 %v323
      %v1052 = vunpack.c.h.b16 %v323
      %v1053 = vunpack.c.l.b16 %v324
      %v1054 = vunpack.c.h.b16 %v324
      %v1055 = vunpack.c.l.b16 %v325
      %v1056 = vunpack.c.h.b16 %v325
      %v1057 = vunpack.c.l.b16 %v326
      %v1058 = vunpack.c.h.b16 %v326
      %v1059 = vunpack.c.l.b16 %v327
      %v1060 = vunpack.c.h.b16 %v327
      %v1061 = vunpack.c.l.b16 %v328
      %v1062 = vunpack.c.h.b16 %v328
      %v1063 = vunpack.c.l.b16 %v329
      %v1064 = vunpack.c.h.b16 %v329
      %v1065 = vunpack.c.l.b16 %v330
      %v1066 = vunpack.c.h.b16 %v330
      %v1067 = vunpack.c.l.b16 %v331
      %v1068 = vunpack.c.h.b16 %v331
      %v1069 = vunpack.c.l.b16 %v332
      %v1070 = vunpack.c.h.b16 %v332
      %v1071 = vunpack.c.l.b16 %v333
      %v1072 = vunpack.c.h.b16 %v333
      %v1073 = vunpack.c.l.b16 %v334
      %v1074 = vunpack.c.h.b16 %v334
      %v1075 = vunpack.c.l.b16 %v335
      %v1076 = vunpack.c.h.b16 %v335
      %v1077 = vunpack.c.l.b16 %v336
      %v1078 = vunpack.c.h.b16 %v336
      %v1079 = vunpack.c.l.b16 %v337
      %v1080 = vunpack.c.h.b16 %v337
      %v1081 = vunpack.c.l.b16 %v338
      %v1082 = vunpack.c.h.b16 %v338
      %v1083 = vunpack.c.l.b16 %v339
      %v1084 = vunpack.c.h.b16 %v339
      %v1085 = vunpack.c.l.b16 %v340
      %v1086 = vunpack.c.h.b16 %v340
      %v1087 = vunpack.c.l.b16 %v341
      %v1088 = vunpack.c.h.b16 %v341
      %v1089 = vunpack.c.l.b16 %v342
      %v1090 = vunpack.c.h.b16 %v342
      %v1091 = vunpack.c.l.b16 %v343
      %v1092 = vunpack.c.h.b16 %v343
      %v1093 = vunpack.c.l.b16 %v344
      %v1094 = vunpack.c.h.b16 %v344
      %v1095 = vunpack.c.l.b16 %v345
      %v1096 = vunpack.c.h.b16 %v345
      %v1097 = vunpack.c.l.b16 %v346
      %v1098 = vunpack.c.h.b16 %v346
      %v1099 = vunpack.c.l.b16 %v347
      %v1100 = vunpack.c.h.b16 %v347
      %v1101 = vunpack.c.l.b16 %v348
      %v1102 = vunpack.c.h.b16 %v348
      %v1103 = vunpack.c.l.b16 %v349
      %v1104 = vunpack.c.h.b16 %v349
      %v1105 = vunpack.c.l.b16 %v350
      %v1106 = vunpack.c.h.b16 %v350
      %v1107 = vunpack.c.l.b16 %v351
      %v1108 = vunpack.c.h.b16 %v351
      %v1109 = vunpack.c.l.b16 %v352
      %v1110 = vunpack.c.h.b16 %v352
      %v1111 = vunpack.c.l.b16 %v353
      %v1112 = vunpack.c.h.b16 %v353
      %v1113 = vunpack.c.l.b16 %v354
      %v1114 = vunpack.c.h.b16 %v354
      %v1115 = vunpack.c.l.b16 %v355
      %v1116 = vunpack.c.h.b16 %v355
      %v1117 = vunpack.c.l.b16 %v356
      %v1118 = vunpack.c.h.b16 %v356
      %v1119 = vunpack.c.l.b16 %v357
      %v1120 = vunpack.c.h.b16 %v357
      %v1121 = vunpack.c.l.b16 %v358
      %v1122 = vunpack.c.h.b16 %v358
      %v1123 = vunpack.c.l.b16 %v359
      %v1124 = vunpack.c.h.b16 %v359
      %v1125 = vunpack.c.l.b16 %v360
      %v1126 = vunpack.c.h.b16 %v360
      %v1127 = vunpack.c.l.b16 %v361
      %v1128 = vunpack.c.h.b16 %v361
      %v1129 = vunpack.c.l.b16 %v362
      %v1130 = vunpack.c.h.b16 %v362
      %v1131 = vunpack.c.l.b16 %v363
      %v1132 = vunpack.c.h.b16 %v363
      %v1133 = vunpack.c.l.b16 %v364
      %v1134 = vunpack.c.h.b16 %v364
      %v1135 = vunpack.c.l.b16 %v365
      %v1136 = vunpack.c.h.b16 %v365
      %v1137 = vunpack.c.l.b16 %v366
      %v1138 = vunpack.c.h.b16 %v366
      %v1139 = vunpack.c.l.b16 %v367
      %v1140 = vunpack.c.h.b16 %v367
      %v1141 = vunpack.c.l.b16 %v368
      %v1142 = vunpack.c.h.b16 %v368
      %v1143 = vunpack.c.l.b16 %v369
      %v1144 = vunpack.c.h.b16 %v369
      %v1145 = vunpack.c.l.b16 %v370
      %v1146 = vunpack.c.h.b16 %v370
      %v1147 = vunpack.c.l.b16 %v371
      %v1148 = vunpack.c.h.b16 %v371
      %v1149 = vunpack.c.l.b16 %v372
      %v1150 = vunpack.c.h.b16 %v372
      %v1151 = vunpack.c.l.b16 %v373
      %v1152 = vunpack.c.h.b16 %v373
      %v1153 = vunpack.c.l.b16 %v374
      %v1154 = vunpack.c.h.b16 %v374
      %v1155 = vunpack.c.l.b16 %v375
      %v1156 = vunpack.c.h.b16 %v375
      %v1157 = vunpack.c.l.b16 %v376
      %v1158 = vunpack.c.h.b16 %v376
      %v1159 = vunpack.c.l.b16 %v377
      %v1160 = vunpack.c.h.b16 %v377
      %v1161 = vunpack.c.l.b16 %v378
      %v1162 = vunpack.c.h.b16 %v378
      %v1163 = vunpack.c.l.b16 %v379
      %v1164 = vunpack.c.h.b16 %v379
      %v1165 = vunpack.c.l.b16 %v380
      %v1166 = vunpack.c.h.b16 %v380
      %v1167 = vunpack.c.l.b16 %v381
      %v1168 = vunpack.c.h.b16 %v381
      %v1169 = vunpack.c.l.b16 %v382
      %v1170 = vunpack.c.h.b16 %v382
      %v1171 = vunpack.c.l.b16 %v383
      %v1172 = vunpack.c.h.b16 %v383
      %v1173 = vunpack.c.l.b16 %v384
      %v1174 = vunpack.c.h.b16 %v384
      %v1175 = vunpack.c.l.b16 %v385
      %v1176 = vunpack.c.h.b16 %v385
      %v1177 = vunpack.c.l.b16 %v386
      %v1178 = vunpack.c.h.b16 %v386
      %v1179 = vunpack.c.l.b16 %v387
      %v1180 = vunpack.c.h.b16 %v387
      %v1181 = vunpack.c.l.b16 %v388
      %v1182 = vunpack.c.h.b16 %v388
      %v1183 = vunpack.c.l.b16 %v389
      %v1184 = vunpack.c.h.b16 %v389
      %v1185 = vunpack.c.l.b16 %v390
      %v1186 = vunpack.c.h.b16 %v390
      %v1187 = vunpack.c.l.b16 %v391
      %v1188 = vunpack.c.h.b16 %v391
      %v1189 = vunpack.c.l.b16 %v392
      %v1190 = vunpack.c.h.b16 %v392
      %v1191 = vunpack.c.l.b16 %v393
      %v1192 = vunpack.c.h.b16 %v393
      %v1193 = vunpack.c.l.b16 %v394
      %v1194 = vunpack.c.h.b16 %v394
      %v1195 = vunpack.c.l.b16 %v395
      %v1196 = vunpack.c.h.b16 %v395
      %v1197 = vunpack.c.l.b16 %v396
      %v1198 = vunpack.c.h.b16 %v396
      %v1199 = vunpack.c.l.b16 %v397
      %v1200 = vunpack.c.h.b16 %v397
      %v1201 = vunpack.c.l.b16 %v398
      %v1202 = vunpack.c.h.b16 %v398
      %v1203 = vunpack.c.l.b16 %v399
      %v1204 = vunpack.c.h.b16 %v399
      %v1205 = vunpack.c.l.b16 %v400
      %v1206 = vunpack.c.h.b16 %v400
      %v1207 = vunpack.c.l.b16 %v401
      %v1208 = vunpack.c.h.b16 %v401
      %v1209 = vunpack.c.l.b16 %v402
      %v1210 = vunpack.c.h.b16 %v402
      %v1211 = vunpack.c.l.b16 %v403
      %v1212 = vunpack.c.h.b16 %v403
      %v1213 = vunpack.c.l.b16 %v404
      %v1214 = vunpack.c.h.b16 %v404
      %v1215 = vunpack.c.l.b16 %v405
      %v1216 = vunpack.c.h.b16 %v405
      %v1217 = vunpack.c.l.b16 %v406
      %v1218 = vunpack.c.h.b16 %v406
      %v1219 = vunpack.c.l.b16 %v407
      %v1220 = vunpack.c.h.b16 %v407
      %v1221 = vunpack.c.l.b16 %v408
      %v1222 = vunpack.c.h.b16 %v408
      %v1223 = vunpack.c.l.b16 %v409
      %v1224 = vunpack.c.h.b16 %v409
      %v1225 = vunpack.c.l.b16 %v410
      %v1226 = vunpack.c.h.b16 %v410
      %v1227 = vunpack.c.l.b16 %v411
      %v1228 = vunpack.c.h.b16 %v411
      %v1229 = vunpack.c.l.b16 %v412
      %v1230 = vunpack.c.h.b16 %v412
      %v1231 = vunpack.c.l.b16 %v413
      %v1232 = vunpack.c.h.b16 %v413
      %v1233 = vunpack.c.l.b16 %v414
      %v1234 = vunpack.c.h.b16 %v414
      %v1235 = vunpack.c.l.b16 %v415
      %v1236 = vunpack.c.h.b16 %v415
      %v1237 = vunpack.c.l.b16 %v416
      %v1238 = vunpack.c.h.b16 %v416
      %v1239 = vunpack.c.l.b16 %v417
      %v1240 = vunpack.c.h.b16 %v417
      %v1241 = vunpack.c.l.b16 %v418
      %v1242 = vunpack.c.h.b16 %v418
      %v1243 = vunpack.c.l.b16 %v419
      %v1244 = vunpack.c.h.b16 %v419
      %v1245 = vunpack.c.l.b16 %v420
      %v1246 = vunpack.c.h.b16 %v420
      %v1247 = vunpack.c.l.b16 %v421
      %v1248 = vunpack.c.h.b16 %v421
      %v1249 = vunpack.c.l.b16 %v422
      %v1250 = vunpack.c.h.b16 %v422
      %v1251 = vunpack.c.l.b16 %v423
      %v1252 = vunpack.c.h.b16 %v423
      %v1253 = vunpack.c.l.b16 %v424
      %v1254 = vunpack.c.h.b16 %v424
      %v1255 = vunpack.c.l.b16 %v425
      %v1256 = vunpack.c.h.b16 %v425
      %v1257 = vunpack.c.l.b16 %v426
      %v1258 = vunpack.c.h.b16 %v426
      %v1259 = vunpack.c.l.b16 %v427
      %v1260 = vunpack.c.h.b16 %v427
      %v1261 = vunpack.c.l.b16 %v428
      %v1262 = vunpack.c.h.b16 %v428
      %v1263 = vunpack.c.l.b16 %v429
      %v1264 = vunpack.c.h.b16 %v429
      %v1265 = vunpack.c.l.b16 %v430
      %v1266 = vunpack.c.h.b16 %v430
      %v1267 = vunpack.c.l.b16 %v431
      %v1268 = vunpack.c.h.b16 %v431
      %v1269 = vunpack.c.l.b16 %v432
      %v1270 = vunpack.c.h.b16 %v432
      %v1271 = vunpack.c.l.b16 %v433
      %v1272 = vunpack.c.h.b16 %v433
      %v1273 = vpack.c.b16 %v765, %v761
      %v1274 = vpack.c.b16 %v766, %v762
      %v1275 = vpack.c.b16 %v767, %v763
      %v1276 = vpack.c.b16 %v768, %v764
      %v1277 = vpack.c.b16 %v773, %v769
      %v1278 = vpack.c.b16 %v774, %v770
      %v1279 = vpack.c.b16 %v775, %v771
      %v1280 = vpack.c.b16 %v776, %v772
      %v1281 = vpack.c.b16 %v781, %v777
      %v1282 = vpack.c.b16 %v782, %v778
      %v1283 = vpack.c.b16 %v783, %v779
      %v1284 = vpack.c.b16 %v784, %v780
      %v1285 = vpack.c.b16 %v789, %v785
      %v1286 = vpack.c.b16 %v790, %v786
      %v1287 = vpack.c.b16 %v791, %v787
      %v1288 = vpack.c.b16 %v792, %v788
      %v1289 = vpack.c.b16 %v797, %v793
      %v1290 = vpack.c.b16 %v798, %v794
      %v1291 = vpack.c.b16 %v799, %v795
      %v1292 = vpack.c.b16 %v800, %v796
      %v1293 = vpack.c.b16 %v805, %v801
      %v1294 = vpack.c.b16 %v806, %v802
      %v1295 = vpack.c.b16 %v807, %v803
      %v1296 = vpack.c.b16 %v808, %v804
      %v1297 = vpack.c.b16 %v813, %v809
      %v1298 = vpack.c.b16 %v814, %v810
      %v1299 = vpack.c.b16 %v815, %v811
      %v1300 = vpack.c.b16 %v816, %v812
      %v1301 = vpack.c.b16 %v821, %v817
      %v1302 = vpack.c.b16 %v822, %v818
      %v1303 = vpack.c.b16 %v823, %v819
      %v1304 = vpack.c.b16 %v824, %v820
      %v1305 = vpack.c.b16 %v829, %v825
      %v1306 = vpack.c.b16 %v830, %v826
      %v1307 = vpack.c.b16 %v831, %v827
      %v1308 = vpack.c.b16 %v832, %v828
      %v1309 = vpack.c.b16 %v837, %v833
      %v1310 = vpack.c.b16 %v838, %v834
      %v1311 = vpack.c.b16 %v839, %v835
      %v1312 = vpack.c.b16 %v840, %v836
      %v1313 = vpack.c.b16 %v845, %v841
      %v1314 = vpack.c.b16 %v846, %v842
      %v1315 = vpack.c.b16 %v847, %v843
      %v1316 = vpack.c.b16 %v848, %v844
      %v1317 = vpack.c.b16 %v853, %v849
      %v1318 = vpack.c.b16 %v854, %v850
      %v1319 = vpack.c.b16 %v855, %v851
      %v1320 = vpack.c.b16 %v856, %v852
      %v1321 = vpack.c.b16 %v861, %v857
      %v1322 = vpack.c.b16 %v862, %v858
      %v1323 = vpack.c.b16 %v863, %v859
      %v1324 = vpack.c.b16 %v864, %v860
      %v1325 = vpack.c.b16 %v869, %v865
      %v1326 = vpack.c.b16 %v870, %v866
      %v1327 = vpack.c.b16 %v871, %v867
      %v1328 = vpack.c.b16 %v872, %v868
      %v1329 = vpack.c.b16 %v877, %v873
      %v1330 = vpack.c.b16 %v878, %v874
      %v1331 = vpack.c.b16 %v879, %v875
      %v1332 = vpack.c.b16 %v880, %v876
      %v1333 = vpack.c.b16 %v885, %v881
      %v1334 = vpack.c.b16 %v886, %v882
      %v1335 = vpack.c.b16 %v887, %v883
      %v1336 = vpack.c.b16 %v888, %v884
      %v1337 = vpack.c.b16 %v893, %v889
      %v1338 = vpack.c.b16 %v894, %v890
      %v1339 = vpack.c.b16 %v895, %v891
      %v1340 = vpack.c.b16 %v896, %v892
      %v1341 = vpack.c.b16 %v901, %v897
      %v1342 = vpack.c.b16 %v902, %v898
      %v1343 = vpack.c.b16 %v903, %v899
      %v1344 = vpack.c.b16 %v904, %v900
      %v1345 = vpack.c.b16 %v909, %v905
      %v1346 = vpack.c.b16 %v910, %v906
      %v1347 = vpack.c.b16 %v911, %v907
      %v1348 = vpack.c.b16 %v912, %v908
      %v1349 = vpack.c.b16 %v917, %v913
      %v1350 = vpack.c.b16 %v918, %v914
      %v1351 = vpack.c.b16 %v919, %v915
      %v1352 = vpack.c.b16 %v920, %v916
      %v1353 = vpack.c.b16 %v925, %v921
      %v1354 = vpack.c.b16 %v926, %v922
      %v1355 = vpack.c.b16 %v927, %v923
      %v1356 = vpack.c.b16 %v928, %v924
      %v1357 = vpack.c.b16 %v933, %v929
      %v1358 = vpack.c.b16 %v934, %v930
      %v1359 = vpack.c.b16 %v935, %v931
      %v1360 = vpack.c.b16 %v936, %v932
      %v1361 = vpack.c.b16 %v941, %v937
      %v1362 = vpack.c.b16 %v942, %v938
      %v1363 = vpack.c.b16 %v943, %v939
      %v1364 = vpack.c.b16 %v944, %v940
      %v1365 = vpack.c.b16 %v949, %v945
      %v1366 = vpack.c.b16 %v950, %v946
      %v1367 = vpack.c.b16 %v951, %v947
      %v1368 = vpack.c.b16 %v952, %v948
      %v1369 = vpack.c.b16 %v957, %v953
      %v1370 = vpack.c.b16 %v958, %v954
      %v1371 = vpack.c.b16 %v959, %v955
      %v1372 = vpack.c.b16 %v960, %v956
      %v1373 = vpack.c.b16 %v965, %v961
      %v1374 = vpack.c.b16 %v966, %v962
      %v1375 = vpack.c.b16 %v967, %v963
      %v1376 = vpack.c.b16 %v968, %v964
      %v1377 = vpack.c.b16 %v973, %v969
      %v1378 = vpack.c.b16 %v974, %v970
      %v1379 = vpack.c.b16 %v975, %v971
      %v1380 = vpack.c.b16 %v976, %v972
      %v1381 = vpack.c.b16 %v981, %v977
      %v1382 = vpack.c.b16 %v982, %v978
      %v1383 = vpack.c.b16 %v983, %v979
      %v1384 = vpack.c.b16 %v984, %v980
      %v1385 = vpack.c.b16 %v989, %v985
      %v1386 = vpack.c.b16 %v990, %v986
      %v1387 = vpack.c.b16 %v991, %v987
      %v1388 = vpack.c.b16 %v992, %v988
      %v1389 = vpack.c.b16 %v997, %v993
      %v1390 = vpack.c.b16 %v998, %v994
      %v1391 = vpack.c.b16 %v999, %v995
      %v1392 = vpack.c.b16 %v1000, %v996
      %v1393 = vpack.c.b16 %v1005, %v1001
      %v1394 = vpack.c.b16 %v1006, %v1002
      %v1395 = vpack.c.b16 %v1007, %v1003
      %v1396 = vpack.c.b16 %v1008, %v1004
      %v1397 = vpack.c.b16 %v1013, %v1009
      %v1398 = vpack.c.b16 %v1014, %v1010
      %v1399 = vpack.c.b16 %v1015, %v1011
      %v1400 = vpack.c.b16 %v1016, %v1012
      %v1401 = vpack.c.b16 %v1021, %v1017
      %v1402 = vpack.c.b16 %v1022, %v1018
      %v1403 = vpack.c.b16 %v1023, %v1019
      %v1404 = vpack.c.b16 %v1024, %v1020
      %v1405 = vpack.c.b16 %v1029, %v1025
      %v1406 = vpack.c.b16 %v1030, %v1026
      %v1407 = vpack.c.b16 %v1031, %v1027
      %v1408 = vpack.c.b16 %v1032, %v1028
      %v1409 = vpack.c.b16 %v1037, %v1033
      %v1410 = vpack.c.b16 %v1038, %v1034
      %v1411 = vpack.c.b16 %v1039, %v1035
      %v1412 = vpack.c.b16 %v1040, %v1036
      %v1413 = vpack.c.b16 %v1045, %v1041
      %v1414 = vpack.c.b16 %v1046, %v1042
      %v1415 = vpack.c.b16 %v1047, %v1043
      %v1416 = vpack.c.b16 %v1048, %v1044
      %v1417 = vpack.c.b16 %v1053, %v1049
      %v1418 = vpack.c.b16 %v1054, %v1050
      %v1419 = vpack.c.b16 %v1055, %v1051
      %v1420 = vpack.c.b16 %v1056, %v1052
      %v1421 = vpack.c.b16 %v1061, %v1057
      %v1422 = vpack.c.b16 %v1062, %v1058
      %v1423 = vpack.c.b16 %v1063, %v1059
      %v1424 = vpack.c.b16 %v1064, %v1060
      %v1425 = vpack.c.b16 %v1069, %v1065
      %v1426 = vpack.c.b16 %v1070, %v1066
      %v1427 = vpack.c.b16 %v1071, %v1067
      %v1428 = vpack.c.b16 %v1072, %v1068
      %v1429 = vpack.c.b16 %v1077, %v1073
      %v1430 = vpack.c.b16 %v1078, %v1074
      %v1431 = vpack.c.b16 %v1079, %v1075
      %v1432 = vpack.c.b16 %v1080, %v1076
      %v1433 = vpack.c.b16 %v1085, %v1081
      %v1434 = vpack.c.b16 %v1086, %v1082
      %v1435 = vpack.c.b16 %v1087, %v1083
      %v1436 = vpack.c.b16 %v1088, %v1084
      %v1437 = vpack.c.b16 %v1093, %v1089
      %v1438 = vpack.c.b16 %v1094, %v1090
      %v1439 = vpack.c.b16 %v1095, %v1091
      %v1440 = vpack.c.b16 %v1096, %v1092
      %v1441 = vpack.c.b16 %v1101, %v1097
      %v1442 = vpack.c.b16 %v1102, %v1098
      %v1443 = vpack.c.b16 %v1103, %v1099
      %v1444 = vpack.c.b16 %v1104, %v1100
      %v1445 = vpack.c.b16 %v1109, %v1105
      %v1446 = vpack.c.b16 %v1110, %v1106
      %v1447 = vpack.c.b16 %v1111, %v1107
      %v1448 = vpack.c.b16 %v1112, %v1108
      %v1449 = vpack.c.b16 %v1117, %v1113
      %v1450 = vpack.c.b16 %v1118, %v1114
      %v1451 = vpack.c.b16 %v1119, %v1115
      %v1452 = vpack.c.b16 %v1120, %v1116
      %v1453 = vpack.c.b16 %v1125, %v1121
      %v1454 = vpack.c.b16 %v1126, %v1122
      %v1455 = vpack.c.b16 %v1127, %v1123
      %v1456 = vpack.c.b16 %v1128, %v1124
      %v1457 = vpack.c.b16 %v1133, %v1129
      %v1458 = vpack.c.b16 %v1134, %v1130
      %v1459 = vpack.c.b16 %v1135, %v1131
      %v1460 = vpack.c.b16 %v1136, %v1132
      %v1461 = vpack.c.b16 %v1141, %v1137
      %v1462 = vpack.c.b16 %v1142, %v1138
      %v1463 = vpack.c.b16 %v1143, %v1139
      %v1464 = vpack.c.b16 %v1144, %v1140
      %v1465 = vpack.c.b16 %v1149, %v1145
      %v1466 = vpack.c.b16 %v1150, %v1146
      %v1467 = vpack.c.b16 %v1151, %v1147
      %v1468 = vpack.c.b16 %v1152, %v1148
      %v1469 = vpack.c.b16 %v1157, %v1153
      %v1470 = vpack.c.b16 %v1158, %v1154
      %v1471 = vpack.c.b16 %v1159, %v1155
      %v1472 = vpack.c.b16 %v1160, %v1156
      %v1473 = vpack.c.b16 %v1165, %v1161
      %v1474 = vpack.c.b16 %v1166, %v1162
      %v1475 = vpack.c.b16 %v1167, %v1163
      %v1476 = vpack.c.b16 %v1168, %v1164
      %v1477 = vpack.c.b16 %v1173, %v1169
      %v1478 = vpack.c.b16 %v1174, %v1170
      %v1479 = vpack.c.b16 %v1175, %v1171
      %v1480 = vpack.c.b16 %v1176, %v1172
      %v1481 = vpack.c.b16 %v1181, %v1177
      %v1482 = vpack.c.b16 %v1182, %v1178
      %v1483 = vpack.c.b16 %v1183, %v1179
      %v1484 = vpack.c.b16 %v1184, %v1180
      %v1485 = vpack.c.b16 %v1189, %v1185
      %v1486 = vpack.c.b16 %v1190, %v1186
      %v1487 = vpack.c.b16 %v1191, %v1187
      %v1488 = vpack.c.b16 %v1192, %v1188
      %v1489 = vpack.c.b16 %v1197, %v1193
      %v1490 = vpack.c.b16 %v1198, %v1194
      %v1491 = vpack.c.b16 %v1199, %v1195
      %v1492 = vpack.c.b16 %v1200, %v1196
      %v1493 = vpack.c.b16 %v1205, %v1201
      %v1494 = vpack.c.b16 %v1206, %v1202
      %v1495 = vpack.c.b16 %v1207, %v1203
      %v1496 = vpack.c.b16 %v1208, %v1204
      %v1497 = vpack.c.b16 %v1213, %v1209
      %v1498 = vpack.c.b16 %v1214, %v1210
      %v1499 = vpack.c.b16 %v1215, %v1211
      %v1500 = vpack.c.b16 %v1216, %v1212
      %v1501 = vpack.c.b16 %v1221, %v1217
      %v1502 = vpack.c.b16 %v1222, %v1218
      %v1503 = vpack.c.b16 %v1223, %v1219
      %v1504 = vpack.c.b16 %v1224, %v1220
      %v1505 = vpack.c.b16 %v1229, %v1225
      %v1506 = vpack.c.b16 %v1230, %v1226
      %v1507 = vpack.c.b16 %v1231, %v1227
      %v1508 = vpack.c.b16 %v1232, %v1228
      %v1509 = vpack.c.b16 %v1237, %v1233
      %v1510 = vpack.c.b16 %v1238, %v1234
      %v1511 = vpack.c.b16 %v1239, %v1235
      %v1512 = vpack.c.b16 %v1240, %v1236
      %v1513 = vpack.c.b16 %v1245, %v1241
      %v1514 = vpack.c.b16 %v1246, %v1242
      %v1515 = vpack.c.b16 %v1247, %v1243
      %v1516 = vpack.c.b16 %v1248, %v1244
      %v1517 = vpack.c.b16 %v1253, %v1249
      %v1518 = vpack.c.b16 %v1254, %v1250
      %v1519 = vpack.c.b16 %v1255, %v1251
      %v1520 = vpack.c.b16 %v1256, %v1252
      %v1521 = vpack.c.b16 %v1261, %v1257
      %v1522 = vpack.c.b16 %v1262, %v1258
      %v1523 = vpack.c.b16 %v1263, %v1259
      %v1524 = vpack.c.b16 %v1264, %v1260
      %v1525 = vpack.c.b16 %v1269, %v1265
      %v1526 = vpack.c.b16 %v1270, %v1266
      %v1527 = vpack.c.b16 %v1271, %v1267
      %v1528 = vpack.c.b16 %v1272, %v1268
      %v1849 = vunpack.c.l.b16 %v434
      %v1850 = vunpack.c.l.b16 %v435
      %v1851 = vunpack.c.l.b16 %v436
      %v1852 = vunpack.c.l.b16 %v437
      %v1853 = vunpack.c.l.b16 %v438
      %v1854 = vunpack.c.l.b16 %v439
      %v1855 = vunpack.c.l.b16 %v440
      %v1856 = vunpack.c.l.b16 %v441
      %v1857 = vunpack.c.l.b16 %v442
      %v1858 = vunpack.c.l.b16 %v443
      %v1859 = vunpack.c.l.b16 %v444
      %v1860 = vunpack.c.l.b16 %v445
      %v1861 = vunpack.c.l.b16 %v446
      %v1862 = vunpack.c.l.b16 %v447
      %v1863 = vunpack.c.l.b16 %v448
      %v1864 = vunpack.c.l.b16 %v449
      %v1865 = vunpack.c.l.b16 %v450
      %v1866 = vunpack.c.l.b16 %v451
      %v1867 = vunpack.c.l.b16 %v452
      %v1868 = vunpack.c.l.b16 %v453
      %v1869 = vunpack.c.l.b16 %v454
      %v1870 = vunpack.c.l.b16 %v455
      %v1871 = vunpack.c.l.b16 %v456
      %v1872 = vunpack.c.l.b16 %v457
      %v1873 = vunpack.c.l.b16 %v458
      %v1874 = vunpack.c.l.b16 %v459
      %v1875 = vunpack.c.l.b16 %v460
      %v1876 = vunpack.c.l.b16 %v461
      %v1877 = vunpack.c.l.b16 %v462
      %v1878 = vunpack.c.l.b16 %v463
      %v1879 = vunpack.c.l.b16 %v464
      %v1880 = vunpack.c.l.b16 %v465
      %v1881 = vunpack.c.l.b16 %v466
      %v1882 = vunpack.c.l.b16 %v467
      %v1883 = vunpack.c.l.b16 %v468
      %v1884 = vunpack.c.l.b16 %v469
      %v1885 = vunpack.c.l.b16 %v470
      %v1886 = vunpack.c.l.b16 %v471
      %v1887 = vunpack.c.l.b16 %v472
      %v1888 = vunpack.c.l.b16 %v473
      %v1889 = vunpack.c.l.b16 %v474
      %v1890 = vunpack.c.l.b16 %v475
      %v1891 = vunpack.c.l.b16 %v476
      %v1892 = vunpack.c.l.b16 %v477
      %v1893 = vunpack.c.l.b16 %v478
      %v1894 = vunpack.c.l.b16 %v479
      %v1895 = vunpack.c.l.b16 %v480
      %v1896 = vunpack.c.l.b16 %v481
      %v1897 = vunpack.c.l.b16 %v482
      %v1898 = vunpack.c.l.b16 %v483
      %v1899 = vunpack.c.l.b16 %v484
      %v1900 = vunpack.c.l.b16 %v485
      %v1901 = vunpack.c.l.b16 %v486
      %v1902 = vunpack.c.l.b16 %v487
      %v1903 = vunpack.c.l.b16 %v488
      %v1904 = vunpack.c.l.b16 %v489
      %v1905 = vunpack.c.l.b16 %v490
      %v1906 = vunpack.c.l.b16 %v491
      %v1907 = vunpack.c.l.b16 %v492
      %v1908 = vunpack.c.l.b16 %v493
      %v1909 = vunpack.c.l.b16 %v494
      %v1910 = vunpack.c.l.b16 %v495
      %v1911 = vunpack.c.l.b16 %v496
      %v1912 = vunpack.c.l.b16 %v497
      %v1913 = vpack.c.b16 %v1850, %v1849
      %v1914 = vpack.c.b16 %v1852, %v1851
      %v1915 = vpack.c.b16 %v1854, %v1853
      %v1916 = vpack.c.b16 %v1856, %v1855
      %v1917 = vpack.c.b16 %v1858, %v1857
      %v1918 = vpack.c.b16 %v1860, %v1859
      %v1919 = vpack.c.b16 %v1862, %v1861
      %v1920 = vpack.c.b16 %v1864, %v1863
      %v1921 = vpack.c.b16 %v1866, %v1865
      %v1922 = vpack.c.b16 %v1868, %v1867
      %v1923 = vpack.c.b16 %v1870, %v1869
      %v1924 = vpack.c.b16 %v1872, %v1871
      %v1925 = vpack.c.b16 %v1874, %v1873
      %v1926 = vpack.c.b16 %v1876, %v1875
      %v1927 = vpack.c.b16 %v1878, %v1877
      %v1928 = vpack.c.b16 %v1880, %v1879
      %v1929 = vpack.c.b16 %v1882, %v1881
      %v1930 = vpack.c.b16 %v1884, %v1883
      %v1931 = vpack.c.b16 %v1886, %v1885
      %v1932 = vpack.c.b16 %v1888, %v1887
      %v1933 = vpack.c.b16 %v1890, %v1889
      %v1934 = vpack.c.b16 %v1892, %v1891
      %v1935 = vpack.c.b16 %v1894, %v1893
      %v1936 = vpack.c.b16 %v1896, %v1895
      %v1937 = vpack.c.b16 %v1898, %v1897
      %v1938 = vpack.c.b16 %v1900, %v1899
      %v1939 = vpack.c.b16 %v1902, %v1901
      %v1940 = vpack.c.b16 %v1904, %v1903
      %v1941 = vpack.c.b16 %v1906, %v1905
      %v1942 = vpack.c.b16 %v1908, %v1907
      %v1943 = vpack.c.b16 %v1910, %v1909
      %v1944 = vpack.c.b16 %v1912, %v1911
      %1977 = vmatprep.subr.bf16.mxu0 0
      %1978 = vmatpush1.bf16.msra.mxu0 %v1913
      %1979 = vmatprep.subr.bf16.mxu0 0
      %1980 = vmatpush1.bf16.msra.mxu0 %v1914
      %1981 = vmatprep.subr.bf16.mxu0 0
      %1982 = vmatpush1.bf16.msra.mxu0 %v1915
      %1983 = vmatprep.subr.bf16.mxu0 0
      %1984 = vmatpush1.bf16.msra.mxu0 %v1916
      %1985 = vmatprep.subr.bf16.mxu0 0
      %1986 = vmatpush1.bf16.msra.mxu0 %v1917
      %1987 = vmatprep.subr.bf16.mxu0 0
      %1988 = vmatpush1.bf16.msra.mxu0 %v1918
      %1989 = vmatprep.subr.bf16.mxu0 0
      %1990 = vmatpush1.bf16.msra.mxu0 %v1919
      %1991 = vmatprep.subr.bf16.mxu0 0
      %1992 = vmatpush1.bf16.msra.mxu0 %v1920
      %1993 = vmatprep.subr.bf16.mxu0 0
      %1994 = vmatpush1.bf16.msra.mxu0 %v1921
      %1995 = vmatprep.subr.bf16.mxu0 0
      %1996 = vmatpush1.bf16.msra.mxu0 %v1922
      %1997 = vmatprep.subr.bf16.mxu0 0
      %1998 = vmatpush1.bf16.msra.mxu0 %v1923
      %1999 = vmatprep.subr.bf16.mxu0 0
      %2000 = vmatpush1.bf16.msra.mxu0 %v1924
      %2001 = vmatprep.subr.bf16.mxu0 0
      %2002 = vmatpush1.bf16.msra.mxu0 %v1925
      %2003 = vmatprep.subr.bf16.mxu0 0
      %2004 = vmatpush1.bf16.msra.mxu0 %v1926
      %2005 = vmatprep.subr.bf16.mxu0 0
      %2006 = vmatpush1.bf16.msra.mxu0 %v1927
      %2007 = vmatprep.subr.bf16.mxu0 0
      %2008 = vmatpush1.bf16.msra.mxu0 %v1928
      %2009 = vmatprep.mubr.bf16.mxu0 %v1274
      %2010 = vmatmul.mubr.bf16.gmra.mrb[0].mxu0 %v1273
      %v2011 = vpop.f32.mrb[0].mxu0
      %v2012 = vadd.f32 %v503, %v2011
      %v2013 = vpop.f32.mrb[0].mxu0
      %v2014 = vpop.f32.mrb[0].mxu0
      %v2015 = vadd.f32 %v503, %v2014
      %v2016 = vpop.f32.mrb[0].mxu0
      %2017 = vmatprep.mubr.bf16.mxu0 %v1278
      %2018 = vmatmul.mubr.bf16.gmra.mrb[0].mxu0 %v1277
      %v2019 = vpop.f32.mrb[0].mxu0
      %v2020 = vadd.f32 %v503, %v2019
      %v2021 = vpop.f32.mrb[0].mxu0
      %v2022 = vpop.f32.mrb[0].mxu0
      %v2023 = vadd.f32 %v503, %v2022
      %v2024 = vpop.f32.mrb[0].mxu0
      %2025 = vmatprep.mubr.bf16.mxu0 %v1282
      %2026 = vmatmul.mubr.bf16.gmra.mrb[0].mxu0 %v1281
      %v2027 = vpop.f32.mrb[0].mxu0
      %v2028 = vadd.f32 %v503, %v2027
      %v2029 = vpop.f32.mrb[0].mxu0
      %v2030 = vpop.f32.mrb[0].mxu0
      %v2031 = vadd.f32 %v503, %v2030
      %v2032 = vpop.f32.mrb[0].mxu0
      %2033 = vmatprep.mubr.bf16.mxu0 %v1286
      %2034 = vmatmul.mubr.bf16.gmra.mrb[0].mxu0 %v1285
      %v2035 = vpop.f32.mrb[0].mxu0
      %v2036 = vadd.f32 %v503, %v2035
      %v2037 = vpop.f32.mrb[0].mxu0
      %v2038 = vpop.f32.mrb[0].mxu0
      %v2039 = vadd.f32 %v503, %v2038
      %v2040 = vpop.f32.mrb[0].mxu0
      %2041 = vmatprep.mubr.bf16.mxu0 %v1290
      %2042 = vmatmul.mubr.bf16.gmra.mrb[0].mxu0 %v1289
      %v2043 = vpop.f32.mrb[0].mxu0
      %v2044 = vadd.f32 %v503, %v2043
      %v2045 = vpop.f32.mrb[0].mxu0
      %v2046 = vpop.f32.mrb[0].mxu0
      %v2047 = vadd.f32 %v503, %v2046
      %v2048 = vpop.f32.mrb[0].mxu0
      %2049 = vmatprep.mubr.bf16.mxu0 %v1294
      %2050 = vmatmul.mubr.bf16.gmra.mrb[0].mxu0 %v1293
      %v2051 = vpop.f32.mrb[0].mxu0
      %v2052 = vadd.f32 %v503, %v2051
      %v2053 = vpop.f32.mrb[0].mxu0
      %v2054 = vpop.f32.mrb[0].mxu0
      %v2055 = vadd.f32 %v503, %v2054
      %v2056 = vpop.f32.mrb[0].mxu0
      %2057 = vmatprep.mubr.bf16.mxu0 %v1298
      %2058 = vmatmul.mubr.bf16.gmra.mrb[0].mxu0 %v1297
      %v2059 = vpop.f32.mrb[0].mxu0
      %v2060 = vadd.f32 %v503, %v2059
      %v2061 = vpop.f32.mrb[0].mxu0
      %v2062 = vpop.f32.mrb[0].mxu0
      %v2063 = vadd.f32 %v503, %v2062
      %v2064 = vpop.f32.mrb[0].mxu0
      %2065 = vmatprep.mubr.bf16.mxu0 %v1302
      %2066 = vmatmul.mubr.bf16.gmra.mrb[0].mxu0 %v1301
      %v2067 = vpop.f32.mrb[0].mxu0
      %v2068 = vadd.f32 %v503, %v2067
      %v2069 = vpop.f32.mrb[0].mxu0
      %v2070 = vpop.f32.mrb[0].mxu0
      %v2071 = vadd.f32 %v503, %v2070
      %v2072 = vpop.f32.mrb[0].mxu0
      %2073 = vmatprep.mubr.bf16.mxu0 %v1306
      %2074 = vmatmul.mubr.bf16.gmra.mrb[0].mxu0 %v1305
      %v2075 = vpop.f32.mrb[0].mxu0
      %v2076 = vadd.f32 %v503, %v2075
      %v2077 = vpop.f32.mrb[0].mxu0
      %v2078 = vpop.f32.mrb[0].mxu0
      %v2079 = vadd.f32 %v503, %v2078
      %v2080 = vpop.f32.mrb[0].mxu0
      %2081 = vmatprep.mubr.bf16.mxu0 %v1310
      %2082 = vmatmul.mubr.bf16.gmra.mrb[0].mxu0 %v1309
      %v2083 = vpop.f32.mrb[0].mxu0
      %v2084 = vadd.f32 %v503, %v2083
      %v2085 = vpop.f32.mrb[0].mxu0
      %v2086 = vpop.f32.mrb[0].mxu0
      %v2087 = vadd.f32 %v503, %v2086
      %v2088 = vpop.f32.mrb[0].mxu0
      %2089 = vmatprep.mubr.bf16.mxu0 %v1314
      %2090 = vmatmul.mubr.bf16.gmra.mrb[0].mxu0 %v1313
      %v2091 = vpop.f32.mrb[0].mxu0
      %v2092 = vadd.f32 %v503, %v2091
      %v2093 = vpop.f32.mrb[0].mxu0
      %v2094 = vpop.f32.mrb[0].mxu0
      %v2095 = vadd.f32 %v503, %v2094
      %v2096 = vpop.f32.mrb[0].mxu0
      %2097 = vmatprep.mubr.bf16.mxu0 %v1318
      %2098 = vmatmul.mubr.bf16.gmra.mrb[0].mxu0 %v1317
      %v2099 = vpop.f32.mrb[0].mxu0
      %v2100 = vadd.f32 %v503, %v2099
      %v2101 = vpop.f32.mrb[0].mxu0
      %v2102 = vpop.f32.mrb[0].mxu0
      %v2103 = vadd.f32 %v503, %v2102
      %v2104 = vpop.f32.mrb[0].mxu0
      %2105 = vmatprep.mubr.bf16.mxu0 %v1322
      %2106 = vmatmul.mubr.bf16.gmra.mrb[0].mxu0 %v1321
      %v2107 = vpop.f32.mrb[0].mxu0
      %v2108 = vadd.f32 %v503, %v2107
      %v2109 = vpop.f32.mrb[0].mxu0
      %v2110 = vpop.f32.mrb[0].mxu0
      %v2111 = vadd.f32 %v503, %v2110
      %v2112 = vpop.f32.mrb[0].mxu0
      %2113 = vmatprep.mubr.bf16.mxu0 %v1326
      %2114 = vmatmul.mubr.bf16.gmra.mrb[0].mxu0 %v1325
      %v2115 = vpop.f32.mrb[0].mxu0
      %v2116 = vadd.f32 %v503, %v2115
      %v2117 = vpop.f32.mrb[0].mxu0
      %v2118 = vpop.f32.mrb[0].mxu0
      %v2119 = vadd.f32 %v503, %v2118
      %v2120 = vpop.f32.mrb[0].mxu0
      %2121 = vmatprep.mubr.bf16.mxu0 %v1330
      %2122 = vmatmul.mubr.bf16.gmra.mrb[0].mxu0 %v1329
      %v2123 = vpop.f32.mrb[0].mxu0
      %v2124 = vadd.f32 %v503, %v2123
      %v2125 = vpop.f32.mrb[0].mxu0
      %v2126 = vpop.f32.mrb[0].mxu0
      %v2127 = vadd.f32 %v503, %v2126
      %v2128 = vpop.f32.mrb[0].mxu0
      %2129 = vmatprep.mubr.bf16.mxu0 %v1334
      %2130 = vmatmul.mubr.bf16.gmra.mrb[0].mxu0 %v1333
      %v2131 = vpop.f32.mrb[0].mxu0
      %v2132 = vadd.f32 %v503, %v2131
      %v2133 = vpop.f32.mrb[0].mxu0
      %v2134 = vpop.f32.mrb[0].mxu0
      %v2135 = vadd.f32 %v503, %v2134
      %v2136 = vpop.f32.mrb[0].mxu0
      %2137 = vmatprep.mubr.bf16.mxu0 %v1338
      %2138 = vmatmul.mubr.bf16.gmra.mrb[0].mxu0 %v1337
      %v2139 = vpop.f32.mrb[0].mxu0
      %v2140 = vadd.f32 %v503, %v2139
      %v2141 = vpop.f32.mrb[0].mxu0
      %v2142 = vpop.f32.mrb[0].mxu0
      %v2143 = vadd.f32 %v503, %v2142
      %v2144 = vpop.f32.mrb[0].mxu0
      %2145 = vmatprep.mubr.bf16.mxu0 %v1342
      %2146 = vmatmul.mubr.bf16.gmra.mrb[0].mxu0 %v1341
      %v2147 = vpop.f32.mrb[0].mxu0
      %v2148 = vadd.f32 %v503, %v2147
      %v2149 = vpop.f32.mrb[0].mxu0
      %v2150 = vpop.f32.mrb[0].mxu0
      %v2151 = vadd.f32 %v503, %v2150
      %v2152 = vpop.f32.mrb[0].mxu0
      %2153 = vmatprep.mubr.bf16.mxu0 %v1346
      %2154 = vmatmul.mubr.bf16.gmra.mrb[0].mxu0 %v1345
      %v2155 = vpop.f32.mrb[0].mxu0
      %v2156 = vadd.f32 %v503, %v2155
      %v2157 = vpop.f32.mrb[0].mxu0
      %v2158 = vpop.f32.mrb[0].mxu0
      %v2159 = vadd.f32 %v503, %v2158
      %v2160 = vpop.f32.mrb[0].mxu0
      %2161 = vmatprep.mubr.bf16.mxu0 %v1350
      %2162 = vmatmul.mubr.bf16.gmra.mrb[0].mxu0 %v1349
      %v2163 = vpop.f32.mrb[0].mxu0
      %v2164 = vadd.f32 %v503, %v2163
      %v2165 = vpop.f32.mrb[0].mxu0
      %v2166 = vpop.f32.mrb[0].mxu0
      %v2167 = vadd.f32 %v503, %v2166
      %v2168 = vpop.f32.mrb[0].mxu0
      %2169 = vmatprep.mubr.bf16.mxu0 %v1354
      %2170 = vmatmul.mubr.bf16.gmra.mrb[0].mxu0 %v1353
      %v2171 = vpop.f32.mrb[0].mxu0
      %v2172 = vadd.f32 %v503, %v2171
      %v2173 = vpop.f32.mrb[0].mxu0
      %v2174 = vpop.f32.mrb[0].mxu0
      %v2175 = vadd.f32 %v503, %v2174
      %v2176 = vpop.f32.mrb[0].mxu0
      %2177 = vmatprep.mubr.bf16.mxu0 %v1358
      %2178 = vmatmul.mubr.bf16.gmra.mrb[0].mxu0 %v1357
      %v2179 = vpop.f32.mrb[0].mxu0
      %v2180 = vadd.f32 %v503, %v2179
      %v2181 = vpop.f32.mrb[0].mxu0
      %v2182 = vpop.f32.mrb[0].mxu0
      %v2183 = vadd.f32 %v503, %v2182
      %v2184 = vpop.f32.mrb[0].mxu0
      %2185 = vmatprep.mubr.bf16.mxu0 %v1362
      %2186 = vmatmul.mubr.bf16.gmra.mrb[0].mxu0 %v1361
      %v2187 = vpop.f32.mrb[0].mxu0
      %v2188 = vadd.f32 %v503, %v2187
      %v2189 = vpop.f32.mrb[0].mxu0
      %v2190 = vpop.f32.mrb[0].mxu0
      %v2191 = vadd.f32 %v503, %v2190
      %v2192 = vpop.f32.mrb[0].mxu0
      %2193 = vmatprep.mubr.bf16.mxu0 %v1366
      %2194 = vmatmul.mubr.bf16.gmra.mrb[0].mxu0 %v1365
      %v2195 = vpop.f32.mrb[0].mxu0
      %v2196 = vadd.f32 %v503, %v2195
      %v2197 = vpop.f32.mrb[0].mxu0
      %v2198 = vpop.f32.mrb[0].mxu0
      %v2199 = vadd.f32 %v503, %v2198
      %v2200 = vpop.f32.mrb[0].mxu0
      %2201 = vmatprep.mubr.bf16.mxu0 %v1370
      %2202 = vmatmul.mubr.bf16.gmra.mrb[0].mxu0 %v1369
      %v2203 = vpop.f32.mrb[0].mxu0
      %v2204 = vadd.f32 %v503, %v2203
      %v2205 = vpop.f32.mrb[0].mxu0
      %v2206 = vpop.f32.mrb[0].mxu0
      %v2207 = vadd.f32 %v503, %v2206
      %v2208 = vpop.f32.mrb[0].mxu0
      %2209 = vmatprep.mubr.bf16.mxu0 %v1374
      %2210 = vmatmul.mubr.bf16.gmra.mrb[0].mxu0 %v1373
      %v2211 = vpop.f32.mrb[0].mxu0
      %v2212 = vadd.f32 %v503, %v2211
      %v2213 = vpop.f32.mrb[0].mxu0
      %v2214 = vpop.f32.mrb[0].mxu0
      %v2215 = vadd.f32 %v503, %v2214
      %v2216 = vpop.f32.mrb[0].mxu0
      %2217 = vmatprep.mubr.bf16.mxu0 %v1378
      %2218 = vmatmul.mubr.bf16.gmra.mrb[0].mxu0 %v1377
      %v2219 = vpop.f32.mrb[0].mxu0
      %v2220 = vadd.f32 %v503, %v2219
      %v2221 = vpop.f32.mrb[0].mxu0
      %v2222 = vpop.f32.mrb[0].mxu0
      %v2223 = vadd.f32 %v503, %v2222
      %v2224 = vpop.f32.mrb[0].mxu0
      %2225 = vmatprep.mubr.bf16.mxu0 %v1382
      %2226 = vmatmul.mubr.bf16.gmra.mrb[0].mxu0 %v1381
      %v2227 = vpop.f32.mrb[0].mxu0
      %v2228 = vadd.f32 %v503, %v2227
      %v2229 = vpop.f32.mrb[0].mxu0
      %v2230 = vpop.f32.mrb[0].mxu0
      %v2231 = vadd.f32 %v503, %v2230
      %v2232 = vpop.f32.mrb[0].mxu0
      %2233 = vmatprep.mubr.bf16.mxu0 %v1386
      %2234 = vmatmul.mubr.bf16.gmra.mrb[0].mxu0 %v1385
      %v2235 = vpop.f32.mrb[0].mxu0
      %v2236 = vadd.f32 %v503, %v2235
      %v2237 = vpop.f32.mrb[0].mxu0
      %v2238 = vpop.f32.mrb[0].mxu0
      %v2239 = vadd.f32 %v503, %v2238
      %v2240 = vpop.f32.mrb[0].mxu0
      %2241 = vmatprep.mubr.bf16.mxu0 %v1390
      %2242 = vmatmul.mubr.bf16.gmra.mrb[0].mxu0 %v1389
      %v2243 = vpop.f32.mrb[0].mxu0
      %v2244 = vadd.f32 %v503, %v2243
      %v2245 = vpop.f32.mrb[0].mxu0
      %v2246 = vpop.f32.mrb[0].mxu0
      %v2247 = vadd.f32 %v503, %v2246
      %v2248 = vpop.f32.mrb[0].mxu0
      %2249 = vmatprep.mubr.bf16.mxu0 %v1394
      %2250 = vmatmul.mubr.bf16.gmra.mrb[0].mxu0 %v1393
      %v2251 = vpop.f32.mrb[0].mxu0
      %v2252 = vadd.f32 %v503, %v2251
      %v2253 = vpop.f32.mrb[0].mxu0
      %v2254 = vpop.f32.mrb[0].mxu0
      %v2255 = vadd.f32 %v503, %v2254
      %v2256 = vpop.f32.mrb[0].mxu0
      %2257 = vmatprep.mubr.bf16.mxu0 %v1398
      %2258 = vmatmul.mubr.bf16.gmra.mrb[0].mxu0 %v1397
      %v2259 = vpop.f32.mrb[0].mxu0
      %v2260 = vadd.f32 %v503, %v2259
      %v2261 = vpop.f32.mrb[0].mxu0
      %v2262 = vpop.f32.mrb[0].mxu0
      %v2263 = vadd.f32 %v503, %v2262
      %v2264 = vpop.f32.mrb[0].mxu0
      %2265 = vmatprep.mubr.bf16.mxu0 %v1402
      %2266 = vmatmul.mubr.bf16.gmra.mrb[0].mxu0 %v1401
      %v2267 = vpop.f32.mrb[0].mxu0
      %v2268 = vadd.f32 %v503, %v2267
      %v2269 = vpop.f32.mrb[0].mxu0
      %v2270 = vpop.f32.mrb[0].mxu0
      %v2271 = vadd.f32 %v503, %v2270
      %v2272 = vpop.f32.mrb[0].mxu0
      %2273 = vmatprep.mubr.bf16.mxu0 %v1406
      %2274 = vmatmul.mubr.bf16.gmra.mrb[0].mxu0 %v1405
      %v2275 = vpop.f32.mrb[0].mxu0
      %v2276 = vadd.f32 %v503, %v2275
      %v2277 = vpop.f32.mrb[0].mxu0
      %v2278 = vpop.f32.mrb[0].mxu0
      %v2279 = vadd.f32 %v503, %v2278
      %v2280 = vpop.f32.mrb[0].mxu0
      %2281 = vmatprep.mubr.bf16.mxu0 %v1410
      %2282 = vmatmul.mubr.bf16.gmra.mrb[0].mxu0 %v1409
      %v2283 = vpop.f32.mrb[0].mxu0
      %v2284 = vadd.f32 %v503, %v2283
      %v2285 = vpop.f32.mrb[0].mxu0
      %v2286 = vpop.f32.mrb[0].mxu0
      %v2287 = vadd.f32 %v503, %v2286
      %v2288 = vpop.f32.mrb[0].mxu0
      %2289 = vmatprep.mubr.bf16.mxu0 %v1414
      %2290 = vmatmul.mubr.bf16.gmra.mrb[0].mxu0 %v1413
      %v2291 = vpop.f32.mrb[0].mxu0
      %v2292 = vadd.f32 %v503, %v2291
      %v2293 = vpop.f32.mrb[0].mxu0
      %v2294 = vpop.f32.mrb[0].mxu0
      %v2295 = vadd.f32 %v503, %v2294
      %v2296 = vpop.f32.mrb[0].mxu0
      %2297 = vmatprep.mubr.bf16.mxu0 %v1418
      %2298 = vmatmul.mubr.bf16.gmra.mrb[0].mxu0 %v1417
      %v2299 = vpop.f32.mrb[0].mxu0
      %v2300 = vadd.f32 %v503, %v2299
      %v2301 = vpop.f32.mrb[0].mxu0
      %v2302 = vpop.f32.mrb[0].mxu0
      %v2303 = vadd.f32 %v503, %v2302
      %v2304 = vpop.f32.mrb[0].mxu0
      %2305 = vmatprep.mubr.bf16.mxu0 %v1422
      %2306 = vmatmul.mubr.bf16.gmra.mrb[0].mxu0 %v1421
      %v2307 = vpop.f32.mrb[0].mxu0
      %v2308 = vadd.f32 %v503, %v2307
      %v2309 = vpop.f32.mrb[0].mxu0
      %v2310 = vpop.f32.mrb[0].mxu0
      %v2311 = vadd.f32 %v503, %v2310
      %v2312 = vpop.f32.mrb[0].mxu0
      %2313 = vmatprep.mubr.bf16.mxu0 %v1426
      %2314 = vmatmul.mubr.bf16.gmra.mrb[0].mxu0 %v1425
      %v2315 = vpop.f32.mrb[0].mxu0
      %v2316 = vadd.f32 %v503, %v2315
      %v2317 = vpop.f32.mrb[0].mxu0
      %v2318 = vpop.f32.mrb[0].mxu0
      %v2319 = vadd.f32 %v503, %v2318
      %v2320 = vpop.f32.mrb[0].mxu0
      %2321 = vmatprep.mubr.bf16.mxu0 %v1430
      %2322 = vmatmul.mubr.bf16.gmra.mrb[0].mxu0 %v1429
      %v2323 = vpop.f32.mrb[0].mxu0
      %v2324 = vadd.f32 %v503, %v2323
      %v2325 = vpop.f32.mrb[0].mxu0
      %v2326 = vpop.f32.mrb[0].mxu0
      %v2327 = vadd.f32 %v503, %v2326
      %v2328 = vpop.f32.mrb[0].mxu0
      %2329 = vmatprep.mubr.bf16.mxu0 %v1434
      %2330 = vmatmul.mubr.bf16.gmra.mrb[0].mxu0 %v1433
      %v2331 = vpop.f32.mrb[0].mxu0
      %v2332 = vadd.f32 %v503, %v2331
      %v2333 = vpop.f32.mrb[0].mxu0
      %v2334 = vpop.f32.mrb[0].mxu0
      %v2335 = vadd.f32 %v503, %v2334
      %v2336 = vpop.f32.mrb[0].mxu0
      %2337 = vmatprep.mubr.bf16.mxu0 %v1438
      %2338 = vmatmul.mubr.bf16.gmra.mrb[0].mxu0 %v1437
      %v2339 = vpop.f32.mrb[0].mxu0
      %v2340 = vadd.f32 %v503, %v2339
      %v2341 = vpop.f32.mrb[0].mxu0
      %v2342 = vpop.f32.mrb[0].mxu0
      %v2343 = vadd.f32 %v503, %v2342
      %v2344 = vpop.f32.mrb[0].mxu0
      %2345 = vmatprep.mubr.bf16.mxu0 %v1442
      %2346 = vmatmul.mubr.bf16.gmra.mrb[0].mxu0 %v1441
      %v2347 = vpop.f32.mrb[0].mxu0
      %v2348 = vadd.f32 %v503, %v2347
      %v2349 = vpop.f32.mrb[0].mxu0
      %v2350 = vpop.f32.mrb[0].mxu0
      %v2351 = vadd.f32 %v503, %v2350
      %v2352 = vpop.f32.mrb[0].mxu0
      %2353 = vmatprep.mubr.bf16.mxu0 %v1446
      %2354 = vmatmul.mubr.bf16.gmra.mrb[0].mxu0 %v1445
      %v2355 = vpop.f32.mrb[0].mxu0
      %v2356 = vadd.f32 %v503, %v2355
      %v2357 = vpop.f32.mrb[0].mxu0
      %v2358 = vpop.f32.mrb[0].mxu0
      %v2359 = vadd.f32 %v503, %v2358
      %v2360 = vpop.f32.mrb[0].mxu0
      %2361 = vmatprep.mubr.bf16.mxu0 %v1450
      %2362 = vmatmul.mubr.bf16.gmra.mrb[0].mxu0 %v1449
      %v2363 = vpop.f32.mrb[0].mxu0
      %v2364 = vadd.f32 %v503, %v2363
      %v2365 = vpop.f32.mrb[0].mxu0
      %v2366 = vpop.f32.mrb[0].mxu0
      %v2367 = vadd.f32 %v503, %v2366
      %v2368 = vpop.f32.mrb[0].mxu0
      %2369 = vmatprep.mubr.bf16.mxu0 %v1454
      %2370 = vmatmul.mubr.bf16.gmra.mrb[0].mxu0 %v1453
      %v2371 = vpop.f32.mrb[0].mxu0
      %v2372 = vadd.f32 %v503, %v2371
      %v2373 = vpop.f32.mrb[0].mxu0
      %v2374 = vpop.f32.mrb[0].mxu0
      %v2375 = vadd.f32 %v503, %v2374
      %v2376 = vpop.f32.mrb[0].mxu0
      %2377 = vmatprep.mubr.bf16.mxu0 %v1458
      %2378 = vmatmul.mubr.bf16.gmra.mrb[0].mxu0 %v1457
      %v2379 = vpop.f32.mrb[0].mxu0
      %v2380 = vadd.f32 %v503, %v2379
      %v2381 = vpop.f32.mrb[0].mxu0
      %v2382 = vpop.f32.mrb[0].mxu0
      %v2383 = vadd.f32 %v503, %v2382
      %v2384 = vpop.f32.mrb[0].mxu0
      %2385 = vmatprep.mubr.bf16.mxu0 %v1462
      %2386 = vmatmul.mubr.bf16.gmra.mrb[0].mxu0 %v1461
      %v2387 = vpop.f32.mrb[0].mxu0
      %v2388 = vadd.f32 %v503, %v2387
      %v2389 = vpop.f32.mrb[0].mxu0
      %v2390 = vpop.f32.mrb[0].mxu0
      %v2391 = vadd.f32 %v503, %v2390
      %v2392 = vpop.f32.mrb[0].mxu0
      %2393 = vmatprep.mubr.bf16.mxu0 %v1466
      %2394 = vmatmul.mubr.bf16.gmra.mrb[0].mxu0 %v1465
      %v2395 = vpop.f32.mrb[0].mxu0
      %v2396 = vadd.f32 %v503, %v2395
      %v2397 = vpop.f32.mrb[0].mxu0
      %v2398 = vpop.f32.mrb[0].mxu0
      %v2399 = vadd.f32 %v503, %v2398
      %v2400 = vpop.f32.mrb[0].mxu0
      %2401 = vmatprep.mubr.bf16.mxu0 %v1470
      %2402 = vmatmul.mubr.bf16.gmra.mrb[0].mxu0 %v1469
      %v2403 = vpop.f32.mrb[0].mxu0
      %v2404 = vadd.f32 %v503, %v2403
      %v2405 = vpop.f32.mrb[0].mxu0
      %v2406 = vpop.f32.mrb[0].mxu0
      %v2407 = vadd.f32 %v503, %v2406
      %v2408 = vpop.f32.mrb[0].mxu0
      %2409 = vmatprep.mubr.bf16.mxu0 %v1474
      %2410 = vmatmul.mubr.bf16.gmra.mrb[0].mxu0 %v1473
      %v2411 = vpop.f32.mrb[0].mxu0
      %v2412 = vadd.f32 %v503, %v2411
      %v2413 = vpop.f32.mrb[0].mxu0
      %v2414 = vpop.f32.mrb[0].mxu0
      %v2415 = vadd.f32 %v503, %v2414
      %v2416 = vpop.f32.mrb[0].mxu0
      %2417 = vmatprep.mubr.bf16.mxu0 %v1478
      %2418 = vmatmul.mubr.bf16.gmra.mrb[0].mxu0 %v1477
      %v2419 = vpop.f32.mrb[0].mxu0
      %v2420 = vadd.f32 %v503, %v2419
      %v2421 = vpop.f32.mrb[0].mxu0
      %v2422 = vpop.f32.mrb[0].mxu0
      %v2423 = vadd.f32 %v503, %v2422
      %v2424 = vpop.f32.mrb[0].mxu0
      %2425 = vmatprep.mubr.bf16.mxu0 %v1482
      %2426 = vmatmul.mubr.bf16.gmra.mrb[0].mxu0 %v1481
      %v2427 = vpop.f32.mrb[0].mxu0
      %v2428 = vadd.f32 %v503, %v2427
      %v2429 = vpop.f32.mrb[0].mxu0
      %v2430 = vpop.f32.mrb[0].mxu0
      %v2431 = vadd.f32 %v503, %v2430
      %v2432 = vpop.f32.mrb[0].mxu0
      %2433 = vmatprep.mubr.bf16.mxu0 %v1486
      %2434 = vmatmul.mubr.bf16.gmra.mrb[0].mxu0 %v1485
      %v2435 = vpop.f32.mrb[0].mxu0
      %v2436 = vadd.f32 %v503, %v2435
      %v2437 = vpop.f32.mrb[0].mxu0
      %v2438 = vpop.f32.mrb[0].mxu0
      %v2439 = vadd.f32 %v503, %v2438
      %v2440 = vpop.f32.mrb[0].mxu0
      %2441 = vmatprep.mubr.bf16.mxu0 %v1490
      %2442 = vmatmul.mubr.bf16.gmra.mrb[0].mxu0 %v1489
      %v2443 = vpop.f32.mrb[0].mxu0
      %v2444 = vadd.f32 %v503, %v2443
      %v2445 = vpop.f32.mrb[0].mxu0
      %v2446 = vpop.f32.mrb[0].mxu0
      %v2447 = vadd.f32 %v503, %v2446
      %v2448 = vpop.f32.mrb[0].mxu0
      %2449 = vmatprep.mubr.bf16.mxu0 %v1494
      %2450 = vmatmul.mubr.bf16.gmra.mrb[0].mxu0 %v1493
      %v2451 = vpop.f32.mrb[0].mxu0
      %v2452 = vadd.f32 %v503, %v2451
      %v2453 = vpop.f32.mrb[0].mxu0
      %v2454 = vpop.f32.mrb[0].mxu0
      %v2455 = vadd.f32 %v503, %v2454
      %v2456 = vpop.f32.mrb[0].mxu0
      %2457 = vmatprep.mubr.bf16.mxu0 %v1498
      %2458 = vmatmul.mubr.bf16.gmra.mrb[0].mxu0 %v1497
      %v2459 = vpop.f32.mrb[0].mxu0
      %v2460 = vadd.f32 %v503, %v2459
      %v2461 = vpop.f32.mrb[0].mxu0
      %v2462 = vpop.f32.mrb[0].mxu0
      %v2463 = vadd.f32 %v503, %v2462
      %v2464 = vpop.f32.mrb[0].mxu0
      %2465 = vmatprep.mubr.bf16.mxu0 %v1502
      %2466 = vmatmul.mubr.bf16.gmra.mrb[0].mxu0 %v1501
      %v2467 = vpop.f32.mrb[0].mxu0
      %v2468 = vadd.f32 %v503, %v2467
      %v2469 = vpop.f32.mrb[0].mxu0
      %v2470 = vpop.f32.mrb[0].mxu0
      %v2471 = vadd.f32 %v503, %v2470
      %v2472 = vpop.f32.mrb[0].mxu0
      %2473 = vmatprep.mubr.bf16.mxu0 %v1506
      %2474 = vmatmul.mubr.bf16.gmra.mrb[0].mxu0 %v1505
      %v2475 = vpop.f32.mrb[0].mxu0
      %v2476 = vadd.f32 %v503, %v2475
      %v2477 = vpop.f32.mrb[0].mxu0
      %v2478 = vpop.f32.mrb[0].mxu0
      %v2479 = vadd.f32 %v503, %v2478
      %v2480 = vpop.f32.mrb[0].mxu0
      %2481 = vmatprep.mubr.bf16.mxu0 %v1510
      %2482 = vmatmul.mubr.bf16.gmra.mrb[0].mxu0 %v1509
      %v2483 = vpop.f32.mrb[0].mxu0
      %v2484 = vadd.f32 %v503, %v2483
      %v2485 = vpop.f32.mrb[0].mxu0
      %v2486 = vpop.f32.mrb[0].mxu0
      %v2487 = vadd.f32 %v503, %v2486
      %v2488 = vpop.f32.mrb[0].mxu0
      %2489 = vmatprep.mubr.bf16.mxu0 %v1514
      %2490 = vmatmul.mubr.bf16.gmra.mrb[0].mxu0 %v1513
      %v2491 = vpop.f32.mrb[0].mxu0
      %v2492 = vadd.f32 %v503, %v2491
      %v2493 = vpop.f32.mrb[0].mxu0
      %v2494 = vpop.f32.mrb[0].mxu0
      %v2495 = vadd.f32 %v503, %v2494
      %v2496 = vpop.f32.mrb[0].mxu0
      %2497 = vmatprep.mubr.bf16.mxu0 %v1518
      %2498 = vmatmul.mubr.bf16.gmra.mrb[0].mxu0 %v1517
      %v2499 = vpop.f32.mrb[0].mxu0
      %v2500 = vadd.f32 %v503, %v2499
      %v2501 = vpop.f32.mrb[0].mxu0
      %v2502 = vpop.f32.mrb[0].mxu0
      %v2503 = vadd.f32 %v503, %v2502
      %v2504 = vpop.f32.mrb[0].mxu0
      %2505 = vmatprep.mubr.bf16.mxu0 %v1522
      %2506 = vmatmul.mubr.bf16.gmra.mrb[0].mxu0 %v1521
      %v2507 = vpop.f32.mrb[0].mxu0
      %v2508 = vadd.f32 %v503, %v2507
      %v2509 = vpop.f32.mrb[0].mxu0
      %v2510 = vpop.f32.mrb[0].mxu0
      %v2511 = vadd.f32 %v503, %v2510
      %v2512 = vpop.f32.mrb[0].mxu0
      %2513 = vmatprep.mubr.bf16.mxu0 %v1526
      %2514 = vmatmul.mubr.bf16.gmra.mrb[0].mxu0 %v1525
      %v2515 = vpop.f32.mrb[0].mxu0
      %v2516 = vadd.f32 %v503, %v2515
      %v2517 = vpop.f32.mrb[0].mxu0
      %v2518 = vpop.f32.mrb[0].mxu0
      %v2519 = vadd.f32 %v503, %v2518
      %v2520 = vpop.f32.mrb[0].mxu0
      %2521 = vdwg.mxu0
      %2522 = vmatprep.subr.bf16.mxu0 0
      %2523 = vmatpush1.bf16.msra.mxu0 %v1929
      %2524 = vmatprep.subr.bf16.mxu0 0
      %2525 = vmatpush1.bf16.msra.mxu0 %v1930
      %2526 = vmatprep.subr.bf16.mxu0 0
      %2527 = vmatpush1.bf16.msra.mxu0 %v1931
      %2528 = vmatprep.subr.bf16.mxu0 0
      %2529 = vmatpush1.bf16.msra.mxu0 %v1932
      %2530 = vmatprep.subr.bf16.mxu0 0
      %2531 = vmatpush1.bf16.msra.mxu0 %v1933
      %2532 = vmatprep.subr.bf16.mxu0 0
      %2533 = vmatpush1.bf16.msra.mxu0 %v1934
      %2534 = vmatprep.subr.bf16.mxu0 0
      %2535 = vmatpush1.bf16.msra.mxu0 %v1935
      %2536 = vmatprep.subr.bf16.mxu0 0
      %2537 = vmatpush1.bf16.msra.mxu0 %v1936
      %2538 = vmatprep.subr.bf16.mxu0 0
      %2539 = vmatpush1.bf16.msra.mxu0 %v1937
      %2540 = vmatprep.subr.bf16.mxu0 0
      %2541 = vmatpush1.bf16.msra.mxu0 %v1938
      %2542 = vmatprep.subr.bf16.mxu0 0
      %2543 = vmatpush1.bf16.msra.mxu0 %v1939
      %2544 = vmatprep.subr.bf16.mxu0 0
      %2545 = vmatpush1.bf16.msra.mxu0 %v1940
      %2546 = vmatprep.subr.bf16.mxu0 0
      %2547 = vmatpush1.bf16.msra.mxu0 %v1941
      %2548 = vmatprep.subr.bf16.mxu0 0
      %2549 = vmatpush1.bf16.msra.mxu0 %v1942
      %2550 = vmatprep.subr.bf16.mxu0 0
      %2551 = vmatpush1.bf16.msra.mxu0 %v1943
      %2552 = vmatprep.subr.bf16.mxu0 0
      %2553 = vmatpush1.bf16.msra.mxu0 %v1944
      %2554 = vmatprep.mubr.bf16.mxu0 %v1276
      %2555 = vmatmul.mubr.bf16.gmra.mrb[0].mxu0 %v1275
      %v2556 = vpop.f32.mrb[0].mxu0
      %v2557 = vadd.f32 %v2012, %v2556
      %v2558 = vpop.f32.mrb[0].mxu0
      %v2559 = vpop.f32.mrb[0].mxu0
      %v2560 = vadd.f32 %v2015, %v2559
      %v2561 = vpop.f32.mrb[0].mxu0
      %2562 = vmatprep.mubr.bf16.mxu0 %v1280
      %2563 = vmatmul.mubr.bf16.gmra.mrb[0].mxu0 %v1279
      %v2564 = vpop.f32.mrb[0].mxu0
      %v2565 = vadd.f32 %v2020, %v2564
      %v2566 = vpop.f32.mrb[0].mxu0
      %v2567 = vpop.f32.mrb[0].mxu0
      %v2568 = vadd.f32 %v2023, %v2567
      %v2569 = vpop.f32.mrb[0].mxu0
      %2570 = vmatprep.mubr.bf16.mxu0 %v1284
      %2571 = vmatmul.mubr.bf16.gmra.mrb[0].mxu0 %v1283
      %v2572 = vpop.f32.mrb[0].mxu0
      %v2573 = vadd.f32 %v2028, %v2572
      %v2574 = vpop.f32.mrb[0].mxu0
      %v2575 = vpop.f32.mrb[0].mxu0
      %v2576 = vadd.f32 %v2031, %v2575
      %v2577 = vpop.f32.mrb[0].mxu0
      %2578 = vmatprep.mubr.bf16.mxu0 %v1288
      %2579 = vmatmul.mubr.bf16.gmra.mrb[0].mxu0 %v1287
      %v2580 = vpop.f32.mrb[0].mxu0
      %v2581 = vadd.f32 %v2036, %v2580
      %v2582 = vpop.f32.mrb[0].mxu0
      %v2583 = vpop.f32.mrb[0].mxu0
      %v2584 = vadd.f32 %v2039, %v2583
      %v2585 = vpop.f32.mrb[0].mxu0
      %2586 = vmatprep.mubr.bf16.mxu0 %v1292
      %2587 = vmatmul.mubr.bf16.gmra.mrb[0].mxu0 %v1291
      %v2588 = vpop.f32.mrb[0].mxu0
      %v2589 = vadd.f32 %v2044, %v2588
      %v2590 = vpop.f32.mrb[0].mxu0
      %v2591 = vpop.f32.mrb[0].mxu0
      %v2592 = vadd.f32 %v2047, %v2591
      %v2593 = vpop.f32.mrb[0].mxu0
      %2594 = vmatprep.mubr.bf16.mxu0 %v1296
      %2595 = vmatmul.mubr.bf16.gmra.mrb[0].mxu0 %v1295
      %v2596 = vpop.f32.mrb[0].mxu0
      %v2597 = vadd.f32 %v2052, %v2596
      %v2598 = vpop.f32.mrb[0].mxu0
      %v2599 = vpop.f32.mrb[0].mxu0
      %v2600 = vadd.f32 %v2055, %v2599
      %v2601 = vpop.f32.mrb[0].mxu0
      %2602 = vmatprep.mubr.bf16.mxu0 %v1300
      %2603 = vmatmul.mubr.bf16.gmra.mrb[0].mxu0 %v1299
      %v2604 = vpop.f32.mrb[0].mxu0
      %v2605 = vadd.f32 %v2060, %v2604
      %v2606 = vpop.f32.mrb[0].mxu0
      %v2607 = vpop.f32.mrb[0].mxu0
      %v2608 = vadd.f32 %v2063, %v2607
      %v2609 = vpop.f32.mrb[0].mxu0
      %2610 = vmatprep.mubr.bf16.mxu0 %v1304
      %2611 = vmatmul.mubr.bf16.gmra.mrb[0].mxu0 %v1303
      %v2612 = vpop.f32.mrb[0].mxu0
      %v2613 = vadd.f32 %v2068, %v2612
      %v2614 = vpop.f32.mrb[0].mxu0
      %v2615 = vpop.f32.mrb[0].mxu0
      %v2616 = vadd.f32 %v2071, %v2615
      %v2617 = vpop.f32.mrb[0].mxu0
      %2618 = vmatprep.mubr.bf16.mxu0 %v1308
      %2619 = vmatmul.mubr.bf16.gmra.mrb[0].mxu0 %v1307
      %v2620 = vpop.f32.mrb[0].mxu0
      %v2621 = vadd.f32 %v2076, %v2620
      %v2622 = vpop.f32.mrb[0].mxu0
      %v2623 = vpop.f32.mrb[0].mxu0
      %v2624 = vadd.f32 %v2079, %v2623
      %v2625 = vpop.f32.mrb[0].mxu0
      %2626 = vmatprep.mubr.bf16.mxu0 %v1312
      %2627 = vmatmul.mubr.bf16.gmra.mrb[0].mxu0 %v1311
      %v2628 = vpop.f32.mrb[0].mxu0
      %v2629 = vadd.f32 %v2084, %v2628
      %v2630 = vpop.f32.mrb[0].mxu0
      %v2631 = vpop.f32.mrb[0].mxu0
      %v2632 = vadd.f32 %v2087, %v2631
      %v2633 = vpop.f32.mrb[0].mxu0
      %2634 = vmatprep.mubr.bf16.mxu0 %v1316
      %2635 = vmatmul.mubr.bf16.gmra.mrb[0].mxu0 %v1315
      %v2636 = vpop.f32.mrb[0].mxu0
      %v2637 = vadd.f32 %v2092, %v2636
      %v2638 = vpop.f32.mrb[0].mxu0
      %v2639 = vpop.f32.mrb[0].mxu0
      %v2640 = vadd.f32 %v2095, %v2639
      %v2641 = vpop.f32.mrb[0].mxu0
      %2642 = vmatprep.mubr.bf16.mxu0 %v1320
      %2643 = vmatmul.mubr.bf16.gmra.mrb[0].mxu0 %v1319
      %v2644 = vpop.f32.mrb[0].mxu0
      %v2645 = vadd.f32 %v2100, %v2644
      %v2646 = vpop.f32.mrb[0].mxu0
      %v2647 = vpop.f32.mrb[0].mxu0
      %v2648 = vadd.f32 %v2103, %v2647
      %v2649 = vpop.f32.mrb[0].mxu0
      %2650 = vmatprep.mubr.bf16.mxu0 %v1324
      %2651 = vmatmul.mubr.bf16.gmra.mrb[0].mxu0 %v1323
      %v2652 = vpop.f32.mrb[0].mxu0
      %v2653 = vadd.f32 %v2108, %v2652
      %v2654 = vpop.f32.mrb[0].mxu0
      %v2655 = vpop.f32.mrb[0].mxu0
      %v2656 = vadd.f32 %v2111, %v2655
      %v2657 = vpop.f32.mrb[0].mxu0
      %2658 = vmatprep.mubr.bf16.mxu0 %v1328
      %2659 = vmatmul.mubr.bf16.gmra.mrb[0].mxu0 %v1327
      %v2660 = vpop.f32.mrb[0].mxu0
      %v2661 = vadd.f32 %v2116, %v2660
      %v2662 = vpop.f32.mrb[0].mxu0
      %v2663 = vpop.f32.mrb[0].mxu0
      %v2664 = vadd.f32 %v2119, %v2663
      %v2665 = vpop.f32.mrb[0].mxu0
      %2666 = vmatprep.mubr.bf16.mxu0 %v1332
      %2667 = vmatmul.mubr.bf16.gmra.mrb[0].mxu0 %v1331
      %v2668 = vpop.f32.mrb[0].mxu0
      %v2669 = vadd.f32 %v2124, %v2668
      %v2670 = vpop.f32.mrb[0].mxu0
      %v2671 = vpop.f32.mrb[0].mxu0
      %v2672 = vadd.f32 %v2127, %v2671
      %v2673 = vpop.f32.mrb[0].mxu0
      %2674 = vmatprep.mubr.bf16.mxu0 %v1336
      %2675 = vmatmul.mubr.bf16.gmra.mrb[0].mxu0 %v1335
      %v2676 = vpop.f32.mrb[0].mxu0
      %v2677 = vadd.f32 %v2132, %v2676
      %v2678 = vpop.f32.mrb[0].mxu0
      %v2679 = vpop.f32.mrb[0].mxu0
      %v2680 = vadd.f32 %v2135, %v2679
      %v2681 = vpop.f32.mrb[0].mxu0
      %2682 = vmatprep.mubr.bf16.mxu0 %v1340
      %2683 = vmatmul.mubr.bf16.gmra.mrb[0].mxu0 %v1339
      %v2684 = vpop.f32.mrb[0].mxu0
      %v2685 = vadd.f32 %v2140, %v2684
      %v2686 = vpop.f32.mrb[0].mxu0
      %v2687 = vpop.f32.mrb[0].mxu0
      %v2688 = vadd.f32 %v2143, %v2687
      %v2689 = vpop.f32.mrb[0].mxu0
      %2690 = vmatprep.mubr.bf16.mxu0 %v1344
      %2691 = vmatmul.mubr.bf16.gmra.mrb[0].mxu0 %v1343
      %v2692 = vpop.f32.mrb[0].mxu0
      %v2693 = vadd.f32 %v2148, %v2692
      %v2694 = vpop.f32.mrb[0].mxu0
      %v2695 = vpop.f32.mrb[0].mxu0
      %v2696 = vadd.f32 %v2151, %v2695
      %v2697 = vpop.f32.mrb[0].mxu0
      %2698 = vmatprep.mubr.bf16.mxu0 %v1348
      %2699 = vmatmul.mubr.bf16.gmra.mrb[0].mxu0 %v1347
      %v2700 = vpop.f32.mrb[0].mxu0
      %v2701 = vadd.f32 %v2156, %v2700
      %v2702 = vpop.f32.mrb[0].mxu0
      %v2703 = vpop.f32.mrb[0].mxu0
      %v2704 = vadd.f32 %v2159, %v2703
      %v2705 = vpop.f32.mrb[0].mxu0
      %2706 = vmatprep.mubr.bf16.mxu0 %v1352
      %2707 = vmatmul.mubr.bf16.gmra.mrb[0].mxu0 %v1351
      %v2708 = vpop.f32.mrb[0].mxu0
      %v2709 = vadd.f32 %v2164, %v2708
      %v2710 = vpop.f32.mrb[0].mxu0
      %v2711 = vpop.f32.mrb[0].mxu0
      %v2712 = vadd.f32 %v2167, %v2711
      %v2713 = vpop.f32.mrb[0].mxu0
      %2714 = vmatprep.mubr.bf16.mxu0 %v1356
      %2715 = vmatmul.mubr.bf16.gmra.mrb[0].mxu0 %v1355
      %v2716 = vpop.f32.mrb[0].mxu0
      %v2717 = vadd.f32 %v2172, %v2716
      %v2718 = vpop.f32.mrb[0].mxu0
      %v2719 = vpop.f32.mrb[0].mxu0
      %v2720 = vadd.f32 %v2175, %v2719
      %v2721 = vpop.f32.mrb[0].mxu0
      %2722 = vmatprep.mubr.bf16.mxu0 %v1360
      %2723 = vmatmul.mubr.bf16.gmra.mrb[0].mxu0 %v1359
      %v2724 = vpop.f32.mrb[0].mxu0
      %v2725 = vadd.f32 %v2180, %v2724
      %v2726 = vpop.f32.mrb[0].mxu0
      %v2727 = vpop.f32.mrb[0].mxu0
      %v2728 = vadd.f32 %v2183, %v2727
      %v2729 = vpop.f32.mrb[0].mxu0
      %2730 = vmatprep.mubr.bf16.mxu0 %v1364
      %2731 = vmatmul.mubr.bf16.gmra.mrb[0].mxu0 %v1363
      %v2732 = vpop.f32.mrb[0].mxu0
      %v2733 = vadd.f32 %v2188, %v2732
      %v2734 = vpop.f32.mrb[0].mxu0
      %v2735 = vpop.f32.mrb[0].mxu0
      %v2736 = vadd.f32 %v2191, %v2735
      %v2737 = vpop.f32.mrb[0].mxu0
      %2738 = vmatprep.mubr.bf16.mxu0 %v1368
      %2739 = vmatmul.mubr.bf16.gmra.mrb[0].mxu0 %v1367
      %v2740 = vpop.f32.mrb[0].mxu0
      %v2741 = vadd.f32 %v2196, %v2740
      %v2742 = vpop.f32.mrb[0].mxu0
      %v2743 = vpop.f32.mrb[0].mxu0
      %v2744 = vadd.f32 %v2199, %v2743
      %v2745 = vpop.f32.mrb[0].mxu0
      %2746 = vmatprep.mubr.bf16.mxu0 %v1372
      %2747 = vmatmul.mubr.bf16.gmra.mrb[0].mxu0 %v1371
      %v2748 = vpop.f32.mrb[0].mxu0
      %v2749 = vadd.f32 %v2204, %v2748
      %v2750 = vpop.f32.mrb[0].mxu0
      %v2751 = vpop.f32.mrb[0].mxu0
      %v2752 = vadd.f32 %v2207, %v2751
      %v2753 = vpop.f32.mrb[0].mxu0
      %2754 = vmatprep.mubr.bf16.mxu0 %v1376
      %2755 = vmatmul.mubr.bf16.gmra.mrb[0].mxu0 %v1375
      %v2756 = vpop.f32.mrb[0].mxu0
      %v2757 = vadd.f32 %v2212, %v2756
      %v2758 = vpop.f32.mrb[0].mxu0
      %v2759 = vpop.f32.mrb[0].mxu0
      %v2760 = vadd.f32 %v2215, %v2759
      %v2761 = vpop.f32.mrb[0].mxu0
      %2762 = vmatprep.mubr.bf16.mxu0 %v1380
      %2763 = vmatmul.mubr.bf16.gmra.mrb[0].mxu0 %v1379
      %v2764 = vpop.f32.mrb[0].mxu0
      %v2765 = vadd.f32 %v2220, %v2764
      %v2766 = vpop.f32.mrb[0].mxu0
      %v2767 = vpop.f32.mrb[0].mxu0
      %v2768 = vadd.f32 %v2223, %v2767
      %v2769 = vpop.f32.mrb[0].mxu0
      %2770 = vmatprep.mubr.bf16.mxu0 %v1384
      %2771 = vmatmul.mubr.bf16.gmra.mrb[0].mxu0 %v1383
      %v2772 = vpop.f32.mrb[0].mxu0
      %v2773 = vadd.f32 %v2228, %v2772
      %v2774 = vpop.f32.mrb[0].mxu0
      %v2775 = vpop.f32.mrb[0].mxu0
      %v2776 = vadd.f32 %v2231, %v2775
      %v2777 = vpop.f32.mrb[0].mxu0
      %2778 = vmatprep.mubr.bf16.mxu0 %v1388
      %2779 = vmatmul.mubr.bf16.gmra.mrb[0].mxu0 %v1387
      %v2780 = vpop.f32.mrb[0].mxu0
      %v2781 = vadd.f32 %v2236, %v2780
      %v2782 = vpop.f32.mrb[0].mxu0
      %v2783 = vpop.f32.mrb[0].mxu0
      %v2784 = vadd.f32 %v2239, %v2783
      %v2785 = vpop.f32.mrb[0].mxu0
      %2786 = vmatprep.mubr.bf16.mxu0 %v1392
      %2787 = vmatmul.mubr.bf16.gmra.mrb[0].mxu0 %v1391
      %v2788 = vpop.f32.mrb[0].mxu0
      %v2789 = vadd.f32 %v2244, %v2788
      %v2790 = vpop.f32.mrb[0].mxu0
      %v2791 = vpop.f32.mrb[0].mxu0
      %v2792 = vadd.f32 %v2247, %v2791
      %v2793 = vpop.f32.mrb[0].mxu0
      %2794 = vmatprep.mubr.bf16.mxu0 %v1396
      %2795 = vmatmul.mubr.bf16.gmra.mrb[0].mxu0 %v1395
      %v2796 = vpop.f32.mrb[0].mxu0
      %v2797 = vadd.f32 %v2252, %v2796
      %v2798 = vpop.f32.mrb[0].mxu0
      %v2799 = vpop.f32.mrb[0].mxu0
      %v2800 = vadd.f32 %v2255, %v2799
      %v2801 = vpop.f32.mrb[0].mxu0
      %2802 = vmatprep.mubr.bf16.mxu0 %v1400
      %2803 = vmatmul.mubr.bf16.gmra.mrb[0].mxu0 %v1399
      %v2804 = vpop.f32.mrb[0].mxu0
      %v2805 = vadd.f32 %v2260, %v2804
      %v2806 = vpop.f32.mrb[0].mxu0
      %v2807 = vpop.f32.mrb[0].mxu0
      %v2808 = vadd.f32 %v2263, %v2807
      %v2809 = vpop.f32.mrb[0].mxu0
      %2810 = vmatprep.mubr.bf16.mxu0 %v1404
      %2811 = vmatmul.mubr.bf16.gmra.mrb[0].mxu0 %v1403
      %v2812 = vpop.f32.mrb[0].mxu0
      %v2813 = vadd.f32 %v2268, %v2812
      %v2814 = vpop.f32.mrb[0].mxu0
      %v2815 = vpop.f32.mrb[0].mxu0
      %v2816 = vadd.f32 %v2271, %v2815
      %v2817 = vpop.f32.mrb[0].mxu0
      %2818 = vmatprep.mubr.bf16.mxu0 %v1408
      %2819 = vmatmul.mubr.bf16.gmra.mrb[0].mxu0 %v1407
      %v2820 = vpop.f32.mrb[0].mxu0
      %v2821 = vadd.f32 %v2276, %v2820
      %v2822 = vpop.f32.mrb[0].mxu0
      %v2823 = vpop.f32.mrb[0].mxu0
      %v2824 = vadd.f32 %v2279, %v2823
      %v2825 = vpop.f32.mrb[0].mxu0
      %2826 = vmatprep.mubr.bf16.mxu0 %v1412
      %2827 = vmatmul.mubr.bf16.gmra.mrb[0].mxu0 %v1411
      %v2828 = vpop.f32.mrb[0].mxu0
      %v2829 = vadd.f32 %v2284, %v2828
      %v2830 = vpop.f32.mrb[0].mxu0
      %v2831 = vpop.f32.mrb[0].mxu0
      %v2832 = vadd.f32 %v2287, %v2831
      %v2833 = vpop.f32.mrb[0].mxu0
      %2834 = vmatprep.mubr.bf16.mxu0 %v1416
      %2835 = vmatmul.mubr.bf16.gmra.mrb[0].mxu0 %v1415
      %v2836 = vpop.f32.mrb[0].mxu0
      %v2837 = vadd.f32 %v2292, %v2836
      %v2838 = vpop.f32.mrb[0].mxu0
      %v2839 = vpop.f32.mrb[0].mxu0
      %v2840 = vadd.f32 %v2295, %v2839
      %v2841 = vpop.f32.mrb[0].mxu0
      %2842 = vmatprep.mubr.bf16.mxu0 %v1420
      %2843 = vmatmul.mubr.bf16.gmra.mrb[0].mxu0 %v1419
      %v2844 = vpop.f32.mrb[0].mxu0
      %v2845 = vadd.f32 %v2300, %v2844
      %v2846 = vpop.f32.mrb[0].mxu0
      %v2847 = vpop.f32.mrb[0].mxu0
      %v2848 = vadd.f32 %v2303, %v2847
      %v2849 = vpop.f32.mrb[0].mxu0
      %2850 = vmatprep.mubr.bf16.mxu0 %v1424
      %2851 = vmatmul.mubr.bf16.gmra.mrb[0].mxu0 %v1423
      %v2852 = vpop.f32.mrb[0].mxu0
      %v2853 = vadd.f32 %v2308, %v2852
      %v2854 = vpop.f32.mrb[0].mxu0
      %v2855 = vpop.f32.mrb[0].mxu0
      %v2856 = vadd.f32 %v2311, %v2855
      %v2857 = vpop.f32.mrb[0].mxu0
      %2858 = vmatprep.mubr.bf16.mxu0 %v1428
      %2859 = vmatmul.mubr.bf16.gmra.mrb[0].mxu0 %v1427
      %v2860 = vpop.f32.mrb[0].mxu0
      %v2861 = vadd.f32 %v2316, %v2860
      %v2862 = vpop.f32.mrb[0].mxu0
      %v2863 = vpop.f32.mrb[0].mxu0
      %v2864 = vadd.f32 %v2319, %v2863
      %v2865 = vpop.f32.mrb[0].mxu0
      %2866 = vmatprep.mubr.bf16.mxu0 %v1432
      %2867 = vmatmul.mubr.bf16.gmra.mrb[0].mxu0 %v1431
      %v2868 = vpop.f32.mrb[0].mxu0
      %v2869 = vadd.f32 %v2324, %v2868
      %v2870 = vpop.f32.mrb[0].mxu0
      %v2871 = vpop.f32.mrb[0].mxu0
      %v2872 = vadd.f32 %v2327, %v2871
      %v2873 = vpop.f32.mrb[0].mxu0
      %2874 = vmatprep.mubr.bf16.mxu0 %v1436
      %2875 = vmatmul.mubr.bf16.gmra.mrb[0].mxu0 %v1435
      %v2876 = vpop.f32.mrb[0].mxu0
      %v2877 = vadd.f32 %v2332, %v2876
      %v2878 = vpop.f32.mrb[0].mxu0
      %v2879 = vpop.f32.mrb[0].mxu0
      %v2880 = vadd.f32 %v2335, %v2879
      %v2881 = vpop.f32.mrb[0].mxu0
      %2882 = vmatprep.mubr.bf16.mxu0 %v1440
      %2883 = vmatmul.mubr.bf16.gmra.mrb[0].mxu0 %v1439
      %v2884 = vpop.f32.mrb[0].mxu0
      %v2885 = vadd.f32 %v2340, %v2884
      %v2886 = vpop.f32.mrb[0].mxu0
      %v2887 = vpop.f32.mrb[0].mxu0
      %v2888 = vadd.f32 %v2343, %v2887
      %v2889 = vpop.f32.mrb[0].mxu0
      %2890 = vmatprep.mubr.bf16.mxu0 %v1444
      %2891 = vmatmul.mubr.bf16.gmra.mrb[0].mxu0 %v1443
      %v2892 = vpop.f32.mrb[0].mxu0
      %v2893 = vadd.f32 %v2348, %v2892
      %v2894 = vpop.f32.mrb[0].mxu0
      %v2895 = vpop.f32.mrb[0].mxu0
      %v2896 = vadd.f32 %v2351, %v2895
      %v2897 = vpop.f32.mrb[0].mxu0
      %2898 = vmatprep.mubr.bf16.mxu0 %v1448
      %2899 = vmatmul.mubr.bf16.gmra.mrb[0].mxu0 %v1447
      %v2900 = vpop.f32.mrb[0].mxu0
      %v2901 = vadd.f32 %v2356, %v2900
      %v2902 = vpop.f32.mrb[0].mxu0
      %v2903 = vpop.f32.mrb[0].mxu0
      %v2904 = vadd.f32 %v2359, %v2903
      %v2905 = vpop.f32.mrb[0].mxu0
      %2906 = vmatprep.mubr.bf16.mxu0 %v1452
      %2907 = vmatmul.mubr.bf16.gmra.mrb[0].mxu0 %v1451
      %v2908 = vpop.f32.mrb[0].mxu0
      %v2909 = vadd.f32 %v2364, %v2908
      %v2910 = vpop.f32.mrb[0].mxu0
      %v2911 = vpop.f32.mrb[0].mxu0
      %v2912 = vadd.f32 %v2367, %v2911
      %v2913 = vpop.f32.mrb[0].mxu0
      %2914 = vmatprep.mubr.bf16.mxu0 %v1456
      %2915 = vmatmul.mubr.bf16.gmra.mrb[0].mxu0 %v1455
      %v2916 = vpop.f32.mrb[0].mxu0
      %v2917 = vadd.f32 %v2372, %v2916
      %v2918 = vpop.f32.mrb[0].mxu0
      %v2919 = vpop.f32.mrb[0].mxu0
      %v2920 = vadd.f32 %v2375, %v2919
      %v2921 = vpop.f32.mrb[0].mxu0
      %2922 = vmatprep.mubr.bf16.mxu0 %v1460
      %2923 = vmatmul.mubr.bf16.gmra.mrb[0].mxu0 %v1459
      %v2924 = vpop.f32.mrb[0].mxu0
      %v2925 = vadd.f32 %v2380, %v2924
      %v2926 = vpop.f32.mrb[0].mxu0
      %v2927 = vpop.f32.mrb[0].mxu0
      %v2928 = vadd.f32 %v2383, %v2927
      %v2929 = vpop.f32.mrb[0].mxu0
      %2930 = vmatprep.mubr.bf16.mxu0 %v1464
      %2931 = vmatmul.mubr.bf16.gmra.mrb[0].mxu0 %v1463
      %v2932 = vpop.f32.mrb[0].mxu0
      %v2933 = vadd.f32 %v2388, %v2932
      %v2934 = vpop.f32.mrb[0].mxu0
      %v2935 = vpop.f32.mrb[0].mxu0
      %v2936 = vadd.f32 %v2391, %v2935
      %v2937 = vpop.f32.mrb[0].mxu0
      %2938 = vmatprep.mubr.bf16.mxu0 %v1468
      %2939 = vmatmul.mubr.bf16.gmra.mrb[0].mxu0 %v1467
      %v2940 = vpop.f32.mrb[0].mxu0
      %v2941 = vadd.f32 %v2396, %v2940
      %v2942 = vpop.f32.mrb[0].mxu0
      %v2943 = vpop.f32.mrb[0].mxu0
      %v2944 = vadd.f32 %v2399, %v2943
      %v2945 = vpop.f32.mrb[0].mxu0
      %2946 = vmatprep.mubr.bf16.mxu0 %v1472
      %2947 = vmatmul.mubr.bf16.gmra.mrb[0].mxu0 %v1471
      %v2948 = vpop.f32.mrb[0].mxu0
      %v2949 = vadd.f32 %v2404, %v2948
      %v2950 = vpop.f32.mrb[0].mxu0
      %v2951 = vpop.f32.mrb[0].mxu0
      %v2952 = vadd.f32 %v2407, %v2951
      %v2953 = vpop.f32.mrb[0].mxu0
      %2954 = vmatprep.mubr.bf16.mxu0 %v1476
      %2955 = vmatmul.mubr.bf16.gmra.mrb[0].mxu0 %v1475
      %v2956 = vpop.f32.mrb[0].mxu0
      %v2957 = vadd.f32 %v2412, %v2956
      %v2958 = vpop.f32.mrb[0].mxu0
      %v2959 = vpop.f32.mrb[0].mxu0
      %v2960 = vadd.f32 %v2415, %v2959
      %v2961 = vpop.f32.mrb[0].mxu0
      %2962 = vmatprep.mubr.bf16.mxu0 %v1480
      %2963 = vmatmul.mubr.bf16.gmra.mrb[0].mxu0 %v1479
      %v2964 = vpop.f32.mrb[0].mxu0
      %v2965 = vadd.f32 %v2420, %v2964
      %v2966 = vpop.f32.mrb[0].mxu0
      %v2967 = vpop.f32.mrb[0].mxu0
      %v2968 = vadd.f32 %v2423, %v2967
      %v2969 = vpop.f32.mrb[0].mxu0
      %2970 = vmatprep.mubr.bf16.mxu0 %v1484
      %2971 = vmatmul.mubr.bf16.gmra.mrb[0].mxu0 %v1483
      %v2972 = vpop.f32.mrb[0].mxu0
      %v2973 = vadd.f32 %v2428, %v2972
      %v2974 = vpop.f32.mrb[0].mxu0
      %v2975 = vpop.f32.mrb[0].mxu0
      %v2976 = vadd.f32 %v2431, %v2975
      %v2977 = vpop.f32.mrb[0].mxu0
      %2978 = vmatprep.mubr.bf16.mxu0 %v1488
      %2979 = vmatmul.mubr.bf16.gmra.mrb[0].mxu0 %v1487
      %v2980 = vpop.f32.mrb[0].mxu0
      %v2981 = vadd.f32 %v2436, %v2980
      %v2982 = vpop.f32.mrb[0].mxu0
      %v2983 = vpop.f32.mrb[0].mxu0
      %v2984 = vadd.f32 %v2439, %v2983
      %v2985 = vpop.f32.mrb[0].mxu0
      %2986 = vmatprep.mubr.bf16.mxu0 %v1492
      %2987 = vmatmul.mubr.bf16.gmra.mrb[0].mxu0 %v1491
      %v2988 = vpop.f32.mrb[0].mxu0
      %v2989 = vadd.f32 %v2444, %v2988
      %v2990 = vpop.f32.mrb[0].mxu0
      %v2991 = vpop.f32.mrb[0].mxu0
      %v2992 = vadd.f32 %v2447, %v2991
      %v2993 = vpop.f32.mrb[0].mxu0
      %2994 = vmatprep.mubr.bf16.mxu0 %v1496
      %2995 = vmatmul.mubr.bf16.gmra.mrb[0].mxu0 %v1495
      %v2996 = vpop.f32.mrb[0].mxu0
      %v2997 = vadd.f32 %v2452, %v2996
      %v2998 = vpop.f32.mrb[0].mxu0
      %v2999 = vpop.f32.mrb[0].mxu0
      %v3000 = vadd.f32 %v2455, %v2999
      %v3001 = vpop.f32.mrb[0].mxu0
      %3002 = vmatprep.mubr.bf16.mxu0 %v1500
      %3003 = vmatmul.mubr.bf16.gmra.mrb[0].mxu0 %v1499
      %v3004 = vpop.f32.mrb[0].mxu0
      %v3005 = vadd.f32 %v2460, %v3004
      %v3006 = vpop.f32.mrb[0].mxu0
      %v3007 = vpop.f32.mrb[0].mxu0
      %v3008 = vadd.f32 %v2463, %v3007
      %v3009 = vpop.f32.mrb[0].mxu0
      %3010 = vmatprep.mubr.bf16.mxu0 %v1504
      %3011 = vmatmul.mubr.bf16.gmra.mrb[0].mxu0 %v1503
      %v3012 = vpop.f32.mrb[0].mxu0
      %v3013 = vadd.f32 %v2468, %v3012
      %v3014 = vpop.f32.mrb[0].mxu0
      %v3015 = vpop.f32.mrb[0].mxu0
      %v3016 = vadd.f32 %v2471, %v3015
      %v3017 = vpop.f32.mrb[0].mxu0
      %3018 = vmatprep.mubr.bf16.mxu0 %v1508
      %3019 = vmatmul.mubr.bf16.gmra.mrb[0].mxu0 %v1507
      %v3020 = vpop.f32.mrb[0].mxu0
      %v3021 = vadd.f32 %v2476, %v3020
      %v3022 = vpop.f32.mrb[0].mxu0
      %v3023 = vpop.f32.mrb[0].mxu0
      %v3024 = vadd.f32 %v2479, %v3023
      %v3025 = vpop.f32.mrb[0].mxu0
      %3026 = vmatprep.mubr.bf16.mxu0 %v1512
      %3027 = vmatmul.mubr.bf16.gmra.mrb[0].mxu0 %v1511
      %v3028 = vpop.f32.mrb[0].mxu0
      %v3029 = vadd.f32 %v2484, %v3028
      %v3030 = vpop.f32.mrb[0].mxu0
      %v3031 = vpop.f32.mrb[0].mxu0
      %v3032 = vadd.f32 %v2487, %v3031
      %v3033 = vpop.f32.mrb[0].mxu0
      %3034 = vmatprep.mubr.bf16.mxu0 %v1516
      %3035 = vmatmul.mubr.bf16.gmra.mrb[0].mxu0 %v1515
      %v3036 = vpop.f32.mrb[0].mxu0
      %v3037 = vadd.f32 %v2492, %v3036
      %v3038 = vpop.f32.mrb[0].mxu0
      %v3039 = vpop.f32.mrb[0].mxu0
      %v3040 = vadd.f32 %v2495, %v3039
      %v3041 = vpop.f32.mrb[0].mxu0
      %3042 = vmatprep.mubr.bf16.mxu0 %v1520
      %3043 = vmatmul.mubr.bf16.gmra.mrb[0].mxu0 %v1519
      %v3044 = vpop.f32.mrb[0].mxu0
      %v3045 = vadd.f32 %v2500, %v3044
      %v3046 = vpop.f32.mrb[0].mxu0
      %v3047 = vpop.f32.mrb[0].mxu0
      %v3048 = vadd.f32 %v2503, %v3047
      %v3049 = vpop.f32.mrb[0].mxu0
      %3050 = vmatprep.mubr.bf16.mxu0 %v1524
      %3051 = vmatmul.mubr.bf16.gmra.mrb[0].mxu0 %v1523
      %v3052 = vpop.f32.mrb[0].mxu0
      %v3053 = vadd.f32 %v2508, %v3052
      %v3054 = vpop.f32.mrb[0].mxu0
      %v3055 = vpop.f32.mrb[0].mxu0
      %v3056 = vadd.f32 %v2511, %v3055
      %v3057 = vpop.f32.mrb[0].mxu0
      %3058 = vmatprep.mubr.bf16.mxu0 %v1528
      %3059 = vmatmul.mubr.bf16.gmra.mrb[0].mxu0 %v1527
      %v3060 = vpop.f32.mrb[0].mxu0
      %v3061 = vadd.f32 %v2516, %v3060
      %v3062 = vpop.f32.mrb[0].mxu0
      %v3063 = vpop.f32.mrb[0].mxu0
      %v3064 = vadd.f32 %v2519, %v3063
      %v3065 = vpop.f32.mrb[0].mxu0
      %3066 = vdwg.mxu0
      %v3067 = vtanh.pop %v2557
      %v3068 = vtanh.pop %v2560
      %v3069 = vtanh.pop %v2565
      %v3070 = vtanh.pop %v2568
      %v3071 = vtanh.pop %v2573
      %v3072 = vtanh.pop %v2576
      %v3073 = vtanh.pop %v2581
      %v3074 = vtanh.pop %v2584
      %v3075 = vtanh.pop %v2589
      %v3076 = vtanh.pop %v2592
      %v3077 = vtanh.pop %v2597
      %v3078 = vtanh.pop %v2600
      %v3079 = vtanh.pop %v2605
      %v3080 = vtanh.pop %v2608
      %v3081 = vtanh.pop %v2613
      %v3082 = vtanh.pop %v2616
      %v3083 = vtanh.pop %v2621
      %v3084 = vtanh.pop %v2624
      %v3085 = vtanh.pop %v2629
      %v3086 = vtanh.pop %v2632
      %v3087 = vtanh.pop %v2637
      %v3088 = vtanh.pop %v2640
      %v3089 = vtanh.pop %v2645
      %v3090 = vtanh.pop %v2648
      %v3091 = vtanh.pop %v2653
      %v3092 = vtanh.pop %v2656
      %v3093 = vtanh.pop %v2661
      %v3094 = vtanh.pop %v2664
      %v3095 = vtanh.pop %v2669
      %v3096 = vtanh.pop %v2672
      %v3097 = vtanh.pop %v2677
      %v3098 = vtanh.pop %v2680
      %v3099 = vtanh.pop %v2685
      %v3100 = vtanh.pop %v2688
      %v3101 = vtanh.pop %v2693
      %v3102 = vtanh.pop %v2696
      %v3103 = vtanh.pop %v2701
      %v3104 = vtanh.pop %v2704
      %v3105 = vtanh.pop %v2709
      %v3106 = vtanh.pop %v2712
      %v3107 = vtanh.pop %v2717
      %v3108 = vtanh.pop %v2720
      %v3109 = vtanh.pop %v2725
      %v3110 = vtanh.pop %v2728
      %v3111 = vtanh.pop %v2733
      %v3112 = vtanh.pop %v2736
      %v3113 = vtanh.pop %v2741
      %v3114 = vtanh.pop %v2744
      %v3115 = vtanh.pop %v2749
      %v3116 = vtanh.pop %v2752
      %v3117 = vtanh.pop %v2757
      %v3118 = vtanh.pop %v2760
      %v3119 = vtanh.pop %v2765
      %v3120 = vtanh.pop %v2768
      %v3121 = vtanh.pop %v2773
      %v3122 = vtanh.pop %v2776
      %v3123 = vtanh.pop %v2781
      %v3124 = vtanh.pop %v2784
      %v3125 = vtanh.pop %v2789
      %v3126 = vtanh.pop %v2792
      %v3127 = vtanh.pop %v2797
      %v3128 = vtanh.pop %v2800
      %v3129 = vtanh.pop %v2805
      %v3130 = vtanh.pop %v2808
      %v3131 = vtanh.pop %v2813
      %v3132 = vtanh.pop %v2816
      %v3133 = vtanh.pop %v2821
      %v3134 = vtanh.pop %v2824
      %v3135 = vtanh.pop %v2829
      %v3136 = vtanh.pop %v2832
      %v3137 = vtanh.pop %v2837
      %v3138 = vtanh.pop %v2840
      %v3139 = vtanh.pop %v2845
      %v3140 = vtanh.pop %v2848
      %v3141 = vtanh.pop %v2853
      %v3142 = vtanh.pop %v2856
      %v3143 = vtanh.pop %v2861
      %v3144 = vtanh.pop %v2864
      %v3145 = vtanh.pop %v2869
      %v3146 = vtanh.pop %v2872
      %v3147 = vtanh.pop %v2877
      %v3148 = vtanh.pop %v2880
      %v3149 = vtanh.pop %v2885
      %v3150 = vtanh.pop %v2888
      %v3151 = vtanh.pop %v2893
      %v3152 = vtanh.pop %v2896
      %v3153 = vtanh.pop %v2901
      %v3154 = vtanh.pop %v2904
      %v3155 = vtanh.pop %v2909
      %v3156 = vtanh.pop %v2912
      %v3157 = vtanh.pop %v2917
      %v3158 = vtanh.pop %v2920
      %v3159 = vtanh.pop %v2925
      %v3160 = vtanh.pop %v2928
      %v3161 = vtanh.pop %v2933
      %v3162 = vtanh.pop %v2936
      %v3163 = vtanh.pop %v2941
      %v3164 = vtanh.pop %v2944
      %v3165 = vtanh.pop %v2949
      %v3166 = vtanh.pop %v2952
      %v3167 = vtanh.pop %v2957
      %v3168 = vtanh.pop %v2960
      %v3169 = vtanh.pop %v2965
      %v3170 = vtanh.pop %v2968
      %v3171 = vtanh.pop %v2973
      %v3172 = vtanh.pop %v2976
      %v3173 = vtanh.pop %v2981
      %v3174 = vtanh.pop %v2984
      %v3175 = vtanh.pop %v2989
      %v3176 = vtanh.pop %v2992
      %v3177 = vtanh.pop %v2997
      %v3178 = vtanh.pop %v3000
      %v3179 = vtanh.pop %v3005
      %v3180 = vtanh.pop %v3008
      %v3181 = vtanh.pop %v3013
      %v3182 = vtanh.pop %v3016
      %v3183 = vtanh.pop %v3021
      %v3184 = vtanh.pop %v3024
      %v3185 = vtanh.pop %v3029
      %v3186 = vtanh.pop %v3032
      %v3187 = vtanh.pop %v3037
      %v3188 = vtanh.pop %v3040
      %v3189 = vtanh.pop %v3045
      %v3190 = vtanh.pop %v3048
      %v3191 = vtanh.pop %v3053
      %v3192 = vtanh.pop %v3056
      %v3193 = vtanh.pop %v3061
      %v3194 = vtanh.pop %v3064
      %vm3195 = vcmask 23552
      %3196 = vst.msk [vmem:[%s175] sm:$0xff] %vm3195, %v3067
      %3197 = vst.msk [vmem:[%s175 + $0x8] sm:$0xff] %vm3195, %v3068
      %3198 = vst.msk [vmem:[%s175 + $0x10] sm:$0xff] %vm3195, %v3069
      %3199 = vst.msk [vmem:[%s175 + $0x18] sm:$0xff] %vm3195, %v3070
      %3200 = vst.msk [vmem:[%s175 + $0x20] sm:$0xff] %vm3195, %v3071
      %3201 = vst.msk [vmem:[%s175 + $0x28] sm:$0xff] %vm3195, %v3072
      %3202 = vst.msk [vmem:[%s175 + $0x30] sm:$0xff] %vm3195, %v3073
      %3203 = vst.msk [vmem:[%s175 + $0x38] sm:$0xff] %vm3195, %v3074
      %3204 = vst.msk [vmem:[%s175 + $0x40] sm:$0xff] %vm3195, %v3075
      %3205 = vst.msk [vmem:[%s175 + $0x48] sm:$0xff] %vm3195, %v3076
      %3206 = vst.msk [vmem:[%s175 + $0x50] sm:$0xff] %vm3195, %v3077
      %3207 = vst.msk [vmem:[%s175 + $0x58] sm:$0xff] %vm3195, %v3078
      %3208 = vst.msk [vmem:[%s175 + $0x60] sm:$0xff] %vm3195, %v3079
      %3209 = vst.msk [vmem:[%s175 + $0x68] sm:$0xff] %vm3195, %v3080
      %3210 = vst.msk [vmem:[%s175 + $0x70] sm:$0xff] %vm3195, %v3081
      %3211 = vst.msk [vmem:[%s175 + $0x78] sm:$0xff] %vm3195, %v3082
      %3212 = vst.msk [vmem:[%s175 + $0x80] sm:$0xff] %vm3195, %v3083
      %3213 = vst.msk [vmem:[%s175 + $0x88] sm:$0xff] %vm3195, %v3084
      %3214 = vst.msk [vmem:[%s175 + $0x90] sm:$0xff] %vm3195, %v3085
      %3215 = vst.msk [vmem:[%s175 + $0x98] sm:$0xff] %vm3195, %v3086
      %3216 = vst.msk [vmem:[%s175 + $0xa0] sm:$0xff] %vm3195, %v3087
      %3217 = vst.msk [vmem:[%s175 + $0xa8] sm:$0xff] %vm3195, %v3088
      %3218 = vst.msk [vmem:[%s175 + $0xb0] sm:$0xff] %vm3195, %v3089
      %3219 = vst.msk [vmem:[%s175 + $0xb8] sm:$0xff] %vm3195, %v3090
      %3220 = vst.msk [vmem:[%s175 + $0xc0] sm:$0xff] %vm3195, %v3091
      %3221 = vst.msk [vmem:[%s175 + $0xc8] sm:$0xff] %vm3195, %v3092
      %3222 = vst.msk [vmem:[%s175 + $0xd0] sm:$0xff] %vm3195, %v3093
      %3223 = vst.msk [vmem:[%s175 + $0xd8] sm:$0xff] %vm3195, %v3094
      %3224 = vst.msk [vmem:[%s175 + $0xe0] sm:$0xff] %vm3195, %v3095
      %3225 = vst.msk [vmem:[%s175 + $0xe8] sm:$0xff] %vm3195, %v3096
      %3226 = vst.msk [vmem:[%s175 + $0xf0] sm:$0xff] %vm3195, %v3097
      %3227 = vst.msk [vmem:[%s175 + $0xf8] sm:$0xff] %vm3195, %v3098
      %3228 = vst.msk [vmem:[%s175 + $0x100] sm:$0xff] %vm3195, %v3099
      %3229 = vst.msk [vmem:[%s175 + $0x108] sm:$0xff] %vm3195, %v3100
      %3230 = vst.msk [vmem:[%s175 + $0x110] sm:$0xff] %vm3195, %v3101
      %3231 = vst.msk [vmem:[%s175 + $0x118] sm:$0xff] %vm3195, %v3102
      %3232 = vst.msk [vmem:[%s175 + $0x120] sm:$0xff] %vm3195, %v3103
      %3233 = vst.msk [vmem:[%s175 + $0x128] sm:$0xff] %vm3195, %v3104
      %3234 = vst.msk [vmem:[%s175 + $0x130] sm:$0xff] %vm3195, %v3105
      %3235 = vst.msk [vmem:[%s175 + $0x138] sm:$0xff] %vm3195, %v3106
      %3236 = vst.msk [vmem:[%s175 + $0x140] sm:$0xff] %vm3195, %v3107
      %3237 = vst.msk [vmem:[%s175 + $0x148] sm:$0xff] %vm3195, %v3108
      %3238 = vst.msk [vmem:[%s175 + $0x150] sm:$0xff] %vm3195, %v3109
      %3239 = vst.msk [vmem:[%s175 + $0x158] sm:$0xff] %vm3195, %v3110
      %3240 = vst.msk [vmem:[%s175 + $0x160] sm:$0xff] %vm3195, %v3111
      %3241 = vst.msk [vmem:[%s175 + $0x168] sm:$0xff] %vm3195, %v3112
      %3242 = vst.msk [vmem:[%s175 + $0x170] sm:$0xff] %vm3195, %v3113
      %3243 = vst.msk [vmem:[%s175 + $0x178] sm:$0xff] %vm3195, %v3114
      %3244 = vst.msk [vmem:[%s175 + $0x180] sm:$0xff] %vm3195, %v3115
      %3245 = vst.msk [vmem:[%s175 + $0x188] sm:$0xff] %vm3195, %v3116
      %3246 = vst.msk [vmem:[%s175 + $0x190] sm:$0xff] %vm3195, %v3117
      %3247 = vst.msk [vmem:[%s175 + $0x198] sm:$0xff] %vm3195, %v3118
      %3248 = vst.msk [vmem:[%s175 + $0x1a0] sm:$0xff] %vm3195, %v3119
      %3249 = vst.msk [vmem:[%s175 + $0x1a8] sm:$0xff] %vm3195, %v3120
      %3250 = vst.msk [vmem:[%s175 + $0x1b0] sm:$0xff] %vm3195, %v3121
      %3251 = vst.msk [vmem:[%s175 + $0x1b8] sm:$0xff] %vm3195, %v3122
      %3252 = vst.msk [vmem:[%s175 + $0x1c0] sm:$0xff] %vm3195, %v3123
      %3253 = vst.msk [vmem:[%s175 + $0x1c8] sm:$0xff] %vm3195, %v3124
      %3254 = vst.msk [vmem:[%s175 + $0x1d0] sm:$0xff] %vm3195, %v3125
      %3255 = vst.msk [vmem:[%s175 + $0x1d8] sm:$0xff] %vm3195, %v3126
      %3256 = vst.msk [vmem:[%s175 + $0x1e0] sm:$0xff] %vm3195, %v3127
      %3257 = vst.msk [vmem:[%s175 + $0x1e8] sm:$0xff] %vm3195, %v3128
      %3258 = vst.msk [vmem:[%s175 + $0x1f0] sm:$0xff] %vm3195, %v3129
      %3259 = vst.msk [vmem:[%s175 + $0x1f8] sm:$0xff] %vm3195, %v3130
      %3260 = vst.msk [vmem:[%s175 + $0x200] sm:$0xff] %vm3195, %v3131
      %3261 = vst.msk [vmem:[%s175 + $0x208] sm:$0xff] %vm3195, %v3132
      %3262 = vst.msk [vmem:[%s175 + $0x210] sm:$0xff] %vm3195, %v3133
      %3263 = vst.msk [vmem:[%s175 + $0x218] sm:$0xff] %vm3195, %v3134
      %3264 = vst.msk [vmem:[%s175 + $0x220] sm:$0xff] %vm3195, %v3135
      %3265 = vst.msk [vmem:[%s175 + $0x228] sm:$0xff] %vm3195, %v3136
      %3266 = vst.msk [vmem:[%s175 + $0x230] sm:$0xff] %vm3195, %v3137
      %3267 = vst.msk [vmem:[%s175 + $0x238] sm:$0xff] %vm3195, %v3138
      %3268 = vst.msk [vmem:[%s175 + $0x240] sm:$0xff] %vm3195, %v3139
      %3269 = vst.msk [vmem:[%s175 + $0x248] sm:$0xff] %vm3195, %v3140
      %3270 = vst.msk [vmem:[%s175 + $0x250] sm:$0xff] %vm3195, %v3141
      %3271 = vst.msk [vmem:[%s175 + $0x258] sm:$0xff] %vm3195, %v3142
      %3272 = vst.msk [vmem:[%s175 + $0x260] sm:$0xff] %vm3195, %v3143
      %3273 = vst.msk [vmem:[%s175 + $0x268] sm:$0xff] %vm3195, %v3144
      %3274 = vst.msk [vmem:[%s175 + $0x270] sm:$0xff] %vm3195, %v3145
      %3275 = vst.msk [vmem:[%s175 + $0x278] sm:$0xff] %vm3195, %v3146
      %3276 = vst.msk [vmem:[%s175 + $0x280] sm:$0xff] %vm3195, %v3147
      %3277 = vst.msk [vmem:[%s175 + $0x288] sm:$0xff] %vm3195, %v3148
      %3278 = vst.msk [vmem:[%s175 + $0x290] sm:$0xff] %vm3195, %v3149
      %3279 = vst.msk [vmem:[%s175 + $0x298] sm:$0xff] %vm3195, %v3150
      %3280 = vst.msk [vmem:[%s175 + $0x2a0] sm:$0xff] %vm3195, %v3151
      %3281 = vst.msk [vmem:[%s175 + $0x2a8] sm:$0xff] %vm3195, %v3152
      %3282 = vst.msk [vmem:[%s175 + $0x2b0] sm:$0xff] %vm3195, %v3153
      %3283 = vst.msk [vmem:[%s175 + $0x2b8] sm:$0xff] %vm3195, %v3154
      %3284 = vst.msk [vmem:[%s175 + $0x2c0] sm:$0xff] %vm3195, %v3155
      %3285 = vst.msk [vmem:[%s175 + $0x2c8] sm:$0xff] %vm3195, %v3156
      %3286 = vst.msk [vmem:[%s175 + $0x2d0] sm:$0xff] %vm3195, %v3157
      %3287 = vst.msk [vmem:[%s175 + $0x2d8] sm:$0xff] %vm3195, %v3158
      %3288 = vst.msk [vmem:[%s175 + $0x2e0] sm:$0xff] %vm3195, %v3159
      %3289 = vst.msk [vmem:[%s175 + $0x2e8] sm:$0xff] %vm3195, %v3160
      %3290 = vst.msk [vmem:[%s175 + $0x2f0] sm:$0xff] %vm3195, %v3161
      %3291 = vst.msk [vmem:[%s175 + $0x2f8] sm:$0xff] %vm3195, %v3162
      %3292 = vst.msk [vmem:[%s175 + $0x300] sm:$0xff] %vm3195, %v3163
      %3293 = vst.msk [vmem:[%s175 + $0x308] sm:$0xff] %vm3195, %v3164
      %3294 = vst.msk [vmem:[%s175 + $0x310] sm:$0xff] %vm3195, %v3165
      %3295 = vst.msk [vmem:[%s175 + $0x318] sm:$0xff] %vm3195, %v3166
      %3296 = vst.msk [vmem:[%s175 + $0x320] sm:$0xff] %vm3195, %v3167
      %3297 = vst.msk [vmem:[%s175 + $0x328] sm:$0xff] %vm3195, %v3168
      %3298 = vst.msk [vmem:[%s175 + $0x330] sm:$0xff] %vm3195, %v3169
      %3299 = vst.msk [vmem:[%s175 + $0x338] sm:$0xff] %vm3195, %v3170
      %3300 = vst.msk [vmem:[%s175 + $0x340] sm:$0xff] %vm3195, %v3171
      %3301 = vst.msk [vmem:[%s175 + $0x348] sm:$0xff] %vm3195, %v3172
      %3302 = vst.msk [vmem:[%s175 + $0x350] sm:$0xff] %vm3195, %v3173
      %3303 = vst.msk [vmem:[%s175 + $0x358] sm:$0xff] %vm3195, %v3174
      %3304 = vst.msk [vmem:[%s175 + $0x360] sm:$0xff] %vm3195, %v3175
      %3305 = vst.msk [vmem:[%s175 + $0x368] sm:$0xff] %vm3195, %v3176
      %3306 = vst.msk [vmem:[%s175 + $0x370] sm:$0xff] %vm3195, %v3177
      %3307 = vst.msk [vmem:[%s175 + $0x378] sm:$0xff] %vm3195, %v3178
      %3308 = vst.msk [vmem:[%s175 + $0x380] sm:$0xff] %vm3195, %v3179
      %3309 = vst.msk [vmem:[%s175 + $0x388] sm:$0xff] %vm3195, %v3180
      %3310 = vst.msk [vmem:[%s175 + $0x390] sm:$0xff] %vm3195, %v3181
      %3311 = vst.msk [vmem:[%s175 + $0x398] sm:$0xff] %vm3195, %v3182
      %3312 = vst.msk [vmem:[%s175 + $0x3a0] sm:$0xff] %vm3195, %v3183
      %3313 = vst.msk [vmem:[%s175 + $0x3a8] sm:$0xff] %vm3195, %v3184
      %3314 = vst.msk [vmem:[%s175 + $0x3b0] sm:$0xff] %vm3195, %v3185
      %3315 = vst.msk [vmem:[%s175 + $0x3b8] sm:$0xff] %vm3195, %v3186
      %3316 = vst.msk [vmem:[%s175 + $0x3c0] sm:$0xff] %vm3195, %v3187
      %3317 = vst.msk [vmem:[%s175 + $0x3c8] sm:$0xff] %vm3195, %v3188
      %3318 = vst.msk [vmem:[%s175 + $0x3d0] sm:$0xff] %vm3195, %v3189
      %3319 = vst.msk [vmem:[%s175 + $0x3d8] sm:$0xff] %vm3195, %v3190
      %3320 = vst.msk [vmem:[%s175 + $0x3e0] sm:$0xff] %vm3195, %v3191
      %3321 = vst.msk [vmem:[%s175 + $0x3e8] sm:$0xff] %vm3195, %v3192
      %3322 = vst.msk [vmem:[%s175 + $0x3f0] sm:$0xff] %vm3195, %v3193
      %3323 = vst.msk [vmem:[%s175 + $0x3f8] sm:$0xff] %vm3195, %v3194
      %s3324 = smul.u32 128, %s14
      %p3325 = scmp.lt.s32.totalorder %s3324, 255
      %s3326 = scalar_select %p3325, %s3324, 255
      %s3327 = smul.addr %s3326, 8
      %s3328 = scalar_lea.vmem %s3, %s3327
      // Predicated region
      $region33: #{_lambda_.47} parent=31 // pred_check
        %p3329 = pneg %p100
      $region34: #{_lambda_.47} parent=31 // pred_check_branch
        %3331 = sbr.rel (%p3329) target = $region36
      $region35: #{_lambda_.47} parent=31 // pred_region
        %s3332 = smul.u32 128, %s14
      $region36: #{_lambda_.47} parent=31 // pred_fallthru
        _
    $region32: #{_lambda_.47} parent=5 // pred_fallthru
      _
    %p3333 = scmp.le.s32.totalorder 2, %s9
    // Predicated region
    $region37: #{_lambda_.47} parent=5 // pred_check
      %p3334 = pneg %p3333
    $region38: #{_lambda_.47} parent=5 // pred_check_branch
      %3336 = sbr.rel (%p3334) target = $region40
    $region39: #{_lambda_.47} parent=5 // pred_region
      %s3337 = ssub.s32 %s9, 2
      // Predicated region
      $region41: #{_lambda_.47} parent=39 // pred_check
        %p3338 = pneg %p106
      $region42: #{_lambda_.47} parent=39 // pred_check_branch
        %3340 = sbr.rel (%p3338) target = $region44
      $region43: #{_lambda_.47} parent=39 // pred_region
        %s3341 = smul.u32 128, %s15
        %p3342 = scmp.lt.s32.totalorder %s3341, 255
        %s3343 = scalar_select %p3342, %s3341, 255
        %s3344 = smul.addr %s3343, 8
        %s3345 = scalar_lea.vmem %s3, %s3344
      $region44: #{_lambda_.47} parent=39 // pred_fallthru
        _
    $region40: #{_lambda_.47} parent=5 // pred_fallthru
      _
  $region6: #{_lambda_.47} parent=0 // loop_footer
    %s13 = sadd.s32 1, %s9
  $region7: #{_lambda_.47} parent=0 // loop_footer_branch
    %8 = sbr.rel target = $region3
  $region8: #{_lambda_.47} parent=0 // loop_exit
    _

</llo_original>
